<compile_context>
chip_gen: v6e
topology: v6e:2x2x1
jax: 0.10.0
libtpu: 0.0.40
codegen_flags: <defaults>
</compile_context>

<pallas_src>
import numpy as np
import jax
import jax.numpy as jnp
from jax.experimental import pallas as pl
from jax.experimental.pallas import tpu as pltpu

# ----------------------------- configuration ---------------------------------
SZ_B   = 2          # batch
IN_CH  = 4          # in_channels (d)
SEQ    = 8          # seq_len (T)
H_SP   = 16         # spatial H
W_SP   = 16         # spatial W
D_MODEL = 32        # d_model (1x1 conv output channels)
N_HEAD = 4          # n_head
D_K    = 8          # d_k
HDK    = N_HEAD * D_K            # 32
ATT_DIM = N_HEAD * D_MODEL       # 128  (concat of per-head outputs, each d_model wide)
MLP_DIMS = [ATT_DIM, 32]         # mlp[0] must equal n_head*d_model for this module
M_OUT  = MLP_DIMS[-1]
EPS    = 1e-5
TEMP   = float(np.power(D_K, 0.5))
assert MLP_DIMS[0] == ATT_DIM

# flat-layout widths
TC  = SEQ * IN_CH        # 32   flattened (time*channel) input width
TD  = SEQ * D_MODEL      # 256  flattened (time*d_model) width
TH  = SEQ * N_HEAD       # 32   (time, head) score width
BIG = SEQ * ATT_DIM      # 1024 (time, head, d_model) expansion width

# packA (f32, width TD): block-diag 1x1 conv (+ folded in_norm affine), block-diag fc1_k
A_WC0, A_WC1 = 0, TC
A_WK0, A_WK1 = TC, TC + TD
# packS (bf16 structural, width TD): innorm full-width averaging, query time-tiling
S_AM0, S_AM1 = 0, TD
S_TQ0, S_TQ1 = TD, TD + HDK
# packB (f32, width 32): folded query, folded MLP, score segment-sum, in_norm avg, head-sum
B_WQ0, B_WQ1 = 0, TD
B_W10, B_W11 = B_WQ1, B_WQ1 + ATT_DIM
B_SS0, B_SS1 = B_W11, B_W11 + TD
B_MI0, B_MI1 = B_SS1, B_SS1 + TC
B_OH0, B_OH1 = B_MI1, B_MI1 + TH
# packC (bf16 structural, width BIG): attention-output expansion matrices
C_EB0, C_EB1 = 0, TH
C_TB0, C_TB1 = TH, TH + TD


def _layernorm(x, g, b):
    mu = jnp.mean(x, axis=-1, keepdims=True)
    var = jnp.mean((x - mu) ** 2, axis=-1, keepdims=True)
    return (x - mu) * jax.lax.rsqrt(var + EPS) * g + b


# ------------------------------- the kernel ----------------------------------
def ltae_kernel(x_ref, pa_ref, ps_ref, pb_ref, pc_ref, vec_ref, o_ref):
    f32 = jnp.float32
    x = x_ref[...]                                 # (TN, TC) = pixels x (time*channels)
    dot = lambda a, b: jnp.dot(a, b, preferred_element_type=f32)

    # ----- packed parameter slices (static, tile-aligned row offsets) -----
    wc      = pa_ref[A_WC0:A_WC1, :]               # (TC, TD)  block-diag conv (+in_norm affine)
    wkbd    = pa_ref[A_WK0:A_WK1, :]               # (TD, TD)  block-diag fc1_k
    am_full = ps_ref[S_AM0:S_AM1, :].astype(f32)   # (TD, TD)  per-timestep mean, full width
    tile_q  = ps_ref[S_TQ0:S_TQ1, :].astype(f32)   # (HDK, TD) query tiling over time
    wq   = pb_ref[B_WQ0:B_WQ1, :]                  # (TD, HDK) mean_t + fc1_q + BN + fc2 (+1/temp)
    wm1  = pb_ref[B_W10:B_W11, :]                  # (ATT_DIM, M_OUT) MLP Linear + BN folded
    sseg = pb_ref[B_SS0:B_SS1, :]                  # (TD, TH)  per-(t,head) segment sum
    m_in = pb_ref[B_MI0:B_MI1, :]                  # (TC, TC)  in_norm block-averaging
    ohd  = pb_ref[B_OH0:B_OH1, :]                  # (TH, TH)  per-head softmax denominator sum
    e_big = pc_ref[C_EB0:C_EB1, :].astype(f32)     # (TH, BIG) attn -> (t, head, d_model) expand
    t_big = pc_ref[C_TB0:C_TB1, :].astype(f32)     # (TD, BIG) v    -> (t, head, d_model) tile
    bc  = vec_ref[0, :]                            # (TD,) conv bias (+ in_norm beta folded)
    g_m = vec_ref[1, :]                            # (TD,) innorm gamma (tiled over T)
    b_m = vec_ref[2, :]                            # (TD,) innorm beta  (tiled over T)
    bk  = vec_ref[3, :]                            # (TD,) fc1_k bias   (tiled over T)
    bq  = vec_ref[4, 0:HDK]                        # (HDK,) folded query bias (1/temp folded)
    bm1 = vec_ref[5, 0:M_OUT]                      # (M_OUT,) folded MLP bias
    o_g = vec_ref[6, 0:M_OUT]                      # (M_OUT,) out_norm gamma
    o_b = vec_ref[7, 0:M_OUT]                      # (M_OUT,) out_norm beta

    # ----- in_norm: LayerNorm over C per timestep (stats via block-avg matmul) -----
    mu   = dot(x, m_in)                            # per-timestep mean, already broadcast
    ex2  = dot(x * x, m_in)
    xhat = (x - mu) * jax.lax.rsqrt(ex2 - mu * mu + EPS)

    # ----- inconv (1x1 Conv1d == per-timestep Linear), block-diagonal -----
    y = dot(xhat, wc) + bc                         # (TN, TD)

    # ----- innorm: LayerNorm over d_model per timestep (full-width stats, no expand) -----
    mu2 = dot(y, am_full)                          # (TN, TD)  per-timestep mean, broadcast
    ey2 = dot(y * y, am_full)
    v = (y - mu2) * jax.lax.rsqrt(ey2 - mu2 * mu2 + EPS) * g_m + b_m   # attention values

    # ----- keys (block-diag fc1_k) and master query (mean_t -> fc1_q -> BN -> fc2, folded) ---
    k = dot(v, wkbd) + bk                          # (TN, TD)   [n, t*HDK + h*D_K + dk]
    q = dot(v, wq) + bq                            # (TN, HDK)  [n, h*D_K + dk], /temp folded
    q_rep = dot(q, tile_q)                         # (TN, TD)   q tiled over time (no concat)

    # ----- all-head scores in one pass (time-major): scores[n, t*N_HEAD + h] -----
    scores = dot(q_rep * k, sseg)                  # (TN, TH)

    # ----- one batched softmax over time for all heads -----
    # (global row max is a valid, numerically safe shift for every head)
    m = jnp.max(scores, axis=-1, keepdims=True)
    e = jnp.exp(scores - m)
    denom = dot(e, ohd)                            # per-head sum broadcast back over time
    r = pl.reciprocal(denom, approx=True)          # EUP slot
    r = r * (2.0 - denom * r)                      # one Newton step -> ~f32 accuracy
    attn = e * r                                   # (TN, TH)
    # TODO(synk): attention dropout (p=0.1) and output dropout (p=0.2) skipped (eval identity).

    # ----- attention output via wide expansions + lane-aligned tree sum -----
    # P[n, t*ATT_DIM + h*D_MODEL + m] = attn[n, t*N_HEAD+h] * v[n, t*D_MODEL+m]
    a_big = dot(attn, e_big)                       # (TN, BIG)
    v_big = dot(v, t_big)                          # (TN, BIG)
    p = a_big * v_big                              # VPU
    parts = [p[:, t * ATT_DIM:(t + 1) * ATT_DIM] for t in range(SEQ)]  # 128-lane aligned
    while len(parts) > 1:
        parts = [parts[i] + parts[i + 1] for i in range(0, len(parts), 2)]
    att = parts[0]                                 # (TN, ATT_DIM) = [n, h*D_MODEL + m]

    # ----- MLP (Linear + BN folded) -> ReLU -> out_norm -----
    z = jnp.maximum(dot(att, wm1) + bm1, 0.0)      # (TN, M_OUT)
    mu_o = jnp.mean(z, axis=-1, keepdims=True)
    var_o = jnp.mean((z - mu_o) ** 2, axis=-1, keepdims=True)
    o_ref[...] = (z - mu_o) * jax.lax.rsqrt(var_o + EPS) * o_g + o_b


# ------------------------------- wrapper --------------------------------------
def _pick_tn(n_rows):
    """One grid step on single-TensorCore chips (v5e/v6e); two 'parallel' steps otherwise
    (v7x / megacore) so both TensorCores get work."""
    kind = ""
    try:
        kind = jax.devices()[0].device_kind.lower()
    except Exception:
        pass
    single_tc = any(t in kind for t in ("v5 lite", "v5e", "v5litepod", "v6 lite", "v6e"))
    tn = n_rows if single_tc else n_rows // 2
    if tn <= 0 or tn % 8 != 0 or n_rows % tn != 0:
        tn = n_rows
    return tn


def ltae2d_forward(x, packs):
    """x: (B, C, T, H, W) float32.  Returns (B, M_OUT, H, W)."""
    B, C, T, Hs, Ws = x.shape
    N = B * Hs * Ws
    # pixel-major, lane-dense flat layout (N, T*C)
    xp = jnp.transpose(x, (0, 3, 4, 2, 1)).reshape(N, T * C)

    packA, packS, packB, packC, vecs = packs
    tn = _pick_tn(N)

    in_specs = [
        pl.BlockSpec((tn, T * C), lambda i: (i, 0)),
        pl.BlockSpec(packA.shape, lambda i: (0, 0)),
        pl.BlockSpec(packS.shape, lambda i: (0, 0)),
        pl.BlockSpec(packB.shape, lambda i: (0, 0)),
        pl.BlockSpec(packC.shape, lambda i: (0, 0)),
        pl.BlockSpec(vecs.shape, lambda i: (0, 0)),
    ]

    out = pl.pallas_call(
        ltae_kernel,
        out_shape=jax.ShapeDtypeStruct((N, M_OUT), jnp.float32),
        grid_spec=pltpu.PrefetchScalarGridSpec(
            num_scalar_prefetch=0,
            grid=(N // tn,),
            in_specs=in_specs,
            out_specs=pl.BlockSpec((tn, M_OUT), lambda i: (i, 0)),
        ),
        compiler_params=pltpu.CompilerParams(
            dimension_semantics=("parallel",),
            vmem_limit_bytes=32 * 1024 * 1024),
    )(xp, packA, packS, packB, packC, vecs)

    return out.reshape(B, Hs, Ws, M_OUT).transpose(0, 3, 1, 2)


# ----------------------- deterministic parameter init -------------------------
def init_params(key):
    ks = jax.random.split(key, 24)
    n = lambda k, shape, s=0.1: s * jax.random.normal(k, shape, dtype=jnp.float32)
    P = {}
    # in_norm
    P["in_g"] = 1.0 + n(ks[0], (IN_CH,));           P["in_b"] = n(ks[1], (IN_CH,))
    # inconv (Conv1d weight (D_MODEL, C, 1))
    P["conv_w"] = n(ks[2], (D_MODEL, IN_CH, 1), 0.3); P["conv_b"] = n(ks[3], (D_MODEL,))
    # innorm
    P["m_g"] = 1.0 + n(ks[4], (D_MODEL,));          P["m_b"] = n(ks[5], (D_MODEL,))
    # fc1_q (std = sqrt(2/d_k) as in module init)
    P["wq"] = np.sqrt(2.0 / D_K) * jax.random.normal(ks[6], (HDK, D_MODEL), dtype=jnp.float32)
    P["bq"] = n(ks[7], (HDK,))
    # fc2: BatchNorm1d(HDK) running stats + affine, then Linear(HDK, HDK)
    P["bn2_g"] = 1.0 + n(ks[8], (HDK,));   P["bn2_b"] = n(ks[9], (HDK,))
    P["bn2_rm"] = n(ks[10], (HDK,));       P["bn2_rv"] = 0.5 + jnp.abs(n(ks[11], (HDK,), 0.5))
    P["w2"] = n(ks[12], (HDK, HDK), 0.2);  P["b2"] = n(ks[13], (HDK,))
    # fc1_k
    P["wk"] = np.sqrt(2.0 / D_K) * jax.random.normal(ks[14], (HDK, D_MODEL), dtype=jnp.float32)
    P["bk"] = n(ks[15], (HDK,))
    # MLP: Linear(ATT_DIM, M_OUT), BatchNorm1d(M_OUT)
    P["wm1"] = n(ks[16], (M_OUT, ATT_DIM), 0.1);  P["bm1"] = n(ks[17], (M_OUT,))
    P["bn1_g"] = 1.0 + n(ks[18], (M_OUT,));       P["bn1_b"] = n(ks[19], (M_OUT,))
    P["bn1_rm"] = n(ks[20], (M_OUT,));            P["bn1_rv"] = 0.5 + jnp.abs(n(ks[21], (M_OUT,), 0.5))
    # out_norm
    P["o_g"] = 1.0 + n(ks[22], (M_OUT,));         P["o_b"] = n(ks[23], (M_OUT,))
    return P


def kernel_params(P):
    """Fold eval-mode BatchNorms / affine chains, build flat-layout block-diagonal and
    structural matrices, and pack into 5 slabs (2 f32 weight slabs, 2 bf16 structural slabs,
    1 scale/bias array).  Structural slabs only contain 0/1 and 1/2^k values (bf16-exact)."""
    f = lambda a: np.asarray(a, dtype=np.float32)
    in_g, in_b = f(P["in_g"]), f(P["in_b"])
    conv_w = f(P["conv_w"])[:, :, 0]                  # (D_MODEL, C)
    conv_b = f(P["conv_b"])
    m_g, m_b = f(P["m_g"]), f(P["m_b"])
    wq, bq = f(P["wq"]), f(P["bq"])
    bn2_s = f(P["bn2_g"]) / np.sqrt(f(P["bn2_rv"]) + EPS)
    bn2_t = f(P["bn2_b"]) - f(P["bn2_rm"]) * bn2_s
    w2, b2 = f(P["w2"]), f(P["b2"])
    wk, bk = f(P["wk"]), f(P["bk"])
    wm1, bm1 = f(P["wm1"]), f(P["bm1"])
    bn1_s = f(P["bn1_g"]) / np.sqrt(f(P["bn1_rv"]) + EPS)
    bn1_t = f(P["bn1_b"]) - f(P["bn1_rm"]) * bn1_s
    o_g, o_b = f(P["o_g"]), f(P["o_b"])

    eyeT = np.eye(SEQ, dtype=np.float32)

    # in_norm affine folded into block-diagonal 1x1 conv
    g_in_tile = np.tile(in_g, SEQ)
    b_in_tile = np.tile(in_b, SEQ)
    wc_bd = np.kron(eyeT, conv_w.T)                               # (TC, TD)
    wc_bd2 = g_in_tile[:, None] * wc_bd
    bc2 = b_in_tile @ wc_bd + np.tile(conv_b, SEQ)                # (TD,)

    # LayerNorm statistics matrices (block averaging on the flat layout)
    m_in = np.kron(eyeT, np.full((IN_CH, IN_CH), 1.0 / IN_CH, np.float32))          # (TC, TC)
    am_full = np.kron(eyeT, np.full((D_MODEL, D_MODEL), 1.0 / D_MODEL, np.float32)) # (TD, TD)
    g_m_tile = np.tile(m_g, SEQ)
    b_m_tile = np.tile(m_b, SEQ)

    # fc1_k block-diagonal
    wk_bd = np.kron(eyeT, wk.T)                                   # (TD, TD)
    bk_tile = np.tile(bk, SEQ)                                    # (TD,)

    # query path: temporal mean -> fc1_q -> BN(eval) -> fc2 Linear, all affine -> fold;
    # 1/temperature folded here (keeps structural segment-sum matrix exactly 0/1).
    amean = np.kron(np.full((SEQ, 1), 1.0 / SEQ, np.float32),
                    np.eye(D_MODEL, dtype=np.float32))            # (TD, D_MODEL)
    wq_full = (amean @ ((wq.T * bn2_s[None, :]) @ w2.T)) / TEMP   # (TD, HDK)
    bq_full = ((bq * bn2_s + bn2_t) @ w2.T + b2) / TEMP           # (HDK,)

    # query time-tiling (replaces the in-kernel concat), pure 0/1
    tile_q = np.tile(np.eye(HDK, dtype=np.float32), (1, SEQ))     # (HDK, TD)
    # score segment-sum (time-major output), pure 0/1
    sseg = np.kron(eyeT, np.kron(np.eye(N_HEAD, dtype=np.float32),
                                 np.ones((D_K, 1), np.float32)))  # (TD, TH)
    # per-head softmax denominator (sum over all timesteps of the same head)
    ohd = np.kron(np.ones((SEQ, SEQ), np.float32),
                  np.eye(N_HEAD, dtype=np.float32))               # (TH, TH)

    # attention-output wide expansion matrices, pure 0/1
    e_big = np.kron(eyeT, np.kron(np.eye(N_HEAD, dtype=np.float32),
                                  np.ones((1, D_MODEL), np.float32)))   # (TH, BIG)
    t_big = np.kron(eyeT, np.tile(np.eye(D_MODEL, dtype=np.float32),
                                  (1, N_HEAD)))                          # (TD, BIG)

    # MLP Linear + BN(eval) folded
    wm1_fold = wm1.T * bn1_s[None, :]                             # (ATT_DIM, M_OUT)
    bm1_fold = bm1 * bn1_s + bn1_t                                # (M_OUT,)

    packA = np.concatenate([wc_bd2, wk_bd], axis=0).astype(np.float32)          # (288, 256) f32
    packS = np.concatenate([am_full, tile_q], axis=0).astype(np.float32)        # (288, 256) -> bf16
    packB = np.concatenate([wq_full, wm1_fold, sseg, m_in, ohd],
                           axis=0).astype(np.float32)                           # (704, 32) f32
    packC = np.concatenate([e_big, t_big], axis=0).astype(np.float32)           # (288, 1024) -> bf16
    vecs = np.zeros((8, TD), np.float32)
    vecs[0] = bc2
    vecs[1] = g_m_tile
    vecs[2] = b_m_tile
    vecs[3] = bk_tile
    vecs[4, :HDK] = bq_full
    vecs[5, :M_OUT] = bm1_fold
    vecs[6, :M_OUT] = o_g
    vecs[7, :M_OUT] = o_b

    return (jnp.asarray(packA),
            jnp.asarray(packS, dtype=jnp.bfloat16),
            jnp.asarray(packB),
            jnp.asarray(packC, dtype=jnp.bfloat16),
            jnp.asarray(vecs))


# ------------------------- pure-JAX reference (eval) --------------------------
def ltae2d_reference(x, P):
    B, C, T, Hs, Ws = x.shape
    N = B * Hs * Ws
    out = jnp.transpose(x, (0, 3, 4, 2, 1)).reshape(N, T, C)
    out = _layernorm(out, P["in_g"], P["in_b"])
    out = jnp.einsum("ntc,mc->ntm", out, P["conv_w"][:, :, 0]) + P["conv_b"]
    out = _layernorm(out, P["m_g"], P["m_b"])
    # MultiHeadAttention
    q = jnp.einsum("ntm,km->ntk", out, P["wq"]) + P["bq"]
    q = q.reshape(N, T, N_HEAD, D_K).mean(axis=1)
    qf = q.reshape(N, HDK)
    qf = (qf - P["bn2_rm"]) / jnp.sqrt(P["bn2_rv"] + EPS) * P["bn2_g"] + P["bn2_b"]
    qf = qf @ P["w2"].T + P["b2"]
    q = qf.reshape(N, N_HEAD, D_K).transpose(1, 0, 2).reshape(N_HEAD * N, D_K)
    k = jnp.einsum("ntm,km->ntk", out, P["wk"]) + P["bk"]
    k = k.reshape(N, T, N_HEAD, D_K).transpose(2, 0, 1, 3).reshape(N_HEAD * N, T, D_K)
    v = jnp.tile(out, (N_HEAD, 1, 1))
    attn = jnp.einsum("bk,btk->bt", q, k) / TEMP
    attn = jax.nn.softmax(attn, axis=-1)
    o = jnp.einsum("bt,btm->bm", attn, v)
    o = o.reshape(N_HEAD, N, D_MODEL).transpose(1, 0, 2).reshape(N, N_HEAD * D_MODEL)
    z = o @ P["wm1"].T + P["bm1"]
    z = (z - P["bn1_rm"]) / jnp.sqrt(P["bn1_rv"] + EPS) * P["bn1_g"] + P["bn1_b"]
    z = jnp.maximum(z, 0.0)
    z = _layernorm(z, P["o_g"], P["o_b"])
    return z.reshape(B, Hs, Ws, M_OUT).transpose(0, 3, 1, 2)


# ---------------------------------- main --------------------------------------
if __name__ == "__main__":
    key = jax.random.PRNGKey(0)
    kx, kp = jax.random.split(key)
    x = jax.random.normal(kx, (SZ_B, IN_CH, SEQ, H_SP, W_SP), dtype=jnp.float32)
    P = init_params(kp)
    packs = kernel_params(P)

    out = ltae2d_forward(x, packs)
    out = jax.block_until_ready(out)

    ref = jax.block_until_ready(ltae2d_reference(x, P))
    # approx reciprocal (+Newton step), refolded affines (incl. 1/temp into the query weights)
    # and the reordered LayerNorm statistics slightly perturb f32 rounding.
    np.testing.assert_allclose(np.asarray(out), np.asarray(ref), rtol=3e-4, atol=3e-4)
    assert out.shape == (SZ_B, M_OUT, H_SP, W_SP)
    print("KERNEL_OK")
</pallas_src>

<mosaic_0001>
module attributes {stable_mosaic.version = 11 : i64} {
  func.func @ltae_kernel(%arg0: i32, %arg1: memref<256x32xf32, #tpu.memory_space<vmem>>, %arg2: memref<288x256xf32, #tpu.memory_space<vmem>>, %arg3: memref<288x256xbf16, #tpu.memory_space<vmem>>, %arg4: memref<704x32xf32, #tpu.memory_space<vmem>>, %arg5: memref<288x1024xbf16, #tpu.memory_space<vmem>>, %arg6: memref<8x256xf32, #tpu.memory_space<vmem>>, %arg7: memref<256x32xf32, #tpu.memory_space<vmem>>) attributes {dimension_semantics = [#tpu.dimension_semantics<parallel>], iteration_bounds = array<i64: 2>, scalar_prefetch = 0 : i64, scratch_operands = 0 : i64, tpu.core_type = #tpu.core_type<tc>, window_params = [{transform_indices = @transform_0, window_bounds = array<i64: 256, 32>}, {pipeline_mode = #tpu.pipeline_mode<synchronous>, transform_indices = @transform_1, window_bounds = array<i64: 288, 256>}, {pipeline_mode = #tpu.pipeline_mode<synchronous>, transform_indices = @transform_2, window_bounds = array<i64: 288, 256>}, {pipeline_mode = #tpu.pipeline_mode<synchronous>, transform_indices = @transform_3, window_bounds = array<i64: 704, 32>}, {pipeline_mode = #tpu.pipeline_mode<synchronous>, transform_indices = @transform_4, window_bounds = array<i64: 288, 1024>}, {pipeline_mode = #tpu.pipeline_mode<synchronous>, transform_indices = @transform_5, window_bounds = array<i64: 8, 256>}, {transform_indices = @transform_6, window_bounds = array<i64: 256, 32>}]} {
    %c0 = arith.constant 0 : index
    %c0_0 = arith.constant 0 : index
    %0 = vector.load %arg1[%c0, %c0_0] : memref<256x32xf32, #tpu.memory_space<vmem>>, vector<256x32xf32>
    %c0_1 = arith.constant 0 : index
    %c0_2 = arith.constant 0 : index
    %1 = vector.load %arg2[%c0_1, %c0_2] : memref<288x256xf32, #tpu.memory_space<vmem>>, vector<32x256xf32>
    %c32 = arith.constant 32 : index
    %c0_3 = arith.constant 0 : index
    %2 = vector.load %arg2[%c32, %c0_3] : memref<288x256xf32, #tpu.memory_space<vmem>>, vector<256x256xf32>
    %c0_4 = arith.constant 0 : index
    %c0_5 = arith.constant 0 : index
    %3 = vector.load %arg3[%c0_4, %c0_5] : memref<288x256xbf16, #tpu.memory_space<vmem>>, vector<256x256xbf16>
    %4 = arith.extf %3 : vector<256x256xbf16> to vector<256x256xf32>
    %c256 = arith.constant 256 : index
    %c0_6 = arith.constant 0 : index
    %5 = vector.load %arg3[%c256, %c0_6] : memref<288x256xbf16, #tpu.memory_space<vmem>>, vector<32x256xbf16>
    %6 = arith.extf %5 : vector<32x256xbf16> to vector<32x256xf32>
    %c0_7 = arith.constant 0 : index
    %c0_8 = arith.constant 0 : index
    %7 = vector.load %arg4[%c0_7, %c0_8] : memref<704x32xf32, #tpu.memory_space<vmem>>, vector<256x32xf32>
    %c256_9 = arith.constant 256 : index
    %c0_10 = arith.constant 0 : index
    %8 = vector.load %arg4[%c256_9, %c0_10] : memref<704x32xf32, #tpu.memory_space<vmem>>, vector<128x32xf32>
    %c384 = arith.constant 384 : index
    %c0_11 = arith.constant 0 : index
    %9 = vector.load %arg4[%c384, %c0_11] : memref<704x32xf32, #tpu.memory_space<vmem>>, vector<256x32xf32>
    %c640 = arith.constant 640 : index
    %c0_12 = arith.constant 0 : index
    %10 = vector.load %arg4[%c640, %c0_12] : memref<704x32xf32, #tpu.memory_space<vmem>>, vector<32x32xf32>
    %c672 = arith.constant 672 : index
    %c0_13 = arith.constant 0 : index
    %11 = vector.load %arg4[%c672, %c0_13] : memref<704x32xf32, #tpu.memory_space<vmem>>, vector<32x32xf32>
    %c0_14 = arith.constant 0 : index
    %c0_15 = arith.constant 0 : index
    %12 = vector.load %arg5[%c0_14, %c0_15] : memref<288x1024xbf16, #tpu.memory_space<vmem>>, vector<32x1024xbf16>
    %13 = arith.extf %12 : vector<32x1024xbf16> to vector<32x1024xf32>
    %c32_16 = arith.constant 32 : index
    %c0_17 = arith.constant 0 : index
    %14 = vector.load %arg5[%c32_16, %c0_17] : memref<288x1024xbf16, #tpu.memory_space<vmem>>, vector<256x1024xbf16>
    %15 = arith.extf %14 : vector<256x1024xbf16> to vector<256x1024xf32>
    %c0_18 = arith.constant 0 : index
    %c0_19 = arith.constant 0 : index
    %16 = vector.load %arg6[%c0_18, %c0_19] : memref<8x256xf32, #tpu.memory_space<vmem>>, vector<1x256xf32>
    %17 = vector.shape_cast %16 : vector<1x256xf32> to vector<256xf32>
    %c1 = arith.constant 1 : index
    %c0_20 = arith.constant 0 : index
    %18 = vector.load %arg6[%c1, %c0_20] : memref<8x256xf32, #tpu.memory_space<vmem>>, vector<1x256xf32>
    %19 = vector.shape_cast %18 : vector<1x256xf32> to vector<256xf32>
    %c2 = arith.constant 2 : index
    %c0_21 = arith.constant 0 : index
    %20 = vector.load %arg6[%c2, %c0_21] : memref<8x256xf32, #tpu.memory_space<vmem>>, vector<1x256xf32>
    %21 = vector.shape_cast %20 : vector<1x256xf32> to vector<256xf32>
    %c3 = arith.constant 3 : index
    %c0_22 = arith.constant 0 : index
    %22 = vector.load %arg6[%c3, %c0_22] : memref<8x256xf32, #tpu.memory_space<vmem>>, vector<1x256xf32>
    %23 = vector.shape_cast %22 : vector<1x256xf32> to vector<256xf32>
    %c4 = arith.constant 4 : index
    %c0_23 = arith.constant 0 : index
    %24 = vector.load %arg6[%c4, %c0_23] : memref<8x256xf32, #tpu.memory_space<vmem>>, vector<1x32xf32>
    %25 = vector.shape_cast %24 : vector<1x32xf32> to vector<32xf32>
    %c5 = arith.constant 5 : index
    %c0_24 = arith.constant 0 : index
    %26 = vector.load %arg6[%c5, %c0_24] : memref<8x256xf32, #tpu.memory_space<vmem>>, vector<1x32xf32>
    %27 = vector.shape_cast %26 : vector<1x32xf32> to vector<32xf32>
    %c6 = arith.constant 6 : index
    %c0_25 = arith.constant 0 : index
    %28 = vector.load %arg6[%c6, %c0_25] : memref<8x256xf32, #tpu.memory_space<vmem>>, vector<1x32xf32>
    %29 = vector.shape_cast %28 : vector<1x32xf32> to vector<32xf32>
    %c7 = arith.constant 7 : index
    %c0_26 = arith.constant 0 : index
    %30 = vector.load %arg6[%c7, %c0_26] : memref<8x256xf32, #tpu.memory_space<vmem>>, vector<1x32xf32>
    %31 = vector.shape_cast %30 : vector<1x32xf32> to vector<32xf32>
    %cst = arith.constant dense<0.000000e+00> : vector<256x32xf32>
    %32 = tpu.matmul %0, %10, %cst {dimension_numbers = #tpu.dot_dimension_numbers<[1], [0], [0], [1], [0, 0, 1, 1], [], []>} : vector<256x32xf32>, vector<32x32xf32>, vector<256x32xf32> -> vector<256x32xf32>
    %33 = arith.mulf %0, %0 : vector<256x32xf32>
    %cst_27 = arith.constant dense<0.000000e+00> : vector<256x32xf32>
    %34 = tpu.matmul %33, %10, %cst_27 {dimension_numbers = #tpu.dot_dimension_numbers<[1], [0], [0], [1], [0, 0, 1, 1], [], []>} : vector<256x32xf32>, vector<32x32xf32>, vector<256x32xf32> -> vector<256x32xf32>
    %35 = arith.subf %0, %32 : vector<256x32xf32>
    %36 = arith.mulf %32, %32 : vector<256x32xf32>
    %37 = arith.subf %34, %36 : vector<256x32xf32>
    %cst_28 = arith.constant 9.99999974E-6 : f32
    %38 = vector.broadcast %cst_28 : f32 to vector<256x32xf32>
    %39 = arith.addf %37, %38 : vector<256x32xf32>
    %40 = math.rsqrt %39 : vector<256x32xf32>
    %41 = arith.mulf %35, %40 : vector<256x32xf32>
    %cst_29 = arith.constant dense<0.000000e+00> : vector<256x256xf32>
    %42 = tpu.matmul %41, %1, %cst_29 {dimension_numbers = #tpu.dot_dimension_numbers<[1], [0], [0], [1], [0, 0, 1, 1], [], []>} : vector<256x32xf32>, vector<32x256xf32>, vector<256x256xf32> -> vector<256x256xf32>
    %43 = vector.shape_cast %17 : vector<256xf32> to vector<1x256xf32>
    %44 = vector.broadcast %43 : vector<1x256xf32> to vector<256x256xf32>
    %45 = arith.addf %42, %44 : vector<256x256xf32>
    %cst_30 = arith.constant dense<0.000000e+00> : vector<256x256xf32>
    %46 = tpu.matmul %45, %4, %cst_30 {dimension_numbers = #tpu.dot_dimension_numbers<[1], [0], [0], [1], [0, 0, 1, 1], [], []>} : vector<256x256xf32>, vector<256x256xf32>, vector<256x256xf32> -> vector<256x256xf32>
    %47 = arith.mulf %45, %45 : vector<256x256xf32>
    %cst_31 = arith.constant dense<0.000000e+00> : vector<256x256xf32>
    %48 = tpu.matmul %47, %4, %cst_31 {dimension_numbers = #tpu.dot_dimension_numbers<[1], [0], [0], [1], [0, 0, 1, 1], [], []>} : vector<256x256xf32>, vector<256x256xf32>, vector<256x256xf32> -> vector<256x256xf32>
    %49 = arith.subf %45, %46 : vector<256x256xf32>
    %50 = arith.mulf %46, %46 : vector<256x256xf32>
    %51 = arith.subf %48, %50 : vector<256x256xf32>
    %cst_32 = arith.constant 9.99999974E-6 : f32
    %52 = vector.broadcast %cst_32 : f32 to vector<256x256xf32>
    %53 = arith.addf %51, %52 : vector<256x256xf32>
    %54 = math.rsqrt %53 : vector<256x256xf32>
    %55 = arith.mulf %49, %54 : vector<256x256xf32>
    %56 = vector.shape_cast %19 : vector<256xf32> to vector<1x256xf32>
    %57 = vector.broadcast %56 : vector<1x256xf32> to vector<256x256xf32>
    %58 = arith.mulf %55, %57 : vector<256x256xf32>
    %59 = vector.shape_cast %21 : vector<256xf32> to vector<1x256xf32>
    %60 = vector.broadcast %59 : vector<1x256xf32> to vector<256x256xf32>
    %61 = arith.addf %58, %60 : vector<256x256xf32>
    %cst_33 = arith.constant dense<0.000000e+00> : vector<256x256xf32>
    %62 = tpu.matmul %61, %2, %cst_33 {dimension_numbers = #tpu.dot_dimension_numbers<[1], [0], [0], [1], [0, 0, 1, 1], [], []>} : vector<256x256xf32>, vector<256x256xf32>, vector<256x256xf32> -> vector<256x256xf32>
    %63 = vector.shape_cast %23 : vector<256xf32> to vector<1x256xf32>
    %64 = vector.broadcast %63 : vector<1x256xf32> to vector<256x256xf32>
    %65 = arith.addf %62, %64 : vector<256x256xf32>
    %cst_34 = arith.constant dense<0.000000e+00> : vector<256x32xf32>
    %66 = tpu.matmul %61, %7, %cst_34 {dimension_numbers = #tpu.dot_dimension_numbers<[1], [0], [0], [1], [0, 0, 1, 1], [], []>} : vector<256x256xf32>, vector<256x32xf32>, vector<256x32xf32> -> vector<256x32xf32>
    %67 = vector.shape_cast %25 : vector<32xf32> to vector<1x32xf32>
    %68 = vector.broadcast %67 : vector<1x32xf32> to vector<256x32xf32>
    %69 = arith.addf %66, %68 : vector<256x32xf32>
    %cst_35 = arith.constant dense<0.000000e+00> : vector<256x256xf32>
    %70 = tpu.matmul %69, %6, %cst_35 {dimension_numbers = #tpu.dot_dimension_numbers<[1], [0], [0], [1], [0, 0, 1, 1], [], []>} : vector<256x32xf32>, vector<32x256xf32>, vector<256x256xf32> -> vector<256x256xf32>
    %71 = arith.mulf %70, %65 : vector<256x256xf32>
    %cst_36 = arith.constant dense<0.000000e+00> : vector<256x32xf32>
    %72 = tpu.matmul %71, %9, %cst_36 {dimension_numbers = #tpu.dot_dimension_numbers<[1], [0], [0], [1], [0, 0, 1, 1], [], []>} : vector<256x256xf32>, vector<256x32xf32>, vector<256x32xf32> -> vector<256x32xf32>
    %cst_37 = arith.constant dense<0xFF800000> : vector<256xf32>
    %73 = vector.multi_reduction <maximumf>, %72, %cst_37 [1] : vector<256x32xf32> to vector<256xf32>
    %74 = vector.shape_cast %73 : vector<256xf32> to vector<256x1xf32>
    %75 = vector.broadcast %74 : vector<256x1xf32> to vector<256x32xf32>
    %76 = arith.subf %72, %75 : vector<256x32xf32>
    %77 = math.exp %76 : vector<256x32xf32>
    %cst_38 = arith.constant dense<0.000000e+00> : vector<256x32xf32>
    %78 = tpu.matmul %77, %11, %cst_38 {dimension_numbers = #tpu.dot_dimension_numbers<[1], [0], [0], [1], [0, 0, 1, 1], [], []>} : vector<256x32xf32>, vector<32x32xf32>, vector<256x32xf32> -> vector<256x32xf32>
    %79 = tpu.reciprocal %78 {approx = true} : vector<256x32xf32> -> vector<256x32xf32>
    %80 = arith.mulf %78, %79 : vector<256x32xf32>
    %cst_39 = arith.constant 2.000000e+00 : f32
    %81 = vector.broadcast %cst_39 : f32 to vector<256x32xf32>
    %82 = arith.subf %81, %80 : vector<256x32xf32>
    %83 = arith.mulf %79, %82 : vector<256x32xf32>
    %84 = arith.mulf %77, %83 : vector<256x32xf32>
    %cst_40 = arith.constant dense<0.000000e+00> : vector<256x1024xf32>
    %85 = tpu.matmul %84, %13, %cst_40 {dimension_numbers = #tpu.dot_dimension_numbers<[1], [0], [0], [1], [0, 0, 1, 1], [], []>} : vector<256x32xf32>, vector<32x1024xf32>, vector<256x1024xf32> -> vector<256x1024xf32>
    %cst_41 = arith.constant dense<0.000000e+00> : vector<256x1024xf32>
    %86 = tpu.matmul %61, %15, %cst_41 {dimension_numbers = #tpu.dot_dimension_numbers<[1], [0], [0], [1], [0, 0, 1, 1], [], []>} : vector<256x256xf32>, vector<256x1024xf32>, vector<256x1024xf32> -> vector<256x1024xf32>
    %87 = arith.mulf %85, %86 : vector<256x1024xf32>
    %88 = vector.extract_strided_slice %87 {offsets = [0, 0], sizes = [256, 128], strides = [1, 1]} : vector<256x1024xf32> to vector<256x128xf32>
    %89 = vector.extract_strided_slice %87 {offsets = [0, 128], sizes = [256, 128], strides = [1, 1]} : vector<256x1024xf32> to vector<256x128xf32>
    %90 = vector.extract_strided_slice %87 {offsets = [0, 256], sizes = [256, 128], strides = [1, 1]} : vector<256x1024xf32> to vector<256x128xf32>
    %91 = vector.extract_strided_slice %87 {offsets = [0, 384], sizes = [256, 128], strides = [1, 1]} : vector<256x1024xf32> to vector<256x128xf32>
    %92 = vector.extract_strided_slice %87 {offsets = [0, 512], sizes = [256, 128], strides = [1, 1]} : vector<256x1024xf32> to vector<256x128xf32>
    %93 = vector.extract_strided_slice %87 {offsets = [0, 640], sizes = [256, 128], strides = [1, 1]} : vector<256x1024xf32> to vector<256x128xf32>
    %94 = vector.extract_strided_slice %87 {offsets = [0, 768], sizes = [256, 128], strides = [1, 1]} : vector<256x1024xf32> to vector<256x128xf32>
    %95 = vector.extract_strided_slice %87 {offsets = [0, 896], sizes = [256, 128], strides = [1, 1]} : vector<256x1024xf32> to vector<256x128xf32>
    %96 = arith.addf %88, %89 : vector<256x128xf32>
    %97 = arith.addf %90, %91 : vector<256x128xf32>
    %98 = arith.addf %92, %93 : vector<256x128xf32>
    %99 = arith.addf %94, %95 : vector<256x128xf32>
    %100 = arith.addf %96, %97 : vector<256x128xf32>
    %101 = arith.addf %98, %99 : vector<256x128xf32>
    %102 = arith.addf %100, %101 : vector<256x128xf32>
    %cst_42 = arith.constant dense<0.000000e+00> : vector<256x32xf32>
    %103 = tpu.matmul %102, %8, %cst_42 {dimension_numbers = #tpu.dot_dimension_numbers<[1], [0], [0], [1], [0, 0, 1, 1], [], []>} : vector<256x128xf32>, vector<128x32xf32>, vector<256x32xf32> -> vector<256x32xf32>
    %104 = vector.shape_cast %27 : vector<32xf32> to vector<1x32xf32>
    %105 = vector.broadcast %104 : vector<1x32xf32> to vector<256x32xf32>
    %106 = arith.addf %103, %105 : vector<256x32xf32>
    %cst_43 = arith.constant 0.000000e+00 : f32
    %107 = vector.broadcast %cst_43 : f32 to vector<256x32xf32>
    %108 = arith.maximumf %106, %107 : vector<256x32xf32>
    %cst_44 = arith.constant dense<0.000000e+00> : vector<256xf32>
    %109 = vector.multi_reduction <add>, %108, %cst_44 [1] : vector<256x32xf32> to vector<256xf32>
    %110 = vector.shape_cast %109 : vector<256xf32> to vector<256x1xf32>
    %cst_45 = arith.constant 3.200000e+01 : f32
    %111 = vector.broadcast %cst_45 : f32 to vector<256x1xf32>
    %112 = arith.divf %110, %111 : vector<256x1xf32>
    %113 = vector.broadcast %112 : vector<256x1xf32> to vector<256x32xf32>
    %114 = arith.subf %108, %113 : vector<256x32xf32>
    %115 = arith.mulf %114, %114 : vector<256x32xf32>
    %cst_46 = arith.constant dense<0.000000e+00> : vector<256xf32>
    %116 = vector.multi_reduction <add>, %115, %cst_46 [1] : vector<256x32xf32> to vector<256xf32>
    %117 = vector.shape_cast %116 : vector<256xf32> to vector<256x1xf32>
    %cst_47 = arith.constant 3.200000e+01 : f32
    %118 = vector.broadcast %cst_47 : f32 to vector<256x1xf32>
    %119 = arith.divf %117, %118 : vector<256x1xf32>
    %120 = vector.broadcast %112 : vector<256x1xf32> to vector<256x32xf32>
    %121 = arith.subf %108, %120 : vector<256x32xf32>
    %cst_48 = arith.constant 9.99999974E-6 : f32
    %122 = vector.broadcast %cst_48 : f32 to vector<256x1xf32>
    %123 = arith.addf %119, %122 : vector<256x1xf32>
    %124 = math.rsqrt %123 : vector<256x1xf32>
    %125 = vector.broadcast %124 : vector<256x1xf32> to vector<256x32xf32>
    %126 = arith.mulf %121, %125 : vector<256x32xf32>
    %127 = vector.shape_cast %29 : vector<32xf32> to vector<1x32xf32>
    %128 = vector.broadcast %127 : vector<1x32xf32> to vector<256x32xf32>
    %129 = arith.mulf %126, %128 : vector<256x32xf32>
    %130 = vector.shape_cast %31 : vector<32xf32> to vector<1x32xf32>
    %131 = vector.broadcast %130 : vector<1x32xf32> to vector<256x32xf32>
    %132 = arith.addf %129, %131 : vector<256x32xf32>
    %c0_49 = arith.constant 0 : index
    %c0_50 = arith.constant 0 : index
    %133 = vector.load %arg7[%c0_49, %c0_50] : memref<256x32xf32, #tpu.memory_space<vmem>>, vector<256x32xf32>
    tpu.vector_store %arg7[%c0_49, %c0_50], %132 {strides = array<i32>} : memref<256x32xf32, #tpu.memory_space<vmem>>, vector<256x32xf32>,
    return
  }
  func.func @transform_0(%arg0: i32) -> (i32, i32) {
    %c0_i32 = arith.constant 0 : i32
    %c0_i32_0 = arith.constant 0 : i32
    return %arg0, %c0_i32 : i32, i32
  }
  func.func @transform_1(%arg0: i32) -> (i32, i32) {
    %c0_i32 = arith.constant 0 : i32
    %c0_i32_0 = arith.constant 0 : i32
    %c0_i32_1 = arith.constant 0 : i32
    return %c0_i32, %c0_i32_0 : i32, i32
  }
  func.func @transform_2(%arg0: i32) -> (i32, i32) {
    %c0_i32 = arith.constant 0 : i32
    %c0_i32_0 = arith.constant 0 : i32
    %c0_i32_1 = arith.constant 0 : i32
    return %c0_i32, %c0_i32_0 : i32, i32
  }
  func.func @transform_3(%arg0: i32) -> (i32, i32) {
    %c0_i32 = arith.constant 0 : i32
    %c0_i32_0 = arith.constant 0 : i32
    %c0_i32_1 = arith.constant 0 : i32
    return %c0_i32, %c0_i32_0 : i32, i32
  }
  func.func @transform_4(%arg0: i32) -> (i32, i32) {
    %c0_i32 = arith.constant 0 : i32
    %c0_i32_0 = arith.constant 0 : i32
    %c0_i32_1 = arith.constant 0 : i32
    return %c0_i32, %c0_i32_0 : i32, i32
  }
  func.func @transform_5(%arg0: i32) -> (i32, i32) {
    %c0_i32 = arith.constant 0 : i32
    %c0_i32_0 = arith.constant 0 : i32
    %c0_i32_1 = arith.constant 0 : i32
    return %c0_i32, %c0_i32_0 : i32, i32
  }
  func.func @transform_6(%arg0: i32) -> (i32, i32) {
    %c0_i32 = arith.constant 0 : i32
    %c0_i32_0 = arith.constant 0 : i32
    return %arg0, %c0_i32 : i32, i32
  }
}

</mosaic_0001>

<llo_original>
// kernel: tpu_custom_call.1
$region0: #{tpu_custom_call.1}
  #allocation0 [shape = 'u32[]', space=smem, size = 0x4, offset = 0x4, fixed_abs, tag = 'smem constant byte address 0x4 - core index']
  #allocation1 [shape = 'u32[144,128]{1,0:T(1,128)}', space=vmem, size = 0x12000, scoped, tag = 'internal scratch']
  %s0 = inlined_call_operand.vmem [shape: f32[512,32], index: 0, kind: input, shape index: {}]
  %s1 = inlined_call_operand.hbm [shape: f32[288,256], index: 1, kind: input, shape index: {}]
  %s2 = inlined_call_operand.vmem [shape: bf16[288,256], index: 2, kind: input, shape index: {}]
  %s3 = inlined_call_operand.vmem [shape: f32[704,32], index: 3, kind: input, shape index: {}]
  %s4 = inlined_call_operand.vmem [shape: bf16[288,1024], index: 4, kind: input, shape index: {}]
  %s5 = inlined_call_operand.vmem [shape: f32[8,256], index: 5, kind: input, shape index: {}]
  %s6 = inlined_call_operand.vmem [shape: f32[512,32], index: 6, kind: output, shape index: {}]
  %s7 = sld [smem:[#allocation0]]
  $region61: #{tpu_custom_call.1} parent=0
    _
  %s9 = ssub.s32 1, %s7
  %s10 = scalar_select 0, %s9, %s7
  $region1: #{tpu_custom_call.1} parent=0
    #allocation2 [shape = 'u8[294912]{0}', space=vmem, size = 0x48000, scoped, tag = 'input window, operand 1, single buffered']
    #allocation3 [shape = 's32[2]{0}', space=sflag, size = 0x8, scoped, tag = 'scoped memory for tpu_custom_call.1']
    %11 = vsyncpa [#allocation3], 0
    loop: start=0, step=1, limit=4
    $region2: #{tpu_custom_call.1} parent=1 // loop_pre_header
      _
    $region3: #{tpu_custom_call.1} parent=1 // loop_header
      %s13 = sphi 0, %s17
      %p14 = scmp.ge.s32.totalorder %s13, 4
      %s23 = sphi 0, %s25
      %s26 = sphi 0, %s23
      %s27 = sphi 0, %s26
      %s43 = sphi 0, %s27
      %s47 = sphi 0, %s47
      %s49 = sphi 0, %s47
      %s50 = sphi 0, %s49
      %s64 = sphi 0, %s50
      %s68 = sphi 0, %s68
      %s70 = sphi 0, %s68
      %s71 = sphi 0, %s70
      %s85 = sphi 0, %s71
      %s89 = sphi 0, %s89
      %s91 = sphi 0, %s89
      %s92 = sphi 0, %s91
      %s106 = sphi 0, %s92
      %s110 = sphi 0, %s110
      %s112 = sphi 0, %s110
      %s113 = sphi 0, %s112
      %s127 = sphi 0, %s113
      %s131 = sphi 0, %s131
      %s133 = sphi 0, %s131
      %s134 = sphi 0, %s133
      %s148 = sphi 0, %s134
      %s154 = sphi 0, %s156
      %s157 = sphi 0, %s154
      %s158 = sphi 0, %s157
      %s174 = sphi 0, %s158
    $region4: #{tpu_custom_call.1} parent=1 // loop_header_branch
      %16 = sbr.rel (%p14) target = $region8
    $region5: #{tpu_custom_call.1} parent=1 // loop_body
      %s18 = ssub.s32 %s13, 1
      %s19 = ssub.s32 %s13, 2
      %s20 = sadd.s32 %s13, 1
      %s21 = ssub.s32 %s13, %s20
      %p22 = scmp.eq.s32.totalorder %s21, 0
      %s24 = sadd.s32 %s23, 1
      %s25 = scalar_select %p22, %s23, %s24
      %p28 = pneg %p22
      %p29 = scmp.eq.s32.totalorder %s13, 1
      %p30 = por %p28, %p29
      %p31 = scmp.ne.s32.totalorder %s23, %s26
      %p32 = scmp.eq.s32.totalorder %s13, 0
      %p33 = por %p31, %p32
      %p34 = scmp.ne.s32.totalorder %s23, %s26
      %p35 = scmp.eq.s32.totalorder %s18, 1
      %p36 = por %p34, %p35
      %p37 = scmp.ne.s32.totalorder %s26, %s27
      %p38 = scmp.eq.s32.totalorder %s18, 0
      %p39 = por %p37, %p38
      %p40 = scmp.ne.s32.totalorder %s26, %s27
      %p41 = scmp.eq.s32.totalorder %s19, 1
      %p42 = por %p40, %p41
      %p44 = scmp.ne.s32.totalorder %s27, %s43
      %p45 = scmp.eq.s32.totalorder %s19, 0
      %p46 = por %p44, %p45
      %s48 = sadd.s32 %s47, 1
      %p51 = scmp.eq.s32.totalorder %s13, 1
      %p52 = scmp.ne.s32.totalorder %s47, %s49
      %p53 = scmp.eq.s32.totalorder %s13, 0
      %p54 = por %p52, %p53
      %p55 = scmp.ne.s32.totalorder %s47, %s49
      %p56 = scmp.eq.s32.totalorder %s18, 1
      %p57 = por %p55, %p56
      %p58 = scmp.ne.s32.totalorder %s49, %s50
      %p59 = scmp.eq.s32.totalorder %s18, 0
      %p60 = por %p58, %p59
      %p61 = scmp.ne.s32.totalorder %s49, %s50
      %p62 = scmp.eq.s32.totalorder %s19, 1
      %p63 = por %p61, %p62
      %p65 = scmp.ne.s32.totalorder %s50, %s64
      %p66 = scmp.eq.s32.totalorder %s19, 0
      %p67 = por %p65, %p66
      %s69 = sadd.s32 %s68, 1
      %p72 = scmp.eq.s32.totalorder %s13, 1
      %p73 = scmp.ne.s32.totalorder %s68, %s70
      %p74 = scmp.eq.s32.totalorder %s13, 0
      %p75 = por %p73, %p74
      %p76 = scmp.ne.s32.totalorder %s68, %s70
      %p77 = scmp.eq.s32.totalorder %s18, 1
      %p78 = por %p76, %p77
      %p79 = scmp.ne.s32.totalorder %s70, %s71
      %p80 = scmp.eq.s32.totalorder %s18, 0
      %p81 = por %p79, %p80
      %p82 = scmp.ne.s32.totalorder %s70, %s71
      %p83 = scmp.eq.s32.totalorder %s19, 1
      %p84 = por %p82, %p83
      %p86 = scmp.ne.s32.totalorder %s71, %s85
      %p87 = scmp.eq.s32.totalorder %s19, 0
      %p88 = por %p86, %p87
      %s90 = sadd.s32 %s89, 1
      %p93 = scmp.eq.s32.totalorder %s13, 1
      %p94 = scmp.ne.s32.totalorder %s89, %s91
      %p95 = scmp.eq.s32.totalorder %s13, 0
      %p96 = por %p94, %p95
      %p97 = scmp.ne.s32.totalorder %s89, %s91
      %p98 = scmp.eq.s32.totalorder %s18, 1
      %p99 = por %p97, %p98
      %p100 = scmp.ne.s32.totalorder %s91, %s92
      %p101 = scmp.eq.s32.totalorder %s18, 0
      %p102 = por %p100, %p101
      %p103 = scmp.ne.s32.totalorder %s91, %s92
      %p104 = scmp.eq.s32.totalorder %s19, 1
      %p105 = por %p103, %p104
      %p107 = scmp.ne.s32.totalorder %s92, %s106
      %p108 = scmp.eq.s32.totalorder %s19, 0
      %p109 = por %p107, %p108
      %s111 = sadd.s32 %s110, 1
      %p114 = scmp.eq.s32.totalorder %s13, 1
      %p115 = scmp.ne.s32.totalorder %s110, %s112
      %p116 = scmp.eq.s32.totalorder %s13, 0
      %p117 = por %p115, %p116
      %p118 = scmp.ne.s32.totalorder %s110, %s112
      %p119 = scmp.eq.s32.totalorder %s18, 1
      %p120 = por %p118, %p119
      %p121 = scmp.ne.s32.totalorder %s112, %s113
      %p122 = scmp.eq.s32.totalorder %s18, 0
      %p123 = por %p121, %p122
      %p124 = scmp.ne.s32.totalorder %s112, %s113
      %p125 = scmp.eq.s32.totalorder %s19, 1
      %p126 = por %p124, %p125
      %p128 = scmp.ne.s32.totalorder %s113, %s127
      %p129 = scmp.eq.s32.totalorder %s19, 0
      %p130 = por %p128, %p129
      %s132 = sadd.s32 %s131, 1
      %p135 = scmp.eq.s32.totalorder %s13, 1
      %p136 = scmp.ne.s32.totalorder %s131, %s133
      %p137 = scmp.eq.s32.totalorder %s13, 0
      %p138 = por %p136, %p137
      %p139 = scmp.ne.s32.totalorder %s131, %s133
      %p140 = scmp.eq.s32.totalorder %s18, 1
      %p141 = por %p139, %p140
      %p142 = scmp.ne.s32.totalorder %s133, %s134
      %p143 = scmp.eq.s32.totalorder %s18, 0
      %p144 = por %p142, %p143
      %p145 = scmp.ne.s32.totalorder %s133, %s134
      %p146 = scmp.eq.s32.totalorder %s19, 1
      %p147 = por %p145, %p146
      %p149 = scmp.ne.s32.totalorder %s134, %s148
      %p150 = scmp.eq.s32.totalorder %s19, 0
      %p151 = por %p149, %p150
      %s152 = ssub.s32 %s13, %s20
      %p153 = scmp.eq.s32.totalorder %s152, 0
      %s155 = sadd.s32 %s154, 1
      %s156 = scalar_select %p153, %s154, %s155
      %p159 = pneg %p153
      %p160 = scmp.eq.s32.totalorder %s13, 1
      %p161 = por %p159, %p160
      %p162 = scmp.ne.s32.totalorder %s154, %s157
      %p163 = scmp.eq.s32.totalorder %s13, 0
      %p164 = por %p162, %p163
      %p165 = scmp.ne.s32.totalorder %s154, %s157
      %p166 = scmp.eq.s32.totalorder %s18, 1
      %p167 = por %p165, %p166
      %p168 = scmp.ne.s32.totalorder %s157, %s158
      %p169 = scmp.eq.s32.totalorder %s18, 0
      %p170 = por %p168, %p169
      %p171 = scmp.ne.s32.totalorder %s157, %s158
      %p172 = scmp.eq.s32.totalorder %s19, 1
      %p173 = por %p171, %p172
      %p175 = scmp.ne.s32.totalorder %s158, %s174
      %p176 = scmp.eq.s32.totalorder %s19, 0
      %p177 = por %p175, %p176
      %p178 = scmp.le.s32.totalorder 1, %s13
      %p179 = scmp.lt.s32.totalorder %s13, 3
      %p180 = pnand %p178, %p179
      %p181 = pneg %p180
      // Predicated region
      $region9: #{tpu_custom_call.1} parent=5 // pred_check
        _
      $region10: #{tpu_custom_call.1} parent=5 // pred_check_branch
        %183 = sbr.rel (%p180) target = $region12
      $region11: #{tpu_custom_call.1} parent=5 // pred_region
        %s184 = ssub.s32 %s13, 1
        // Predicated region
        $region13: #{tpu_custom_call.1} parent=11 // pred_check
          %p185 = pneg %p60
        $region14: #{tpu_custom_call.1} parent=11 // pred_check_branch
          %187 = sbr.rel (%p185) target = $region16
        $region15: #{tpu_custom_call.1} parent=11 // pred_region
          %s189 = ssub.s32 9216, 9216
          %190 = vsyncadd [#allocation3], %s189
          %s191 = sshll.u32 [#allocation2], 4
          %s192 = int_to_ptr.vmem [resolvable:$true] %s191
          %197 = dma.hbm_to_vmem [thread:$0]  %s1, 9216, %s192, [#allocation3], 256, 256, 16
        $region16: #{tpu_custom_call.1} parent=11 // pred_fallthru
          _
        // Predicated region
        $region17: #{tpu_custom_call.1} parent=11 // pred_check
          %p198 = pneg %p81
        $region18: #{tpu_custom_call.1} parent=11 // pred_check_branch
          %200 = sbr.rel (%p198) target = $region20
        $region19: #{tpu_custom_call.1} parent=11 // pred_region
          _
        $region20: #{tpu_custom_call.1} parent=11 // pred_fallthru
          _
        // Predicated region
        $region21: #{tpu_custom_call.1} parent=11 // pred_check
          %p201 = pneg %p102
        $region22: #{tpu_custom_call.1} parent=11 // pred_check_branch
          %203 = sbr.rel (%p201) target = $region24
        $region23: #{tpu_custom_call.1} parent=11 // pred_region
          _
        $region24: #{tpu_custom_call.1} parent=11 // pred_fallthru
          _
        // Predicated region
        $region25: #{tpu_custom_call.1} parent=11 // pred_check
          %p204 = pneg %p123
        $region26: #{tpu_custom_call.1} parent=11 // pred_check_branch
          %206 = sbr.rel (%p204) target = $region28
        $region27: #{tpu_custom_call.1} parent=11 // pred_region
          _
        $region28: #{tpu_custom_call.1} parent=11 // pred_fallthru
          _
        // Predicated region
        $region29: #{tpu_custom_call.1} parent=11 // pred_check
          %p207 = pneg %p144
        $region30: #{tpu_custom_call.1} parent=11 // pred_check_branch
          %209 = sbr.rel (%p207) target = $region32
        $region31: #{tpu_custom_call.1} parent=11 // pred_region
          _
        $region32: #{tpu_custom_call.1} parent=11 // pred_fallthru
          _
      $region12: #{tpu_custom_call.1} parent=5 // pred_fallthru
        _
      %p210 = scmp.lt.s32.totalorder %s13, 2
      // Predicated region
      $region33: #{tpu_custom_call.1} parent=5 // pred_check
        %p211 = pneg %p210
      $region34: #{tpu_custom_call.1} parent=5 // pred_check_branch
        %213 = sbr.rel (%p211) target = $region36
      $region35: #{tpu_custom_call.1} parent=5 // pred_region
        // Predicated region
        $region37: #{tpu_custom_call.1} parent=35 // pred_check
          %p214 = pneg %p33
        $region38: #{tpu_custom_call.1} parent=35 // pred_check_branch
          %216 = sbr.rel (%p214) target = $region40
        $region39: #{tpu_custom_call.1} parent=35 // pred_region
          %s217 = smul.u32 32, %s13
          %p218 = scmp.lt.s32.totalorder %s217, 63
          %s219 = scalar_select %p218, %s217, 63
          %s220 = smul.addr %s219, 8
          %s221 = scalar_lea.vmem %s0, %s220
          %s222 = smul.u32 32, %s13
        $region40: #{tpu_custom_call.1} parent=35 // pred_fallthru
          _
      $region36: #{tpu_custom_call.1} parent=5 // pred_fallthru
        _
      %p223 = scmp.le.s32.totalorder 1, %s13
      %p224 = scmp.lt.s32.totalorder %s13, 3
      %p225 = pnand %p223, %p224
      %p226 = pneg %p225
      // Predicated region
      $region41: #{tpu_custom_call.1} parent=5 // pred_check
        _
      $region42: #{tpu_custom_call.1} parent=5 // pred_check_branch
        %228 = sbr.rel (%p225) target = $region44
      $region43: #{tpu_custom_call.1} parent=5 // pred_region
        %s229 = ssub.s32 %s13, 1
        // Predicated region
        $region45: #{tpu_custom_call.1} parent=43 // pred_check
          %p230 = pneg %p60
        $region46: #{tpu_custom_call.1} parent=43 // pred_check_branch
          %232 = sbr.rel (%p230) target = $region48
        $region47: #{tpu_custom_call.1} parent=43 // pred_region
          %233 = dma.done [#allocation3], 9216
        $region48: #{tpu_custom_call.1} parent=43 // pred_fallthru
          _
        %s234 = smul.u32 32, %s18
        %p235 = scmp.lt.s32.totalorder %s234, 63
        %s236 = scalar_select %p235, %s234, 63
        %s237 = smul.addr %s236, 8
        %s238 = scalar_lea.vmem %s0, %s237
        %p239 = pneg %p39
        %p240 = pneg %p36
        %p241 = pneg %p60
        %p242 = pneg %p57
        %p243 = pneg %p81
        %p244 = pneg %p78
        %p245 = pneg %p102
        %p246 = pneg %p99
        %p247 = pneg %p123
        %p248 = pneg %p120
        %p249 = pneg %p144
        %p250 = pneg %p141
        %p251 = pneg %p170
        %p252 = pneg %p167
        %s253 = smul.u32 32, %s18
        %p254 = scmp.lt.s32.totalorder %s253, 63
        %s255 = scalar_select %p254, %s253, 63
        %s256 = smul.addr %s255, 8
        %s257 = scalar_lea.vmem %s6, %s256
        %s258 = smul.u32 32, %s18
        %p259 = scmp.lt.s32.totalorder %s258, 63
        %s260 = scalar_select %p259, %s258, 63
        %s261 = smul.addr %s260, 8
        %s262 = scalar_lea.vmem %s0, %s261
        %s263 = smul.u32 32, %s18
        %s264 = smul.u32 32, %s18
        %p265 = scmp.lt.s32.totalorder %s264, 63
        %s266 = scalar_select %p265, %s264, 63
        %s267 = smul.addr %s266, 8
        %s268 = scalar_lea.vmem %s6, %s267
        %s269 = smul.u32 32, %s18
        %v270 = vld [vmem:[%s262] sm:$0xff]
        %v271 = vld [vmem:[%s262 + $0x8] sm:$0xff]
        %v272 = vld [vmem:[%s262 + $0x10] sm:$0xff]
        %v273 = vld [vmem:[%s262 + $0x18] sm:$0xff]
        %v274 = vld [vmem:[%s262 + $0x20] sm:$0xff]
        %v275 = vld [vmem:[%s262 + $0x28] sm:$0xff]
        %v276 = vld [vmem:[%s262 + $0x30] sm:$0xff]
        %v277 = vld [vmem:[%s262 + $0x38] sm:$0xff]
        %v278 = vld [vmem:[%s262 + $0x40] sm:$0xff]
        %v279 = vld [vmem:[%s262 + $0x48] sm:$0xff]
        %v280 = vld [vmem:[%s262 + $0x50] sm:$0xff]
        %v281 = vld [vmem:[%s262 + $0x58] sm:$0xff]
        %v282 = vld [vmem:[%s262 + $0x60] sm:$0xff]
        %v283 = vld [vmem:[%s262 + $0x68] sm:$0xff]
        %v284 = vld [vmem:[%s262 + $0x70] sm:$0xff]
        %v285 = vld [vmem:[%s262 + $0x78] sm:$0xff]
        %v286 = vld [vmem:[%s262 + $0x80] sm:$0xff]
        %v287 = vld [vmem:[%s262 + $0x88] sm:$0xff]
        %v288 = vld [vmem:[%s262 + $0x90] sm:$0xff]
        %v289 = vld [vmem:[%s262 + $0x98] sm:$0xff]
        %v290 = vld [vmem:[%s262 + $0xa0] sm:$0xff]
        %v291 = vld [vmem:[%s262 + $0xa8] sm:$0xff]
        %v292 = vld [vmem:[%s262 + $0xb0] sm:$0xff]
        %v293 = vld [vmem:[%s262 + $0xb8] sm:$0xff]
        %v294 = vld [vmem:[%s262 + $0xc0] sm:$0xff]
        %v295 = vld [vmem:[%s262 + $0xc8] sm:$0xff]
        %v296 = vld [vmem:[%s262 + $0xd0] sm:$0xff]
        %v297 = vld [vmem:[%s262 + $0xd8] sm:$0xff]
        %v298 = vld [vmem:[%s262 + $0xe0] sm:$0xff]
        %v299 = vld [vmem:[%s262 + $0xe8] sm:$0xff]
        %v300 = vld [vmem:[%s262 + $0xf0] sm:$0xff]
        %v301 = vld [vmem:[%s262 + $0xf8] sm:$0xff]
        %v302 = vld [vmem:[#allocation2] sm:$0xff]
        %v303 = vld [vmem:[#allocation2 + $0x8] sm:$0xff]
        %v304 = vld [vmem:[#allocation2 + $0x10] sm:$0xff]
        %v305 = vld [vmem:[#allocation2 + $0x18] sm:$0xff]
        %v306 = vld [vmem:[#allocation2 + $0x20] sm:$0xff]
        %v307 = vld [vmem:[#allocation2 + $0x28] sm:$0xff]
        %v308 = vld [vmem:[#allocation2 + $0x30] sm:$0xff]
        %v309 = vld [vmem:[#allocation2 + $0x38] sm:$0xff]
        %v310 = vld [vmem:[#allocation2 + $0x40] sm:$0xff]
        %v311 = vld [vmem:[#allocation2 + $0x48] sm:$0xff]
        %v312 = vld [vmem:[#allocation2 + $0x50] sm:$0xff]
        %v313 = vld [vmem:[#allocation2 + $0x58] sm:$0xff]
        %v314 = vld [vmem:[#allocation2 + $0x60] sm:$0xff]
        %v315 = vld [vmem:[#allocation2 + $0x68] sm:$0xff]
        %v316 = vld [vmem:[#allocation2 + $0x70] sm:$0xff]
        %v317 = vld [vmem:[#allocation2 + $0x78] sm:$0xff]
        %v318 = vld [vmem:[#allocation2 + $0x80] sm:$0xff]
        %v319 = vld [vmem:[#allocation2 + $0x88] sm:$0xff]
        %v320 = vld [vmem:[#allocation2 + $0x90] sm:$0xff]
        %v321 = vld [vmem:[#allocation2 + $0x98] sm:$0xff]
        %v322 = vld [vmem:[#allocation2 + $0xa0] sm:$0xff]
        %v323 = vld [vmem:[#allocation2 + $0xa8] sm:$0xff]
        %v324 = vld [vmem:[#allocation2 + $0xb0] sm:$0xff]
        %v325 = vld [vmem:[#allocation2 + $0xb8] sm:$0xff]
        %v326 = vld [vmem:[#allocation2 + $0xc0] sm:$0xff]
        %v327 = vld [vmem:[#allocation2 + $0xc8] sm:$0xff]
        %v328 = vld [vmem:[#allocation2 + $0xd0] sm:$0xff]
        %v329 = vld [vmem:[#allocation2 + $0xd8] sm:$0xff]
        %v330 = vld [vmem:[#allocation2 + $0xe0] sm:$0xff]
        %v331 = vld [vmem:[#allocation2 + $0xe8] sm:$0xff]
        %v332 = vld [vmem:[#allocation2 + $0xf0] sm:$0xff]
        %v333 = vld [vmem:[#allocation2 + $0xf8] sm:$0xff]
        %v334 = vld [vmem:[#allocation2 + $0x100] sm:$0xff]
        %v335 = vld [vmem:[#allocation2 + $0x108] sm:$0xff]
        %v336 = vld [vmem:[#allocation2 + $0x110] sm:$0xff]
        %v337 = vld [vmem:[#allocation2 + $0x118] sm:$0xff]
        %v338 = vld [vmem:[#allocation2 + $0x120] sm:$0xff]
        %v339 = vld [vmem:[#allocation2 + $0x128] sm:$0xff]
        %v340 = vld [vmem:[#allocation2 + $0x130] sm:$0xff]
        %v341 = vld [vmem:[#allocation2 + $0x138] sm:$0xff]
        %v342 = vld [vmem:[#allocation2 + $0x140] sm:$0xff]
        %v343 = vld [vmem:[#allocation2 + $0x148] sm:$0xff]
        %v344 = vld [vmem:[#allocation2 + $0x150] sm:$0xff]
        %v345 = vld [vmem:[#allocation2 + $0x158] sm:$0xff]
        %v346 = vld [vmem:[#allocation2 + $0x160] sm:$0xff]
        %v347 = vld [vmem:[#allocation2 + $0x168] sm:$0xff]
        %v348 = vld [vmem:[#allocation2 + $0x170] sm:$0xff]
        %v349 = vld [vmem:[#allocation2 + $0x178] sm:$0xff]
        %v350 = vld [vmem:[#allocation2 + $0x180] sm:$0xff]
        %v351 = vld [vmem:[#allocation2 + $0x188] sm:$0xff]
        %v352 = vld [vmem:[#allocation2 + $0x190] sm:$0xff]
        %v353 = vld [vmem:[#allocation2 + $0x198] sm:$0xff]
        %v354 = vld [vmem:[#allocation2 + $0x1a0] sm:$0xff]
        %v355 = vld [vmem:[#allocation2 + $0x1a8] sm:$0xff]
        %v356 = vld [vmem:[#allocation2 + $0x1b0] sm:$0xff]
        %v357 = vld [vmem:[#allocation2 + $0x1b8] sm:$0xff]
        %v358 = vld [vmem:[#allocation2 + $0x1c0] sm:$0xff]
        %v359 = vld [vmem:[#allocation2 + $0x1c8] sm:$0xff]
        %v360 = vld [vmem:[#allocation2 + $0x1d0] sm:$0xff]
        %v361 = vld [vmem:[#allocation2 + $0x1d8] sm:$0xff]
        %v362 = vld [vmem:[#allocation2 + $0x1e0] sm:$0xff]
        %v363 = vld [vmem:[#allocation2 + $0x1e8] sm:$0xff]
        %v364 = vld [vmem:[#allocation2 + $0x1f0] sm:$0xff]
        %v365 = vld [vmem:[#allocation2 + $0x1f8] sm:$0xff]
        %v366 = vld [vmem:[#allocation2 + $0x200] sm:$0xff]
        %v367 = vld [vmem:[#allocation2 + $0x208] sm:$0xff]
        %v368 = vld [vmem:[#allocation2 + $0x210] sm:$0xff]
        %v369 = vld [vmem:[#allocation2 + $0x218] sm:$0xff]
        %v370 = vld [vmem:[#allocation2 + $0x220] sm:$0xff]
        %v371 = vld [vmem:[#allocation2 + $0x228] sm:$0xff]
        %v372 = vld [vmem:[#allocation2 + $0x230] sm:$0xff]
        %v373 = vld [vmem:[#allocation2 + $0x238] sm:$0xff]
        %v374 = vld [vmem:[%s2] sm:$0xff]
        %v375 = vld [vmem:[%s2 + $0x8] sm:$0xff]
        %v376 = vld [vmem:[%s2 + $0x10] sm:$0xff]
        %v377 = vld [vmem:[%s2 + $0x18] sm:$0xff]
        %v378 = vld [vmem:[%s2 + $0x20] sm:$0xff]
        %v379 = vld [vmem:[%s2 + $0x28] sm:$0xff]
        %v380 = vld [vmem:[%s2 + $0x30] sm:$0xff]
        %v381 = vld [vmem:[%s2 + $0x38] sm:$0xff]
        %v382 = vld [vmem:[%s2 + $0x40] sm:$0xff]
        %v383 = vld [vmem:[%s2 + $0x48] sm:$0xff]
        %v384 = vld [vmem:[%s2 + $0x50] sm:$0xff]
        %v385 = vld [vmem:[%s2 + $0x58] sm:$0xff]
        %v386 = vld [vmem:[%s2 + $0x60] sm:$0xff]
        %v387 = vld [vmem:[%s2 + $0x68] sm:$0xff]
        %v388 = vld [vmem:[%s2 + $0x70] sm:$0xff]
        %v389 = vld [vmem:[%s2 + $0x78] sm:$0xff]
        %v390 = vld [vmem:[%s2 + $0x80] sm:$0xff]
        %v391 = vld [vmem:[%s2 + $0x88] sm:$0xff]
        %v392 = vld [vmem:[%s2 + $0x90] sm:$0xff]
        %v393 = vld [vmem:[%s2 + $0x98] sm:$0xff]
        %v394 = vld [vmem:[%s2 + $0xa0] sm:$0xff]
        %v395 = vld [vmem:[%s2 + $0xa8] sm:$0xff]
        %v396 = vld [vmem:[%s2 + $0xb0] sm:$0xff]
        %v397 = vld [vmem:[%s2 + $0xb8] sm:$0xff]
        %v398 = vld [vmem:[%s2 + $0xc0] sm:$0xff]
        %v399 = vld [vmem:[%s2 + $0xc8] sm:$0xff]
        %v400 = vld [vmem:[%s2 + $0xd0] sm:$0xff]
        %v401 = vld [vmem:[%s2 + $0xd8] sm:$0xff]
        %v402 = vld [vmem:[%s2 + $0xe0] sm:$0xff]
        %v403 = vld [vmem:[%s2 + $0xe8] sm:$0xff]
        %v404 = vld [vmem:[%s2 + $0xf0] sm:$0xff]
        %v405 = vld [vmem:[%s2 + $0xf8] sm:$0xff]
        %v406 = vunpack.c.l.bf16 %v374
        %v407 = vunpack.c.h.bf16 %v374
        %v408 = vunpack.c.l.bf16 %v375
        %v409 = vunpack.c.h.bf16 %v375
        %v410 = vunpack.c.l.bf16 %v376
        %v411 = vunpack.c.h.bf16 %v376
        %v412 = vunpack.c.l.bf16 %v377
        %v413 = vunpack.c.h.bf16 %v377
        %v414 = vunpack.c.l.bf16 %v378
        %v415 = vunpack.c.h.bf16 %v378
        %v416 = vunpack.c.l.bf16 %v379
        %v417 = vunpack.c.h.bf16 %v379
        %v418 = vunpack.c.l.bf16 %v380
        %v419 = vunpack.c.h.bf16 %v380
        %v420 = vunpack.c.l.bf16 %v381
        %v421 = vunpack.c.h.bf16 %v381
        %v422 = vunpack.c.l.bf16 %v382
        %v423 = vunpack.c.h.bf16 %v382
        %v424 = vunpack.c.l.bf16 %v383
        %v425 = vunpack.c.h.bf16 %v383
        %v426 = vunpack.c.l.bf16 %v384
        %v427 = vunpack.c.h.bf16 %v384
        %v428 = vunpack.c.l.bf16 %v385
        %v429 = vunpack.c.h.bf16 %v385
        %v430 = vunpack.c.l.bf16 %v386
        %v431 = vunpack.c.h.bf16 %v386
        %v432 = vunpack.c.l.bf16 %v387
        %v433 = vunpack.c.h.bf16 %v387
        %v434 = vunpack.c.l.bf16 %v388
        %v435 = vunpack.c.h.bf16 %v388
        %v436 = vunpack.c.l.bf16 %v389
        %v437 = vunpack.c.h.bf16 %v389
        %v438 = vunpack.c.l.bf16 %v390
        %v439 = vunpack.c.h.bf16 %v390
        %v440 = vunpack.c.l.bf16 %v391
        %v441 = vunpack.c.h.bf16 %v391
        %v442 = vunpack.c.l.bf16 %v392
        %v443 = vunpack.c.h.bf16 %v392
        %v444 = vunpack.c.l.bf16 %v393
        %v445 = vunpack.c.h.bf16 %v393
        %v446 = vunpack.c.l.bf16 %v394
        %v447 = vunpack.c.h.bf16 %v394
        %v448 = vunpack.c.l.bf16 %v395
        %v449 = vunpack.c.h.bf16 %v395
        %v450 = vunpack.c.l.bf16 %v396
        %v451 = vunpack.c.h.bf16 %v396
        %v452 = vunpack.c.l.bf16 %v397
        %v453 = vunpack.c.h.bf16 %v397
        %v454 = vunpack.c.l.bf16 %v398
        %v455 = vunpack.c.h.bf16 %v398
        %v456 = vunpack.c.l.bf16 %v399
        %v457 = vunpack.c.h.bf16 %v399
        %v458 = vunpack.c.l.bf16 %v400
        %v459 = vunpack.c.h.bf16 %v400
        %v460 = vunpack.c.l.bf16 %v401
        %v461 = vunpack.c.h.bf16 %v401
        %v462 = vunpack.c.l.bf16 %v402
        %v463 = vunpack.c.h.bf16 %v402
        %v464 = vunpack.c.l.bf16 %v403
        %v465 = vunpack.c.h.bf16 %v403
        %v466 = vunpack.c.l.bf16 %v404
        %v467 = vunpack.c.h.bf16 %v404
        %v468 = vunpack.c.l.bf16 %v405
        %v469 = vunpack.c.h.bf16 %v405
        %v470 = vld [vmem:[%s2 + $0x100] sm:$0xff]
        %v471 = vld [vmem:[%s2 + $0x108] sm:$0xff]
        %v472 = vld [vmem:[%s2 + $0x110] sm:$0xff]
        %v473 = vld [vmem:[%s2 + $0x118] sm:$0xff]
        %v474 = vunpack.c.l.bf16 %v470
        %v475 = vunpack.c.h.bf16 %v470
        %v476 = vunpack.c.l.bf16 %v471
        %v477 = vunpack.c.h.bf16 %v471
        %v478 = vunpack.c.l.bf16 %v472
        %v479 = vunpack.c.h.bf16 %v472
        %v480 = vunpack.c.l.bf16 %v473
        %v481 = vunpack.c.h.bf16 %v473
        %v482 = vld [vmem:[%s3] sm:$0xff]
        %v483 = vld [vmem:[%s3 + $0x8] sm:$0xff]
        %v484 = vld [vmem:[%s3 + $0x10] sm:$0xff]
        %v485 = vld [vmem:[%s3 + $0x18] sm:$0xff]
        %v486 = vld [vmem:[%s3 + $0x20] sm:$0xff]
        %v487 = vld [vmem:[%s3 + $0x28] sm:$0xff]
        %v488 = vld [vmem:[%s3 + $0x30] sm:$0xff]
        %v489 = vld [vmem:[%s3 + $0x38] sm:$0xff]
        %v490 = vld [vmem:[%s3 + $0x40] sm:$0xff]
        %v491 = vld [vmem:[%s3 + $0x48] sm:$0xff]
        %v492 = vld [vmem:[%s3 + $0x50] sm:$0xff]
        %v493 = vld [vmem:[%s3 + $0x58] sm:$0xff]
        %v494 = vld [vmem:[%s3 + $0x60] sm:$0xff]
        %v495 = vld [vmem:[%s3 + $0x68] sm:$0xff]
        %v496 = vld [vmem:[%s3 + $0x70] sm:$0xff]
        %v497 = vld [vmem:[%s3 + $0x78] sm:$0xff]
        %v498 = vld [vmem:[%s3 + $0x80] sm:$0xff]
        %v499 = vld [vmem:[%s3 + $0x88] sm:$0xff]
        %v500 = vld [vmem:[%s3 + $0x90] sm:$0xff]
        %v501 = vld [vmem:[%s3 + $0x98] sm:$0xff]
        %v502 = vld [vmem:[%s3 + $0xa0] sm:$0xff]
        %v503 = vld [vmem:[%s3 + $0xa8] sm:$0xff]
        %v504 = vld [vmem:[%s3 + $0xb0] sm:$0xff]
        %v505 = vld [vmem:[%s3 + $0xb8] sm:$0xff]
        %v506 = vld [vmem:[%s3 + $0xc0] sm:$0xff]
        %v507 = vld [vmem:[%s3 + $0xc8] sm:$0xff]
        %v508 = vld [vmem:[%s3 + $0xd0] sm:$0xff]
        %v509 = vld [vmem:[%s3 + $0xd8] sm:$0xff]
        %v510 = vld [vmem:[%s3 + $0xe0] sm:$0xff]
        %v511 = vld [vmem:[%s3 + $0xe8] sm:$0xff]
        %v512 = vld [vmem:[%s3 + $0xf0] sm:$0xff]
        %v513 = vld [vmem:[%s3 + $0xf8] sm:$0xff]
        %v514 = vld [vmem:[%s3 + $0x100] sm:$0xff]
        %v515 = vld [vmem:[%s3 + $0x108] sm:$0xff]
        %v516 = vld [vmem:[%s3 + $0x110] sm:$0xff]
        %v517 = vld [vmem:[%s3 + $0x118] sm:$0xff]
        %v518 = vld [vmem:[%s3 + $0x120] sm:$0xff]
        %v519 = vld [vmem:[%s3 + $0x128] sm:$0xff]
        %v520 = vld [vmem:[%s3 + $0x130] sm:$0xff]
        %v521 = vld [vmem:[%s3 + $0x138] sm:$0xff]
        %v522 = vld [vmem:[%s3 + $0x140] sm:$0xff]
        %v523 = vld [vmem:[%s3 + $0x148] sm:$0xff]
        %v524 = vld [vmem:[%s3 + $0x150] sm:$0xff]
        %v525 = vld [vmem:[%s3 + $0x158] sm:$0xff]
        %v526 = vld [vmem:[%s3 + $0x160] sm:$0xff]
        %v527 = vld [vmem:[%s3 + $0x168] sm:$0xff]
        %v528 = vld [vmem:[%s3 + $0x170] sm:$0xff]
        %v529 = vld [vmem:[%s3 + $0x178] sm:$0xff]
        %v530 = vld [vmem:[%s3 + $0x180] sm:$0xff]
        %v531 = vld [vmem:[%s3 + $0x188] sm:$0xff]
        %v532 = vld [vmem:[%s3 + $0x190] sm:$0xff]
        %v533 = vld [vmem:[%s3 + $0x198] sm:$0xff]
        %v534 = vld [vmem:[%s3 + $0x1a0] sm:$0xff]
        %v535 = vld [vmem:[%s3 + $0x1a8] sm:$0xff]
        %v536 = vld [vmem:[%s3 + $0x1b0] sm:$0xff]
        %v537 = vld [vmem:[%s3 + $0x1b8] sm:$0xff]
        %v538 = vld [vmem:[%s3 + $0x1c0] sm:$0xff]
        %v539 = vld [vmem:[%s3 + $0x1c8] sm:$0xff]
        %v540 = vld [vmem:[%s3 + $0x1d0] sm:$0xff]
        %v541 = vld [vmem:[%s3 + $0x1d8] sm:$0xff]
        %v542 = vld [vmem:[%s3 + $0x1e0] sm:$0xff]
        %v543 = vld [vmem:[%s3 + $0x1e8] sm:$0xff]
        %v544 = vld [vmem:[%s3 + $0x1f0] sm:$0xff]
        %v545 = vld [vmem:[%s3 + $0x1f8] sm:$0xff]
        %v546 = vld [vmem:[%s3 + $0x200] sm:$0xff]
        %v547 = vld [vmem:[%s3 + $0x208] sm:$0xff]
        %v548 = vld [vmem:[%s3 + $0x210] sm:$0xff]
        %v549 = vld [vmem:[%s3 + $0x218] sm:$0xff]
        %v550 = vld [vmem:[%s3 + $0x220] sm:$0xff]
        %v551 = vld [vmem:[%s3 + $0x228] sm:$0xff]
        %v552 = vld [vmem:[%s3 + $0x230] sm:$0xff]
        %v553 = vld [vmem:[%s3 + $0x238] sm:$0xff]
        %v554 = vld [vmem:[%s3 + $0x240] sm:$0xff]
        %v555 = vld [vmem:[%s3 + $0x248] sm:$0xff]
        %v556 = vld [vmem:[%s3 + $0x250] sm:$0xff]
        %v557 = vld [vmem:[%s3 + $0x258] sm:$0xff]
        %v558 = vld [vmem:[%s3 + $0x260] sm:$0xff]
        %v559 = vld [vmem:[%s3 + $0x268] sm:$0xff]
        %v560 = vld [vmem:[%s3 + $0x270] sm:$0xff]
        %v561 = vld [vmem:[%s3 + $0x278] sm:$0xff]
        %v562 = vld [vmem:[%s3 + $0x280] sm:$0xff]
        %v563 = vld [vmem:[%s3 + $0x288] sm:$0xff]
        %v564 = vld [vmem:[%s3 + $0x290] sm:$0xff]
        %v565 = vld [vmem:[%s3 + $0x298] sm:$0xff]
        %v566 = vld [vmem:[%s3 + $0x2a0] sm:$0xff]
        %v567 = vld [vmem:[%s3 + $0x2a8] sm:$0xff]
        %v568 = vld [vmem:[%s3 + $0x2b0] sm:$0xff]
        %v569 = vld [vmem:[%s3 + $0x2b8] sm:$0xff]
        %v570 = vld [vmem:[%s4] sm:$0xff]
        %v571 = vld [vmem:[%s4 + $0x8] sm:$0xff]
        %v572 = vld [vmem:[%s4 + $0x10] sm:$0xff]
        %v573 = vld [vmem:[%s4 + $0x18] sm:$0xff]
        %v574 = vld [vmem:[%s4 + $0x20] sm:$0xff]
        %v575 = vld [vmem:[%s4 + $0x28] sm:$0xff]
        %v576 = vld [vmem:[%s4 + $0x30] sm:$0xff]
        %v577 = vld [vmem:[%s4 + $0x38] sm:$0xff]
        %v578 = vld [vmem:[%s4 + $0x40] sm:$0xff]
        %v579 = vld [vmem:[%s4 + $0x48] sm:$0xff]
        %v580 = vld [vmem:[%s4 + $0x50] sm:$0xff]
        %v581 = vld [vmem:[%s4 + $0x58] sm:$0xff]
        %v582 = vld [vmem:[%s4 + $0x60] sm:$0xff]
        %v583 = vld [vmem:[%s4 + $0x68] sm:$0xff]
        %v584 = vld [vmem:[%s4 + $0x70] sm:$0xff]
        %v585 = vld [vmem:[%s4 + $0x78] sm:$0xff]
        %v586 = vunpack.c.l.bf16 %v570
        %v587 = vunpack.c.h.bf16 %v570
        %v588 = vunpack.c.l.bf16 %v571
        %v589 = vunpack.c.h.bf16 %v571
        %v590 = vunpack.c.l.bf16 %v572
        %v591 = vunpack.c.h.bf16 %v572
        %v592 = vunpack.c.l.bf16 %v573
        %v593 = vunpack.c.h.bf16 %v573
        %v594 = vunpack.c.l.bf16 %v574
        %v595 = vunpack.c.h.bf16 %v574
        %v596 = vunpack.c.l.bf16 %v575
        %v597 = vunpack.c.h.bf16 %v575
        %v598 = vunpack.c.l.bf16 %v576
        %v599 = vunpack.c.h.bf16 %v576
        %v600 = vunpack.c.l.bf16 %v577
        %v601 = vunpack.c.h.bf16 %v577
        %v602 = vunpack.c.l.bf16 %v578
        %v603 = vunpack.c.h.bf16 %v578
        %v604 = vunpack.c.l.bf16 %v579
        %v605 = vunpack.c.h.bf16 %v579
        %v606 = vunpack.c.l.bf16 %v580
        %v607 = vunpack.c.h.bf16 %v580
        %v608 = vunpack.c.l.bf16 %v581
        %v609 = vunpack.c.h.bf16 %v581
        %v610 = vunpack.c.l.bf16 %v582
        %v611 = vunpack.c.h.bf16 %v582
        %v612 = vunpack.c.l.bf16 %v583
        %v613 = vunpack.c.h.bf16 %v583
        %v614 = vunpack.c.l.bf16 %v584
        %v615 = vunpack.c.h.bf16 %v584
        %v616 = vunpack.c.l.bf16 %v585
        %v617 = vunpack.c.h.bf16 %v585
        %v618 = vld [vmem:[%s4 + $0x80] sm:$0xff]
        %v619 = vld [vmem:[%s4 + $0x88] sm:$0xff]
        %v620 = vld [vmem:[%s4 + $0x90] sm:$0xff]
        %v621 = vld [vmem:[%s4 + $0x98] sm:$0xff]
        %v622 = vld [vmem:[%s4 + $0xa0] sm:$0xff]
        %v623 = vld [vmem:[%s4 + $0xa8] sm:$0xff]
        %v624 = vld [vmem:[%s4 + $0xb0] sm:$0xff]
        %v625 = vld [vmem:[%s4 + $0xb8] sm:$0xff]
        %v626 = vld [vmem:[%s4 + $0xc0] sm:$0xff]
        %v627 = vld [vmem:[%s4 + $0xc8] sm:$0xff]
        %v628 = vld [vmem:[%s4 + $0xd0] sm:$0xff]
        %v629 = vld [vmem:[%s4 + $0xd8] sm:$0xff]
        %v630 = vld [vmem:[%s4 + $0xe0] sm:$0xff]
        %v631 = vld [vmem:[%s4 + $0xe8] sm:$0xff]
        %v632 = vld [vmem:[%s4 + $0xf0] sm:$0xff]
        %v633 = vld [vmem:[%s4 + $0xf8] sm:$0xff]
        %v634 = vld [vmem:[%s4 + $0x100] sm:$0xff]
        %v635 = vld [vmem:[%s4 + $0x108] sm:$0xff]
        %v636 = vld [vmem:[%s4 + $0x110] sm:$0xff]
        %v637 = vld [vmem:[%s4 + $0x118] sm:$0xff]
        %v638 = vld [vmem:[%s4 + $0x120] sm:$0xff]
        %v639 = vld [vmem:[%s4 + $0x128] sm:$0xff]
        %v640 = vld [vmem:[%s4 + $0x130] sm:$0xff]
        %v641 = vld [vmem:[%s4 + $0x138] sm:$0xff]
        %v642 = vld [vmem:[%s4 + $0x140] sm:$0xff]
        %v643 = vld [vmem:[%s4 + $0x148] sm:$0xff]
        %v644 = vld [vmem:[%s4 + $0x150] sm:$0xff]
        %v645 = vld [vmem:[%s4 + $0x158] sm:$0xff]
        %v646 = vld [vmem:[%s4 + $0x160] sm:$0xff]
        %v647 = vld [vmem:[%s4 + $0x168] sm:$0xff]
        %v648 = vld [vmem:[%s4 + $0x170] sm:$0xff]
        %v649 = vld [vmem:[%s4 + $0x178] sm:$0xff]
        %v650 = vld [vmem:[%s4 + $0x180] sm:$0xff]
        %v651 = vld [vmem:[%s4 + $0x188] sm:$0xff]
        %v652 = vld [vmem:[%s4 + $0x190] sm:$0xff]
        %v653 = vld [vmem:[%s4 + $0x198] sm:$0xff]
        %v654 = vld [vmem:[%s4 + $0x1a0] sm:$0xff]
        %v655 = vld [vmem:[%s4 + $0x1a8] sm:$0xff]
        %v656 = vld [vmem:[%s4 + $0x1b0] sm:$0xff]
        %v657 = vld [vmem:[%s4 + $0x1b8] sm:$0xff]
        %v658 = vld [vmem:[%s4 + $0x1c0] sm:$0xff]
        %v659 = vld [vmem:[%s4 + $0x1c8] sm:$0xff]
        %v660 = vld [vmem:[%s4 + $0x1d0] sm:$0xff]
        %v661 = vld [vmem:[%s4 + $0x1d8] sm:$0xff]
        %v662 = vld [vmem:[%s4 + $0x1e0] sm:$0xff]
        %v663 = vld [vmem:[%s4 + $0x1e8] sm:$0xff]
        %v664 = vld [vmem:[%s4 + $0x1f0] sm:$0xff]
        %v665 = vld [vmem:[%s4 + $0x1f8] sm:$0xff]
        %v666 = vld [vmem:[%s4 + $0x200] sm:$0xff]
        %v667 = vld [vmem:[%s4 + $0x208] sm:$0xff]
        %v668 = vld [vmem:[%s4 + $0x210] sm:$0xff]
        %v669 = vld [vmem:[%s4 + $0x218] sm:$0xff]
        %v670 = vld [vmem:[%s4 + $0x220] sm:$0xff]
        %v671 = vld [vmem:[%s4 + $0x228] sm:$0xff]
        %v672 = vld [vmem:[%s4 + $0x230] sm:$0xff]
        %v673 = vld [vmem:[%s4 + $0x238] sm:$0xff]
        %v674 = vld [vmem:[%s4 + $0x240] sm:$0xff]
        %v675 = vld [vmem:[%s4 + $0x248] sm:$0xff]
        %v676 = vld [vmem:[%s4 + $0x250] sm:$0xff]
        %v677 = vld [vmem:[%s4 + $0x258] sm:$0xff]
        %v678 = vld [vmem:[%s4 + $0x260] sm:$0xff]
        %v679 = vld [vmem:[%s4 + $0x268] sm:$0xff]
        %v680 = vld [vmem:[%s4 + $0x270] sm:$0xff]
        %v681 = vld [vmem:[%s4 + $0x278] sm:$0xff]
        %v682 = vld [vmem:[%s4 + $0x280] sm:$0xff]
        %v683 = vld [vmem:[%s4 + $0x288] sm:$0xff]
        %v684 = vld [vmem:[%s4 + $0x290] sm:$0xff]
        %v685 = vld [vmem:[%s4 + $0x298] sm:$0xff]
        %v686 = vld [vmem:[%s4 + $0x2a0] sm:$0xff]
        %v687 = vld [vmem:[%s4 + $0x2a8] sm:$0xff]
        %v688 = vld [vmem:[%s4 + $0x2b0] sm:$0xff]
        %v689 = vld [vmem:[%s4 + $0x2b8] sm:$0xff]
        %v690 = vld [vmem:[%s4 + $0x2c0] sm:$0xff]
        %v691 = vld [vmem:[%s4 + $0x2c8] sm:$0xff]
        %v692 = vld [vmem:[%s4 + $0x2d0] sm:$0xff]
        %v693 = vld [vmem:[%s4 + $0x2d8] sm:$0xff]
        %v694 = vld [vmem:[%s4 + $0x2e0] sm:$0xff]
        %v695 = vld [vmem:[%s4 + $0x2e8] sm:$0xff]
        %v696 = vld [vmem:[%s4 + $0x2f0] sm:$0xff]
        %v697 = vld [vmem:[%s4 + $0x2f8] sm:$0xff]
        %v698 = vld [vmem:[%s4 + $0x300] sm:$0xff]
        %v699 = vld [vmem:[%s4 + $0x308] sm:$0xff]
        %v700 = vld [vmem:[%s4 + $0x310] sm:$0xff]
        %v701 = vld [vmem:[%s4 + $0x318] sm:$0xff]
        %v702 = vld [vmem:[%s4 + $0x320] sm:$0xff]
        %v703 = vld [vmem:[%s4 + $0x328] sm:$0xff]
        %v704 = vld [vmem:[%s4 + $0x330] sm:$0xff]
        %v705 = vld [vmem:[%s4 + $0x338] sm:$0xff]
        %v706 = vld [vmem:[%s4 + $0x340] sm:$0xff]
        %v707 = vld [vmem:[%s4 + $0x348] sm:$0xff]
        %v708 = vld [vmem:[%s4 + $0x350] sm:$0xff]
        %v709 = vld [vmem:[%s4 + $0x358] sm:$0xff]
        %v710 = vld [vmem:[%s4 + $0x360] sm:$0xff]
        %v711 = vld [vmem:[%s4 + $0x368] sm:$0xff]
        %v712 = vld [vmem:[%s4 + $0x370] sm:$0xff]
        %v713 = vld [vmem:[%s4 + $0x378] sm:$0xff]
        %v714 = vld [vmem:[%s4 + $0x380] sm:$0xff]
        %v715 = vld [vmem:[%s4 + $0x388] sm:$0xff]
        %v716 = vld [vmem:[%s4 + $0x390] sm:$0xff]
        %v717 = vld [vmem:[%s4 + $0x398] sm:$0xff]
        %v718 = vld [vmem:[%s4 + $0x3a0] sm:$0xff]
        %v719 = vld [vmem:[%s4 + $0x3a8] sm:$0xff]
        %v720 = vld [vmem:[%s4 + $0x3b0] sm:$0xff]
        %v721 = vld [vmem:[%s4 + $0x3b8] sm:$0xff]
        %v722 = vld [vmem:[%s4 + $0x3c0] sm:$0xff]
        %v723 = vld [vmem:[%s4 + $0x3c8] sm:$0xff]
        %v724 = vld [vmem:[%s4 + $0x3d0] sm:$0xff]
        %v725 = vld [vmem:[%s4 + $0x3d8] sm:$0xff]
        %v726 = vld [vmem:[%s4 + $0x3e0] sm:$0xff]
        %v727 = vld [vmem:[%s4 + $0x3e8] sm:$0xff]
        %v728 = vld [vmem:[%s4 + $0x3f0] sm:$0xff]
        %v729 = vld [vmem:[%s4 + $0x3f8] sm:$0xff]
        %v730 = vld [vmem:[%s4 + $0x400] sm:$0xff]
        %v731 = vld [vmem:[%s4 + $0x408] sm:$0xff]
        %v732 = vld [vmem:[%s4 + $0x410] sm:$0xff]
        %v733 = vld [vmem:[%s4 + $0x418] sm:$0xff]
        %v734 = vld [vmem:[%s4 + $0x420] sm:$0xff]
        %v735 = vld [vmem:[%s4 + $0x428] sm:$0xff]
        %v736 = vld [vmem:[%s4 + $0x430] sm:$0xff]
        %v737 = vld [vmem:[%s4 + $0x438] sm:$0xff]
        %v738 = vld [vmem:[%s4 + $0x440] sm:$0xff]
        %v739 = vld [vmem:[%s4 + $0x448] sm:$0xff]
        %v740 = vld [vmem:[%s4 + $0x450] sm:$0xff]
        %v741 = vld [vmem:[%s4 + $0x458] sm:$0xff]
        %v742 = vld [vmem:[%s4 + $0x460] sm:$0xff]
        %v743 = vld [vmem:[%s4 + $0x468] sm:$0xff]
        %v744 = vld [vmem:[%s4 + $0x470] sm:$0xff]
        %v745 = vld [vmem:[%s4 + $0x478] sm:$0xff]
        %v746 = vunpack.c.l.bf16 %v618
        %v747 = vunpack.c.h.bf16 %v618
        %v748 = vunpack.c.l.bf16 %v619
        %v749 = vunpack.c.h.bf16 %v619
        %v750 = vunpack.c.l.bf16 %v620
        %v751 = vunpack.c.h.bf16 %v620
        %v752 = vunpack.c.l.bf16 %v621
        %v753 = vunpack.c.h.bf16 %v621
        %v754 = vunpack.c.l.bf16 %v622
        %v755 = vunpack.c.h.bf16 %v622
        %v756 = vunpack.c.l.bf16 %v623
        %v757 = vunpack.c.h.bf16 %v623
        %v758 = vunpack.c.l.bf16 %v624
        %v759 = vunpack.c.h.bf16 %v624
        %v760 = vunpack.c.l.bf16 %v625
        %v761 = vunpack.c.h.bf16 %v625
        %v762 = vunpack.c.l.bf16 %v626
        %v763 = vunpack.c.h.bf16 %v626
        %v764 = vunpack.c.l.bf16 %v627
        %v765 = vunpack.c.h.bf16 %v627
        %v766 = vunpack.c.l.bf16 %v628
        %v767 = vunpack.c.h.bf16 %v628
        %v768 = vunpack.c.l.bf16 %v629
        %v769 = vunpack.c.h.bf16 %v629
        %v770 = vunpack.c.l.bf16 %v630
        %v771 = vunpack.c.h.bf16 %v630
        %v772 = vunpack.c.l.bf16 %v631
        %v773 = vunpack.c.h.bf16 %v631
        %v774 = vunpack.c.l.bf16 %v632
        %v775 = vunpack.c.h.bf16 %v632
        %v776 = vunpack.c.l.bf16 %v633
        %v777 = vunpack.c.h.bf16 %v633
        %v778 = vunpack.c.l.bf16 %v634
        %v779 = vunpack.c.h.bf16 %v634
        %v780 = vunpack.c.l.bf16 %v635
        %v781 = vunpack.c.h.bf16 %v635
        %v782 = vunpack.c.l.bf16 %v636
        %v783 = vunpack.c.h.bf16 %v636
        %v784 = vunpack.c.l.bf16 %v637
        %v785 = vunpack.c.h.bf16 %v637
        %v786 = vunpack.c.l.bf16 %v638
        %v787 = vunpack.c.h.bf16 %v638
        %v788 = vunpack.c.l.bf16 %v639
        %v789 = vunpack.c.h.bf16 %v639
        %v790 = vunpack.c.l.bf16 %v640
        %v791 = vunpack.c.h.bf16 %v640
        %v792 = vunpack.c.l.bf16 %v641
        %v793 = vunpack.c.h.bf16 %v641
        %v794 = vunpack.c.l.bf16 %v642
        %v795 = vunpack.c.h.bf16 %v642
        %v796 = vunpack.c.l.bf16 %v643
        %v797 = vunpack.c.h.bf16 %v643
        %v798 = vunpack.c.l.bf16 %v644
        %v799 = vunpack.c.h.bf16 %v644
        %v800 = vunpack.c.l.bf16 %v645
        %v801 = vunpack.c.h.bf16 %v645
        %v802 = vunpack.c.l.bf16 %v646
        %v803 = vunpack.c.h.bf16 %v646
        %v804 = vunpack.c.l.bf16 %v647
        %v805 = vunpack.c.h.bf16 %v647
        %v806 = vunpack.c.l.bf16 %v648
        %v807 = vunpack.c.h.bf16 %v648
        %v808 = vunpack.c.l.bf16 %v649
        %v809 = vunpack.c.h.bf16 %v649
        %v810 = vunpack.c.l.bf16 %v650
        %v811 = vunpack.c.h.bf16 %v650
        %v812 = vunpack.c.l.bf16 %v651
        %v813 = vunpack.c.h.bf16 %v651
        %v814 = vunpack.c.l.bf16 %v652
        %v815 = vunpack.c.h.bf16 %v652
        %v816 = vunpack.c.l.bf16 %v653
        %v817 = vunpack.c.h.bf16 %v653
        %v818 = vunpack.c.l.bf16 %v654
        %v819 = vunpack.c.h.bf16 %v654
        %v820 = vunpack.c.l.bf16 %v655
        %v821 = vunpack.c.h.bf16 %v655
        %v822 = vunpack.c.l.bf16 %v656
        %v823 = vunpack.c.h.bf16 %v656
        %v824 = vunpack.c.l.bf16 %v657
        %v825 = vunpack.c.h.bf16 %v657
        %v826 = vunpack.c.l.bf16 %v658
        %v827 = vunpack.c.h.bf16 %v658
        %v828 = vunpack.c.l.bf16 %v659
        %v829 = vunpack.c.h.bf16 %v659
        %v830 = vunpack.c.l.bf16 %v660
        %v831 = vunpack.c.h.bf16 %v660
        %v832 = vunpack.c.l.bf16 %v661
        %v833 = vunpack.c.h.bf16 %v661
        %v834 = vunpack.c.l.bf16 %v662
        %v835 = vunpack.c.h.bf16 %v662
        %v836 = vunpack.c.l.bf16 %v663
        %v837 = vunpack.c.h.bf16 %v663
        %v838 = vunpack.c.l.bf16 %v664
        %v839 = vunpack.c.h.bf16 %v664
        %v840 = vunpack.c.l.bf16 %v665
        %v841 = vunpack.c.h.bf16 %v665
        %v842 = vunpack.c.l.bf16 %v666
        %v843 = vunpack.c.h.bf16 %v666
        %v844 = vunpack.c.l.bf16 %v667
        %v845 = vunpack.c.h.bf16 %v667
        %v846 = vunpack.c.l.bf16 %v668
        %v847 = vunpack.c.h.bf16 %v668
        %v848 = vunpack.c.l.bf16 %v669
        %v849 = vunpack.c.h.bf16 %v669
        %v850 = vunpack.c.l.bf16 %v670
        %v851 = vunpack.c.h.bf16 %v670
        %v852 = vunpack.c.l.bf16 %v671
        %v853 = vunpack.c.h.bf16 %v671
        %v854 = vunpack.c.l.bf16 %v672
        %v855 = vunpack.c.h.bf16 %v672
        %v856 = vunpack.c.l.bf16 %v673
        %v857 = vunpack.c.h.bf16 %v673
        %v858 = vunpack.c.l.bf16 %v674
        %v859 = vunpack.c.h.bf16 %v674
        %v860 = vunpack.c.l.bf16 %v675
        %v861 = vunpack.c.h.bf16 %v675
        %v862 = vunpack.c.l.bf16 %v676
        %v863 = vunpack.c.h.bf16 %v676
        %v864 = vunpack.c.l.bf16 %v677
        %v865 = vunpack.c.h.bf16 %v677
        %v866 = vunpack.c.l.bf16 %v678
        %v867 = vunpack.c.h.bf16 %v678
        %v868 = vunpack.c.l.bf16 %v679
        %v869 = vunpack.c.h.bf16 %v679
        %v870 = vunpack.c.l.bf16 %v680
        %v871 = vunpack.c.h.bf16 %v680
        %v872 = vunpack.c.l.bf16 %v681
        %v873 = vunpack.c.h.bf16 %v681
        %v874 = vunpack.c.l.bf16 %v682
        %v875 = vunpack.c.h.bf16 %v682
        %v876 = vunpack.c.l.bf16 %v683
        %v877 = vunpack.c.h.bf16 %v683
        %v878 = vunpack.c.l.bf16 %v684
        %v879 = vunpack.c.h.bf16 %v684
        %v880 = vunpack.c.l.bf16 %v685
        %v881 = vunpack.c.h.bf16 %v685
        %v882 = vunpack.c.l.bf16 %v686
        %v883 = vunpack.c.h.bf16 %v686
        %v884 = vunpack.c.l.bf16 %v687
        %v885 = vunpack.c.h.bf16 %v687
        %v886 = vunpack.c.l.bf16 %v688
        %v887 = vunpack.c.h.bf16 %v688
        %v888 = vunpack.c.l.bf16 %v689
        %v889 = vunpack.c.h.bf16 %v689
        %v890 = vunpack.c.l.bf16 %v690
        %v891 = vunpack.c.h.bf16 %v690
        %v892 = vunpack.c.l.bf16 %v691
        %v893 = vunpack.c.h.bf16 %v691
        %v894 = vunpack.c.l.bf16 %v692
        %v895 = vunpack.c.h.bf16 %v692
        %v896 = vunpack.c.l.bf16 %v693
        %v897 = vunpack.c.h.bf16 %v693
        %v898 = vunpack.c.l.bf16 %v694
        %v899 = vunpack.c.h.bf16 %v694
        %v900 = vunpack.c.l.bf16 %v695
        %v901 = vunpack.c.h.bf16 %v695
        %v902 = vunpack.c.l.bf16 %v696
        %v903 = vunpack.c.h.bf16 %v696
        %v904 = vunpack.c.l.bf16 %v697
        %v905 = vunpack.c.h.bf16 %v697
        %v906 = vunpack.c.l.bf16 %v698
        %v907 = vunpack.c.h.bf16 %v698
        %v908 = vunpack.c.l.bf16 %v699
        %v909 = vunpack.c.h.bf16 %v699
        %v910 = vunpack.c.l.bf16 %v700
        %v911 = vunpack.c.h.bf16 %v700
        %v912 = vunpack.c.l.bf16 %v701
        %v913 = vunpack.c.h.bf16 %v701
        %v914 = vunpack.c.l.bf16 %v702
        %v915 = vunpack.c.h.bf16 %v702
        %v916 = vunpack.c.l.bf16 %v703
        %v917 = vunpack.c.h.bf16 %v703
        %v918 = vunpack.c.l.bf16 %v704
        %v919 = vunpack.c.h.bf16 %v704
        %v920 = vunpack.c.l.bf16 %v705
        %v921 = vunpack.c.h.bf16 %v705
        %v922 = vunpack.c.l.bf16 %v706
        %v923 = vunpack.c.h.bf16 %v706
        %v924 = vunpack.c.l.bf16 %v707
        %v925 = vunpack.c.h.bf16 %v707
        %v926 = vunpack.c.l.bf16 %v708
        %v927 = vunpack.c.h.bf16 %v708
        %v928 = vunpack.c.l.bf16 %v709
        %v929 = vunpack.c.h.bf16 %v709
        %v930 = vunpack.c.l.bf16 %v710
        %v931 = vunpack.c.h.bf16 %v710
        %v932 = vunpack.c.l.bf16 %v711
        %v933 = vunpack.c.h.bf16 %v711
        %v934 = vunpack.c.l.bf16 %v712
        %v935 = vunpack.c.h.bf16 %v712
        %v936 = vunpack.c.l.bf16 %v713
        %v937 = vunpack.c.h.bf16 %v713
        %v938 = vunpack.c.l.bf16 %v714
        %v939 = vunpack.c.h.bf16 %v714
        %v940 = vunpack.c.l.bf16 %v715
        %v941 = vunpack.c.h.bf16 %v715
        %v942 = vunpack.c.l.bf16 %v716
        %v943 = vunpack.c.h.bf16 %v716
        %v944 = vunpack.c.l.bf16 %v717
        %v945 = vunpack.c.h.bf16 %v717
        %v946 = vunpack.c.l.bf16 %v718
        %v947 = vunpack.c.h.bf16 %v718
        %v948 = vunpack.c.l.bf16 %v719
        %v949 = vunpack.c.h.bf16 %v719
        %v950 = vunpack.c.l.bf16 %v720
        %v951 = vunpack.c.h.bf16 %v720
        %v952 = vunpack.c.l.bf16 %v721
        %v953 = vunpack.c.h.bf16 %v721
        %v954 = vunpack.c.l.bf16 %v722
        %v955 = vunpack.c.h.bf16 %v722
        %v956 = vunpack.c.l.bf16 %v723
        %v957 = vunpack.c.h.bf16 %v723
        %v958 = vunpack.c.l.bf16 %v724
        %v959 = vunpack.c.h.bf16 %v724
        %v960 = vunpack.c.l.bf16 %v725
        %v961 = vunpack.c.h.bf16 %v725
        %v962 = vunpack.c.l.bf16 %v726
        %v963 = vunpack.c.h.bf16 %v726
        %v964 = vunpack.c.l.bf16 %v727
        %v965 = vunpack.c.h.bf16 %v727
        %v966 = vunpack.c.l.bf16 %v728
        %v967 = vunpack.c.h.bf16 %v728
        %v968 = vunpack.c.l.bf16 %v729
        %v969 = vunpack.c.h.bf16 %v729
        %v970 = vunpack.c.l.bf16 %v730
        %v971 = vunpack.c.h.bf16 %v730
        %v972 = vunpack.c.l.bf16 %v731
        %v973 = vunpack.c.h.bf16 %v731
        %v974 = vunpack.c.l.bf16 %v732
        %v975 = vunpack.c.h.bf16 %v732
        %v976 = vunpack.c.l.bf16 %v733
        %v977 = vunpack.c.h.bf16 %v733
        %v978 = vunpack.c.l.bf16 %v734
        %v979 = vunpack.c.h.bf16 %v734
        %v980 = vunpack.c.l.bf16 %v735
        %v981 = vunpack.c.h.bf16 %v735
        %v982 = vunpack.c.l.bf16 %v736
        %v983 = vunpack.c.h.bf16 %v736
        %v984 = vunpack.c.l.bf16 %v737
        %v985 = vunpack.c.h.bf16 %v737
        %v986 = vunpack.c.l.bf16 %v738
        %v987 = vunpack.c.h.bf16 %v738
        %v988 = vunpack.c.l.bf16 %v739
        %v989 = vunpack.c.h.bf16 %v739
        %v990 = vunpack.c.l.bf16 %v740
        %v991 = vunpack.c.h.bf16 %v740
        %v992 = vunpack.c.l.bf16 %v741
        %v993 = vunpack.c.h.bf16 %v741
        %v994 = vunpack.c.l.bf16 %v742
        %v995 = vunpack.c.h.bf16 %v742
        %v996 = vunpack.c.l.bf16 %v743
        %v997 = vunpack.c.h.bf16 %v743
        %v998 = vunpack.c.l.bf16 %v744
        %v999 = vunpack.c.h.bf16 %v744
        %v1000 = vunpack.c.l.bf16 %v745
        %v1001 = vunpack.c.h.bf16 %v745
        %v1002 = vld [vmem:[%s5] ss:$8 sm:$0x3]
        %s1003 = scalar_lea.vmem %s5, 1
        %v1004 = vld [vmem:[%s1003] ss:$8 sm:$0x3]
        %s1005 = scalar_lea.vmem %s5, 2
        %v1006 = vld [vmem:[%s1005] ss:$8 sm:$0x3]
        %s1007 = scalar_lea.vmem %s5, 3
        %v1008 = vld [vmem:[%s1007] ss:$8 sm:$0x3]
        %v1009 = vld [vmem:[%s5 + $0x4] ss:$0 sm:$0xff]
        %v1010 = vld [vmem:[%s5 + $0x5] ss:$0 sm:$0xff]
        %v1011 = vld [vmem:[%s5 + $0x6] ss:$0 sm:$0xff]
        %v1012 = vld [vmem:[%s5 + $0x7] ss:$0 sm:$0xff]
        %vm1013 = vcmask 261120
        %v1015 = vsel %vm1013, %v270, 0
        %v1018 = vsel %vm1013, %v271, 0
        %v1021 = vsel %vm1013, %v272, 0
        %v1024 = vsel %vm1013, %v273, 0
        %v1027 = vsel %vm1013, %v274, 0
        %v1030 = vsel %vm1013, %v275, 0
        %v1033 = vsel %vm1013, %v276, 0
        %v1036 = vsel %vm1013, %v277, 0
        %v1039 = vsel %vm1013, %v278, 0
        %v1042 = vsel %vm1013, %v279, 0
        %v1045 = vsel %vm1013, %v280, 0
        %v1048 = vsel %vm1013, %v281, 0
        %v1051 = vsel %vm1013, %v282, 0
        %v1054 = vsel %vm1013, %v283, 0
        %v1057 = vsel %vm1013, %v284, 0
        %v1060 = vsel %vm1013, %v285, 0
        %v1063 = vsel %vm1013, %v286, 0
        %v1066 = vsel %vm1013, %v287, 0
        %v1069 = vsel %vm1013, %v288, 0
        %v1072 = vsel %vm1013, %v289, 0
        %v1075 = vsel %vm1013, %v290, 0
        %v1078 = vsel %vm1013, %v291, 0
        %v1081 = vsel %vm1013, %v292, 0
        %v1084 = vsel %vm1013, %v293, 0
        %v1087 = vsel %vm1013, %v294, 0
        %v1090 = vsel %vm1013, %v295, 0
        %v1093 = vsel %vm1013, %v296, 0
        %v1096 = vsel %vm1013, %v297, 0
        %v1099 = vsel %vm1013, %v298, 0
        %v1102 = vsel %vm1013, %v299, 0
        %v1105 = vsel %vm1013, %v300, 0
        %v1108 = vsel %vm1013, %v301, 0
        %1110 = vmatprep.subr.mxu0 0.0
        %1111 = vmatpush1.msra.mxu0 0.0
        %1112 = vmatprep.subr.mxu0 0.0
        %1113 = vmatpush1.msra.mxu0 0.0
        %1114 = vmatprep.subr.mxu0 0.0
        %1115 = vmatpush1.msra.mxu0 0.0
        %1116 = vmatprep.subr.mxu0 0.0
        %1117 = vmatpush1.msra.mxu0 0.0
        %1118 = vmatprep.subr.mxu0 0.0
        %1119 = vmatpush1.msra.mxu0 0.0
        %1120 = vmatprep.subr.mxu0 0.0
        %1121 = vmatpush1.msra.mxu0 0.0
        %1122 = vmatprep.subr.mxu0 0.0
        %1123 = vmatpush1.msra.mxu0 0.0
        %1124 = vmatprep.subr.mxu0 0.0
        %1125 = vmatpush1.msra.mxu0 0.0
        %1126 = vmatprep.subr.mxu0 0.0
        %1127 = vmatpush1.msra.mxu0 0.0
        %1128 = vmatprep.subr.mxu0 0.0
        %1129 = vmatpush1.msra.mxu0 0.0
        %1130 = vmatprep.subr.mxu0 0.0
        %1131 = vmatpush1.msra.mxu0 0.0
        %1132 = vmatprep.subr.mxu0 0.0
        %1133 = vmatpush1.msra.mxu0 0.0
        %1134 = vmatprep.subr.mxu0 0.0
        %1135 = vmatpush1.msra.mxu0 %v565
        %1136 = vmatprep.subr.mxu0 0.0
        %1137 = vmatpush1.msra.mxu0 %v564
        %1138 = vmatprep.subr.mxu0 0.0
        %1139 = vmatpush1.msra.mxu0 %v563
        %1140 = vmatprep.subr.mxu0 0.0
        %1141 = vmatpush1.msra.mxu0 %v562
        %1142 = vmatprep.subr.mxu0 0.0
        %1143 = vmatpush2.msra.mxu0 0.0
        %1144 = vmatprep.subr.mxu0 0.0
        %1145 = vmatpush2.msra.mxu0 0.0
        %1146 = vmatprep.subr.mxu0 0.0
        %1147 = vmatpush2.msra.mxu0 0.0
        %1148 = vmatprep.subr.mxu0 0.0
        %1149 = vmatpush2.msra.mxu0 0.0
        %1150 = vmatprep.subr.mxu0 0.0
        %1151 = vmatpush2.msra.mxu0 0.0
        %1152 = vmatprep.subr.mxu0 0.0
        %1153 = vmatpush2.msra.mxu0 0.0
        %1154 = vmatprep.subr.mxu0 0.0
        %1155 = vmatpush2.msra.mxu0 0.0
        %1156 = vmatprep.subr.mxu0 0.0
        %1157 = vmatpush2.msra.mxu0 0.0
        %1158 = vmatprep.subr.mxu0 0.0
        %1159 = vmatpush2.msra.mxu0 0.0
        %1160 = vmatprep.subr.mxu0 0.0
        %1161 = vmatpush2.msra.mxu0 0.0
        %1162 = vmatprep.subr.mxu0 0.0
        %1163 = vmatpush2.msra.mxu0 0.0
        %1164 = vmatprep.subr.mxu0 0.0
        %1165 = vmatpush2.msra.mxu0 0.0
        %1166 = vmatprep.subr.mxu0 0.0
        %1167 = vmatpush2.msra.mxu0 0.0
        %1168 = vmatprep.subr.mxu0 0.0
        %1169 = vmatpush2.msra.mxu0 0.0
        %1170 = vmatprep.subr.mxu0 0.0
        %1171 = vmatpush2.msra.mxu0 0.0
        %1172 = vmatprep.subr.mxu0 0.0
        %1173 = vmatpush2.msra.mxu0 0.0
        %1174 = vmatprep.mubr.f32.mxu0 0.0
        %1175 = vmatmul.mubr.f32.gmra.mxu0 %v1015
        %v1176 = vpop.f32.mrf.mxu0
        %v1177 = vadd.f32 0.0, %v1176
        %v1178 = vpop.f32.mrf.mxu0
        %1179 = vmatprep.mubr.f32.mxu0 0.0
        %1180 = vmatmul.mubr.f32.gmra.mxu0 %v1018
        %v1181 = vpop.f32.mrf.mxu0
        %v1182 = vadd.f32 0.0, %v1181
        %v1183 = vpop.f32.mrf.mxu0
        %1184 = vmatprep.mubr.f32.mxu0 0.0
        %1185 = vmatmul.mubr.f32.gmra.mxu0 %v1021
        %v1186 = vpop.f32.mrf.mxu0
        %v1187 = vadd.f32 0.0, %v1186
        %v1188 = vpop.f32.mrf.mxu0
        %1189 = vmatprep.mubr.f32.mxu0 0.0
        %1190 = vmatmul.mubr.f32.gmra.mxu0 %v1024
        %v1191 = vpop.f32.mrf.mxu0
        %v1192 = vadd.f32 0.0, %v1191
        %v1193 = vpop.f32.mrf.mxu0
        %1194 = vmatprep.mubr.f32.mxu0 0.0
        %1195 = vmatmul.mubr.f32.gmra.mxu0 %v1027
        %v1196 = vpop.f32.mrf.mxu0
        %v1197 = vadd.f32 0.0, %v1196
        %v1198 = vpop.f32.mrf.mxu0
        %1199 = vmatprep.mubr.f32.mxu0 0.0
        %1200 = vmatmul.mubr.f32.gmra.mxu0 %v1030
        %v1201 = vpop.f32.mrf.mxu0
        %v1202 = vadd.f32 0.0, %v1201
        %v1203 = vpop.f32.mrf.mxu0
        %1204 = vmatprep.mubr.f32.mxu0 0.0
        %1205 = vmatmul.mubr.f32.gmra.mxu0 %v1033
        %v1206 = vpop.f32.mrf.mxu0
        %v1207 = vadd.f32 0.0, %v1206
        %v1208 = vpop.f32.mrf.mxu0
        %1209 = vmatprep.mubr.f32.mxu0 0.0
        %1210 = vmatmul.mubr.f32.gmra.mxu0 %v1036
        %v1211 = vpop.f32.mrf.mxu0
        %v1212 = vadd.f32 0.0, %v1211
        %v1213 = vpop.f32.mrf.mxu0
        %1214 = vmatprep.mubr.f32.mxu0 0.0
        %1215 = vmatmul.mubr.f32.gmra.mxu0 %v1039
        %v1216 = vpop.f32.mrf.mxu0
        %v1217 = vadd.f32 0.0, %v1216
        %v1218 = vpop.f32.mrf.mxu0
        %1219 = vmatprep.mubr.f32.mxu0 0.0
        %1220 = vmatmul.mubr.f32.gmra.mxu0 %v1042
        %v1221 = vpop.f32.mrf.mxu0
        %v1222 = vadd.f32 0.0, %v1221
        %v1223 = vpop.f32.mrf.mxu0
        %1224 = vmatprep.mubr.f32.mxu0 0.0
        %1225 = vmatmul.mubr.f32.gmra.mxu0 %v1045
        %v1226 = vpop.f32.mrf.mxu0
        %v1227 = vadd.f32 0.0, %v1226
        %v1228 = vpop.f32.mrf.mxu0
        %1229 = vmatprep.mubr.f32.mxu0 0.0
        %1230 = vmatmul.mubr.f32.gmra.mxu0 %v1048
        %v1231 = vpop.f32.mrf.mxu0
        %v1232 = vadd.f32 0.0, %v1231
        %v1233 = vpop.f32.mrf.mxu0
        %1234 = vmatprep.mubr.f32.mxu0 0.0
        %1235 = vmatmul.mubr.f32.gmra.mxu0 %v1051
        %v1236 = vpop.f32.mrf.mxu0
        %v1237 = vadd.f32 0.0, %v1236
        %v1238 = vpop.f32.mrf.mxu0
        %1239 = vmatprep.mubr.f32.mxu0 0.0
        %1240 = vmatmul.mubr.f32.gmra.mxu0 %v1054
        %v1241 = vpop.f32.mrf.mxu0
        %v1242 = vadd.f32 0.0, %v1241
        %v1243 = vpop.f32.mrf.mxu0
        %1244 = vmatprep.mubr.f32.mxu0 0.0
        %1245 = vmatmul.mubr.f32.gmra.mxu0 %v1057
        %v1246 = vpop.f32.mrf.mxu0
        %v1247 = vadd.f32 0.0, %v1246
        %v1248 = vpop.f32.mrf.mxu0
        %1249 = vmatprep.mubr.f32.mxu0 0.0
        %1250 = vmatmul.mubr.f32.gmra.mxu0 %v1060
        %v1251 = vpop.f32.mrf.mxu0
        %v1252 = vadd.f32 0.0, %v1251
        %v1253 = vpop.f32.mrf.mxu0
        %1254 = vmatprep.mubr.f32.mxu0 0.0
        %1255 = vmatmul.mubr.f32.gmra.mxu0 %v1063
        %v1256 = vpop.f32.mrf.mxu0
        %v1257 = vadd.f32 0.0, %v1256
        %v1258 = vpop.f32.mrf.mxu0
        %1259 = vmatprep.mubr.f32.mxu0 0.0
        %1260 = vmatmul.mubr.f32.gmra.mxu0 %v1066
        %v1261 = vpop.f32.mrf.mxu0
        %v1262 = vadd.f32 0.0, %v1261
        %v1263 = vpop.f32.mrf.mxu0
        %1264 = vmatprep.mubr.f32.mxu0 0.0
        %1265 = vmatmul.mubr.f32.gmra.mxu0 %v1069
        %v1266 = vpop.f32.mrf.mxu0
        %v1267 = vadd.f32 0.0, %v1266
        %v1268 = vpop.f32.mrf.mxu0
        %1269 = vmatprep.mubr.f32.mxu0 0.0
        %1270 = vmatmul.mubr.f32.gmra.mxu0 %v1072
        %v1271 = vpop.f32.mrf.mxu0
        %v1272 = vadd.f32 0.0, %v1271
        %v1273 = vpop.f32.mrf.mxu0
        %1274 = vmatprep.mubr.f32.mxu0 0.0
        %1275 = vmatmul.mubr.f32.gmra.mxu0 %v1075
        %v1276 = vpop.f32.mrf.mxu0
        %v1277 = vadd.f32 0.0, %v1276
        %v1278 = vpop.f32.mrf.mxu0
        %1279 = vmatprep.mubr.f32.mxu0 0.0
        %1280 = vmatmul.mubr.f32.gmra.mxu0 %v1078
        %v1281 = vpop.f32.mrf.mxu0
        %v1282 = vadd.f32 0.0, %v1281
        %v1283 = vpop.f32.mrf.mxu0
        %1284 = vmatprep.mubr.f32.mxu0 0.0
        %1285 = vmatmul.mubr.f32.gmra.mxu0 %v1081
        %v1286 = vpop.f32.mrf.mxu0
        %v1287 = vadd.f32 0.0, %v1286
        %v1288 = vpop.f32.mrf.mxu0
        %1289 = vmatprep.mubr.f32.mxu0 0.0
        %1290 = vmatmul.mubr.f32.gmra.mxu0 %v1084
        %v1291 = vpop.f32.mrf.mxu0
        %v1292 = vadd.f32 0.0, %v1291
        %v1293 = vpop.f32.mrf.mxu0
        %1294 = vmatprep.mubr.f32.mxu0 0.0
        %1295 = vmatmul.mubr.f32.gmra.mxu0 %v1087
        %v1296 = vpop.f32.mrf.mxu0
        %v1297 = vadd.f32 0.0, %v1296
        %v1298 = vpop.f32.mrf.mxu0
        %1299 = vmatprep.mubr.f32.mxu0 0.0
        %1300 = vmatmul.mubr.f32.gmra.mxu0 %v1090
        %v1301 = vpop.f32.mrf.mxu0
        %v1302 = vadd.f32 0.0, %v1301
        %v1303 = vpop.f32.mrf.mxu0
        %1304 = vmatprep.mubr.f32.mxu0 0.0
        %1305 = vmatmul.mubr.f32.gmra.mxu0 %v1093
        %v1306 = vpop.f32.mrf.mxu0
        %v1307 = vadd.f32 0.0, %v1306
        %v1308 = vpop.f32.mrf.mxu0
        %1309 = vmatprep.mubr.f32.mxu0 0.0
        %1310 = vmatmul.mubr.f32.gmra.mxu0 %v1096
        %v1311 = vpop.f32.mrf.mxu0
        %v1312 = vadd.f32 0.0, %v1311
        %v1313 = vpop.f32.mrf.mxu0
        %1314 = vmatprep.mubr.f32.mxu0 0.0
        %1315 = vmatmul.mubr.f32.gmra.mxu0 %v1099
        %v1316 = vpop.f32.mrf.mxu0
        %v1317 = vadd.f32 0.0, %v1316
        %v1318 = vpop.f32.mrf.mxu0
        %1319 = vmatprep.mubr.f32.mxu0 0.0
        %1320 = vmatmul.mubr.f32.gmra.mxu0 %v1102
        %v1321 = vpop.f32.mrf.mxu0
        %v1322 = vadd.f32 0.0, %v1321
        %v1323 = vpop.f32.mrf.mxu0
        %1324 = vmatprep.mubr.f32.mxu0 0.0
        %1325 = vmatmul.mubr.f32.gmra.mxu0 %v1105
        %v1326 = vpop.f32.mrf.mxu0
        %v1327 = vadd.f32 0.0, %v1326
        %v1328 = vpop.f32.mrf.mxu0
        %1329 = vmatprep.mubr.f32.mxu0 0.0
        %1330 = vmatmul.mubr.f32.gmra.mxu0 %v1108
        %v1331 = vpop.f32.mrf.mxu0
        %v1332 = vadd.f32 0.0, %v1331
        %v1333 = vpop.f32.mrf.mxu0
        %1334 = vdwg.mxu0
        %v1335 = vmul.f32 %v270, %v270
        %v1336 = vmul.f32 %v271, %v271
        %v1337 = vmul.f32 %v272, %v272
        %v1338 = vmul.f32 %v273, %v273
        %v1339 = vmul.f32 %v274, %v274
        %v1340 = vmul.f32 %v275, %v275
        %v1341 = vmul.f32 %v276, %v276
        %v1342 = vmul.f32 %v277, %v277
        %v1343 = vmul.f32 %v278, %v278
        %v1344 = vmul.f32 %v279, %v279
        %v1345 = vmul.f32 %v280, %v280
        %v1346 = vmul.f32 %v281, %v281
        %v1347 = vmul.f32 %v282, %v282
        %v1348 = vmul.f32 %v283, %v283
        %v1349 = vmul.f32 %v284, %v284
        %v1350 = vmul.f32 %v285, %v285
        %v1351 = vmul.f32 %v286, %v286
        %v1352 = vmul.f32 %v287, %v287
        %v1353 = vmul.f32 %v288, %v288
        %v1354 = vmul.f32 %v289, %v289
        %v1355 = vmul.f32 %v290, %v290
        %v1356 = vmul.f32 %v291, %v291
        %v1357 = vmul.f32 %v292, %v292
        %v1358 = vmul.f32 %v293, %v293
        %v1359 = vmul.f32 %v294, %v294
        %v1360 = vmul.f32 %v295, %v295
        %v1361 = vmul.f32 %v296, %v296
        %v1362 = vmul.f32 %v297, %v297
        %v1363 = vmul.f32 %v298, %v298
        %v1364 = vmul.f32 %v299, %v299
        %v1365 = vmul.f32 %v300, %v300
        %v1366 = vmul.f32 %v301, %v301
        %v1368 = vsel %vm1013, %v1335, 0
        %v1371 = vsel %vm1013, %v1336, 0
        %v1374 = vsel %vm1013, %v1337, 0
        %v1377 = vsel %vm1013, %v1338, 0
        %v1380 = vsel %vm1013, %v1339, 0
        %v1383 = vsel %vm1013, %v1340, 0
        %v1386 = vsel %vm1013, %v1341, 0
        %v1389 = vsel %vm1013, %v1342, 0
        %v1392 = vsel %vm1013, %v1343, 0
        %v1395 = vsel %vm1013, %v1344, 0
        %v1398 = vsel %vm1013, %v1345, 0
        %v1401 = vsel %vm1013, %v1346, 0
        %v1404 = vsel %vm1013, %v1347, 0
        %v1407 = vsel %vm1013, %v1348, 0
        %v1410 = vsel %vm1013, %v1349, 0
        %v1413 = vsel %vm1013, %v1350, 0
        %v1416 = vsel %vm1013, %v1351, 0
        %v1419 = vsel %vm1013, %v1352, 0
        %v1422 = vsel %vm1013, %v1353, 0
        %v1425 = vsel %vm1013, %v1354, 0
        %v1428 = vsel %vm1013, %v1355, 0
        %v1431 = vsel %vm1013, %v1356, 0
        %v1434 = vsel %vm1013, %v1357, 0
        %v1437 = vsel %vm1013, %v1358, 0
        %v1440 = vsel %vm1013, %v1359, 0
        %v1443 = vsel %vm1013, %v1360, 0
        %v1446 = vsel %vm1013, %v1361, 0
        %v1449 = vsel %vm1013, %v1362, 0
        %v1452 = vsel %vm1013, %v1363, 0
        %v1455 = vsel %vm1013, %v1364, 0
        %v1458 = vsel %vm1013, %v1365, 0
        %v1461 = vsel %vm1013, %v1366, 0
        %1463 = vmatprep.subr.mxu0 0.0
        %1464 = vmatpush1.msra.mxu0 0.0
        %1465 = vmatprep.subr.mxu0 0.0
        %1466 = vmatpush1.msra.mxu0 0.0
        %1467 = vmatprep.subr.mxu0 0.0
        %1468 = vmatpush1.msra.mxu0 0.0
        %1469 = vmatprep.subr.mxu0 0.0
        %1470 = vmatpush1.msra.mxu0 0.0
        %1471 = vmatprep.subr.mxu0 0.0
        %1472 = vmatpush1.msra.mxu0 0.0
        %1473 = vmatprep.subr.mxu0 0.0
        %1474 = vmatpush1.msra.mxu0 0.0
        %1475 = vmatprep.subr.mxu0 0.0
        %1476 = vmatpush1.msra.mxu0 0.0
        %1477 = vmatprep.subr.mxu0 0.0
        %1478 = vmatpush1.msra.mxu0 0.0
        %1479 = vmatprep.subr.mxu0 0.0
        %1480 = vmatpush1.msra.mxu0 0.0
        %1481 = vmatprep.subr.mxu0 0.0
        %1482 = vmatpush1.msra.mxu0 0.0
        %1483 = vmatprep.subr.mxu0 0.0
        %1484 = vmatpush1.msra.mxu0 0.0
        %1485 = vmatprep.subr.mxu0 0.0
        %1486 = vmatpush1.msra.mxu0 0.0
        %1487 = vmatprep.subr.mxu0 0.0
        %1488 = vmatpush1.msra.mxu0 %v565
        %1489 = vmatprep.subr.mxu0 0.0
        %1490 = vmatpush1.msra.mxu0 %v564
        %1491 = vmatprep.subr.mxu0 0.0
        %1492 = vmatpush1.msra.mxu0 %v563
        %1493 = vmatprep.subr.mxu0 0.0
        %1494 = vmatpush1.msra.mxu0 %v562
        %1495 = vmatprep.subr.mxu0 0.0
        %1496 = vmatpush2.msra.mxu0 0.0
        %1497 = vmatprep.subr.mxu0 0.0
        %1498 = vmatpush2.msra.mxu0 0.0
        %1499 = vmatprep.subr.mxu0 0.0
        %1500 = vmatpush2.msra.mxu0 0.0
        %1501 = vmatprep.subr.mxu0 0.0
        %1502 = vmatpush2.msra.mxu0 0.0
        %1503 = vmatprep.subr.mxu0 0.0
        %1504 = vmatpush2.msra.mxu0 0.0
        %1505 = vmatprep.subr.mxu0 0.0
        %1506 = vmatpush2.msra.mxu0 0.0
        %1507 = vmatprep.subr.mxu0 0.0
        %1508 = vmatpush2.msra.mxu0 0.0
        %1509 = vmatprep.subr.mxu0 0.0
        %1510 = vmatpush2.msra.mxu0 0.0
        %1511 = vmatprep.subr.mxu0 0.0
        %1512 = vmatpush2.msra.mxu0 0.0
        %1513 = vmatprep.subr.mxu0 0.0
        %1514 = vmatpush2.msra.mxu0 0.0
        %1515 = vmatprep.subr.mxu0 0.0
        %1516 = vmatpush2.msra.mxu0 0.0
        %1517 = vmatprep.subr.mxu0 0.0
        %1518 = vmatpush2.msra.mxu0 0.0
        %1519 = vmatprep.subr.mxu0 0.0
        %1520 = vmatpush2.msra.mxu0 0.0
        %1521 = vmatprep.subr.mxu0 0.0
        %1522 = vmatpush2.msra.mxu0 0.0
        %1523 = vmatprep.subr.mxu0 0.0
        %1524 = vmatpush2.msra.mxu0 0.0
        %1525 = vmatprep.subr.mxu0 0.0
        %1526 = vmatpush2.msra.mxu0 0.0
        %1527 = vmatprep.mubr.f32.mxu0 0.0
        %1528 = vmatmul.mubr.f32.gmra.mxu0 %v1368
        %v1529 = vpop.f32.mrf.mxu0
        %v1530 = vadd.f32 0.0, %v1529
        %v1531 = vpop.f32.mrf.mxu0
        %1532 = vmatprep.mubr.f32.mxu0 0.0
        %1533 = vmatmul.mubr.f32.gmra.mxu0 %v1371
        %v1534 = vpop.f32.mrf.mxu0
        %v1535 = vadd.f32 0.0, %v1534
        %v1536 = vpop.f32.mrf.mxu0
        %1537 = vmatprep.mubr.f32.mxu0 0.0
        %1538 = vmatmul.mubr.f32.gmra.mxu0 %v1374
        %v1539 = vpop.f32.mrf.mxu0
        %v1540 = vadd.f32 0.0, %v1539
        %v1541 = vpop.f32.mrf.mxu0
        %1542 = vmatprep.mubr.f32.mxu0 0.0
        %1543 = vmatmul.mubr.f32.gmra.mxu0 %v1377
        %v1544 = vpop.f32.mrf.mxu0
        %v1545 = vadd.f32 0.0, %v1544
        %v1546 = vpop.f32.mrf.mxu0
        %1547 = vmatprep.mubr.f32.mxu0 0.0
        %1548 = vmatmul.mubr.f32.gmra.mxu0 %v1380
        %v1549 = vpop.f32.mrf.mxu0
        %v1550 = vadd.f32 0.0, %v1549
        %v1551 = vpop.f32.mrf.mxu0
        %1552 = vmatprep.mubr.f32.mxu0 0.0
        %1553 = vmatmul.mubr.f32.gmra.mxu0 %v1383
        %v1554 = vpop.f32.mrf.mxu0
        %v1555 = vadd.f32 0.0, %v1554
        %v1556 = vpop.f32.mrf.mxu0
        %1557 = vmatprep.mubr.f32.mxu0 0.0
        %1558 = vmatmul.mubr.f32.gmra.mxu0 %v1386
        %v1559 = vpop.f32.mrf.mxu0
        %v1560 = vadd.f32 0.0, %v1559
        %v1561 = vpop.f32.mrf.mxu0
        %1562 = vmatprep.mubr.f32.mxu0 0.0
        %1563 = vmatmul.mubr.f32.gmra.mxu0 %v1389
        %v1564 = vpop.f32.mrf.mxu0
        %v1565 = vadd.f32 0.0, %v1564
        %v1566 = vpop.f32.mrf.mxu0
        %1567 = vmatprep.mubr.f32.mxu0 0.0
        %1568 = vmatmul.mubr.f32.gmra.mxu0 %v1392
        %v1569 = vpop.f32.mrf.mxu0
        %v1570 = vadd.f32 0.0, %v1569
        %v1571 = vpop.f32.mrf.mxu0
        %1572 = vmatprep.mubr.f32.mxu0 0.0
        %1573 = vmatmul.mubr.f32.gmra.mxu0 %v1395
        %v1574 = vpop.f32.mrf.mxu0
        %v1575 = vadd.f32 0.0, %v1574
        %v1576 = vpop.f32.mrf.mxu0
        %1577 = vmatprep.mubr.f32.mxu0 0.0
        %1578 = vmatmul.mubr.f32.gmra.mxu0 %v1398
        %v1579 = vpop.f32.mrf.mxu0
        %v1580 = vadd.f32 0.0, %v1579
        %v1581 = vpop.f32.mrf.mxu0
        %1582 = vmatprep.mubr.f32.mxu0 0.0
        %1583 = vmatmul.mubr.f32.gmra.mxu0 %v1401
        %v1584 = vpop.f32.mrf.mxu0
        %v1585 = vadd.f32 0.0, %v1584
        %v1586 = vpop.f32.mrf.mxu0
        %1587 = vmatprep.mubr.f32.mxu0 0.0
        %1588 = vmatmul.mubr.f32.gmra.mxu0 %v1404
        %v1589 = vpop.f32.mrf.mxu0
        %v1590 = vadd.f32 0.0, %v1589
        %v1591 = vpop.f32.mrf.mxu0
        %1592 = vmatprep.mubr.f32.mxu0 0.0
        %1593 = vmatmul.mubr.f32.gmra.mxu0 %v1407
        %v1594 = vpop.f32.mrf.mxu0
        %v1595 = vadd.f32 0.0, %v1594
        %v1596 = vpop.f32.mrf.mxu0
        %1597 = vmatprep.mubr.f32.mxu0 0.0
        %1598 = vmatmul.mubr.f32.gmra.mxu0 %v1410
        %v1599 = vpop.f32.mrf.mxu0
        %v1600 = vadd.f32 0.0, %v1599
        %v1601 = vpop.f32.mrf.mxu0
        %1602 = vmatprep.mubr.f32.mxu0 0.0
        %1603 = vmatmul.mubr.f32.gmra.mxu0 %v1413
        %v1604 = vpop.f32.mrf.mxu0
        %v1605 = vadd.f32 0.0, %v1604
        %v1606 = vpop.f32.mrf.mxu0
        %1607 = vmatprep.mubr.f32.mxu0 0.0
        %1608 = vmatmul.mubr.f32.gmra.mxu0 %v1416
        %v1609 = vpop.f32.mrf.mxu0
        %v1610 = vadd.f32 0.0, %v1609
        %v1611 = vpop.f32.mrf.mxu0
        %1612 = vmatprep.mubr.f32.mxu0 0.0
        %1613 = vmatmul.mubr.f32.gmra.mxu0 %v1419
        %v1614 = vpop.f32.mrf.mxu0
        %v1615 = vadd.f32 0.0, %v1614
        %v1616 = vpop.f32.mrf.mxu0
        %1617 = vmatprep.mubr.f32.mxu0 0.0
        %1618 = vmatmul.mubr.f32.gmra.mxu0 %v1422
        %v1619 = vpop.f32.mrf.mxu0
        %v1620 = vadd.f32 0.0, %v1619
        %v1621 = vpop.f32.mrf.mxu0
        %1622 = vmatprep.mubr.f32.mxu0 0.0
        %1623 = vmatmul.mubr.f32.gmra.mxu0 %v1425
        %v1624 = vpop.f32.mrf.mxu0
        %v1625 = vadd.f32 0.0, %v1624
        %v1626 = vpop.f32.mrf.mxu0
        %1627 = vmatprep.mubr.f32.mxu0 0.0
        %1628 = vmatmul.mubr.f32.gmra.mxu0 %v1428
        %v1629 = vpop.f32.mrf.mxu0
        %v1630 = vadd.f32 0.0, %v1629
        %v1631 = vpop.f32.mrf.mxu0
        %1632 = vmatprep.mubr.f32.mxu0 0.0
        %1633 = vmatmul.mubr.f32.gmra.mxu0 %v1431
        %v1634 = vpop.f32.mrf.mxu0
        %v1635 = vadd.f32 0.0, %v1634
        %v1636 = vpop.f32.mrf.mxu0
        %1637 = vmatprep.mubr.f32.mxu0 0.0
        %1638 = vmatmul.mubr.f32.gmra.mxu0 %v1434
        %v1639 = vpop.f32.mrf.mxu0
        %v1640 = vadd.f32 0.0, %v1639
        %v1641 = vpop.f32.mrf.mxu0
        %1642 = vmatprep.mubr.f32.mxu0 0.0
        %1643 = vmatmul.mubr.f32.gmra.mxu0 %v1437
        %v1644 = vpop.f32.mrf.mxu0
        %v1645 = vadd.f32 0.0, %v1644
        %v1646 = vpop.f32.mrf.mxu0
        %1647 = vmatprep.mubr.f32.mxu0 0.0
        %1648 = vmatmul.mubr.f32.gmra.mxu0 %v1440
        %v1649 = vpop.f32.mrf.mxu0
        %v1650 = vadd.f32 0.0, %v1649
        %v1651 = vpop.f32.mrf.mxu0
        %1652 = vmatprep.mubr.f32.mxu0 0.0
        %1653 = vmatmul.mubr.f32.gmra.mxu0 %v1443
        %v1654 = vpop.f32.mrf.mxu0
        %v1655 = vadd.f32 0.0, %v1654
        %v1656 = vpop.f32.mrf.mxu0
        %1657 = vmatprep.mubr.f32.mxu0 0.0
        %1658 = vmatmul.mubr.f32.gmra.mxu0 %v1446
        %v1659 = vpop.f32.mrf.mxu0
        %v1660 = vadd.f32 0.0, %v1659
        %v1661 = vpop.f32.mrf.mxu0
        %1662 = vmatprep.mubr.f32.mxu0 0.0
        %1663 = vmatmul.mubr.f32.gmra.mxu0 %v1449
        %v1664 = vpop.f32.mrf.mxu0
        %v1665 = vadd.f32 0.0, %v1664
        %v1666 = vpop.f32.mrf.mxu0
        %1667 = vmatprep.mubr.f32.mxu0 0.0
        %1668 = vmatmul.mubr.f32.gmra.mxu0 %v1452
        %v1669 = vpop.f32.mrf.mxu0
        %v1670 = vadd.f32 0.0, %v1669
        %v1671 = vpop.f32.mrf.mxu0
        %1672 = vmatprep.mubr.f32.mxu0 0.0
        %1673 = vmatmul.mubr.f32.gmra.mxu0 %v1455
        %v1674 = vpop.f32.mrf.mxu0
        %v1675 = vadd.f32 0.0, %v1674
        %v1676 = vpop.f32.mrf.mxu0
        %1677 = vmatprep.mubr.f32.mxu0 0.0
        %1678 = vmatmul.mubr.f32.gmra.mxu0 %v1458
        %v1679 = vpop.f32.mrf.mxu0
        %v1680 = vadd.f32 0.0, %v1679
        %v1681 = vpop.f32.mrf.mxu0
        %1682 = vmatprep.mubr.f32.mxu0 0.0
        %1683 = vmatmul.mubr.f32.gmra.mxu0 %v1461
        %v1684 = vpop.f32.mrf.mxu0
        %v1685 = vadd.f32 0.0, %v1684
        %v1686 = vpop.f32.mrf.mxu0
        %1687 = vdwg.mxu0
        %v1688 = vsub.f32 %v270, %v1177
        %v1689 = vsub.f32 %v271, %v1182
        %v1690 = vsub.f32 %v272, %v1187
        %v1691 = vsub.f32 %v273, %v1192
        %v1692 = vsub.f32 %v274, %v1197
        %v1693 = vsub.f32 %v275, %v1202
        %v1694 = vsub.f32 %v276, %v1207
        %v1695 = vsub.f32 %v277, %v1212
        %v1696 = vsub.f32 %v278, %v1217
        %v1697 = vsub.f32 %v279, %v1222
        %v1698 = vsub.f32 %v280, %v1227
        %v1699 = vsub.f32 %v281, %v1232
        %v1700 = vsub.f32 %v282, %v1237
        %v1701 = vsub.f32 %v283, %v1242
        %v1702 = vsub.f32 %v284, %v1247
        %v1703 = vsub.f32 %v285, %v1252
        %v1704 = vsub.f32 %v286, %v1257
        %v1705 = vsub.f32 %v287, %v1262
        %v1706 = vsub.f32 %v288, %v1267
        %v1707 = vsub.f32 %v289, %v1272
        %v1708 = vsub.f32 %v290, %v1277
        %v1709 = vsub.f32 %v291, %v1282
        %v1710 = vsub.f32 %v292, %v1287
        %v1711 = vsub.f32 %v293, %v1292
        %v1712 = vsub.f32 %v294, %v1297
        %v1713 = vsub.f32 %v295, %v1302
        %v1714 = vsub.f32 %v296, %v1307
        %v1715 = vsub.f32 %v297, %v1312
        %v1716 = vsub.f32 %v298, %v1317
        %v1717 = vsub.f32 %v299, %v1322
        %v1718 = vsub.f32 %v300, %v1327
        %v1719 = vsub.f32 %v301, %v1332
        %v1720 = vmul.f32 %v1177, %v1177
        %v1721 = vmul.f32 %v1182, %v1182
        %v1722 = vmul.f32 %v1187, %v1187
        %v1723 = vmul.f32 %v1192, %v1192
        %v1724 = vmul.f32 %v1197, %v1197
        %v1725 = vmul.f32 %v1202, %v1202
        %v1726 = vmul.f32 %v1207, %v1207
        %v1727 = vmul.f32 %v1212, %v1212
        %v1728 = vmul.f32 %v1217, %v1217
        %v1729 = vmul.f32 %v1222, %v1222
        %v1730 = vmul.f32 %v1227, %v1227
        %v1731 = vmul.f32 %v1232, %v1232
        %v1732 = vmul.f32 %v1237, %v1237
        %v1733 = vmul.f32 %v1242, %v1242
        %v1734 = vmul.f32 %v1247, %v1247
        %v1735 = vmul.f32 %v1252, %v1252
        %v1736 = vmul.f32 %v1257, %v1257
        %v1737 = vmul.f32 %v1262, %v1262
        %v1738 = vmul.f32 %v1267, %v1267
        %v1739 = vmul.f32 %v1272, %v1272
        %v1740 = vmul.f32 %v1277, %v1277
        %v1741 = vmul.f32 %v1282, %v1282
        %v1742 = vmul.f32 %v1287, %v1287
        %v1743 = vmul.f32 %v1292, %v1292
        %v1744 = vmul.f32 %v1297, %v1297
        %v1745 = vmul.f32 %v1302, %v1302
        %v1746 = vmul.f32 %v1307, %v1307
        %v1747 = vmul.f32 %v1312, %v1312
        %v1748 = vmul.f32 %v1317, %v1317
        %v1749 = vmul.f32 %v1322, %v1322
        %v1750 = vmul.f32 %v1327, %v1327
        %v1751 = vmul.f32 %v1332, %v1332
        %v1752 = vsub.f32 %v1530, %v1720
        %v1753 = vsub.f32 %v1535, %v1721
        %v1754 = vsub.f32 %v1540, %v1722
        %v1755 = vsub.f32 %v1545, %v1723
        %v1756 = vsub.f32 %v1550, %v1724
        %v1757 = vsub.f32 %v1555, %v1725
        %v1758 = vsub.f32 %v1560, %v1726
        %v1759 = vsub.f32 %v1565, %v1727
        %v1760 = vsub.f32 %v1570, %v1728
        %v1761 = vsub.f32 %v1575, %v1729
        %v1762 = vsub.f32 %v1580, %v1730
        %v1763 = vsub.f32 %v1585, %v1731
        %v1764 = vsub.f32 %v1590, %v1732
        %v1765 = vsub.f32 %v1595, %v1733
        %v1766 = vsub.f32 %v1600, %v1734
        %v1767 = vsub.f32 %v1605, %v1735
        %v1768 = vsub.f32 %v1610, %v1736
        %v1769 = vsub.f32 %v1615, %v1737
        %v1770 = vsub.f32 %v1620, %v1738
        %v1771 = vsub.f32 %v1625, %v1739
        %v1772 = vsub.f32 %v1630, %v1740
        %v1773 = vsub.f32 %v1635, %v1741
        %v1774 = vsub.f32 %v1640, %v1742
        %v1775 = vsub.f32 %v1645, %v1743
        %v1776 = vsub.f32 %v1650, %v1744
        %v1777 = vsub.f32 %v1655, %v1745
        %v1778 = vsub.f32 %v1660, %v1746
        %v1779 = vsub.f32 %v1665, %v1747
        %v1780 = vsub.f32 %v1670, %v1748
        %v1781 = vsub.f32 %v1675, %v1749
        %v1782 = vsub.f32 %v1680, %v1750
        %v1783 = vsub.f32 %v1685, %v1751
        %v1784 = vadd.f32 %v1752, 1e-05
        %v1785 = vadd.f32 %v1753, 1e-05
        %v1786 = vadd.f32 %v1754, 1e-05
        %v1787 = vadd.f32 %v1755, 1e-05
        %v1788 = vadd.f32 %v1756, 1e-05
        %v1789 = vadd.f32 %v1757, 1e-05
        %v1790 = vadd.f32 %v1758, 1e-05
        %v1791 = vadd.f32 %v1759, 1e-05
        %v1792 = vadd.f32 %v1760, 1e-05
        %v1793 = vadd.f32 %v1761, 1e-05
        %v1794 = vadd.f32 %v1762, 1e-05
        %v1795 = vadd.f32 %v1763, 1e-05
        %v1796 = vadd.f32 %v1764, 1e-05
        %v1797 = vadd.f32 %v1765, 1e-05
        %v1798 = vadd.f32 %v1766, 1e-05
        %v1799 = vadd.f32 %v1767, 1e-05
        %v1800 = vadd.f32 %v1768, 1e-05
        %v1801 = vadd.f32 %v1769, 1e-05
        %v1802 = vadd.f32 %v1770, 1e-05
        %v1803 = vadd.f32 %v1771, 1e-05
        %v1804 = vadd.f32 %v1772, 1e-05
        %v1805 = vadd.f32 %v1773, 1e-05
        %v1806 = vadd.f32 %v1774, 1e-05
        %v1807 = vadd.f32 %v1775, 1e-05
        %v1808 = vadd.f32 %v1776, 1e-05
        %v1809 = vadd.f32 %v1777, 1e-05
        %v1810 = vadd.f32 %v1778, 1e-05
        %v1811 = vadd.f32 %v1779, 1e-05
        %v1812 = vadd.f32 %v1780, 1e-05
        %v1813 = vadd.f32 %v1781, 1e-05
        %v1814 = vadd.f32 %v1782, 1e-05
        %v1815 = vadd.f32 %v1783, 1e-05
        %v1816 = vrsqrt.pop %v1784
        %v1817 = vrsqrt.pop %v1785
        %v1818 = vrsqrt.pop %v1786
        %v1819 = vrsqrt.pop %v1787
        %v1820 = vrsqrt.pop %v1788
        %v1821 = vrsqrt.pop %v1789
        %v1822 = vrsqrt.pop %v1790
        %v1823 = vrsqrt.pop %v1791
        %v1824 = vrsqrt.pop %v1792
        %v1825 = vrsqrt.pop %v1793
        %v1826 = vrsqrt.pop %v1794
        %v1827 = vrsqrt.pop %v1795
        %v1828 = vrsqrt.pop %v1796
        %v1829 = vrsqrt.pop %v1797
        %v1830 = vrsqrt.pop %v1798
        %v1831 = vrsqrt.pop %v1799
        %v1832 = vrsqrt.pop %v1800
        %v1833 = vrsqrt.pop %v1801
        %v1834 = vrsqrt.pop %v1802
        %v1835 = vrsqrt.pop %v1803
        %v1836 = vrsqrt.pop %v1804
        %v1837 = vrsqrt.pop %v1805
        %v1838 = vrsqrt.pop %v1806
        %v1839 = vrsqrt.pop %v1807
        %v1840 = vrsqrt.pop %v1808
        %v1841 = vrsqrt.pop %v1809
        %v1842 = vrsqrt.pop %v1810
        %v1843 = vrsqrt.pop %v1811
        %v1844 = vrsqrt.pop %v1812
        %v1845 = vrsqrt.pop %v1813
        %v1846 = vrsqrt.pop %v1814
        %v1847 = vrsqrt.pop %v1815
        %v1848 = vmul.f32 %v1688, %v1816
        %v1849 = vmul.f32 %v1689, %v1817
        %v1850 = vmul.f32 %v1690, %v1818
        %v1851 = vmul.f32 %v1691, %v1819
        %v1852 = vmul.f32 %v1692, %v1820
        %v1853 = vmul.f32 %v1693, %v1821
        %v1854 = vmul.f32 %v1694, %v1822
        %v1855 = vmul.f32 %v1695, %v1823
        %v1856 = vmul.f32 %v1696, %v1824
        %v1857 = vmul.f32 %v1697, %v1825
        %v1858 = vmul.f32 %v1698, %v1826
        %v1859 = vmul.f32 %v1699, %v1827
        %v1860 = vmul.f32 %v1700, %v1828
        %v1861 = vmul.f32 %v1701, %v1829
        %v1862 = vmul.f32 %v1702, %v1830
        %v1863 = vmul.f32 %v1703, %v1831
        %v1864 = vmul.f32 %v1704, %v1832
        %v1865 = vmul.f32 %v1705, %v1833
        %v1866 = vmul.f32 %v1706, %v1834
        %v1867 = vmul.f32 %v1707, %v1835
        %v1868 = vmul.f32 %v1708, %v1836
        %v1869 = vmul.f32 %v1709, %v1837
        %v1870 = vmul.f32 %v1710, %v1838
        %v1871 = vmul.f32 %v1711, %v1839
        %v1872 = vmul.f32 %v1712, %v1840
        %v1873 = vmul.f32 %v1713, %v1841
        %v1874 = vmul.f32 %v1714, %v1842
        %v1875 = vmul.f32 %v1715, %v1843
        %v1876 = vmul.f32 %v1716, %v1844
        %v1877 = vmul.f32 %v1717, %v1845
        %v1878 = vmul.f32 %v1718, %v1846
        %v1879 = vmul.f32 %v1719, %v1847
        %v1881 = vlaneseq
        %v1882 = vshrl.u32 %v1881, 7
        %v1883 = vsub.s32 0, %v1882
        %v1884 = vrot.slane %v1002, %v1883
        %v1885 = vlaneseq
        %v1886 = vshrl.u32 %v1885, 7
        %v1887 = vsub.s32 1, %v1886
        %v1888 = vrot.slane %v1002, %v1887
        %v1892 = vsel %vm1013, %v1848, 0
        %v1895 = vsel %vm1013, %v1849, 0
        %v1898 = vsel %vm1013, %v1850, 0
        %v1901 = vsel %vm1013, %v1851, 0
        %v1904 = vsel %vm1013, %v1852, 0
        %v1907 = vsel %vm1013, %v1853, 0
        %v1910 = vsel %vm1013, %v1854, 0
        %v1913 = vsel %vm1013, %v1855, 0
        %v1916 = vsel %vm1013, %v1856, 0
        %v1919 = vsel %vm1013, %v1857, 0
        %v1922 = vsel %vm1013, %v1858, 0
        %v1925 = vsel %vm1013, %v1859, 0
        %v1928 = vsel %vm1013, %v1860, 0
        %v1931 = vsel %vm1013, %v1861, 0
        %v1934 = vsel %vm1013, %v1862, 0
        %v1937 = vsel %vm1013, %v1863, 0
        %v1940 = vsel %vm1013, %v1864, 0
        %v1943 = vsel %vm1013, %v1865, 0
        %v1946 = vsel %vm1013, %v1866, 0
        %v1949 = vsel %vm1013, %v1867, 0
        %v1952 = vsel %vm1013, %v1868, 0
        %v1955 = vsel %vm1013, %v1869, 0
        %v1958 = vsel %vm1013, %v1870, 0
        %v1961 = vsel %vm1013, %v1871, 0
        %v1964 = vsel %vm1013, %v1872, 0
        %v1967 = vsel %vm1013, %v1873, 0
        %v1970 = vsel %vm1013, %v1874, 0
        %v1973 = vsel %vm1013, %v1875, 0
        %v1976 = vsel %vm1013, %v1876, 0
        %v1979 = vsel %vm1013, %v1877, 0
        %v1982 = vsel %vm1013, %v1878, 0
        %v1985 = vsel %vm1013, %v1879, 0
        %1987 = vmatprep.subr.mxu0 0.0
        %1988 = vmatpush1.msra.mxu0 0.0
        %1989 = vmatprep.subr.mxu0 0.0
        %1990 = vmatpush1.msra.mxu0 0.0
        %1991 = vmatprep.subr.mxu0 0.0
        %1992 = vmatpush1.msra.mxu0 0.0
        %1993 = vmatprep.subr.mxu0 0.0
        %1994 = vmatpush1.msra.mxu0 0.0
        %1995 = vmatprep.subr.mxu0 0.0
        %1996 = vmatpush1.msra.mxu0 0.0
        %1997 = vmatprep.subr.mxu0 0.0
        %1998 = vmatpush1.msra.mxu0 0.0
        %1999 = vmatprep.subr.mxu0 0.0
        %2000 = vmatpush1.msra.mxu0 0.0
        %2001 = vmatprep.subr.mxu0 0.0
        %2002 = vmatpush1.msra.mxu0 0.0
        %2003 = vmatprep.subr.mxu0 0.0
        %2004 = vmatpush1.msra.mxu0 0.0
        %2005 = vmatprep.subr.mxu0 0.0
        %2006 = vmatpush1.msra.mxu0 0.0
        %2007 = vmatprep.subr.mxu0 0.0
        %2008 = vmatpush1.msra.mxu0 0.0
        %2009 = vmatprep.subr.mxu0 0.0
        %2010 = vmatpush1.msra.mxu0 0.0
        %2011 = vmatprep.subr.mxu0 %v309
        %2012 = vmatpush1.msra.mxu0 %v308
        %2013 = vmatprep.subr.mxu0 %v307
        %2014 = vmatpush1.msra.mxu0 %v306
        %2015 = vmatprep.subr.mxu0 %v305
        %2016 = vmatpush1.msra.mxu0 %v304
        %2017 = vmatprep.subr.mxu0 %v303
        %2018 = vmatpush1.msra.mxu0 %v302
        %2019 = vmatprep.subr.mxu0 0.0
        %2020 = vmatpush2.msra.mxu0 0.0
        %2021 = vmatprep.subr.mxu0 0.0
        %2022 = vmatpush2.msra.mxu0 0.0
        %2023 = vmatprep.subr.mxu0 0.0
        %2024 = vmatpush2.msra.mxu0 0.0
        %2025 = vmatprep.subr.mxu0 0.0
        %2026 = vmatpush2.msra.mxu0 0.0
        %2027 = vmatprep.subr.mxu0 0.0
        %2028 = vmatpush2.msra.mxu0 0.0
        %2029 = vmatprep.subr.mxu0 0.0
        %2030 = vmatpush2.msra.mxu0 0.0
        %2031 = vmatprep.subr.mxu0 0.0
        %2032 = vmatpush2.msra.mxu0 0.0
        %2033 = vmatprep.subr.mxu0 0.0
        %2034 = vmatpush2.msra.mxu0 0.0
        %2035 = vmatprep.subr.mxu0 0.0
        %2036 = vmatpush2.msra.mxu0 0.0
        %2037 = vmatprep.subr.mxu0 0.0
        %2038 = vmatpush2.msra.mxu0 0.0
        %2039 = vmatprep.subr.mxu0 0.0
        %2040 = vmatpush2.msra.mxu0 0.0
        %2041 = vmatprep.subr.mxu0 0.0
        %2042 = vmatpush2.msra.mxu0 0.0
        %2043 = vmatprep.subr.mxu0 0.0
        %2044 = vmatpush2.msra.mxu0 0.0
        %2045 = vmatprep.subr.mxu0 0.0
        %2046 = vmatpush2.msra.mxu0 0.0
        %2047 = vmatprep.subr.mxu0 0.0
        %2048 = vmatpush2.msra.mxu0 0.0
        %2049 = vmatprep.subr.mxu0 0.0
        %2050 = vmatpush2.msra.mxu0 0.0
        %2051 = vmatprep.mubr.f32.mxu0 0.0
        %2052 = vmatmul.mubr.f32.gmra.mxu0 %v1892
        %v2053 = vpop.f32.mrf.mxu0
        %v2054 = vadd.f32 %v1884, %v2053
        %v2055 = vpop.f32.mrf.mxu0
        %v2056 = vadd.f32 %v1888, %v2055
        %2057 = vmatprep.mubr.f32.mxu0 0.0
        %2058 = vmatmul.mubr.f32.gmra.mxu0 %v1895
        %v2059 = vpop.f32.mrf.mxu0
        %v2060 = vadd.f32 %v1884, %v2059
        %v2061 = vpop.f32.mrf.mxu0
        %v2062 = vadd.f32 %v1888, %v2061
        %2063 = vmatprep.mubr.f32.mxu0 0.0
        %2064 = vmatmul.mubr.f32.gmra.mxu0 %v1898
        %v2065 = vpop.f32.mrf.mxu0
        %v2066 = vadd.f32 %v1884, %v2065
        %v2067 = vpop.f32.mrf.mxu0
        %v2068 = vadd.f32 %v1888, %v2067
        %2069 = vmatprep.mubr.f32.mxu0 0.0
        %2070 = vmatmul.mubr.f32.gmra.mxu0 %v1901
        %v2071 = vpop.f32.mrf.mxu0
        %v2072 = vadd.f32 %v1884, %v2071
        %v2073 = vpop.f32.mrf.mxu0
        %v2074 = vadd.f32 %v1888, %v2073
        %2075 = vmatprep.mubr.f32.mxu0 0.0
        %2076 = vmatmul.mubr.f32.gmra.mxu0 %v1904
        %v2077 = vpop.f32.mrf.mxu0
        %v2078 = vadd.f32 %v1884, %v2077
        %v2079 = vpop.f32.mrf.mxu0
        %v2080 = vadd.f32 %v1888, %v2079
        %2081 = vmatprep.mubr.f32.mxu0 0.0
        %2082 = vmatmul.mubr.f32.gmra.mxu0 %v1907
        %v2083 = vpop.f32.mrf.mxu0
        %v2084 = vadd.f32 %v1884, %v2083
        %v2085 = vpop.f32.mrf.mxu0
        %v2086 = vadd.f32 %v1888, %v2085
        %2087 = vmatprep.mubr.f32.mxu0 0.0
        %2088 = vmatmul.mubr.f32.gmra.mxu0 %v1910
        %v2089 = vpop.f32.mrf.mxu0
        %v2090 = vadd.f32 %v1884, %v2089
        %v2091 = vpop.f32.mrf.mxu0
        %v2092 = vadd.f32 %v1888, %v2091
        %2093 = vmatprep.mubr.f32.mxu0 0.0
        %2094 = vmatmul.mubr.f32.gmra.mxu0 %v1913
        %v2095 = vpop.f32.mrf.mxu0
        %v2096 = vadd.f32 %v1884, %v2095
        %v2097 = vpop.f32.mrf.mxu0
        %v2098 = vadd.f32 %v1888, %v2097
        %2099 = vmatprep.mubr.f32.mxu0 0.0
        %2100 = vmatmul.mubr.f32.gmra.mxu0 %v1916
        %v2101 = vpop.f32.mrf.mxu0
        %v2102 = vadd.f32 %v1884, %v2101
        %v2103 = vpop.f32.mrf.mxu0
        %v2104 = vadd.f32 %v1888, %v2103
        %2105 = vmatprep.mubr.f32.mxu0 0.0
        %2106 = vmatmul.mubr.f32.gmra.mxu0 %v1919
        %v2107 = vpop.f32.mrf.mxu0
        %v2108 = vadd.f32 %v1884, %v2107
        %v2109 = vpop.f32.mrf.mxu0
        %v2110 = vadd.f32 %v1888, %v2109
        %2111 = vmatprep.mubr.f32.mxu0 0.0
        %2112 = vmatmul.mubr.f32.gmra.mxu0 %v1922
        %v2113 = vpop.f32.mrf.mxu0
        %v2114 = vadd.f32 %v1884, %v2113
        %v2115 = vpop.f32.mrf.mxu0
        %v2116 = vadd.f32 %v1888, %v2115
        %2117 = vmatprep.mubr.f32.mxu0 0.0
        %2118 = vmatmul.mubr.f32.gmra.mxu0 %v1925
        %v2119 = vpop.f32.mrf.mxu0
        %v2120 = vadd.f32 %v1884, %v2119
        %v2121 = vpop.f32.mrf.mxu0
        %v2122 = vadd.f32 %v1888, %v2121
        %2123 = vmatprep.mubr.f32.mxu0 0.0
        %2124 = vmatmul.mubr.f32.gmra.mxu0 %v1928
        %v2125 = vpop.f32.mrf.mxu0
        %v2126 = vadd.f32 %v1884, %v2125
        %v2127 = vpop.f32.mrf.mxu0
        %v2128 = vadd.f32 %v1888, %v2127
        %2129 = vmatprep.mubr.f32.mxu0 0.0
        %2130 = vmatmul.mubr.f32.gmra.mxu0 %v1931
        %v2131 = vpop.f32.mrf.mxu0
        %v2132 = vadd.f32 %v1884, %v2131
        %v2133 = vpop.f32.mrf.mxu0
        %v2134 = vadd.f32 %v1888, %v2133
        %2135 = vmatprep.mubr.f32.mxu0 0.0
        %2136 = vmatmul.mubr.f32.gmra.mxu0 %v1934
        %v2137 = vpop.f32.mrf.mxu0
        %v2138 = vadd.f32 %v1884, %v2137
        %v2139 = vpop.f32.mrf.mxu0
        %v2140 = vadd.f32 %v1888, %v2139
        %2141 = vmatprep.mubr.f32.mxu0 0.0
        %2142 = vmatmul.mubr.f32.gmra.mxu0 %v1937
        %v2143 = vpop.f32.mrf.mxu0
        %v2144 = vadd.f32 %v1884, %v2143
        %v2145 = vpop.f32.mrf.mxu0
        %v2146 = vadd.f32 %v1888, %v2145
        %2147 = vmatprep.mubr.f32.mxu0 0.0
        %2148 = vmatmul.mubr.f32.gmra.mxu0 %v1940
        %v2149 = vpop.f32.mrf.mxu0
        %v2150 = vadd.f32 %v1884, %v2149
        %v2151 = vpop.f32.mrf.mxu0
        %v2152 = vadd.f32 %v1888, %v2151
        %2153 = vmatprep.mubr.f32.mxu0 0.0
        %2154 = vmatmul.mubr.f32.gmra.mxu0 %v1943
        %v2155 = vpop.f32.mrf.mxu0
        %v2156 = vadd.f32 %v1884, %v2155
        %v2157 = vpop.f32.mrf.mxu0
        %v2158 = vadd.f32 %v1888, %v2157
        %2159 = vmatprep.mubr.f32.mxu0 0.0
        %2160 = vmatmul.mubr.f32.gmra.mxu0 %v1946
        %v2161 = vpop.f32.mrf.mxu0
        %v2162 = vadd.f32 %v1884, %v2161
        %v2163 = vpop.f32.mrf.mxu0
        %v2164 = vadd.f32 %v1888, %v2163
        %2165 = vmatprep.mubr.f32.mxu0 0.0
        %2166 = vmatmul.mubr.f32.gmra.mxu0 %v1949
        %v2167 = vpop.f32.mrf.mxu0
        %v2168 = vadd.f32 %v1884, %v2167
        %v2169 = vpop.f32.mrf.mxu0
        %v2170 = vadd.f32 %v1888, %v2169
        %2171 = vmatprep.mubr.f32.mxu0 0.0
        %2172 = vmatmul.mubr.f32.gmra.mxu0 %v1952
        %v2173 = vpop.f32.mrf.mxu0
        %v2174 = vadd.f32 %v1884, %v2173
        %v2175 = vpop.f32.mrf.mxu0
        %v2176 = vadd.f32 %v1888, %v2175
        %2177 = vmatprep.mubr.f32.mxu0 0.0
        %2178 = vmatmul.mubr.f32.gmra.mxu0 %v1955
        %v2179 = vpop.f32.mrf.mxu0
        %v2180 = vadd.f32 %v1884, %v2179
        %v2181 = vpop.f32.mrf.mxu0
        %v2182 = vadd.f32 %v1888, %v2181
        %2183 = vmatprep.mubr.f32.mxu0 0.0
        %2184 = vmatmul.mubr.f32.gmra.mxu0 %v1958
        %v2185 = vpop.f32.mrf.mxu0
        %v2186 = vadd.f32 %v1884, %v2185
        %v2187 = vpop.f32.mrf.mxu0
        %v2188 = vadd.f32 %v1888, %v2187
        %2189 = vmatprep.mubr.f32.mxu0 0.0
        %2190 = vmatmul.mubr.f32.gmra.mxu0 %v1961
        %v2191 = vpop.f32.mrf.mxu0
        %v2192 = vadd.f32 %v1884, %v2191
        %v2193 = vpop.f32.mrf.mxu0
        %v2194 = vadd.f32 %v1888, %v2193
        %2195 = vmatprep.mubr.f32.mxu0 0.0
        %2196 = vmatmul.mubr.f32.gmra.mxu0 %v1964
        %v2197 = vpop.f32.mrf.mxu0
        %v2198 = vadd.f32 %v1884, %v2197
        %v2199 = vpop.f32.mrf.mxu0
        %v2200 = vadd.f32 %v1888, %v2199
        %2201 = vmatprep.mubr.f32.mxu0 0.0
        %2202 = vmatmul.mubr.f32.gmra.mxu0 %v1967
        %v2203 = vpop.f32.mrf.mxu0
        %v2204 = vadd.f32 %v1884, %v2203
        %v2205 = vpop.f32.mrf.mxu0
        %v2206 = vadd.f32 %v1888, %v2205
        %2207 = vmatprep.mubr.f32.mxu0 0.0
        %2208 = vmatmul.mubr.f32.gmra.mxu0 %v1970
        %v2209 = vpop.f32.mrf.mxu0
        %v2210 = vadd.f32 %v1884, %v2209
        %v2211 = vpop.f32.mrf.mxu0
        %v2212 = vadd.f32 %v1888, %v2211
        %2213 = vmatprep.mubr.f32.mxu0 0.0
        %2214 = vmatmul.mubr.f32.gmra.mxu0 %v1973
        %v2215 = vpop.f32.mrf.mxu0
        %v2216 = vadd.f32 %v1884, %v2215
        %v2217 = vpop.f32.mrf.mxu0
        %v2218 = vadd.f32 %v1888, %v2217
        %2219 = vmatprep.mubr.f32.mxu0 0.0
        %2220 = vmatmul.mubr.f32.gmra.mxu0 %v1976
        %v2221 = vpop.f32.mrf.mxu0
        %v2222 = vadd.f32 %v1884, %v2221
        %v2223 = vpop.f32.mrf.mxu0
        %v2224 = vadd.f32 %v1888, %v2223
        %2225 = vmatprep.mubr.f32.mxu0 0.0
        %2226 = vmatmul.mubr.f32.gmra.mxu0 %v1979
        %v2227 = vpop.f32.mrf.mxu0
        %v2228 = vadd.f32 %v1884, %v2227
        %v2229 = vpop.f32.mrf.mxu0
        %v2230 = vadd.f32 %v1888, %v2229
        %2231 = vmatprep.mubr.f32.mxu0 0.0
        %2232 = vmatmul.mubr.f32.gmra.mxu0 %v1982
        %v2233 = vpop.f32.mrf.mxu0
        %v2234 = vadd.f32 %v1884, %v2233
        %v2235 = vpop.f32.mrf.mxu0
        %v2236 = vadd.f32 %v1888, %v2235
        %2237 = vmatprep.mubr.f32.mxu0 0.0
        %2238 = vmatmul.mubr.f32.gmra.mxu0 %v1985
        %v2239 = vpop.f32.mrf.mxu0
        %v2240 = vadd.f32 %v1884, %v2239
        %v2241 = vpop.f32.mrf.mxu0
        %v2242 = vadd.f32 %v1888, %v2241
        %2243 = vdwg.mxu0
        %2244 = vmatprep.subr.mxu0 %v437
        %2245 = vmatpush1.msra.mxu0 %v436
        %2246 = vmatprep.subr.mxu0 %v435
        %2247 = vmatpush1.msra.mxu0 %v434
        %2248 = vmatprep.subr.mxu0 %v433
        %2249 = vmatpush1.msra.mxu0 %v432
        %2250 = vmatprep.subr.mxu0 %v431
        %2251 = vmatpush1.msra.mxu0 %v430
        %2252 = vmatprep.subr.mxu0 %v429
        %2253 = vmatpush1.msra.mxu0 %v428
        %2254 = vmatprep.subr.mxu0 %v427
        %2255 = vmatpush1.msra.mxu0 %v426
        %2256 = vmatprep.subr.mxu0 %v425
        %2257 = vmatpush1.msra.mxu0 %v424
        %2258 = vmatprep.subr.mxu0 %v423
        %2259 = vmatpush1.msra.mxu0 %v422
        %2260 = vmatprep.subr.mxu0 %v421
        %2261 = vmatpush1.msra.mxu0 %v420
        %2262 = vmatprep.subr.mxu0 %v419
        %2263 = vmatpush1.msra.mxu0 %v418
        %2264 = vmatprep.subr.mxu0 %v417
        %2265 = vmatpush1.msra.mxu0 %v416
        %2266 = vmatprep.subr.mxu0 %v415
        %2267 = vmatpush1.msra.mxu0 %v414
        %2268 = vmatprep.subr.mxu0 %v413
        %2269 = vmatpush1.msra.mxu0 %v412
        %2270 = vmatprep.subr.mxu0 %v411
        %2271 = vmatpush1.msra.mxu0 %v410
        %2272 = vmatprep.subr.mxu0 %v409
        %2273 = vmatpush1.msra.mxu0 %v408
        %2274 = vmatprep.subr.mxu0 %v407
        %2275 = vmatpush1.msra.mxu0 %v406
        %2276 = vmatprep.subr.mxu0 %v469
        %2277 = vmatpush2.msra.mxu0 %v468
        %2278 = vmatprep.subr.mxu0 %v467
        %2279 = vmatpush2.msra.mxu0 %v466
        %2280 = vmatprep.subr.mxu0 %v465
        %2281 = vmatpush2.msra.mxu0 %v464
        %2282 = vmatprep.subr.mxu0 %v463
        %2283 = vmatpush2.msra.mxu0 %v462
        %2284 = vmatprep.subr.mxu0 %v461
        %2285 = vmatpush2.msra.mxu0 %v460
        %2286 = vmatprep.subr.mxu0 %v459
        %2287 = vmatpush2.msra.mxu0 %v458
        %2288 = vmatprep.subr.mxu0 %v457
        %2289 = vmatpush2.msra.mxu0 %v456
        %2290 = vmatprep.subr.mxu0 %v455
        %2291 = vmatpush2.msra.mxu0 %v454
        %2292 = vmatprep.subr.mxu0 %v453
        %2293 = vmatpush2.msra.mxu0 %v452
        %2294 = vmatprep.subr.mxu0 %v451
        %2295 = vmatpush2.msra.mxu0 %v450
        %2296 = vmatprep.subr.mxu0 %v449
        %2297 = vmatpush2.msra.mxu0 %v448
        %2298 = vmatprep.subr.mxu0 %v447
        %2299 = vmatpush2.msra.mxu0 %v446
        %2300 = vmatprep.subr.mxu0 %v445
        %2301 = vmatpush2.msra.mxu0 %v444
        %2302 = vmatprep.subr.mxu0 %v443
        %2303 = vmatpush2.msra.mxu0 %v442
        %2304 = vmatprep.subr.mxu0 %v441
        %2305 = vmatpush2.msra.mxu0 %v440
        %2306 = vmatprep.subr.mxu0 %v439
        %2307 = vmatpush2.msra.mxu0 %v438
        %2308 = vmatprep.mubr.f32.mxu0 %v2056
        %2309 = vmatmul.mubr.f32.gmra.mxu0 %v2054
        %v2310 = vpop.f32.mrf.mxu0
        %v2311 = vadd.f32 0.0, %v2310
        %v2312 = vpop.f32.mrf.mxu0
        %v2313 = vadd.f32 0.0, %v2312
        %2314 = vmatprep.mubr.f32.mxu0 %v2062
        %2315 = vmatmul.mubr.f32.gmra.mxu0 %v2060
        %v2316 = vpop.f32.mrf.mxu0
        %v2317 = vadd.f32 0.0, %v2316
        %v2318 = vpop.f32.mrf.mxu0
        %v2319 = vadd.f32 0.0, %v2318
        %2320 = vmatprep.mubr.f32.mxu0 %v2068
        %2321 = vmatmul.mubr.f32.gmra.mxu0 %v2066
        %v2322 = vpop.f32.mrf.mxu0
        %v2323 = vadd.f32 0.0, %v2322
        %v2324 = vpop.f32.mrf.mxu0
        %v2325 = vadd.f32 0.0, %v2324
        %2326 = vmatprep.mubr.f32.mxu0 %v2074
        %2327 = vmatmul.mubr.f32.gmra.mxu0 %v2072
        %v2328 = vpop.f32.mrf.mxu0
        %v2329 = vadd.f32 0.0, %v2328
        %v2330 = vpop.f32.mrf.mxu0
        %v2331 = vadd.f32 0.0, %v2330
        %2332 = vmatprep.mubr.f32.mxu0 %v2080
        %2333 = vmatmul.mubr.f32.gmra.mxu0 %v2078
        %v2334 = vpop.f32.mrf.mxu0
        %v2335 = vadd.f32 0.0, %v2334
        %v2336 = vpop.f32.mrf.mxu0
        %v2337 = vadd.f32 0.0, %v2336
        %2338 = vmatprep.mubr.f32.mxu0 %v2086
        %2339 = vmatmul.mubr.f32.gmra.mxu0 %v2084
        %v2340 = vpop.f32.mrf.mxu0
        %v2341 = vadd.f32 0.0, %v2340
        %v2342 = vpop.f32.mrf.mxu0
        %v2343 = vadd.f32 0.0, %v2342
        %2344 = vmatprep.mubr.f32.mxu0 %v2092
        %2345 = vmatmul.mubr.f32.gmra.mxu0 %v2090
        %v2346 = vpop.f32.mrf.mxu0
        %v2347 = vadd.f32 0.0, %v2346
        %v2348 = vpop.f32.mrf.mxu0
        %v2349 = vadd.f32 0.0, %v2348
        %2350 = vmatprep.mubr.f32.mxu0 %v2098
        %2351 = vmatmul.mubr.f32.gmra.mxu0 %v2096
        %v2352 = vpop.f32.mrf.mxu0
        %v2353 = vadd.f32 0.0, %v2352
        %v2354 = vpop.f32.mrf.mxu0
        %v2355 = vadd.f32 0.0, %v2354
        %2356 = vmatprep.mubr.f32.mxu0 %v2104
        %2357 = vmatmul.mubr.f32.gmra.mxu0 %v2102
        %v2358 = vpop.f32.mrf.mxu0
        %v2359 = vadd.f32 0.0, %v2358
        %v2360 = vpop.f32.mrf.mxu0
        %v2361 = vadd.f32 0.0, %v2360
        %2362 = vmatprep.mubr.f32.mxu0 %v2110
        %2363 = vmatmul.mubr.f32.gmra.mxu0 %v2108
        %v2364 = vpop.f32.mrf.mxu0
        %v2365 = vadd.f32 0.0, %v2364
        %v2366 = vpop.f32.mrf.mxu0
        %v2367 = vadd.f32 0.0, %v2366
        %2368 = vmatprep.mubr.f32.mxu0 %v2116
        %2369 = vmatmul.mubr.f32.gmra.mxu0 %v2114
        %v2370 = vpop.f32.mrf.mxu0
        %v2371 = vadd.f32 0.0, %v2370
        %v2372 = vpop.f32.mrf.mxu0
        %v2373 = vadd.f32 0.0, %v2372
        %2374 = vmatprep.mubr.f32.mxu0 %v2122
        %2375 = vmatmul.mubr.f32.gmra.mxu0 %v2120
        %v2376 = vpop.f32.mrf.mxu0
        %v2377 = vadd.f32 0.0, %v2376
        %v2378 = vpop.f32.mrf.mxu0
        %v2379 = vadd.f32 0.0, %v2378
        %2380 = vmatprep.mubr.f32.mxu0 %v2128
        %2381 = vmatmul.mubr.f32.gmra.mxu0 %v2126
        %v2382 = vpop.f32.mrf.mxu0
        %v2383 = vadd.f32 0.0, %v2382
        %v2384 = vpop.f32.mrf.mxu0
        %v2385 = vadd.f32 0.0, %v2384
        %2386 = vmatprep.mubr.f32.mxu0 %v2134
        %2387 = vmatmul.mubr.f32.gmra.mxu0 %v2132
        %v2388 = vpop.f32.mrf.mxu0
        %v2389 = vadd.f32 0.0, %v2388
        %v2390 = vpop.f32.mrf.mxu0
        %v2391 = vadd.f32 0.0, %v2390
        %2392 = vmatprep.mubr.f32.mxu0 %v2140
        %2393 = vmatmul.mubr.f32.gmra.mxu0 %v2138
        %v2394 = vpop.f32.mrf.mxu0
        %v2395 = vadd.f32 0.0, %v2394
        %v2396 = vpop.f32.mrf.mxu0
        %v2397 = vadd.f32 0.0, %v2396
        %2398 = vmatprep.mubr.f32.mxu0 %v2146
        %2399 = vmatmul.mubr.f32.gmra.mxu0 %v2144
        %v2400 = vpop.f32.mrf.mxu0
        %v2401 = vadd.f32 0.0, %v2400
        %v2402 = vpop.f32.mrf.mxu0
        %v2403 = vadd.f32 0.0, %v2402
        %2404 = vmatprep.mubr.f32.mxu0 %v2152
        %2405 = vmatmul.mubr.f32.gmra.mxu0 %v2150
        %v2406 = vpop.f32.mrf.mxu0
        %v2407 = vadd.f32 0.0, %v2406
        %v2408 = vpop.f32.mrf.mxu0
        %v2409 = vadd.f32 0.0, %v2408
        %2410 = vmatprep.mubr.f32.mxu0 %v2158
        %2411 = vmatmul.mubr.f32.gmra.mxu0 %v2156
        %v2412 = vpop.f32.mrf.mxu0
        %v2413 = vadd.f32 0.0, %v2412
        %v2414 = vpop.f32.mrf.mxu0
        %v2415 = vadd.f32 0.0, %v2414
        %2416 = vmatprep.mubr.f32.mxu0 %v2164
        %2417 = vmatmul.mubr.f32.gmra.mxu0 %v2162
        %v2418 = vpop.f32.mrf.mxu0
        %v2419 = vadd.f32 0.0, %v2418
        %v2420 = vpop.f32.mrf.mxu0
        %v2421 = vadd.f32 0.0, %v2420
        %2422 = vmatprep.mubr.f32.mxu0 %v2170
        %2423 = vmatmul.mubr.f32.gmra.mxu0 %v2168
        %v2424 = vpop.f32.mrf.mxu0
        %v2425 = vadd.f32 0.0, %v2424
        %v2426 = vpop.f32.mrf.mxu0
        %v2427 = vadd.f32 0.0, %v2426
        %2428 = vmatprep.mubr.f32.mxu0 %v2176
        %2429 = vmatmul.mubr.f32.gmra.mxu0 %v2174
        %v2430 = vpop.f32.mrf.mxu0
        %v2431 = vadd.f32 0.0, %v2430
        %v2432 = vpop.f32.mrf.mxu0
        %v2433 = vadd.f32 0.0, %v2432
        %2434 = vmatprep.mubr.f32.mxu0 %v2182
        %2435 = vmatmul.mubr.f32.gmra.mxu0 %v2180
        %v2436 = vpop.f32.mrf.mxu0
        %v2437 = vadd.f32 0.0, %v2436
        %v2438 = vpop.f32.mrf.mxu0
        %v2439 = vadd.f32 0.0, %v2438
        %2440 = vmatprep.mubr.f32.mxu0 %v2188
        %2441 = vmatmul.mubr.f32.gmra.mxu0 %v2186
        %v2442 = vpop.f32.mrf.mxu0
        %v2443 = vadd.f32 0.0, %v2442
        %v2444 = vpop.f32.mrf.mxu0
        %v2445 = vadd.f32 0.0, %v2444
        %2446 = vmatprep.mubr.f32.mxu0 %v2194
        %2447 = vmatmul.mubr.f32.gmra.mxu0 %v2192
        %v2448 = vpop.f32.mrf.mxu0
        %v2449 = vadd.f32 0.0, %v2448
        %v2450 = vpop.f32.mrf.mxu0
        %v2451 = vadd.f32 0.0, %v2450
        %2452 = vmatprep.mubr.f32.mxu0 %v2200
        %2453 = vmatmul.mubr.f32.gmra.mxu0 %v2198
        %v2454 = vpop.f32.mrf.mxu0
        %v2455 = vadd.f32 0.0, %v2454
        %v2456 = vpop.f32.mrf.mxu0
        %v2457 = vadd.f32 0.0, %v2456
        %2458 = vmatprep.mubr.f32.mxu0 %v2206
        %2459 = vmatmul.mubr.f32.gmra.mxu0 %v2204
        %v2460 = vpop.f32.mrf.mxu0
        %v2461 = vadd.f32 0.0, %v2460
        %v2462 = vpop.f32.mrf.mxu0
        %v2463 = vadd.f32 0.0, %v2462
        %2464 = vmatprep.mubr.f32.mxu0 %v2212
        %2465 = vmatmul.mubr.f32.gmra.mxu0 %v2210
        %v2466 = vpop.f32.mrf.mxu0
        %v2467 = vadd.f32 0.0, %v2466
        %v2468 = vpop.f32.mrf.mxu0
        %v2469 = vadd.f32 0.0, %v2468
        %2470 = vmatprep.mubr.f32.mxu0 %v2218
        %2471 = vmatmul.mubr.f32.gmra.mxu0 %v2216
        %v2472 = vpop.f32.mrf.mxu0
        %v2473 = vadd.f32 0.0, %v2472
        %v2474 = vpop.f32.mrf.mxu0
        %v2475 = vadd.f32 0.0, %v2474
        %2476 = vmatprep.mubr.f32.mxu0 %v2224
        %2477 = vmatmul.mubr.f32.gmra.mxu0 %v2222
        %v2478 = vpop.f32.mrf.mxu0
        %v2479 = vadd.f32 0.0, %v2478
        %v2480 = vpop.f32.mrf.mxu0
        %v2481 = vadd.f32 0.0, %v2480
        %2482 = vmatprep.mubr.f32.mxu0 %v2230
        %2483 = vmatmul.mubr.f32.gmra.mxu0 %v2228
        %v2484 = vpop.f32.mrf.mxu0
        %v2485 = vadd.f32 0.0, %v2484
        %v2486 = vpop.f32.mrf.mxu0
        %v2487 = vadd.f32 0.0, %v2486
        %2488 = vmatprep.mubr.f32.mxu0 %v2236
        %2489 = vmatmul.mubr.f32.gmra.mxu0 %v2234
        %v2490 = vpop.f32.mrf.mxu0
        %v2491 = vadd.f32 0.0, %v2490
        %v2492 = vpop.f32.mrf.mxu0
        %v2493 = vadd.f32 0.0, %v2492
        %2494 = vmatprep.mubr.f32.mxu0 %v2242
        %2495 = vmatmul.mubr.f32.gmra.mxu0 %v2240
        %v2496 = vpop.f32.mrf.mxu0
        %v2497 = vadd.f32 0.0, %v2496
        %v2498 = vpop.f32.mrf.mxu0
        %v2499 = vadd.f32 0.0, %v2498
        %2500 = vdwg.mxu0
        %v2501 = vmul.f32 %v2054, %v2054
        %v2502 = vmul.f32 %v2056, %v2056
        %v2503 = vmul.f32 %v2060, %v2060
        %v2504 = vmul.f32 %v2062, %v2062
        %v2505 = vmul.f32 %v2066, %v2066
        %v2506 = vmul.f32 %v2068, %v2068
        %v2507 = vmul.f32 %v2072, %v2072
        %v2508 = vmul.f32 %v2074, %v2074
        %v2509 = vmul.f32 %v2078, %v2078
        %v2510 = vmul.f32 %v2080, %v2080
        %v2511 = vmul.f32 %v2084, %v2084
        %v2512 = vmul.f32 %v2086, %v2086
        %v2513 = vmul.f32 %v2090, %v2090
        %v2514 = vmul.f32 %v2092, %v2092
        %v2515 = vmul.f32 %v2096, %v2096
        %v2516 = vmul.f32 %v2098, %v2098
        %v2517 = vmul.f32 %v2102, %v2102
        %v2518 = vmul.f32 %v2104, %v2104
        %v2519 = vmul.f32 %v2108, %v2108
        %v2520 = vmul.f32 %v2110, %v2110
        %v2521 = vmul.f32 %v2114, %v2114
        %v2522 = vmul.f32 %v2116, %v2116
        %v2523 = vmul.f32 %v2120, %v2120
        %v2524 = vmul.f32 %v2122, %v2122
        %v2525 = vmul.f32 %v2126, %v2126
        %v2526 = vmul.f32 %v2128, %v2128
        %v2527 = vmul.f32 %v2132, %v2132
        %v2528 = vmul.f32 %v2134, %v2134
        %v2529 = vmul.f32 %v2138, %v2138
        %v2530 = vmul.f32 %v2140, %v2140
        %v2531 = vmul.f32 %v2144, %v2144
        %v2532 = vmul.f32 %v2146, %v2146
        %v2533 = vmul.f32 %v2150, %v2150
        %v2534 = vmul.f32 %v2152, %v2152
        %v2535 = vmul.f32 %v2156, %v2156
        %v2536 = vmul.f32 %v2158, %v2158
        %v2537 = vmul.f32 %v2162, %v2162
        %v2538 = vmul.f32 %v2164, %v2164
        %v2539 = vmul.f32 %v2168, %v2168
        %v2540 = vmul.f32 %v2170, %v2170
        %v2541 = vmul.f32 %v2174, %v2174
        %v2542 = vmul.f32 %v2176, %v2176
        %v2543 = vmul.f32 %v2180, %v2180
        %v2544 = vmul.f32 %v2182, %v2182
        %v2545 = vmul.f32 %v2186, %v2186
        %v2546 = vmul.f32 %v2188, %v2188
        %v2547 = vmul.f32 %v2192, %v2192
        %v2548 = vmul.f32 %v2194, %v2194
        %v2549 = vmul.f32 %v2198, %v2198
        %v2550 = vmul.f32 %v2200, %v2200
        %v2551 = vmul.f32 %v2204, %v2204
        %v2552 = vmul.f32 %v2206, %v2206
        %v2553 = vmul.f32 %v2210, %v2210
        %v2554 = vmul.f32 %v2212, %v2212
        %v2555 = vmul.f32 %v2216, %v2216
        %v2556 = vmul.f32 %v2218, %v2218
        %v2557 = vmul.f32 %v2222, %v2222
        %v2558 = vmul.f32 %v2224, %v2224
        %v2559 = vmul.f32 %v2228, %v2228
        %v2560 = vmul.f32 %v2230, %v2230
        %v2561 = vmul.f32 %v2234, %v2234
        %v2562 = vmul.f32 %v2236, %v2236
        %v2563 = vmul.f32 %v2240, %v2240
        %v2564 = vmul.f32 %v2242, %v2242
        %2565 = vmatprep.subr.mxu0 %v437
        %2566 = vmatpush1.msra.mxu0 %v436
        %2567 = vmatprep.subr.mxu0 %v435
        %2568 = vmatpush1.msra.mxu0 %v434
        %2569 = vmatprep.subr.mxu0 %v433
        %2570 = vmatpush1.msra.mxu0 %v432
        %2571 = vmatprep.subr.mxu0 %v431
        %2572 = vmatpush1.msra.mxu0 %v430
        %2573 = vmatprep.subr.mxu0 %v429
        %2574 = vmatpush1.msra.mxu0 %v428
        %2575 = vmatprep.subr.mxu0 %v427
        %2576 = vmatpush1.msra.mxu0 %v426
        %2577 = vmatprep.subr.mxu0 %v425
        %2578 = vmatpush1.msra.mxu0 %v424
        %2579 = vmatprep.subr.mxu0 %v423
        %2580 = vmatpush1.msra.mxu0 %v422
        %2581 = vmatprep.subr.mxu0 %v421
        %2582 = vmatpush1.msra.mxu0 %v420
        %2583 = vmatprep.subr.mxu0 %v419
        %2584 = vmatpush1.msra.mxu0 %v418
        %2585 = vmatprep.subr.mxu0 %v417
        %2586 = vmatpush1.msra.mxu0 %v416
        %2587 = vmatprep.subr.mxu0 %v415
        %2588 = vmatpush1.msra.mxu0 %v414
        %2589 = vmatprep.subr.mxu0 %v413
        %2590 = vmatpush1.msra.mxu0 %v412
        %2591 = vmatprep.subr.mxu0 %v411
        %2592 = vmatpush1.msra.mxu0 %v410
        %2593 = vmatprep.subr.mxu0 %v409
        %2594 = vmatpush1.msra.mxu0 %v408
        %2595 = vmatprep.subr.mxu0 %v407
        %2596 = vmatpush1.msra.mxu0 %v406
        %2597 = vmatprep.subr.mxu0 %v469
        %2598 = vmatpush2.msra.mxu0 %v468
        %2599 = vmatprep.subr.mxu0 %v467
        %2600 = vmatpush2.msra.mxu0 %v466
        %2601 = vmatprep.subr.mxu0 %v465
        %2602 = vmatpush2.msra.mxu0 %v464
        %2603 = vmatprep.subr.mxu0 %v463
        %2604 = vmatpush2.msra.mxu0 %v462
        %2605 = vmatprep.subr.mxu0 %v461
        %2606 = vmatpush2.msra.mxu0 %v460
        %2607 = vmatprep.subr.mxu0 %v459
        %2608 = vmatpush2.msra.mxu0 %v458
        %2609 = vmatprep.subr.mxu0 %v457
        %2610 = vmatpush2.msra.mxu0 %v456
        %2611 = vmatprep.subr.mxu0 %v455
        %2612 = vmatpush2.msra.mxu0 %v454
        %2613 = vmatprep.subr.mxu0 %v453
        %2614 = vmatpush2.msra.mxu0 %v452
        %2615 = vmatprep.subr.mxu0 %v451
        %2616 = vmatpush2.msra.mxu0 %v450
        %2617 = vmatprep.subr.mxu0 %v449
        %2618 = vmatpush2.msra.mxu0 %v448
        %2619 = vmatprep.subr.mxu0 %v447
        %2620 = vmatpush2.msra.mxu0 %v446
        %2621 = vmatprep.subr.mxu0 %v445
        %2622 = vmatpush2.msra.mxu0 %v444
        %2623 = vmatprep.subr.mxu0 %v443
        %2624 = vmatpush2.msra.mxu0 %v442
        %2625 = vmatprep.subr.mxu0 %v441
        %2626 = vmatpush2.msra.mxu0 %v440
        %2627 = vmatprep.subr.mxu0 %v439
        %2628 = vmatpush2.msra.mxu0 %v438
        %2629 = vmatprep.mubr.f32.mxu0 %v2502
        %2630 = vmatmul.mubr.f32.gmra.mxu0 %v2501
        %v2631 = vpop.f32.mrf.mxu0
        %v2632 = vadd.f32 0.0, %v2631
        %v2633 = vpop.f32.mrf.mxu0
        %v2634 = vadd.f32 0.0, %v2633
        %2635 = vmatprep.mubr.f32.mxu0 %v2504
        %2636 = vmatmul.mubr.f32.gmra.mxu0 %v2503
        %v2637 = vpop.f32.mrf.mxu0
        %v2638 = vadd.f32 0.0, %v2637
        %v2639 = vpop.f32.mrf.mxu0
        %v2640 = vadd.f32 0.0, %v2639
        %2641 = vmatprep.mubr.f32.mxu0 %v2506
        %2642 = vmatmul.mubr.f32.gmra.mxu0 %v2505
        %v2643 = vpop.f32.mrf.mxu0
        %v2644 = vadd.f32 0.0, %v2643
        %v2645 = vpop.f32.mrf.mxu0
        %v2646 = vadd.f32 0.0, %v2645
        %2647 = vmatprep.mubr.f32.mxu0 %v2508
        %2648 = vmatmul.mubr.f32.gmra.mxu0 %v2507
        %v2649 = vpop.f32.mrf.mxu0
        %v2650 = vadd.f32 0.0, %v2649
        %v2651 = vpop.f32.mrf.mxu0
        %v2652 = vadd.f32 0.0, %v2651
        %2653 = vmatprep.mubr.f32.mxu0 %v2510
        %2654 = vmatmul.mubr.f32.gmra.mxu0 %v2509
        %v2655 = vpop.f32.mrf.mxu0
        %v2656 = vadd.f32 0.0, %v2655
        %v2657 = vpop.f32.mrf.mxu0
        %v2658 = vadd.f32 0.0, %v2657
        %2659 = vmatprep.mubr.f32.mxu0 %v2512
        %2660 = vmatmul.mubr.f32.gmra.mxu0 %v2511
        %v2661 = vpop.f32.mrf.mxu0
        %v2662 = vadd.f32 0.0, %v2661
        %v2663 = vpop.f32.mrf.mxu0
        %v2664 = vadd.f32 0.0, %v2663
        %2665 = vmatprep.mubr.f32.mxu0 %v2514
        %2666 = vmatmul.mubr.f32.gmra.mxu0 %v2513
        %v2667 = vpop.f32.mrf.mxu0
        %v2668 = vadd.f32 0.0, %v2667
        %v2669 = vpop.f32.mrf.mxu0
        %v2670 = vadd.f32 0.0, %v2669
        %2671 = vmatprep.mubr.f32.mxu0 %v2516
        %2672 = vmatmul.mubr.f32.gmra.mxu0 %v2515
        %v2673 = vpop.f32.mrf.mxu0
        %v2674 = vadd.f32 0.0, %v2673
        %v2675 = vpop.f32.mrf.mxu0
        %v2676 = vadd.f32 0.0, %v2675
        %2677 = vmatprep.mubr.f32.mxu0 %v2518
        %2678 = vmatmul.mubr.f32.gmra.mxu0 %v2517
        %v2679 = vpop.f32.mrf.mxu0
        %v2680 = vadd.f32 0.0, %v2679
        %v2681 = vpop.f32.mrf.mxu0
        %v2682 = vadd.f32 0.0, %v2681
        %2683 = vmatprep.mubr.f32.mxu0 %v2520
        %2684 = vmatmul.mubr.f32.gmra.mxu0 %v2519
        %v2685 = vpop.f32.mrf.mxu0
        %v2686 = vadd.f32 0.0, %v2685
        %v2687 = vpop.f32.mrf.mxu0
        %v2688 = vadd.f32 0.0, %v2687
        %2689 = vmatprep.mubr.f32.mxu0 %v2522
        %2690 = vmatmul.mubr.f32.gmra.mxu0 %v2521
        %v2691 = vpop.f32.mrf.mxu0
        %v2692 = vadd.f32 0.0, %v2691
        %v2693 = vpop.f32.mrf.mxu0
        %v2694 = vadd.f32 0.0, %v2693
        %2695 = vmatprep.mubr.f32.mxu0 %v2524
        %2696 = vmatmul.mubr.f32.gmra.mxu0 %v2523
        %v2697 = vpop.f32.mrf.mxu0
        %v2698 = vadd.f32 0.0, %v2697
        %v2699 = vpop.f32.mrf.mxu0
        %v2700 = vadd.f32 0.0, %v2699
        %2701 = vmatprep.mubr.f32.mxu0 %v2526
        %2702 = vmatmul.mubr.f32.gmra.mxu0 %v2525
        %v2703 = vpop.f32.mrf.mxu0
        %v2704 = vadd.f32 0.0, %v2703
        %v2705 = vpop.f32.mrf.mxu0
        %v2706 = vadd.f32 0.0, %v2705
        %2707 = vmatprep.mubr.f32.mxu0 %v2528
        %2708 = vmatmul.mubr.f32.gmra.mxu0 %v2527
        %v2709 = vpop.f32.mrf.mxu0
        %v2710 = vadd.f32 0.0, %v2709
        %v2711 = vpop.f32.mrf.mxu0
        %v2712 = vadd.f32 0.0, %v2711
        %2713 = vmatprep.mubr.f32.mxu0 %v2530
        %2714 = vmatmul.mubr.f32.gmra.mxu0 %v2529
        %v2715 = vpop.f32.mrf.mxu0
        %v2716 = vadd.f32 0.0, %v2715
        %v2717 = vpop.f32.mrf.mxu0
        %v2718 = vadd.f32 0.0, %v2717
        %2719 = vmatprep.mubr.f32.mxu0 %v2532
        %2720 = vmatmul.mubr.f32.gmra.mxu0 %v2531
        %v2721 = vpop.f32.mrf.mxu0
        %v2722 = vadd.f32 0.0, %v2721
        %v2723 = vpop.f32.mrf.mxu0
        %v2724 = vadd.f32 0.0, %v2723
        %2725 = vmatprep.mubr.f32.mxu0 %v2534
        %2726 = vmatmul.mubr.f32.gmra.mxu0 %v2533
        %v2727 = vpop.f32.mrf.mxu0
        %v2728 = vadd.f32 0.0, %v2727
        %v2729 = vpop.f32.mrf.mxu0
        %v2730 = vadd.f32 0.0, %v2729
        %2731 = vmatprep.mubr.f32.mxu0 %v2536
        %2732 = vmatmul.mubr.f32.gmra.mxu0 %v2535
        %v2733 = vpop.f32.mrf.mxu0
        %v2734 = vadd.f32 0.0, %v2733
        %v2735 = vpop.f32.mrf.mxu0
        %v2736 = vadd.f32 0.0, %v2735
        %2737 = vmatprep.mubr.f32.mxu0 %v2538
        %2738 = vmatmul.mubr.f32.gmra.mxu0 %v2537
        %v2739 = vpop.f32.mrf.mxu0
        %v2740 = vadd.f32 0.0, %v2739
        %v2741 = vpop.f32.mrf.mxu0
        %v2742 = vadd.f32 0.0, %v2741
        %2743 = vmatprep.mubr.f32.mxu0 %v2540
        %2744 = vmatmul.mubr.f32.gmra.mxu0 %v2539
        %v2745 = vpop.f32.mrf.mxu0
        %v2746 = vadd.f32 0.0, %v2745
        %v2747 = vpop.f32.mrf.mxu0
        %v2748 = vadd.f32 0.0, %v2747
        %2749 = vmatprep.mubr.f32.mxu0 %v2542
        %2750 = vmatmul.mubr.f32.gmra.mxu0 %v2541
        %v2751 = vpop.f32.mrf.mxu0
        %v2752 = vadd.f32 0.0, %v2751
        %v2753 = vpop.f32.mrf.mxu0
        %v2754 = vadd.f32 0.0, %v2753
        %2755 = vmatprep.mubr.f32.mxu0 %v2544
        %2756 = vmatmul.mubr.f32.gmra.mxu0 %v2543
        %v2757 = vpop.f32.mrf.mxu0
        %v2758 = vadd.f32 0.0, %v2757
        %v2759 = vpop.f32.mrf.mxu0
        %v2760 = vadd.f32 0.0, %v2759
        %2761 = vmatprep.mubr.f32.mxu0 %v2546
        %2762 = vmatmul.mubr.f32.gmra.mxu0 %v2545
        %v2763 = vpop.f32.mrf.mxu0
        %v2764 = vadd.f32 0.0, %v2763
        %v2765 = vpop.f32.mrf.mxu0
        %v2766 = vadd.f32 0.0, %v2765
        %2767 = vmatprep.mubr.f32.mxu0 %v2548
        %2768 = vmatmul.mubr.f32.gmra.mxu0 %v2547
        %v2769 = vpop.f32.mrf.mxu0
        %v2770 = vadd.f32 0.0, %v2769
        %v2771 = vpop.f32.mrf.mxu0
        %v2772 = vadd.f32 0.0, %v2771
        %2773 = vmatprep.mubr.f32.mxu0 %v2550
        %2774 = vmatmul.mubr.f32.gmra.mxu0 %v2549
        %v2775 = vpop.f32.mrf.mxu0
        %v2776 = vadd.f32 0.0, %v2775
        %v2777 = vpop.f32.mrf.mxu0
        %v2778 = vadd.f32 0.0, %v2777
        %2779 = vmatprep.mubr.f32.mxu0 %v2552
        %2780 = vmatmul.mubr.f32.gmra.mxu0 %v2551
        %v2781 = vpop.f32.mrf.mxu0
        %v2782 = vadd.f32 0.0, %v2781
        %v2783 = vpop.f32.mrf.mxu0
        %v2784 = vadd.f32 0.0, %v2783
        %2785 = vmatprep.mubr.f32.mxu0 %v2554
        %2786 = vmatmul.mubr.f32.gmra.mxu0 %v2553
        %v2787 = vpop.f32.mrf.mxu0
        %v2788 = vadd.f32 0.0, %v2787
        %v2789 = vpop.f32.mrf.mxu0
        %v2790 = vadd.f32 0.0, %v2789
        %2791 = vmatprep.mubr.f32.mxu0 %v2556
        %2792 = vmatmul.mubr.f32.gmra.mxu0 %v2555
        %v2793 = vpop.f32.mrf.mxu0
        %v2794 = vadd.f32 0.0, %v2793
        %v2795 = vpop.f32.mrf.mxu0
        %v2796 = vadd.f32 0.0, %v2795
        %2797 = vmatprep.mubr.f32.mxu0 %v2558
        %2798 = vmatmul.mubr.f32.gmra.mxu0 %v2557
        %v2799 = vpop.f32.mrf.mxu0
        %v2800 = vadd.f32 0.0, %v2799
        %v2801 = vpop.f32.mrf.mxu0
        %v2802 = vadd.f32 0.0, %v2801
        %2803 = vmatprep.mubr.f32.mxu0 %v2560
        %2804 = vmatmul.mubr.f32.gmra.mxu0 %v2559
        %v2805 = vpop.f32.mrf.mxu0
        %v2806 = vadd.f32 0.0, %v2805
        %v2807 = vpop.f32.mrf.mxu0
        %v2808 = vadd.f32 0.0, %v2807
        %2809 = vmatprep.mubr.f32.mxu0 %v2562
        %2810 = vmatmul.mubr.f32.gmra.mxu0 %v2561
        %v2811 = vpop.f32.mrf.mxu0
        %v2812 = vadd.f32 0.0, %v2811
        %v2813 = vpop.f32.mrf.mxu0
        %v2814 = vadd.f32 0.0, %v2813
        %2815 = vmatprep.mubr.f32.mxu0 %v2564
        %2816 = vmatmul.mubr.f32.gmra.mxu0 %v2563
        %v2817 = vpop.f32.mrf.mxu0
        %v2818 = vadd.f32 0.0, %v2817
        %v2819 = vpop.f32.mrf.mxu0
        %v2820 = vadd.f32 0.0, %v2819
        %2821 = vdwg.mxu0
        %v2822 = vsub.f32 %v2054, %v2311
        %v2823 = vsub.f32 %v2056, %v2313
        %v2824 = vsub.f32 %v2060, %v2317
        %v2825 = vsub.f32 %v2062, %v2319
        %v2826 = vsub.f32 %v2066, %v2323
        %v2827 = vsub.f32 %v2068, %v2325
        %v2828 = vsub.f32 %v2072, %v2329
        %v2829 = vsub.f32 %v2074, %v2331
        %v2830 = vsub.f32 %v2078, %v2335
        %v2831 = vsub.f32 %v2080, %v2337
        %v2832 = vsub.f32 %v2084, %v2341
        %v2833 = vsub.f32 %v2086, %v2343
        %v2834 = vsub.f32 %v2090, %v2347
        %v2835 = vsub.f32 %v2092, %v2349
        %v2836 = vsub.f32 %v2096, %v2353
        %v2837 = vsub.f32 %v2098, %v2355
        %v2838 = vsub.f32 %v2102, %v2359
        %v2839 = vsub.f32 %v2104, %v2361
        %v2840 = vsub.f32 %v2108, %v2365
        %v2841 = vsub.f32 %v2110, %v2367
        %v2842 = vsub.f32 %v2114, %v2371
        %v2843 = vsub.f32 %v2116, %v2373
        %v2844 = vsub.f32 %v2120, %v2377
        %v2845 = vsub.f32 %v2122, %v2379
        %v2846 = vsub.f32 %v2126, %v2383
        %v2847 = vsub.f32 %v2128, %v2385
        %v2848 = vsub.f32 %v2132, %v2389
        %v2849 = vsub.f32 %v2134, %v2391
        %v2850 = vsub.f32 %v2138, %v2395
        %v2851 = vsub.f32 %v2140, %v2397
        %v2852 = vsub.f32 %v2144, %v2401
        %v2853 = vsub.f32 %v2146, %v2403
        %v2854 = vsub.f32 %v2150, %v2407
        %v2855 = vsub.f32 %v2152, %v2409
        %v2856 = vsub.f32 %v2156, %v2413
        %v2857 = vsub.f32 %v2158, %v2415
        %v2858 = vsub.f32 %v2162, %v2419
        %v2859 = vsub.f32 %v2164, %v2421
        %v2860 = vsub.f32 %v2168, %v2425
        %v2861 = vsub.f32 %v2170, %v2427
        %v2862 = vsub.f32 %v2174, %v2431
        %v2863 = vsub.f32 %v2176, %v2433
        %v2864 = vsub.f32 %v2180, %v2437
        %v2865 = vsub.f32 %v2182, %v2439
        %v2866 = vsub.f32 %v2186, %v2443
        %v2867 = vsub.f32 %v2188, %v2445
        %v2868 = vsub.f32 %v2192, %v2449
        %v2869 = vsub.f32 %v2194, %v2451
        %v2870 = vsub.f32 %v2198, %v2455
        %v2871 = vsub.f32 %v2200, %v2457
        %v2872 = vsub.f32 %v2204, %v2461
        %v2873 = vsub.f32 %v2206, %v2463
        %v2874 = vsub.f32 %v2210, %v2467
        %v2875 = vsub.f32 %v2212, %v2469
        %v2876 = vsub.f32 %v2216, %v2473
        %v2877 = vsub.f32 %v2218, %v2475
        %v2878 = vsub.f32 %v2222, %v2479
        %v2879 = vsub.f32 %v2224, %v2481
        %v2880 = vsub.f32 %v2228, %v2485
        %v2881 = vsub.f32 %v2230, %v2487
        %v2882 = vsub.f32 %v2234, %v2491
        %v2883 = vsub.f32 %v2236, %v2493
        %v2884 = vsub.f32 %v2240, %v2497
        %v2885 = vsub.f32 %v2242, %v2499
        %v2886 = vmul.f32 %v2311, %v2311
        %v2887 = vmul.f32 %v2313, %v2313
        %v2888 = vmul.f32 %v2317, %v2317
        %v2889 = vmul.f32 %v2319, %v2319
        %v2890 = vmul.f32 %v2323, %v2323
        %v2891 = vmul.f32 %v2325, %v2325
        %v2892 = vmul.f32 %v2329, %v2329
        %v2893 = vmul.f32 %v2331, %v2331
        %v2894 = vmul.f32 %v2335, %v2335
        %v2895 = vmul.f32 %v2337, %v2337
        %v2896 = vmul.f32 %v2341, %v2341
        %v2897 = vmul.f32 %v2343, %v2343
        %v2898 = vmul.f32 %v2347, %v2347
        %v2899 = vmul.f32 %v2349, %v2349
        %v2900 = vmul.f32 %v2353, %v2353
        %v2901 = vmul.f32 %v2355, %v2355
        %v2902 = vmul.f32 %v2359, %v2359
        %v2903 = vmul.f32 %v2361, %v2361
        %v2904 = vmul.f32 %v2365, %v2365
        %v2905 = vmul.f32 %v2367, %v2367
        %v2906 = vmul.f32 %v2371, %v2371
        %v2907 = vmul.f32 %v2373, %v2373
        %v2908 = vmul.f32 %v2377, %v2377
        %v2909 = vmul.f32 %v2379, %v2379
        %v2910 = vmul.f32 %v2383, %v2383
        %v2911 = vmul.f32 %v2385, %v2385
        %v2912 = vmul.f32 %v2389, %v2389
        %v2913 = vmul.f32 %v2391, %v2391
        %v2914 = vmul.f32 %v2395, %v2395
        %v2915 = vmul.f32 %v2397, %v2397
        %v2916 = vmul.f32 %v2401, %v2401
        %v2917 = vmul.f32 %v2403, %v2403
        %v2918 = vmul.f32 %v2407, %v2407
        %v2919 = vmul.f32 %v2409, %v2409
        %v2920 = vmul.f32 %v2413, %v2413
        %v2921 = vmul.f32 %v2415, %v2415
        %v2922 = vmul.f32 %v2419, %v2419
        %v2923 = vmul.f32 %v2421, %v2421
        %v2924 = vmul.f32 %v2425, %v2425
        %v2925 = vmul.f32 %v2427, %v2427
        %v2926 = vmul.f32 %v2431, %v2431
        %v2927 = vmul.f32 %v2433, %v2433
        %v2928 = vmul.f32 %v2437, %v2437
        %v2929 = vmul.f32 %v2439, %v2439
        %v2930 = vmul.f32 %v2443, %v2443
        %v2931 = vmul.f32 %v2445, %v2445
        %v2932 = vmul.f32 %v2449, %v2449
        %v2933 = vmul.f32 %v2451, %v2451
        %v2934 = vmul.f32 %v2455, %v2455
        %v2935 = vmul.f32 %v2457, %v2457
        %v2936 = vmul.f32 %v2461, %v2461
        %v2937 = vmul.f32 %v2463, %v2463
        %v2938 = vmul.f32 %v2467, %v2467
        %v2939 = vmul.f32 %v2469, %v2469
        %v2940 = vmul.f32 %v2473, %v2473
        %v2941 = vmul.f32 %v2475, %v2475
        %v2942 = vmul.f32 %v2479, %v2479
        %v2943 = vmul.f32 %v2481, %v2481
        %v2944 = vmul.f32 %v2485, %v2485
        %v2945 = vmul.f32 %v2487, %v2487
        %v2946 = vmul.f32 %v2491, %v2491
        %v2947 = vmul.f32 %v2493, %v2493
        %v2948 = vmul.f32 %v2497, %v2497
        %v2949 = vmul.f32 %v2499, %v2499
        %v2950 = vsub.f32 %v2632, %v2886
        %v2951 = vsub.f32 %v2634, %v2887
        %v2952 = vsub.f32 %v2638, %v2888
        %v2953 = vsub.f32 %v2640, %v2889
        %v2954 = vsub.f32 %v2644, %v2890
        %v2955 = vsub.f32 %v2646, %v2891
        %v2956 = vsub.f32 %v2650, %v2892
        %v2957 = vsub.f32 %v2652, %v2893
        %v2958 = vsub.f32 %v2656, %v2894
        %v2959 = vsub.f32 %v2658, %v2895
        %v2960 = vsub.f32 %v2662, %v2896
        %v2961 = vsub.f32 %v2664, %v2897
        %v2962 = vsub.f32 %v2668, %v2898
        %v2963 = vsub.f32 %v2670, %v2899
        %v2964 = vsub.f32 %v2674, %v2900
        %v2965 = vsub.f32 %v2676, %v2901
        %v2966 = vsub.f32 %v2680, %v2902
        %v2967 = vsub.f32 %v2682, %v2903
        %v2968 = vsub.f32 %v2686, %v2904
        %v2969 = vsub.f32 %v2688, %v2905
        %v2970 = vsub.f32 %v2692, %v2906
        %v2971 = vsub.f32 %v2694, %v2907
        %v2972 = vsub.f32 %v2698, %v2908
        %v2973 = vsub.f32 %v2700, %v2909
        %v2974 = vsub.f32 %v2704, %v2910
        %v2975 = vsub.f32 %v2706, %v2911
        %v2976 = vsub.f32 %v2710, %v2912
        %v2977 = vsub.f32 %v2712, %v2913
        %v2978 = vsub.f32 %v2716, %v2914
        %v2979 = vsub.f32 %v2718, %v2915
        %v2980 = vsub.f32 %v2722, %v2916
        %v2981 = vsub.f32 %v2724, %v2917
        %v2982 = vsub.f32 %v2728, %v2918
        %v2983 = vsub.f32 %v2730, %v2919
        %v2984 = vsub.f32 %v2734, %v2920
        %v2985 = vsub.f32 %v2736, %v2921
        %v2986 = vsub.f32 %v2740, %v2922
        %v2987 = vsub.f32 %v2742, %v2923
        %v2988 = vsub.f32 %v2746, %v2924
        %v2989 = vsub.f32 %v2748, %v2925
        %v2990 = vsub.f32 %v2752, %v2926
        %v2991 = vsub.f32 %v2754, %v2927
        %v2992 = vsub.f32 %v2758, %v2928
        %v2993 = vsub.f32 %v2760, %v2929
        %v2994 = vsub.f32 %v2764, %v2930
        %v2995 = vsub.f32 %v2766, %v2931
        %v2996 = vsub.f32 %v2770, %v2932
        %v2997 = vsub.f32 %v2772, %v2933
        %v2998 = vsub.f32 %v2776, %v2934
        %v2999 = vsub.f32 %v2778, %v2935
        %v3000 = vsub.f32 %v2782, %v2936
        %v3001 = vsub.f32 %v2784, %v2937
        %v3002 = vsub.f32 %v2788, %v2938
        %v3003 = vsub.f32 %v2790, %v2939
        %v3004 = vsub.f32 %v2794, %v2940
        %v3005 = vsub.f32 %v2796, %v2941
        %v3006 = vsub.f32 %v2800, %v2942
        %v3007 = vsub.f32 %v2802, %v2943
        %v3008 = vsub.f32 %v2806, %v2944
        %v3009 = vsub.f32 %v2808, %v2945
        %v3010 = vsub.f32 %v2812, %v2946
        %v3011 = vsub.f32 %v2814, %v2947
        %v3012 = vsub.f32 %v2818, %v2948
        %v3013 = vsub.f32 %v2820, %v2949
        %v3014 = vadd.f32 %v2950, 1e-05
        %v3015 = vadd.f32 %v2951, 1e-05
        %v3016 = vadd.f32 %v2952, 1e-05
        %v3017 = vadd.f32 %v2953, 1e-05
        %v3018 = vadd.f32 %v2954, 1e-05
        %v3019 = vadd.f32 %v2955, 1e-05
        %v3020 = vadd.f32 %v2956, 1e-05
        %v3021 = vadd.f32 %v2957, 1e-05
        %v3022 = vadd.f32 %v2958, 1e-05
        %v3023 = vadd.f32 %v2959, 1e-05
        %v3024 = vadd.f32 %v2960, 1e-05
        %v3025 = vadd.f32 %v2961, 1e-05
        %v3026 = vadd.f32 %v2962, 1e-05
        %v3027 = vadd.f32 %v2963, 1e-05
        %v3028 = vadd.f32 %v2964, 1e-05
        %v3029 = vadd.f32 %v2965, 1e-05
        %v3030 = vadd.f32 %v2966, 1e-05
        %v3031 = vadd.f32 %v2967, 1e-05
        %v3032 = vadd.f32 %v2968, 1e-05
        %v3033 = vadd.f32 %v2969, 1e-05
        %v3034 = vadd.f32 %v2970, 1e-05
        %v3035 = vadd.f32 %v2971, 1e-05
        %v3036 = vadd.f32 %v2972, 1e-05
        %v3037 = vadd.f32 %v2973, 1e-05
        %v3038 = vadd.f32 %v2974, 1e-05
        %v3039 = vadd.f32 %v2975, 1e-05
        %v3040 = vadd.f32 %v2976, 1e-05
        %v3041 = vadd.f32 %v2977, 1e-05
        %v3042 = vadd.f32 %v2978, 1e-05
        %v3043 = vadd.f32 %v2979, 1e-05
        %v3044 = vadd.f32 %v2980, 1e-05
        %v3045 = vadd.f32 %v2981, 1e-05
        %v3046 = vadd.f32 %v2982, 1e-05
        %v3047 = vadd.f32 %v2983, 1e-05
        %v3048 = vadd.f32 %v2984, 1e-05
        %v3049 = vadd.f32 %v2985, 1e-05
        %v3050 = vadd.f32 %v2986, 1e-05
        %v3051 = vadd.f32 %v2987, 1e-05
        %v3052 = vadd.f32 %v2988, 1e-05
        %v3053 = vadd.f32 %v2989, 1e-05
        %v3054 = vadd.f32 %v2990, 1e-05
        %v3055 = vadd.f32 %v2991, 1e-05
        %v3056 = vadd.f32 %v2992, 1e-05
        %v3057 = vadd.f32 %v2993, 1e-05
        %v3058 = vadd.f32 %v2994, 1e-05
        %v3059 = vadd.f32 %v2995, 1e-05
        %v3060 = vadd.f32 %v2996, 1e-05
        %v3061 = vadd.f32 %v2997, 1e-05
        %v3062 = vadd.f32 %v2998, 1e-05
        %v3063 = vadd.f32 %v2999, 1e-05
        %v3064 = vadd.f32 %v3000, 1e-05
        %v3065 = vadd.f32 %v3001, 1e-05
        %v3066 = vadd.f32 %v3002, 1e-05
        %v3067 = vadd.f32 %v3003, 1e-05
        %v3068 = vadd.f32 %v3004, 1e-05
        %v3069 = vadd.f32 %v3005, 1e-05
        %v3070 = vadd.f32 %v3006, 1e-05
        %v3071 = vadd.f32 %v3007, 1e-05
        %v3072 = vadd.f32 %v3008, 1e-05
        %v3073 = vadd.f32 %v3009, 1e-05
        %v3074 = vadd.f32 %v3010, 1e-05
        %v3075 = vadd.f32 %v3011, 1e-05
        %v3076 = vadd.f32 %v3012, 1e-05
        %v3077 = vadd.f32 %v3013, 1e-05
        %v3078 = vrsqrt.pop %v3014
        %v3079 = vrsqrt.pop %v3015
        %v3080 = vrsqrt.pop %v3016
        %v3081 = vrsqrt.pop %v3017
        %v3082 = vrsqrt.pop %v3018
        %v3083 = vrsqrt.pop %v3019
        %v3084 = vrsqrt.pop %v3020
        %v3085 = vrsqrt.pop %v3021
        %v3086 = vrsqrt.pop %v3022
        %v3087 = vrsqrt.pop %v3023
        %v3088 = vrsqrt.pop %v3024
        %v3089 = vrsqrt.pop %v3025
        %v3090 = vrsqrt.pop %v3026
        %v3091 = vrsqrt.pop %v3027
        %v3092 = vrsqrt.pop %v3028
        %v3093 = vrsqrt.pop %v3029
        %v3094 = vrsqrt.pop %v3030
        %v3095 = vrsqrt.pop %v3031
        %v3096 = vrsqrt.pop %v3032
        %v3097 = vrsqrt.pop %v3033
        %v3098 = vrsqrt.pop %v3034
        %v3099 = vrsqrt.pop %v3035
        %v3100 = vrsqrt.pop %v3036
        %v3101 = vrsqrt.pop %v3037
        %v3102 = vrsqrt.pop %v3038
        %v3103 = vrsqrt.pop %v3039
        %v3104 = vrsqrt.pop %v3040
        %v3105 = vrsqrt.pop %v3041
        %v3106 = vrsqrt.pop %v3042
        %v3107 = vrsqrt.pop %v3043
        %v3108 = vrsqrt.pop %v3044
        %v3109 = vrsqrt.pop %v3045
        %v3110 = vrsqrt.pop %v3046
        %v3111 = vrsqrt.pop %v3047
        %v3112 = vrsqrt.pop %v3048
        %v3113 = vrsqrt.pop %v3049
        %v3114 = vrsqrt.pop %v3050
        %v3115 = vrsqrt.pop %v3051
        %v3116 = vrsqrt.pop %v3052
        %v3117 = vrsqrt.pop %v3053
        %v3118 = vrsqrt.pop %v3054
        %v3119 = vrsqrt.pop %v3055
        %v3120 = vrsqrt.pop %v3056
        %v3121 = vrsqrt.pop %v3057
        %v3122 = vrsqrt.pop %v3058
        %v3123 = vrsqrt.pop %v3059
        %v3124 = vrsqrt.pop %v3060
        %v3125 = vrsqrt.pop %v3061
        %v3126 = vrsqrt.pop %v3062
        %v3127 = vrsqrt.pop %v3063
        %v3128 = vrsqrt.pop %v3064
        %v3129 = vrsqrt.pop %v3065
        %v3130 = vrsqrt.pop %v3066
        %v3131 = vrsqrt.pop %v3067
        %v3132 = vrsqrt.pop %v3068
        %v3133 = vrsqrt.pop %v3069
        %v3134 = vrsqrt.pop %v3070
        %v3135 = vrsqrt.pop %v3071
        %v3136 = vrsqrt.pop %v3072
        %v3137 = vrsqrt.pop %v3073
        %v3138 = vrsqrt.pop %v3074
        %v3139 = vrsqrt.pop %v3075
        %v3140 = vrsqrt.pop %v3076
        %v3141 = vrsqrt.pop %v3077
        %v3142 = vmul.f32 %v2822, %v3078
        %v3143 = vmul.f32 %v2823, %v3079
        %v3144 = vmul.f32 %v2824, %v3080
        %v3145 = vmul.f32 %v2825, %v3081
        %v3146 = vmul.f32 %v2826, %v3082
        %v3147 = vmul.f32 %v2827, %v3083
        %v3148 = vmul.f32 %v2828, %v3084
        %v3149 = vmul.f32 %v2829, %v3085
        %v3150 = vmul.f32 %v2830, %v3086
        %v3151 = vmul.f32 %v2831, %v3087
        %v3152 = vmul.f32 %v2832, %v3088
        %v3153 = vmul.f32 %v2833, %v3089
        %v3154 = vmul.f32 %v2834, %v3090
        %v3155 = vmul.f32 %v2835, %v3091
        %v3156 = vmul.f32 %v2836, %v3092
        %v3157 = vmul.f32 %v2837, %v3093
        %v3158 = vmul.f32 %v2838, %v3094
        %v3159 = vmul.f32 %v2839, %v3095
        %v3160 = vmul.f32 %v2840, %v3096
        %v3161 = vmul.f32 %v2841, %v3097
        %v3162 = vmul.f32 %v2842, %v3098
        %v3163 = vmul.f32 %v2843, %v3099
        %v3164 = vmul.f32 %v2844, %v3100
        %v3165 = vmul.f32 %v2845, %v3101
        %v3166 = vmul.f32 %v2846, %v3102
        %v3167 = vmul.f32 %v2847, %v3103
        %v3168 = vmul.f32 %v2848, %v3104
        %v3169 = vmul.f32 %v2849, %v3105
        %v3170 = vmul.f32 %v2850, %v3106
        %v3171 = vmul.f32 %v2851, %v3107
        %v3172 = vmul.f32 %v2852, %v3108
        %v3173 = vmul.f32 %v2853, %v3109
        %v3174 = vmul.f32 %v2854, %v3110
        %v3175 = vmul.f32 %v2855, %v3111
        %v3176 = vmul.f32 %v2856, %v3112
        %v3177 = vmul.f32 %v2857, %v3113
        %v3178 = vmul.f32 %v2858, %v3114
        %v3179 = vmul.f32 %v2859, %v3115
        %v3180 = vmul.f32 %v2860, %v3116
        %v3181 = vmul.f32 %v2861, %v3117
        %v3182 = vmul.f32 %v2862, %v3118
        %v3183 = vmul.f32 %v2863, %v3119
        %v3184 = vmul.f32 %v2864, %v3120
        %v3185 = vmul.f32 %v2865, %v3121
        %v3186 = vmul.f32 %v2866, %v3122
        %v3187 = vmul.f32 %v2867, %v3123
        %v3188 = vmul.f32 %v2868, %v3124
        %v3189 = vmul.f32 %v2869, %v3125
        %v3190 = vmul.f32 %v2870, %v3126
        %v3191 = vmul.f32 %v2871, %v3127
        %v3192 = vmul.f32 %v2872, %v3128
        %v3193 = vmul.f32 %v2873, %v3129
        %v3194 = vmul.f32 %v2874, %v3130
        %v3195 = vmul.f32 %v2875, %v3131
        %v3196 = vmul.f32 %v2876, %v3132
        %v3197 = vmul.f32 %v2877, %v3133
        %v3198 = vmul.f32 %v2878, %v3134
        %v3199 = vmul.f32 %v2879, %v3135
        %v3200 = vmul.f32 %v2880, %v3136
        %v3201 = vmul.f32 %v2881, %v3137
        %v3202 = vmul.f32 %v2882, %v3138
        %v3203 = vmul.f32 %v2883, %v3139
        %v3204 = vmul.f32 %v2884, %v3140
        %v3205 = vmul.f32 %v2885, %v3141
        %v3207 = vlaneseq
        %v3208 = vshrl.u32 %v3207, 7
        %v3209 = vsub.s32 0, %v3208
        %v3210 = vrot.slane %v1004, %v3209
        %v3211 = vlaneseq
        %v3212 = vshrl.u32 %v3211, 7
        %v3213 = vsub.s32 1, %v3212
        %v3214 = vrot.slane %v1004, %v3213
        %v3217 = vmul.f32 %v3142, %v3210
        %v3218 = vmul.f32 %v3143, %v3214
        %v3219 = vmul.f32 %v3144, %v3210
        %v3220 = vmul.f32 %v3145, %v3214
        %v3221 = vmul.f32 %v3146, %v3210
        %v3222 = vmul.f32 %v3147, %v3214
        %v3223 = vmul.f32 %v3148, %v3210
        %v3224 = vmul.f32 %v3149, %v3214
        %v3225 = vmul.f32 %v3150, %v3210
        %v3226 = vmul.f32 %v3151, %v3214
        %v3227 = vmul.f32 %v3152, %v3210
        %v3228 = vmul.f32 %v3153, %v3214
        %v3229 = vmul.f32 %v3154, %v3210
        %v3230 = vmul.f32 %v3155, %v3214
        %v3231 = vmul.f32 %v3156, %v3210
        %v3232 = vmul.f32 %v3157, %v3214
        %v3233 = vmul.f32 %v3158, %v3210
        %v3234 = vmul.f32 %v3159, %v3214
        %v3235 = vmul.f32 %v3160, %v3210
        %v3236 = vmul.f32 %v3161, %v3214
        %v3237 = vmul.f32 %v3162, %v3210
        %v3238 = vmul.f32 %v3163, %v3214
        %v3239 = vmul.f32 %v3164, %v3210
        %v3240 = vmul.f32 %v3165, %v3214
        %v3241 = vmul.f32 %v3166, %v3210
        %v3242 = vmul.f32 %v3167, %v3214
        %v3243 = vmul.f32 %v3168, %v3210
        %v3244 = vmul.f32 %v3169, %v3214
        %v3245 = vmul.f32 %v3170, %v3210
        %v3246 = vmul.f32 %v3171, %v3214
        %v3247 = vmul.f32 %v3172, %v3210
        %v3248 = vmul.f32 %v3173, %v3214
        %v3249 = vmul.f32 %v3174, %v3210
        %v3250 = vmul.f32 %v3175, %v3214
        %v3251 = vmul.f32 %v3176, %v3210
        %v3252 = vmul.f32 %v3177, %v3214
        %v3253 = vmul.f32 %v3178, %v3210
        %v3254 = vmul.f32 %v3179, %v3214
        %v3255 = vmul.f32 %v3180, %v3210
        %v3256 = vmul.f32 %v3181, %v3214
        %v3257 = vmul.f32 %v3182, %v3210
        %v3258 = vmul.f32 %v3183, %v3214
        %v3259 = vmul.f32 %v3184, %v3210
        %v3260 = vmul.f32 %v3185, %v3214
        %v3261 = vmul.f32 %v3186, %v3210
        %v3262 = vmul.f32 %v3187, %v3214
        %v3263 = vmul.f32 %v3188, %v3210
        %v3264 = vmul.f32 %v3189, %v3214
        %v3265 = vmul.f32 %v3190, %v3210
        %v3266 = vmul.f32 %v3191, %v3214
        %v3267 = vmul.f32 %v3192, %v3210
        %v3268 = vmul.f32 %v3193, %v3214
        %v3269 = vmul.f32 %v3194, %v3210
        %v3270 = vmul.f32 %v3195, %v3214
        %v3271 = vmul.f32 %v3196, %v3210
        %v3272 = vmul.f32 %v3197, %v3214
        %v3273 = vmul.f32 %v3198, %v3210
        %v3274 = vmul.f32 %v3199, %v3214
        %v3275 = vmul.f32 %v3200, %v3210
        %v3276 = vmul.f32 %v3201, %v3214
        %v3277 = vmul.f32 %v3202, %v3210
        %v3278 = vmul.f32 %v3203, %v3214
        %v3279 = vmul.f32 %v3204, %v3210
        %v3280 = vmul.f32 %v3205, %v3214
        %v3282 = vlaneseq
        %v3283 = vshrl.u32 %v3282, 7
        %v3284 = vsub.s32 0, %v3283
        %v3285 = vrot.slane %v1006, %v3284
        %v3286 = vlaneseq
        %v3287 = vshrl.u32 %v3286, 7
        %v3288 = vsub.s32 1, %v3287
        %v3289 = vrot.slane %v1006, %v3288
        %v3292 = vadd.f32 %v3217, %v3285
        %v3293 = vadd.f32 %v3218, %v3289
        %v3294 = vadd.f32 %v3219, %v3285
        %v3295 = vadd.f32 %v3220, %v3289
        %v3296 = vadd.f32 %v3221, %v3285
        %v3297 = vadd.f32 %v3222, %v3289
        %v3298 = vadd.f32 %v3223, %v3285
        %v3299 = vadd.f32 %v3224, %v3289
        %v3300 = vadd.f32 %v3225, %v3285
        %v3301 = vadd.f32 %v3226, %v3289
        %v3302 = vadd.f32 %v3227, %v3285
        %v3303 = vadd.f32 %v3228, %v3289
        %v3304 = vadd.f32 %v3229, %v3285
        %v3305 = vadd.f32 %v3230, %v3289
        %v3306 = vadd.f32 %v3231, %v3285
        %v3307 = vadd.f32 %v3232, %v3289
        %v3308 = vadd.f32 %v3233, %v3285
        %v3309 = vadd.f32 %v3234, %v3289
        %v3310 = vadd.f32 %v3235, %v3285
        %v3311 = vadd.f32 %v3236, %v3289
        %v3312 = vadd.f32 %v3237, %v3285
        %v3313 = vadd.f32 %v3238, %v3289
        %v3314 = vadd.f32 %v3239, %v3285
        %v3315 = vadd.f32 %v3240, %v3289
        %v3316 = vadd.f32 %v3241, %v3285
        %v3317 = vadd.f32 %v3242, %v3289
        %v3318 = vadd.f32 %v3243, %v3285
        %v3319 = vadd.f32 %v3244, %v3289
        %v3320 = vadd.f32 %v3245, %v3285
        %v3321 = vadd.f32 %v3246, %v3289
        %v3322 = vadd.f32 %v3247, %v3285
        %v3323 = vadd.f32 %v3248, %v3289
        %v3324 = vadd.f32 %v3249, %v3285
        %v3325 = vadd.f32 %v3250, %v3289
        %v3326 = vadd.f32 %v3251, %v3285
        %v3327 = vadd.f32 %v3252, %v3289
        %v3328 = vadd.f32 %v3253, %v3285
        %v3329 = vadd.f32 %v3254, %v3289
        %v3330 = vadd.f32 %v3255, %v3285
        %v3331 = vadd.f32 %v3256, %v3289
        %v3332 = vadd.f32 %v3257, %v3285
        %v3333 = vadd.f32 %v3258, %v3289
        %v3334 = vadd.f32 %v3259, %v3285
        %v3335 = vadd.f32 %v3260, %v3289
        %v3336 = vadd.f32 %v3261, %v3285
        %v3337 = vadd.f32 %v3262, %v3289
        %v3338 = vadd.f32 %v3263, %v3285
        %v3339 = vadd.f32 %v3264, %v3289
        %v3340 = vadd.f32 %v3265, %v3285
        %v3341 = vadd.f32 %v3266, %v3289
        %v3342 = vadd.f32 %v3267, %v3285
        %v3343 = vadd.f32 %v3268, %v3289
        %v3344 = vadd.f32 %v3269, %v3285
        %v3345 = vadd.f32 %v3270, %v3289
        %v3346 = vadd.f32 %v3271, %v3285
        %v3347 = vadd.f32 %v3272, %v3289
        %v3348 = vadd.f32 %v3273, %v3285
        %v3349 = vadd.f32 %v3274, %v3289
        %v3350 = vadd.f32 %v3275, %v3285
        %v3351 = vadd.f32 %v3276, %v3289
        %v3352 = vadd.f32 %v3277, %v3285
        %v3353 = vadd.f32 %v3278, %v3289
        %v3354 = vadd.f32 %v3279, %v3285
        %v3355 = vadd.f32 %v3280, %v3289
        %v3357 = vlaneseq
        %v3358 = vshrl.u32 %v3357, 7
        %v3359 = vsub.s32 0, %v3358
        %v3360 = vrot.slane %v1008, %v3359
        %v3361 = vlaneseq
        %v3362 = vshrl.u32 %v3361, 7
        %v3363 = vsub.s32 1, %v3362
        %v3364 = vrot.slane %v1008, %v3363
        %3367 = vmatprep.subr.mxu0 %v341
        %3368 = vmatpush1.msra.mxu0 %v340
        %3369 = vmatprep.subr.mxu0 %v339
        %3370 = vmatpush1.msra.mxu0 %v338
        %3371 = vmatprep.subr.mxu0 %v337
        %3372 = vmatpush1.msra.mxu0 %v336
        %3373 = vmatprep.subr.mxu0 %v335
        %3374 = vmatpush1.msra.mxu0 %v334
        %3375 = vmatprep.subr.mxu0 %v333
        %3376 = vmatpush1.msra.mxu0 %v332
        %3377 = vmatprep.subr.mxu0 %v331
        %3378 = vmatpush1.msra.mxu0 %v330
        %3379 = vmatprep.subr.mxu0 %v329
        %3380 = vmatpush1.msra.mxu0 %v328
        %3381 = vmatprep.subr.mxu0 %v327
        %3382 = vmatpush1.msra.mxu0 %v326
        %3383 = vmatprep.subr.mxu0 %v325
        %3384 = vmatpush1.msra.mxu0 %v324
        %3385 = vmatprep.subr.mxu0 %v323
        %3386 = vmatpush1.msra.mxu0 %v322
        %3387 = vmatprep.subr.mxu0 %v321
        %3388 = vmatpush1.msra.mxu0 %v320
        %3389 = vmatprep.subr.mxu0 %v319
        %3390 = vmatpush1.msra.mxu0 %v318
        %3391 = vmatprep.subr.mxu0 %v317
        %3392 = vmatpush1.msra.mxu0 %v316
        %3393 = vmatprep.subr.mxu0 %v315
        %3394 = vmatpush1.msra.mxu0 %v314
        %3395 = vmatprep.subr.mxu0 %v313
        %3396 = vmatpush1.msra.mxu0 %v312
        %3397 = vmatprep.subr.mxu0 %v311
        %3398 = vmatpush1.msra.mxu0 %v310
        %3399 = vmatprep.subr.mxu0 %v373
        %3400 = vmatpush2.msra.mxu0 %v372
        %3401 = vmatprep.subr.mxu0 %v371
        %3402 = vmatpush2.msra.mxu0 %v370
        %3403 = vmatprep.subr.mxu0 %v369
        %3404 = vmatpush2.msra.mxu0 %v368
        %3405 = vmatprep.subr.mxu0 %v367
        %3406 = vmatpush2.msra.mxu0 %v366
        %3407 = vmatprep.subr.mxu0 %v365
        %3408 = vmatpush2.msra.mxu0 %v364
        %3409 = vmatprep.subr.mxu0 %v363
        %3410 = vmatpush2.msra.mxu0 %v362
        %3411 = vmatprep.subr.mxu0 %v361
        %3412 = vmatpush2.msra.mxu0 %v360
        %3413 = vmatprep.subr.mxu0 %v359
        %3414 = vmatpush2.msra.mxu0 %v358
        %3415 = vmatprep.subr.mxu0 %v357
        %3416 = vmatpush2.msra.mxu0 %v356
        %3417 = vmatprep.subr.mxu0 %v355
        %3418 = vmatpush2.msra.mxu0 %v354
        %3419 = vmatprep.subr.mxu0 %v353
        %3420 = vmatpush2.msra.mxu0 %v352
        %3421 = vmatprep.subr.mxu0 %v351
        %3422 = vmatpush2.msra.mxu0 %v350
        %3423 = vmatprep.subr.mxu0 %v349
        %3424 = vmatpush2.msra.mxu0 %v348
        %3425 = vmatprep.subr.mxu0 %v347
        %3426 = vmatpush2.msra.mxu0 %v346
        %3427 = vmatprep.subr.mxu0 %v345
        %3428 = vmatpush2.msra.mxu0 %v344
        %3429 = vmatprep.subr.mxu0 %v343
        %3430 = vmatpush2.msra.mxu0 %v342
        %3431 = vmatprep.mubr.f32.mxu0 %v3293
        %3432 = vmatmul.mubr.f32.gmra.mxu0 %v3292
        %v3433 = vpop.f32.mrf.mxu0
        %v3434 = vadd.f32 %v3360, %v3433
        %v3435 = vpop.f32.mrf.mxu0
        %v3436 = vadd.f32 %v3364, %v3435
        %3437 = vmatprep.mubr.f32.mxu0 %v3295
        %3438 = vmatmul.mubr.f32.gmra.mxu0 %v3294
        %v3439 = vpop.f32.mrf.mxu0
        %v3440 = vadd.f32 %v3360, %v3439
        %v3441 = vpop.f32.mrf.mxu0
        %v3442 = vadd.f32 %v3364, %v3441
        %3443 = vmatprep.mubr.f32.mxu0 %v3297
        %3444 = vmatmul.mubr.f32.gmra.mxu0 %v3296
        %v3445 = vpop.f32.mrf.mxu0
        %v3446 = vadd.f32 %v3360, %v3445
        %v3447 = vpop.f32.mrf.mxu0
        %v3448 = vadd.f32 %v3364, %v3447
        %3449 = vmatprep.mubr.f32.mxu0 %v3299
        %3450 = vmatmul.mubr.f32.gmra.mxu0 %v3298
        %v3451 = vpop.f32.mrf.mxu0
        %v3452 = vadd.f32 %v3360, %v3451
        %v3453 = vpop.f32.mrf.mxu0
        %v3454 = vadd.f32 %v3364, %v3453
        %3455 = vmatprep.mubr.f32.mxu0 %v3301
        %3456 = vmatmul.mubr.f32.gmra.mxu0 %v3300
        %v3457 = vpop.f32.mrf.mxu0
        %v3458 = vadd.f32 %v3360, %v3457
        %v3459 = vpop.f32.mrf.mxu0
        %v3460 = vadd.f32 %v3364, %v3459
        %3461 = vmatprep.mubr.f32.mxu0 %v3303
        %3462 = vmatmul.mubr.f32.gmra.mxu0 %v3302
        %v3463 = vpop.f32.mrf.mxu0
        %v3464 = vadd.f32 %v3360, %v3463
        %v3465 = vpop.f32.mrf.mxu0
        %v3466 = vadd.f32 %v3364, %v3465
        %3467 = vmatprep.mubr.f32.mxu0 %v3305
        %3468 = vmatmul.mubr.f32.gmra.mxu0 %v3304
        %v3469 = vpop.f32.mrf.mxu0
        %v3470 = vadd.f32 %v3360, %v3469
        %v3471 = vpop.f32.mrf.mxu0
        %v3472 = vadd.f32 %v3364, %v3471
        %3473 = vmatprep.mubr.f32.mxu0 %v3307
        %3474 = vmatmul.mubr.f32.gmra.mxu0 %v3306
        %v3475 = vpop.f32.mrf.mxu0
        %v3476 = vadd.f32 %v3360, %v3475
        %v3477 = vpop.f32.mrf.mxu0
        %v3478 = vadd.f32 %v3364, %v3477
        %3479 = vmatprep.mubr.f32.mxu0 %v3309
        %3480 = vmatmul.mubr.f32.gmra.mxu0 %v3308
        %v3481 = vpop.f32.mrf.mxu0
        %v3482 = vadd.f32 %v3360, %v3481
        %v3483 = vpop.f32.mrf.mxu0
        %v3484 = vadd.f32 %v3364, %v3483
        %3485 = vmatprep.mubr.f32.mxu0 %v3311
        %3486 = vmatmul.mubr.f32.gmra.mxu0 %v3310
        %v3487 = vpop.f32.mrf.mxu0
        %v3488 = vadd.f32 %v3360, %v3487
        %v3489 = vpop.f32.mrf.mxu0
        %v3490 = vadd.f32 %v3364, %v3489
        %3491 = vmatprep.mubr.f32.mxu0 %v3313
        %3492 = vmatmul.mubr.f32.gmra.mxu0 %v3312
        %v3493 = vpop.f32.mrf.mxu0
        %v3494 = vadd.f32 %v3360, %v3493
        %v3495 = vpop.f32.mrf.mxu0
        %v3496 = vadd.f32 %v3364, %v3495
        %3497 = vmatprep.mubr.f32.mxu0 %v3315
        %3498 = vmatmul.mubr.f32.gmra.mxu0 %v3314
        %v3499 = vpop.f32.mrf.mxu0
        %v3500 = vadd.f32 %v3360, %v3499
        %v3501 = vpop.f32.mrf.mxu0
        %v3502 = vadd.f32 %v3364, %v3501
        %3503 = vmatprep.mubr.f32.mxu0 %v3317
        %3504 = vmatmul.mubr.f32.gmra.mxu0 %v3316
        %v3505 = vpop.f32.mrf.mxu0
        %v3506 = vadd.f32 %v3360, %v3505
        %v3507 = vpop.f32.mrf.mxu0
        %v3508 = vadd.f32 %v3364, %v3507
        %3509 = vmatprep.mubr.f32.mxu0 %v3319
        %3510 = vmatmul.mubr.f32.gmra.mxu0 %v3318
        %v3511 = vpop.f32.mrf.mxu0
        %v3512 = vadd.f32 %v3360, %v3511
        %v3513 = vpop.f32.mrf.mxu0
        %v3514 = vadd.f32 %v3364, %v3513
        %3515 = vmatprep.mubr.f32.mxu0 %v3321
        %3516 = vmatmul.mubr.f32.gmra.mxu0 %v3320
        %v3517 = vpop.f32.mrf.mxu0
        %v3518 = vadd.f32 %v3360, %v3517
        %v3519 = vpop.f32.mrf.mxu0
        %v3520 = vadd.f32 %v3364, %v3519
        %3521 = vmatprep.mubr.f32.mxu0 %v3323
        %3522 = vmatmul.mubr.f32.gmra.mxu0 %v3322
        %v3523 = vpop.f32.mrf.mxu0
        %v3524 = vadd.f32 %v3360, %v3523
        %v3525 = vpop.f32.mrf.mxu0
        %v3526 = vadd.f32 %v3364, %v3525
        %3527 = vmatprep.mubr.f32.mxu0 %v3325
        %3528 = vmatmul.mubr.f32.gmra.mxu0 %v3324
        %v3529 = vpop.f32.mrf.mxu0
        %v3530 = vadd.f32 %v3360, %v3529
        %v3531 = vpop.f32.mrf.mxu0
        %v3532 = vadd.f32 %v3364, %v3531
        %3533 = vmatprep.mubr.f32.mxu0 %v3327
        %3534 = vmatmul.mubr.f32.gmra.mxu0 %v3326
        %v3535 = vpop.f32.mrf.mxu0
        %v3536 = vadd.f32 %v3360, %v3535
        %v3537 = vpop.f32.mrf.mxu0
        %v3538 = vadd.f32 %v3364, %v3537
        %3539 = vmatprep.mubr.f32.mxu0 %v3329
        %3540 = vmatmul.mubr.f32.gmra.mxu0 %v3328
        %v3541 = vpop.f32.mrf.mxu0
        %v3542 = vadd.f32 %v3360, %v3541
        %v3543 = vpop.f32.mrf.mxu0
        %v3544 = vadd.f32 %v3364, %v3543
        %3545 = vmatprep.mubr.f32.mxu0 %v3331
        %3546 = vmatmul.mubr.f32.gmra.mxu0 %v3330
        %v3547 = vpop.f32.mrf.mxu0
        %v3548 = vadd.f32 %v3360, %v3547
        %v3549 = vpop.f32.mrf.mxu0
        %v3550 = vadd.f32 %v3364, %v3549
        %3551 = vmatprep.mubr.f32.mxu0 %v3333
        %3552 = vmatmul.mubr.f32.gmra.mxu0 %v3332
        %v3553 = vpop.f32.mrf.mxu0
        %v3554 = vadd.f32 %v3360, %v3553
        %v3555 = vpop.f32.mrf.mxu0
        %v3556 = vadd.f32 %v3364, %v3555
        %3557 = vmatprep.mubr.f32.mxu0 %v3335
        %3558 = vmatmul.mubr.f32.gmra.mxu0 %v3334
        %v3559 = vpop.f32.mrf.mxu0
        %v3560 = vadd.f32 %v3360, %v3559
        %v3561 = vpop.f32.mrf.mxu0
        %v3562 = vadd.f32 %v3364, %v3561
        %3563 = vmatprep.mubr.f32.mxu0 %v3337
        %3564 = vmatmul.mubr.f32.gmra.mxu0 %v3336
        %v3565 = vpop.f32.mrf.mxu0
        %v3566 = vadd.f32 %v3360, %v3565
        %v3567 = vpop.f32.mrf.mxu0
        %v3568 = vadd.f32 %v3364, %v3567
        %3569 = vmatprep.mubr.f32.mxu0 %v3339
        %3570 = vmatmul.mubr.f32.gmra.mxu0 %v3338
        %v3571 = vpop.f32.mrf.mxu0
        %v3572 = vadd.f32 %v3360, %v3571
        %v3573 = vpop.f32.mrf.mxu0
        %v3574 = vadd.f32 %v3364, %v3573
        %3575 = vmatprep.mubr.f32.mxu0 %v3341
        %3576 = vmatmul.mubr.f32.gmra.mxu0 %v3340
        %v3577 = vpop.f32.mrf.mxu0
        %v3578 = vadd.f32 %v3360, %v3577
        %v3579 = vpop.f32.mrf.mxu0
        %v3580 = vadd.f32 %v3364, %v3579
        %3581 = vmatprep.mubr.f32.mxu0 %v3343
        %3582 = vmatmul.mubr.f32.gmra.mxu0 %v3342
        %v3583 = vpop.f32.mrf.mxu0
        %v3584 = vadd.f32 %v3360, %v3583
        %v3585 = vpop.f32.mrf.mxu0
        %v3586 = vadd.f32 %v3364, %v3585
        %3587 = vmatprep.mubr.f32.mxu0 %v3345
        %3588 = vmatmul.mubr.f32.gmra.mxu0 %v3344
        %v3589 = vpop.f32.mrf.mxu0
        %v3590 = vadd.f32 %v3360, %v3589
        %v3591 = vpop.f32.mrf.mxu0
        %v3592 = vadd.f32 %v3364, %v3591
        %3593 = vmatprep.mubr.f32.mxu0 %v3347
        %3594 = vmatmul.mubr.f32.gmra.mxu0 %v3346
        %v3595 = vpop.f32.mrf.mxu0
        %v3596 = vadd.f32 %v3360, %v3595
        %v3597 = vpop.f32.mrf.mxu0
        %v3598 = vadd.f32 %v3364, %v3597
        %3599 = vmatprep.mubr.f32.mxu0 %v3349
        %3600 = vmatmul.mubr.f32.gmra.mxu0 %v3348
        %v3601 = vpop.f32.mrf.mxu0
        %v3602 = vadd.f32 %v3360, %v3601
        %v3603 = vpop.f32.mrf.mxu0
        %v3604 = vadd.f32 %v3364, %v3603
        %3605 = vmatprep.mubr.f32.mxu0 %v3351
        %3606 = vmatmul.mubr.f32.gmra.mxu0 %v3350
        %v3607 = vpop.f32.mrf.mxu0
        %v3608 = vadd.f32 %v3360, %v3607
        %v3609 = vpop.f32.mrf.mxu0
        %v3610 = vadd.f32 %v3364, %v3609
        %3611 = vmatprep.mubr.f32.mxu0 %v3353
        %3612 = vmatmul.mubr.f32.gmra.mxu0 %v3352
        %v3613 = vpop.f32.mrf.mxu0
        %v3614 = vadd.f32 %v3360, %v3613
        %v3615 = vpop.f32.mrf.mxu0
        %v3616 = vadd.f32 %v3364, %v3615
        %3617 = vmatprep.mubr.f32.mxu0 %v3355
        %3618 = vmatmul.mubr.f32.gmra.mxu0 %v3354
        %v3619 = vpop.f32.mrf.mxu0
        %v3620 = vadd.f32 %v3360, %v3619
        %v3621 = vpop.f32.mrf.mxu0
        %v3622 = vadd.f32 %v3364, %v3621
        %3623 = vdwg.mxu0
        %3624 = vmatprep.subr.mxu0 0.0
        %3625 = vmatpush1.msra.mxu0 %v497
        %3626 = vmatprep.subr.mxu0 0.0
        %3627 = vmatpush1.msra.mxu0 %v496
        %3628 = vmatprep.subr.mxu0 0.0
        %3629 = vmatpush1.msra.mxu0 %v495
        %3630 = vmatprep.subr.mxu0 0.0
        %3631 = vmatpush1.msra.mxu0 %v494
        %3632 = vmatprep.subr.mxu0 0.0
        %3633 = vmatpush1.msra.mxu0 %v493
        %3634 = vmatprep.subr.mxu0 0.0
        %3635 = vmatpush1.msra.mxu0 %v492
        %3636 = vmatprep.subr.mxu0 0.0
        %3637 = vmatpush1.msra.mxu0 %v491
        %3638 = vmatprep.subr.mxu0 0.0
        %3639 = vmatpush1.msra.mxu0 %v490
        %3640 = vmatprep.subr.mxu0 0.0
        %3641 = vmatpush1.msra.mxu0 %v489
        %3642 = vmatprep.subr.mxu0 0.0
        %3643 = vmatpush1.msra.mxu0 %v488
        %3644 = vmatprep.subr.mxu0 0.0
        %3645 = vmatpush1.msra.mxu0 %v487
        %3646 = vmatprep.subr.mxu0 0.0
        %3647 = vmatpush1.msra.mxu0 %v486
        %3648 = vmatprep.subr.mxu0 0.0
        %3649 = vmatpush1.msra.mxu0 %v485
        %3650 = vmatprep.subr.mxu0 0.0
        %3651 = vmatpush1.msra.mxu0 %v484
        %3652 = vmatprep.subr.mxu0 0.0
        %3653 = vmatpush1.msra.mxu0 %v483
        %3654 = vmatprep.subr.mxu0 0.0
        %3655 = vmatpush1.msra.mxu0 %v482
        %3656 = vmatprep.subr.mxu0 0.0
        %3657 = vmatpush2.msra.mxu0 %v513
        %3658 = vmatprep.subr.mxu0 0.0
        %3659 = vmatpush2.msra.mxu0 %v512
        %3660 = vmatprep.subr.mxu0 0.0
        %3661 = vmatpush2.msra.mxu0 %v511
        %3662 = vmatprep.subr.mxu0 0.0
        %3663 = vmatpush2.msra.mxu0 %v510
        %3664 = vmatprep.subr.mxu0 0.0
        %3665 = vmatpush2.msra.mxu0 %v509
        %3666 = vmatprep.subr.mxu0 0.0
        %3667 = vmatpush2.msra.mxu0 %v508
        %3668 = vmatprep.subr.mxu0 0.0
        %3669 = vmatpush2.msra.mxu0 %v507
        %3670 = vmatprep.subr.mxu0 0.0
        %3671 = vmatpush2.msra.mxu0 %v506
        %3672 = vmatprep.subr.mxu0 0.0
        %3673 = vmatpush2.msra.mxu0 %v505
        %3674 = vmatprep.subr.mxu0 0.0
        %3675 = vmatpush2.msra.mxu0 %v504
        %3676 = vmatprep.subr.mxu0 0.0
        %3677 = vmatpush2.msra.mxu0 %v503
        %3678 = vmatprep.subr.mxu0 0.0
        %3679 = vmatpush2.msra.mxu0 %v502
        %3680 = vmatprep.subr.mxu0 0.0
        %3681 = vmatpush2.msra.mxu0 %v501
        %3682 = vmatprep.subr.mxu0 0.0
        %3683 = vmatpush2.msra.mxu0 %v500
        %3684 = vmatprep.subr.mxu0 0.0
        %3685 = vmatpush2.msra.mxu0 %v499
        %3686 = vmatprep.subr.mxu0 0.0
        %3687 = vmatpush2.msra.mxu0 %v498
        %3688 = vmatprep.mubr.f32.mxu0 %v3293
        %3689 = vmatmul.mubr.f32.gmra.mxu0 %v3292
        %v3690 = vpop.f32.mrf.mxu0
        %v3691 = vadd.f32 %v1009, %v3690
        %v3692 = vpop.f32.mrf.mxu0
        %3693 = vmatprep.mubr.f32.mxu0 %v3295
        %3694 = vmatmul.mubr.f32.gmra.mxu0 %v3294
        %v3695 = vpop.f32.mrf.mxu0
        %v3696 = vadd.f32 %v1009, %v3695
        %v3697 = vpop.f32.mrf.mxu0
        %3698 = vmatprep.mubr.f32.mxu0 %v3297
        %3699 = vmatmul.mubr.f32.gmra.mxu0 %v3296
        %v3700 = vpop.f32.mrf.mxu0
        %v3701 = vadd.f32 %v1009, %v3700
        %v3702 = vpop.f32.mrf.mxu0
        %3703 = vmatprep.mubr.f32.mxu0 %v3299
        %3704 = vmatmul.mubr.f32.gmra.mxu0 %v3298
        %v3705 = vpop.f32.mrf.mxu0
        %v3706 = vadd.f32 %v1009, %v3705
        %v3707 = vpop.f32.mrf.mxu0
        %3708 = vmatprep.mubr.f32.mxu0 %v3301
        %3709 = vmatmul.mubr.f32.gmra.mxu0 %v3300
        %v3710 = vpop.f32.mrf.mxu0
        %v3711 = vadd.f32 %v1009, %v3710
        %v3712 = vpop.f32.mrf.mxu0
        %3713 = vmatprep.mubr.f32.mxu0 %v3303
        %3714 = vmatmul.mubr.f32.gmra.mxu0 %v3302
        %v3715 = vpop.f32.mrf.mxu0
        %v3716 = vadd.f32 %v1009, %v3715
        %v3717 = vpop.f32.mrf.mxu0
        %3718 = vmatprep.mubr.f32.mxu0 %v3305
        %3719 = vmatmul.mubr.f32.gmra.mxu0 %v3304
        %v3720 = vpop.f32.mrf.mxu0
        %v3721 = vadd.f32 %v1009, %v3720
        %v3722 = vpop.f32.mrf.mxu0
        %3723 = vmatprep.mubr.f32.mxu0 %v3307
        %3724 = vmatmul.mubr.f32.gmra.mxu0 %v3306
        %v3725 = vpop.f32.mrf.mxu0
        %v3726 = vadd.f32 %v1009, %v3725
        %v3727 = vpop.f32.mrf.mxu0
        %3728 = vmatprep.mubr.f32.mxu0 %v3309
        %3729 = vmatmul.mubr.f32.gmra.mxu0 %v3308
        %v3730 = vpop.f32.mrf.mxu0
        %v3731 = vadd.f32 %v1009, %v3730
        %v3732 = vpop.f32.mrf.mxu0
        %3733 = vmatprep.mubr.f32.mxu0 %v3311
        %3734 = vmatmul.mubr.f32.gmra.mxu0 %v3310
        %v3735 = vpop.f32.mrf.mxu0
        %v3736 = vadd.f32 %v1009, %v3735
        %v3737 = vpop.f32.mrf.mxu0
        %3738 = vmatprep.mubr.f32.mxu0 %v3313
        %3739 = vmatmul.mubr.f32.gmra.mxu0 %v3312
        %v3740 = vpop.f32.mrf.mxu0
        %v3741 = vadd.f32 %v1009, %v3740
        %v3742 = vpop.f32.mrf.mxu0
        %3743 = vmatprep.mubr.f32.mxu0 %v3315
        %3744 = vmatmul.mubr.f32.gmra.mxu0 %v3314
        %v3745 = vpop.f32.mrf.mxu0
        %v3746 = vadd.f32 %v1009, %v3745
        %v3747 = vpop.f32.mrf.mxu0
        %3748 = vmatprep.mubr.f32.mxu0 %v3317
        %3749 = vmatmul.mubr.f32.gmra.mxu0 %v3316
        %v3750 = vpop.f32.mrf.mxu0
        %v3751 = vadd.f32 %v1009, %v3750
        %v3752 = vpop.f32.mrf.mxu0
        %3753 = vmatprep.mubr.f32.mxu0 %v3319
        %3754 = vmatmul.mubr.f32.gmra.mxu0 %v3318
        %v3755 = vpop.f32.mrf.mxu0
        %v3756 = vadd.f32 %v1009, %v3755
        %v3757 = vpop.f32.mrf.mxu0
        %3758 = vmatprep.mubr.f32.mxu0 %v3321
        %3759 = vmatmul.mubr.f32.gmra.mxu0 %v3320
        %v3760 = vpop.f32.mrf.mxu0
        %v3761 = vadd.f32 %v1009, %v3760
        %v3762 = vpop.f32.mrf.mxu0
        %3763 = vmatprep.mubr.f32.mxu0 %v3323
        %3764 = vmatmul.mubr.f32.gmra.mxu0 %v3322
        %v3765 = vpop.f32.mrf.mxu0
        %v3766 = vadd.f32 %v1009, %v3765
        %v3767 = vpop.f32.mrf.mxu0
        %3768 = vmatprep.mubr.f32.mxu0 %v3325
        %3769 = vmatmul.mubr.f32.gmra.mxu0 %v3324
        %v3770 = vpop.f32.mrf.mxu0
        %v3771 = vadd.f32 %v1009, %v3770
        %v3772 = vpop.f32.mrf.mxu0
        %3773 = vmatprep.mubr.f32.mxu0 %v3327
        %3774 = vmatmul.mubr.f32.gmra.mxu0 %v3326
        %v3775 = vpop.f32.mrf.mxu0
        %v3776 = vadd.f32 %v1009, %v3775
        %v3777 = vpop.f32.mrf.mxu0
        %3778 = vmatprep.mubr.f32.mxu0 %v3329
        %3779 = vmatmul.mubr.f32.gmra.mxu0 %v3328
        %v3780 = vpop.f32.mrf.mxu0
        %v3781 = vadd.f32 %v1009, %v3780
        %v3782 = vpop.f32.mrf.mxu0
        %3783 = vmatprep.mubr.f32.mxu0 %v3331
        %3784 = vmatmul.mubr.f32.gmra.mxu0 %v3330
        %v3785 = vpop.f32.mrf.mxu0
        %v3786 = vadd.f32 %v1009, %v3785
        %v3787 = vpop.f32.mrf.mxu0
        %3788 = vmatprep.mubr.f32.mxu0 %v3333
        %3789 = vmatmul.mubr.f32.gmra.mxu0 %v3332
        %v3790 = vpop.f32.mrf.mxu0
        %v3791 = vadd.f32 %v1009, %v3790
        %v3792 = vpop.f32.mrf.mxu0
        %3793 = vmatprep.mubr.f32.mxu0 %v3335
        %3794 = vmatmul.mubr.f32.gmra.mxu0 %v3334
        %v3795 = vpop.f32.mrf.mxu0
        %v3796 = vadd.f32 %v1009, %v3795
        %v3797 = vpop.f32.mrf.mxu0
        %3798 = vmatprep.mubr.f32.mxu0 %v3337
        %3799 = vmatmul.mubr.f32.gmra.mxu0 %v3336
        %v3800 = vpop.f32.mrf.mxu0
        %v3801 = vadd.f32 %v1009, %v3800
        %v3802 = vpop.f32.mrf.mxu0
        %3803 = vmatprep.mubr.f32.mxu0 %v3339
        %3804 = vmatmul.mubr.f32.gmra.mxu0 %v3338
        %v3805 = vpop.f32.mrf.mxu0
        %v3806 = vadd.f32 %v1009, %v3805
        %v3807 = vpop.f32.mrf.mxu0
        %3808 = vmatprep.mubr.f32.mxu0 %v3341
        %3809 = vmatmul.mubr.f32.gmra.mxu0 %v3340
        %v3810 = vpop.f32.mrf.mxu0
        %v3811 = vadd.f32 %v1009, %v3810
        %v3812 = vpop.f32.mrf.mxu0
        %3813 = vmatprep.mubr.f32.mxu0 %v3343
        %3814 = vmatmul.mubr.f32.gmra.mxu0 %v3342
        %v3815 = vpop.f32.mrf.mxu0
        %v3816 = vadd.f32 %v1009, %v3815
        %v3817 = vpop.f32.mrf.mxu0
        %3818 = vmatprep.mubr.f32.mxu0 %v3345
        %3819 = vmatmul.mubr.f32.gmra.mxu0 %v3344
        %v3820 = vpop.f32.mrf.mxu0
        %v3821 = vadd.f32 %v1009, %v3820
        %v3822 = vpop.f32.mrf.mxu0
        %3823 = vmatprep.mubr.f32.mxu0 %v3347
        %3824 = vmatmul.mubr.f32.gmra.mxu0 %v3346
        %v3825 = vpop.f32.mrf.mxu0
        %v3826 = vadd.f32 %v1009, %v3825
        %v3827 = vpop.f32.mrf.mxu0
        %3828 = vmatprep.mubr.f32.mxu0 %v3349
        %3829 = vmatmul.mubr.f32.gmra.mxu0 %v3348
        %v3830 = vpop.f32.mrf.mxu0
        %v3831 = vadd.f32 %v1009, %v3830
        %v3832 = vpop.f32.mrf.mxu0
        %3833 = vmatprep.mubr.f32.mxu0 %v3351
        %3834 = vmatmul.mubr.f32.gmra.mxu0 %v3350
        %v3835 = vpop.f32.mrf.mxu0
        %v3836 = vadd.f32 %v1009, %v3835
        %v3837 = vpop.f32.mrf.mxu0
        %3838 = vmatprep.mubr.f32.mxu0 %v3353
        %3839 = vmatmul.mubr.f32.gmra.mxu0 %v3352
        %v3840 = vpop.f32.mrf.mxu0
        %v3841 = vadd.f32 %v1009, %v3840
        %v3842 = vpop.f32.mrf.mxu0
        %3843 = vmatprep.mubr.f32.mxu0 %v3355
        %3844 = vmatmul.mubr.f32.gmra.mxu0 %v3354
        %v3845 = vpop.f32.mrf.mxu0
        %v3846 = vadd.f32 %v1009, %v3845
        %v3847 = vpop.f32.mrf.mxu0
        %3848 = vdwg.mxu0
        %v3850 = vsel %vm1013, %v3691, 0
        %v3853 = vsel %vm1013, %v3696, 0
        %v3856 = vsel %vm1013, %v3701, 0
        %v3859 = vsel %vm1013, %v3706, 0
        %v3862 = vsel %vm1013, %v3711, 0
        %v3865 = vsel %vm1013, %v3716, 0
        %v3868 = vsel %vm1013, %v3721, 0
        %v3871 = vsel %vm1013, %v3726, 0
        %v3874 = vsel %vm1013, %v3731, 0
        %v3877 = vsel %vm1013, %v3736, 0
        %v3880 = vsel %vm1013, %v3741, 0
        %v3883 = vsel %vm1013, %v3746, 0
        %v3886 = vsel %vm1013, %v3751, 0
        %v3889 = vsel %vm1013, %v3756, 0
        %v3892 = vsel %vm1013, %v3761, 0
        %v3895 = vsel %vm1013, %v3766, 0
        %v3898 = vsel %vm1013, %v3771, 0
        %v3901 = vsel %vm1013, %v3776, 0
        %v3904 = vsel %vm1013, %v3781, 0
        %v3907 = vsel %vm1013, %v3786, 0
        %v3910 = vsel %vm1013, %v3791, 0
        %v3913 = vsel %vm1013, %v3796, 0
        %v3916 = vsel %vm1013, %v3801, 0
        %v3919 = vsel %vm1013, %v3806, 0
        %v3922 = vsel %vm1013, %v3811, 0
        %v3925 = vsel %vm1013, %v3816, 0
        %v3928 = vsel %vm1013, %v3821, 0
        %v3931 = vsel %vm1013, %v3826, 0
        %v3934 = vsel %vm1013, %v3831, 0
        %v3937 = vsel %vm1013, %v3836, 0
        %v3940 = vsel %vm1013, %v3841, 0
        %v3943 = vsel %vm1013, %v3846, 0
        %3945 = vmatprep.subr.mxu0 0.0
        %3946 = vmatpush1.msra.mxu0 0.0
        %3947 = vmatprep.subr.mxu0 0.0
        %3948 = vmatpush1.msra.mxu0 0.0
        %3949 = vmatprep.subr.mxu0 0.0
        %3950 = vmatpush1.msra.mxu0 0.0
        %3951 = vmatprep.subr.mxu0 0.0
        %3952 = vmatpush1.msra.mxu0 0.0
        %3953 = vmatprep.subr.mxu0 0.0
        %3954 = vmatpush1.msra.mxu0 0.0
        %3955 = vmatprep.subr.mxu0 0.0
        %3956 = vmatpush1.msra.mxu0 0.0
        %3957 = vmatprep.subr.mxu0 0.0
        %3958 = vmatpush1.msra.mxu0 0.0
        %3959 = vmatprep.subr.mxu0 0.0
        %3960 = vmatpush1.msra.mxu0 0.0
        %3961 = vmatprep.subr.mxu0 0.0
        %3962 = vmatpush1.msra.mxu0 0.0
        %3963 = vmatprep.subr.mxu0 0.0
        %3964 = vmatpush1.msra.mxu0 0.0
        %3965 = vmatprep.subr.mxu0 0.0
        %3966 = vmatpush1.msra.mxu0 0.0
        %3967 = vmatprep.subr.mxu0 0.0
        %3968 = vmatpush1.msra.mxu0 0.0
        %3969 = vmatprep.subr.mxu0 %v481
        %3970 = vmatpush1.msra.mxu0 %v480
        %3971 = vmatprep.subr.mxu0 %v479
        %3972 = vmatpush1.msra.mxu0 %v478
        %3973 = vmatprep.subr.mxu0 %v477
        %3974 = vmatpush1.msra.mxu0 %v476
        %3975 = vmatprep.subr.mxu0 %v475
        %3976 = vmatpush1.msra.mxu0 %v474
        %3977 = vmatprep.subr.mxu0 0.0
        %3978 = vmatpush2.msra.mxu0 0.0
        %3979 = vmatprep.subr.mxu0 0.0
        %3980 = vmatpush2.msra.mxu0 0.0
        %3981 = vmatprep.subr.mxu0 0.0
        %3982 = vmatpush2.msra.mxu0 0.0
        %3983 = vmatprep.subr.mxu0 0.0
        %3984 = vmatpush2.msra.mxu0 0.0
        %3985 = vmatprep.subr.mxu0 0.0
        %3986 = vmatpush2.msra.mxu0 0.0
        %3987 = vmatprep.subr.mxu0 0.0
        %3988 = vmatpush2.msra.mxu0 0.0
        %3989 = vmatprep.subr.mxu0 0.0
        %3990 = vmatpush2.msra.mxu0 0.0
        %3991 = vmatprep.subr.mxu0 0.0
        %3992 = vmatpush2.msra.mxu0 0.0
        %3993 = vmatprep.subr.mxu0 0.0
        %3994 = vmatpush2.msra.mxu0 0.0
        %3995 = vmatprep.subr.mxu0 0.0
        %3996 = vmatpush2.msra.mxu0 0.0
        %3997 = vmatprep.subr.mxu0 0.0
        %3998 = vmatpush2.msra.mxu0 0.0
        %3999 = vmatprep.subr.mxu0 0.0
        %4000 = vmatpush2.msra.mxu0 0.0
        %4001 = vmatprep.subr.mxu0 0.0
        %4002 = vmatpush2.msra.mxu0 0.0
        %4003 = vmatprep.subr.mxu0 0.0
        %4004 = vmatpush2.msra.mxu0 0.0
        %4005 = vmatprep.subr.mxu0 0.0
        %4006 = vmatpush2.msra.mxu0 0.0
        %4007 = vmatprep.subr.mxu0 0.0
        %4008 = vmatpush2.msra.mxu0 0.0
        %4009 = vmatprep.mubr.f32.mxu0 0.0
        %4010 = vmatmul.mubr.f32.gmra.mxu0 %v3850
        %v4011 = vpop.f32.mrf.mxu0
        %v4012 = vadd.f32 0.0, %v4011
        %v4013 = vpop.f32.mrf.mxu0
        %v4014 = vadd.f32 0.0, %v4013
        %4015 = vmatprep.mubr.f32.mxu0 0.0
        %4016 = vmatmul.mubr.f32.gmra.mxu0 %v3853
        %v4017 = vpop.f32.mrf.mxu0
        %v4018 = vadd.f32 0.0, %v4017
        %v4019 = vpop.f32.mrf.mxu0
        %v4020 = vadd.f32 0.0, %v4019
        %4021 = vmatprep.mubr.f32.mxu0 0.0
        %4022 = vmatmul.mubr.f32.gmra.mxu0 %v3856
        %v4023 = vpop.f32.mrf.mxu0
        %v4024 = vadd.f32 0.0, %v4023
        %v4025 = vpop.f32.mrf.mxu0
        %v4026 = vadd.f32 0.0, %v4025
        %4027 = vmatprep.mubr.f32.mxu0 0.0
        %4028 = vmatmul.mubr.f32.gmra.mxu0 %v3859
        %v4029 = vpop.f32.mrf.mxu0
        %v4030 = vadd.f32 0.0, %v4029
        %v4031 = vpop.f32.mrf.mxu0
        %v4032 = vadd.f32 0.0, %v4031
        %4033 = vmatprep.mubr.f32.mxu0 0.0
        %4034 = vmatmul.mubr.f32.gmra.mxu0 %v3862
        %v4035 = vpop.f32.mrf.mxu0
        %v4036 = vadd.f32 0.0, %v4035
        %v4037 = vpop.f32.mrf.mxu0
        %v4038 = vadd.f32 0.0, %v4037
        %4039 = vmatprep.mubr.f32.mxu0 0.0
        %4040 = vmatmul.mubr.f32.gmra.mxu0 %v3865
        %v4041 = vpop.f32.mrf.mxu0
        %v4042 = vadd.f32 0.0, %v4041
        %v4043 = vpop.f32.mrf.mxu0
        %v4044 = vadd.f32 0.0, %v4043
        %4045 = vmatprep.mubr.f32.mxu0 0.0
        %4046 = vmatmul.mubr.f32.gmra.mxu0 %v3868
        %v4047 = vpop.f32.mrf.mxu0
        %v4048 = vadd.f32 0.0, %v4047
        %v4049 = vpop.f32.mrf.mxu0
        %v4050 = vadd.f32 0.0, %v4049
        %4051 = vmatprep.mubr.f32.mxu0 0.0
        %4052 = vmatmul.mubr.f32.gmra.mxu0 %v3871
        %v4053 = vpop.f32.mrf.mxu0
        %v4054 = vadd.f32 0.0, %v4053
        %v4055 = vpop.f32.mrf.mxu0
        %v4056 = vadd.f32 0.0, %v4055
        %4057 = vmatprep.mubr.f32.mxu0 0.0
        %4058 = vmatmul.mubr.f32.gmra.mxu0 %v3874
        %v4059 = vpop.f32.mrf.mxu0
        %v4060 = vadd.f32 0.0, %v4059
        %v4061 = vpop.f32.mrf.mxu0
        %v4062 = vadd.f32 0.0, %v4061
        %4063 = vmatprep.mubr.f32.mxu0 0.0
        %4064 = vmatmul.mubr.f32.gmra.mxu0 %v3877
        %v4065 = vpop.f32.mrf.mxu0
        %v4066 = vadd.f32 0.0, %v4065
        %v4067 = vpop.f32.mrf.mxu0
        %v4068 = vadd.f32 0.0, %v4067
        %4069 = vmatprep.mubr.f32.mxu0 0.0
        %4070 = vmatmul.mubr.f32.gmra.mxu0 %v3880
        %v4071 = vpop.f32.mrf.mxu0
        %v4072 = vadd.f32 0.0, %v4071
        %v4073 = vpop.f32.mrf.mxu0
        %v4074 = vadd.f32 0.0, %v4073
        %4075 = vmatprep.mubr.f32.mxu0 0.0
        %4076 = vmatmul.mubr.f32.gmra.mxu0 %v3883
        %v4077 = vpop.f32.mrf.mxu0
        %v4078 = vadd.f32 0.0, %v4077
        %v4079 = vpop.f32.mrf.mxu0
        %v4080 = vadd.f32 0.0, %v4079
        %4081 = vmatprep.mubr.f32.mxu0 0.0
        %4082 = vmatmul.mubr.f32.gmra.mxu0 %v3886
        %v4083 = vpop.f32.mrf.mxu0
        %v4084 = vadd.f32 0.0, %v4083
        %v4085 = vpop.f32.mrf.mxu0
        %v4086 = vadd.f32 0.0, %v4085
        %4087 = vmatprep.mubr.f32.mxu0 0.0
        %4088 = vmatmul.mubr.f32.gmra.mxu0 %v3889
        %v4089 = vpop.f32.mrf.mxu0
        %v4090 = vadd.f32 0.0, %v4089
        %v4091 = vpop.f32.mrf.mxu0
        %v4092 = vadd.f32 0.0, %v4091
        %4093 = vmatprep.mubr.f32.mxu0 0.0
        %4094 = vmatmul.mubr.f32.gmra.mxu0 %v3892
        %v4095 = vpop.f32.mrf.mxu0
        %v4096 = vadd.f32 0.0, %v4095
        %v4097 = vpop.f32.mrf.mxu0
        %v4098 = vadd.f32 0.0, %v4097
        %4099 = vmatprep.mubr.f32.mxu0 0.0
        %4100 = vmatmul.mubr.f32.gmra.mxu0 %v3895
        %v4101 = vpop.f32.mrf.mxu0
        %v4102 = vadd.f32 0.0, %v4101
        %v4103 = vpop.f32.mrf.mxu0
        %v4104 = vadd.f32 0.0, %v4103
        %4105 = vmatprep.mubr.f32.mxu0 0.0
        %4106 = vmatmul.mubr.f32.gmra.mxu0 %v3898
        %v4107 = vpop.f32.mrf.mxu0
        %v4108 = vadd.f32 0.0, %v4107
        %v4109 = vpop.f32.mrf.mxu0
        %v4110 = vadd.f32 0.0, %v4109
        %4111 = vmatprep.mubr.f32.mxu0 0.0
        %4112 = vmatmul.mubr.f32.gmra.mxu0 %v3901
        %v4113 = vpop.f32.mrf.mxu0
        %v4114 = vadd.f32 0.0, %v4113
        %v4115 = vpop.f32.mrf.mxu0
        %v4116 = vadd.f32 0.0, %v4115
        %4117 = vmatprep.mubr.f32.mxu0 0.0
        %4118 = vmatmul.mubr.f32.gmra.mxu0 %v3904
        %v4119 = vpop.f32.mrf.mxu0
        %v4120 = vadd.f32 0.0, %v4119
        %v4121 = vpop.f32.mrf.mxu0
        %v4122 = vadd.f32 0.0, %v4121
        %4123 = vmatprep.mubr.f32.mxu0 0.0
        %4124 = vmatmul.mubr.f32.gmra.mxu0 %v3907
        %v4125 = vpop.f32.mrf.mxu0
        %v4126 = vadd.f32 0.0, %v4125
        %v4127 = vpop.f32.mrf.mxu0
        %v4128 = vadd.f32 0.0, %v4127
        %4129 = vmatprep.mubr.f32.mxu0 0.0
        %4130 = vmatmul.mubr.f32.gmra.mxu0 %v3910
        %v4131 = vpop.f32.mrf.mxu0
        %v4132 = vadd.f32 0.0, %v4131
        %v4133 = vpop.f32.mrf.mxu0
        %v4134 = vadd.f32 0.0, %v4133
        %4135 = vmatprep.mubr.f32.mxu0 0.0
        %4136 = vmatmul.mubr.f32.gmra.mxu0 %v3913
        %v4137 = vpop.f32.mrf.mxu0
        %v4138 = vadd.f32 0.0, %v4137
        %v4139 = vpop.f32.mrf.mxu0
        %v4140 = vadd.f32 0.0, %v4139
        %4141 = vmatprep.mubr.f32.mxu0 0.0
        %4142 = vmatmul.mubr.f32.gmra.mxu0 %v3916
        %v4143 = vpop.f32.mrf.mxu0
        %v4144 = vadd.f32 0.0, %v4143
        %v4145 = vpop.f32.mrf.mxu0
        %v4146 = vadd.f32 0.0, %v4145
        %4147 = vmatprep.mubr.f32.mxu0 0.0
        %4148 = vmatmul.mubr.f32.gmra.mxu0 %v3919
        %v4149 = vpop.f32.mrf.mxu0
        %v4150 = vadd.f32 0.0, %v4149
        %v4151 = vpop.f32.mrf.mxu0
        %v4152 = vadd.f32 0.0, %v4151
        %4153 = vmatprep.mubr.f32.mxu0 0.0
        %4154 = vmatmul.mubr.f32.gmra.mxu0 %v3922
        %v4155 = vpop.f32.mrf.mxu0
        %v4156 = vadd.f32 0.0, %v4155
        %v4157 = vpop.f32.mrf.mxu0
        %v4158 = vadd.f32 0.0, %v4157
        %4159 = vmatprep.mubr.f32.mxu0 0.0
        %4160 = vmatmul.mubr.f32.gmra.mxu0 %v3925
        %v4161 = vpop.f32.mrf.mxu0
        %v4162 = vadd.f32 0.0, %v4161
        %v4163 = vpop.f32.mrf.mxu0
        %v4164 = vadd.f32 0.0, %v4163
        %4165 = vmatprep.mubr.f32.mxu0 0.0
        %4166 = vmatmul.mubr.f32.gmra.mxu0 %v3928
        %v4167 = vpop.f32.mrf.mxu0
        %v4168 = vadd.f32 0.0, %v4167
        %v4169 = vpop.f32.mrf.mxu0
        %v4170 = vadd.f32 0.0, %v4169
        %4171 = vmatprep.mubr.f32.mxu0 0.0
        %4172 = vmatmul.mubr.f32.gmra.mxu0 %v3931
        %v4173 = vpop.f32.mrf.mxu0
        %v4174 = vadd.f32 0.0, %v4173
        %v4175 = vpop.f32.mrf.mxu0
        %v4176 = vadd.f32 0.0, %v4175
        %4177 = vmatprep.mubr.f32.mxu0 0.0
        %4178 = vmatmul.mubr.f32.gmra.mxu0 %v3934
        %v4179 = vpop.f32.mrf.mxu0
        %v4180 = vadd.f32 0.0, %v4179
        %v4181 = vpop.f32.mrf.mxu0
        %v4182 = vadd.f32 0.0, %v4181
        %4183 = vmatprep.mubr.f32.mxu0 0.0
        %4184 = vmatmul.mubr.f32.gmra.mxu0 %v3937
        %v4185 = vpop.f32.mrf.mxu0
        %v4186 = vadd.f32 0.0, %v4185
        %v4187 = vpop.f32.mrf.mxu0
        %v4188 = vadd.f32 0.0, %v4187
        %4189 = vmatprep.mubr.f32.mxu0 0.0
        %4190 = vmatmul.mubr.f32.gmra.mxu0 %v3940
        %v4191 = vpop.f32.mrf.mxu0
        %v4192 = vadd.f32 0.0, %v4191
        %v4193 = vpop.f32.mrf.mxu0
        %v4194 = vadd.f32 0.0, %v4193
        %4195 = vmatprep.mubr.f32.mxu0 0.0
        %4196 = vmatmul.mubr.f32.gmra.mxu0 %v3943
        %v4197 = vpop.f32.mrf.mxu0
        %v4198 = vadd.f32 0.0, %v4197
        %v4199 = vpop.f32.mrf.mxu0
        %v4200 = vadd.f32 0.0, %v4199
        %4201 = vdwg.mxu0
        %v4202 = vmul.f32 %v4012, %v3434
        %v4203 = vmul.f32 %v4014, %v3436
        %v4204 = vmul.f32 %v4018, %v3440
        %v4205 = vmul.f32 %v4020, %v3442
        %v4206 = vmul.f32 %v4024, %v3446
        %v4207 = vmul.f32 %v4026, %v3448
        %v4208 = vmul.f32 %v4030, %v3452
        %v4209 = vmul.f32 %v4032, %v3454
        %v4210 = vmul.f32 %v4036, %v3458
        %v4211 = vmul.f32 %v4038, %v3460
        %v4212 = vmul.f32 %v4042, %v3464
        %v4213 = vmul.f32 %v4044, %v3466
        %v4214 = vmul.f32 %v4048, %v3470
        %v4215 = vmul.f32 %v4050, %v3472
        %v4216 = vmul.f32 %v4054, %v3476
        %v4217 = vmul.f32 %v4056, %v3478
        %v4218 = vmul.f32 %v4060, %v3482
        %v4219 = vmul.f32 %v4062, %v3484
        %v4220 = vmul.f32 %v4066, %v3488
        %v4221 = vmul.f32 %v4068, %v3490
        %v4222 = vmul.f32 %v4072, %v3494
        %v4223 = vmul.f32 %v4074, %v3496
        %v4224 = vmul.f32 %v4078, %v3500
        %v4225 = vmul.f32 %v4080, %v3502
        %v4226 = vmul.f32 %v4084, %v3506
        %v4227 = vmul.f32 %v4086, %v3508
        %v4228 = vmul.f32 %v4090, %v3512
        %v4229 = vmul.f32 %v4092, %v3514
        %v4230 = vmul.f32 %v4096, %v3518
        %v4231 = vmul.f32 %v4098, %v3520
        %v4232 = vmul.f32 %v4102, %v3524
        %v4233 = vmul.f32 %v4104, %v3526
        %v4234 = vmul.f32 %v4108, %v3530
        %v4235 = vmul.f32 %v4110, %v3532
        %v4236 = vmul.f32 %v4114, %v3536
        %v4237 = vmul.f32 %v4116, %v3538
        %v4238 = vmul.f32 %v4120, %v3542
        %v4239 = vmul.f32 %v4122, %v3544
        %v4240 = vmul.f32 %v4126, %v3548
        %v4241 = vmul.f32 %v4128, %v3550
        %v4242 = vmul.f32 %v4132, %v3554
        %v4243 = vmul.f32 %v4134, %v3556
        %v4244 = vmul.f32 %v4138, %v3560
        %v4245 = vmul.f32 %v4140, %v3562
        %v4246 = vmul.f32 %v4144, %v3566
        %v4247 = vmul.f32 %v4146, %v3568
        %v4248 = vmul.f32 %v4150, %v3572
        %v4249 = vmul.f32 %v4152, %v3574
        %v4250 = vmul.f32 %v4156, %v3578
        %v4251 = vmul.f32 %v4158, %v3580
        %v4252 = vmul.f32 %v4162, %v3584
        %v4253 = vmul.f32 %v4164, %v3586
        %v4254 = vmul.f32 %v4168, %v3590
        %v4255 = vmul.f32 %v4170, %v3592
        %v4256 = vmul.f32 %v4174, %v3596
        %v4257 = vmul.f32 %v4176, %v3598
        %v4258 = vmul.f32 %v4180, %v3602
        %v4259 = vmul.f32 %v4182, %v3604
        %v4260 = vmul.f32 %v4186, %v3608
        %v4261 = vmul.f32 %v4188, %v3610
        %v4262 = vmul.f32 %v4192, %v3614
        %v4263 = vmul.f32 %v4194, %v3616
        %v4264 = vmul.f32 %v4198, %v3620
        %v4265 = vmul.f32 %v4200, %v3622
        %4266 = vmatprep.subr.mxu0 0.0
        %4267 = vmatpush1.msra.mxu0 %v545
        %4268 = vmatprep.subr.mxu0 0.0
        %4269 = vmatpush1.msra.mxu0 %v544
        %4270 = vmatprep.subr.mxu0 0.0
        %4271 = vmatpush1.msra.mxu0 %v543
        %4272 = vmatprep.subr.mxu0 0.0
        %4273 = vmatpush1.msra.mxu0 %v542
        %4274 = vmatprep.subr.mxu0 0.0
        %4275 = vmatpush1.msra.mxu0 %v541
        %4276 = vmatprep.subr.mxu0 0.0
        %4277 = vmatpush1.msra.mxu0 %v540
        %4278 = vmatprep.subr.mxu0 0.0
        %4279 = vmatpush1.msra.mxu0 %v539
        %4280 = vmatprep.subr.mxu0 0.0
        %4281 = vmatpush1.msra.mxu0 %v538
        %4282 = vmatprep.subr.mxu0 0.0
        %4283 = vmatpush1.msra.mxu0 %v537
        %4284 = vmatprep.subr.mxu0 0.0
        %4285 = vmatpush1.msra.mxu0 %v536
        %4286 = vmatprep.subr.mxu0 0.0
        %4287 = vmatpush1.msra.mxu0 %v535
        %4288 = vmatprep.subr.mxu0 0.0
        %4289 = vmatpush1.msra.mxu0 %v534
        %4290 = vmatprep.subr.mxu0 0.0
        %4291 = vmatpush1.msra.mxu0 %v533
        %4292 = vmatprep.subr.mxu0 0.0
        %4293 = vmatpush1.msra.mxu0 %v532
        %4294 = vmatprep.subr.mxu0 0.0
        %4295 = vmatpush1.msra.mxu0 %v531
        %4296 = vmatprep.subr.mxu0 0.0
        %4297 = vmatpush1.msra.mxu0 %v530
        %4298 = vmatprep.subr.mxu0 0.0
        %4299 = vmatpush2.msra.mxu0 %v561
        %4300 = vmatprep.subr.mxu0 0.0
        %4301 = vmatpush2.msra.mxu0 %v560
        %4302 = vmatprep.subr.mxu0 0.0
        %4303 = vmatpush2.msra.mxu0 %v559
        %4304 = vmatprep.subr.mxu0 0.0
        %4305 = vmatpush2.msra.mxu0 %v558
        %4306 = vmatprep.subr.mxu0 0.0
        %4307 = vmatpush2.msra.mxu0 %v557
        %4308 = vmatprep.subr.mxu0 0.0
        %4309 = vmatpush2.msra.mxu0 %v556
        %4310 = vmatprep.subr.mxu0 0.0
        %4311 = vmatpush2.msra.mxu0 %v555
        %4312 = vmatprep.subr.mxu0 0.0
        %4313 = vmatpush2.msra.mxu0 %v554
        %4314 = vmatprep.subr.mxu0 0.0
        %4315 = vmatpush2.msra.mxu0 %v553
        %4316 = vmatprep.subr.mxu0 0.0
        %4317 = vmatpush2.msra.mxu0 %v552
        %4318 = vmatprep.subr.mxu0 0.0
        %4319 = vmatpush2.msra.mxu0 %v551
        %4320 = vmatprep.subr.mxu0 0.0
        %4321 = vmatpush2.msra.mxu0 %v550
        %4322 = vmatprep.subr.mxu0 0.0
        %4323 = vmatpush2.msra.mxu0 %v549
        %4324 = vmatprep.subr.mxu0 0.0
        %4325 = vmatpush2.msra.mxu0 %v548
        %4326 = vmatprep.subr.mxu0 0.0
        %4327 = vmatpush2.msra.mxu0 %v547
        %4328 = vmatprep.subr.mxu0 0.0
        %4329 = vmatpush2.msra.mxu0 %v546
        %4330 = vmatprep.mubr.f32.mxu0 %v4203
        %4331 = vmatmul.mubr.f32.gmra.mxu0 %v4202
        %v4332 = vpop.f32.mrf.mxu0
        %v4333 = vadd.f32 0.0, %v4332
        %v4334 = vpop.f32.mrf.mxu0
        %4335 = vmatprep.mubr.f32.mxu0 %v4205
        %4336 = vmatmul.mubr.f32.gmra.mxu0 %v4204
        %v4337 = vpop.f32.mrf.mxu0
        %v4338 = vadd.f32 0.0, %v4337
        %v4339 = vpop.f32.mrf.mxu0
        %4340 = vmatprep.mubr.f32.mxu0 %v4207
        %4341 = vmatmul.mubr.f32.gmra.mxu0 %v4206
        %v4342 = vpop.f32.mrf.mxu0
        %v4343 = vadd.f32 0.0, %v4342
        %v4344 = vpop.f32.mrf.mxu0
        %4345 = vmatprep.mubr.f32.mxu0 %v4209
        %4346 = vmatmul.mubr.f32.gmra.mxu0 %v4208
        %v4347 = vpop.f32.mrf.mxu0
        %v4348 = vadd.f32 0.0, %v4347
        %v4349 = vpop.f32.mrf.mxu0
        %4350 = vmatprep.mubr.f32.mxu0 %v4211
        %4351 = vmatmul.mubr.f32.gmra.mxu0 %v4210
        %v4352 = vpop.f32.mrf.mxu0
        %v4353 = vadd.f32 0.0, %v4352
        %v4354 = vpop.f32.mrf.mxu0
        %4355 = vmatprep.mubr.f32.mxu0 %v4213
        %4356 = vmatmul.mubr.f32.gmra.mxu0 %v4212
        %v4357 = vpop.f32.mrf.mxu0
        %v4358 = vadd.f32 0.0, %v4357
        %v4359 = vpop.f32.mrf.mxu0
        %4360 = vmatprep.mubr.f32.mxu0 %v4215
        %4361 = vmatmul.mubr.f32.gmra.mxu0 %v4214
        %v4362 = vpop.f32.mrf.mxu0
        %v4363 = vadd.f32 0.0, %v4362
        %v4364 = vpop.f32.mrf.mxu0
        %4365 = vmatprep.mubr.f32.mxu0 %v4217
        %4366 = vmatmul.mubr.f32.gmra.mxu0 %v4216
        %v4367 = vpop.f32.mrf.mxu0
        %v4368 = vadd.f32 0.0, %v4367
        %v4369 = vpop.f32.mrf.mxu0
        %4370 = vmatprep.mubr.f32.mxu0 %v4219
        %4371 = vmatmul.mubr.f32.gmra.mxu0 %v4218
        %v4372 = vpop.f32.mrf.mxu0
        %v4373 = vadd.f32 0.0, %v4372
        %v4374 = vpop.f32.mrf.mxu0
        %4375 = vmatprep.mubr.f32.mxu0 %v4221
        %4376 = vmatmul.mubr.f32.gmra.mxu0 %v4220
        %v4377 = vpop.f32.mrf.mxu0
        %v4378 = vadd.f32 0.0, %v4377
        %v4379 = vpop.f32.mrf.mxu0
        %4380 = vmatprep.mubr.f32.mxu0 %v4223
        %4381 = vmatmul.mubr.f32.gmra.mxu0 %v4222
        %v4382 = vpop.f32.mrf.mxu0
        %v4383 = vadd.f32 0.0, %v4382
        %v4384 = vpop.f32.mrf.mxu0
        %4385 = vmatprep.mubr.f32.mxu0 %v4225
        %4386 = vmatmul.mubr.f32.gmra.mxu0 %v4224
        %v4387 = vpop.f32.mrf.mxu0
        %v4388 = vadd.f32 0.0, %v4387
        %v4389 = vpop.f32.mrf.mxu0
        %4390 = vmatprep.mubr.f32.mxu0 %v4227
        %4391 = vmatmul.mubr.f32.gmra.mxu0 %v4226
        %v4392 = vpop.f32.mrf.mxu0
        %v4393 = vadd.f32 0.0, %v4392
        %v4394 = vpop.f32.mrf.mxu0
        %4395 = vmatprep.mubr.f32.mxu0 %v4229
        %4396 = vmatmul.mubr.f32.gmra.mxu0 %v4228
        %v4397 = vpop.f32.mrf.mxu0
        %v4398 = vadd.f32 0.0, %v4397
        %v4399 = vpop.f32.mrf.mxu0
        %4400 = vmatprep.mubr.f32.mxu0 %v4231
        %4401 = vmatmul.mubr.f32.gmra.mxu0 %v4230
        %v4402 = vpop.f32.mrf.mxu0
        %v4403 = vadd.f32 0.0, %v4402
        %v4404 = vpop.f32.mrf.mxu0
        %4405 = vmatprep.mubr.f32.mxu0 %v4233
        %4406 = vmatmul.mubr.f32.gmra.mxu0 %v4232
        %v4407 = vpop.f32.mrf.mxu0
        %v4408 = vadd.f32 0.0, %v4407
        %v4409 = vpop.f32.mrf.mxu0
        %4410 = vmatprep.mubr.f32.mxu0 %v4235
        %4411 = vmatmul.mubr.f32.gmra.mxu0 %v4234
        %v4412 = vpop.f32.mrf.mxu0
        %v4413 = vadd.f32 0.0, %v4412
        %v4414 = vpop.f32.mrf.mxu0
        %4415 = vmatprep.mubr.f32.mxu0 %v4237
        %4416 = vmatmul.mubr.f32.gmra.mxu0 %v4236
        %v4417 = vpop.f32.mrf.mxu0
        %v4418 = vadd.f32 0.0, %v4417
        %v4419 = vpop.f32.mrf.mxu0
        %4420 = vmatprep.mubr.f32.mxu0 %v4239
        %4421 = vmatmul.mubr.f32.gmra.mxu0 %v4238
        %v4422 = vpop.f32.mrf.mxu0
        %v4423 = vadd.f32 0.0, %v4422
        %v4424 = vpop.f32.mrf.mxu0
        %4425 = vmatprep.mubr.f32.mxu0 %v4241
        %4426 = vmatmul.mubr.f32.gmra.mxu0 %v4240
        %v4427 = vpop.f32.mrf.mxu0
        %v4428 = vadd.f32 0.0, %v4427
        %v4429 = vpop.f32.mrf.mxu0
        %4430 = vmatprep.mubr.f32.mxu0 %v4243
        %4431 = vmatmul.mubr.f32.gmra.mxu0 %v4242
        %v4432 = vpop.f32.mrf.mxu0
        %v4433 = vadd.f32 0.0, %v4432
        %v4434 = vpop.f32.mrf.mxu0
        %4435 = vmatprep.mubr.f32.mxu0 %v4245
        %4436 = vmatmul.mubr.f32.gmra.mxu0 %v4244
        %v4437 = vpop.f32.mrf.mxu0
        %v4438 = vadd.f32 0.0, %v4437
        %v4439 = vpop.f32.mrf.mxu0
        %4440 = vmatprep.mubr.f32.mxu0 %v4247
        %4441 = vmatmul.mubr.f32.gmra.mxu0 %v4246
        %v4442 = vpop.f32.mrf.mxu0
        %v4443 = vadd.f32 0.0, %v4442
        %v4444 = vpop.f32.mrf.mxu0
        %4445 = vmatprep.mubr.f32.mxu0 %v4249
        %4446 = vmatmul.mubr.f32.gmra.mxu0 %v4248
        %v4447 = vpop.f32.mrf.mxu0
        %v4448 = vadd.f32 0.0, %v4447
        %v4449 = vpop.f32.mrf.mxu0
        %4450 = vmatprep.mubr.f32.mxu0 %v4251
        %4451 = vmatmul.mubr.f32.gmra.mxu0 %v4250
        %v4452 = vpop.f32.mrf.mxu0
        %v4453 = vadd.f32 0.0, %v4452
        %v4454 = vpop.f32.mrf.mxu0
        %4455 = vmatprep.mubr.f32.mxu0 %v4253
        %4456 = vmatmul.mubr.f32.gmra.mxu0 %v4252
        %v4457 = vpop.f32.mrf.mxu0
        %v4458 = vadd.f32 0.0, %v4457
        %v4459 = vpop.f32.mrf.mxu0
        %4460 = vmatprep.mubr.f32.mxu0 %v4255
        %4461 = vmatmul.mubr.f32.gmra.mxu0 %v4254
        %v4462 = vpop.f32.mrf.mxu0
        %v4463 = vadd.f32 0.0, %v4462
        %v4464 = vpop.f32.mrf.mxu0
        %4465 = vmatprep.mubr.f32.mxu0 %v4257
        %4466 = vmatmul.mubr.f32.gmra.mxu0 %v4256
        %v4467 = vpop.f32.mrf.mxu0
        %v4468 = vadd.f32 0.0, %v4467
        %v4469 = vpop.f32.mrf.mxu0
        %4470 = vmatprep.mubr.f32.mxu0 %v4259
        %4471 = vmatmul.mubr.f32.gmra.mxu0 %v4258
        %v4472 = vpop.f32.mrf.mxu0
        %v4473 = vadd.f32 0.0, %v4472
        %v4474 = vpop.f32.mrf.mxu0
        %4475 = vmatprep.mubr.f32.mxu0 %v4261
        %4476 = vmatmul.mubr.f32.gmra.mxu0 %v4260
        %v4477 = vpop.f32.mrf.mxu0
        %v4478 = vadd.f32 0.0, %v4477
        %v4479 = vpop.f32.mrf.mxu0
        %4480 = vmatprep.mubr.f32.mxu0 %v4263
        %4481 = vmatmul.mubr.f32.gmra.mxu0 %v4262
        %v4482 = vpop.f32.mrf.mxu0
        %v4483 = vadd.f32 0.0, %v4482
        %v4484 = vpop.f32.mrf.mxu0
        %4485 = vmatprep.mubr.f32.mxu0 %v4265
        %4486 = vmatmul.mubr.f32.gmra.mxu0 %v4264
        %v4487 = vpop.f32.mrf.mxu0
        %v4488 = vadd.f32 0.0, %v4487
        %v4489 = vpop.f32.mrf.mxu0
        %4490 = vdwg.mxu0
        %v4491 = vsel %vm1013, %v4333, -inf
        %4492 = vmax.xlane.f32.xlu0 %v4491
        %v4493 = vpop.xlane.xlu0 %4492
        %v4494 = vsel %vm1013, %v4338, -inf
        %4495 = vmax.xlane.f32.xlu0 %v4494
        %v4496 = vpop.xlane.xlu0 %4495
        %v4497 = vsel %vm1013, %v4343, -inf
        %4498 = vmax.xlane.f32.xlu0 %v4497
        %v4499 = vpop.xlane.xlu0 %4498
        %v4500 = vsel %vm1013, %v4348, -inf
        %4501 = vmax.xlane.f32.xlu0 %v4500
        %v4502 = vpop.xlane.xlu0 %4501
        %v4503 = vsel %vm1013, %v4353, -inf
        %4504 = vmax.xlane.f32.xlu0 %v4503
        %v4505 = vpop.xlane.xlu0 %4504
        %v4506 = vsel %vm1013, %v4358, -inf
        %4507 = vmax.xlane.f32.xlu0 %v4506
        %v4508 = vpop.xlane.xlu0 %4507
        %v4509 = vsel %vm1013, %v4363, -inf
        %4510 = vmax.xlane.f32.xlu0 %v4509
        %v4511 = vpop.xlane.xlu0 %4510
        %v4512 = vsel %vm1013, %v4368, -inf
        %4513 = vmax.xlane.f32.xlu0 %v4512
        %v4514 = vpop.xlane.xlu0 %4513
        %v4515 = vsel %vm1013, %v4373, -inf
        %4516 = vmax.xlane.f32.xlu0 %v4515
        %v4517 = vpop.xlane.xlu0 %4516
        %v4518 = vsel %vm1013, %v4378, -inf
        %4519 = vmax.xlane.f32.xlu0 %v4518
        %v4520 = vpop.xlane.xlu0 %4519
        %v4521 = vsel %vm1013, %v4383, -inf
        %4522 = vmax.xlane.f32.xlu0 %v4521
        %v4523 = vpop.xlane.xlu0 %4522
        %v4524 = vsel %vm1013, %v4388, -inf
        %4525 = vmax.xlane.f32.xlu0 %v4524
        %v4526 = vpop.xlane.xlu0 %4525
        %v4527 = vsel %vm1013, %v4393, -inf
        %4528 = vmax.xlane.f32.xlu0 %v4527
        %v4529 = vpop.xlane.xlu0 %4528
        %v4530 = vsel %vm1013, %v4398, -inf
        %4531 = vmax.xlane.f32.xlu0 %v4530
        %v4532 = vpop.xlane.xlu0 %4531
        %v4533 = vsel %vm1013, %v4403, -inf
        %4534 = vmax.xlane.f32.xlu0 %v4533
        %v4535 = vpop.xlane.xlu0 %4534
        %v4536 = vsel %vm1013, %v4408, -inf
        %4537 = vmax.xlane.f32.xlu0 %v4536
        %v4538 = vpop.xlane.xlu0 %4537
        %v4539 = vsel %vm1013, %v4413, -inf
        %4540 = vmax.xlane.f32.xlu0 %v4539
        %v4541 = vpop.xlane.xlu0 %4540
        %v4542 = vsel %vm1013, %v4418, -inf
        %4543 = vmax.xlane.f32.xlu0 %v4542
        %v4544 = vpop.xlane.xlu0 %4543
        %v4545 = vsel %vm1013, %v4423, -inf
        %4546 = vmax.xlane.f32.xlu0 %v4545
        %v4547 = vpop.xlane.xlu0 %4546
        %v4548 = vsel %vm1013, %v4428, -inf
        %4549 = vmax.xlane.f32.xlu0 %v4548
        %v4550 = vpop.xlane.xlu0 %4549
        %v4551 = vsel %vm1013, %v4433, -inf
        %4552 = vmax.xlane.f32.xlu0 %v4551
        %v4553 = vpop.xlane.xlu0 %4552
        %v4554 = vsel %vm1013, %v4438, -inf
        %4555 = vmax.xlane.f32.xlu0 %v4554
        %v4556 = vpop.xlane.xlu0 %4555
        %v4557 = vsel %vm1013, %v4443, -inf
        %4558 = vmax.xlane.f32.xlu0 %v4557
        %v4559 = vpop.xlane.xlu0 %4558
        %v4560 = vsel %vm1013, %v4448, -inf
        %4561 = vmax.xlane.f32.xlu0 %v4560
        %v4562 = vpop.xlane.xlu0 %4561
        %v4563 = vsel %vm1013, %v4453, -inf
        %4564 = vmax.xlane.f32.xlu0 %v4563
        %v4565 = vpop.xlane.xlu0 %4564
        %v4566 = vsel %vm1013, %v4458, -inf
        %4567 = vmax.xlane.f32.xlu0 %v4566
        %v4568 = vpop.xlane.xlu0 %4567
        %v4569 = vsel %vm1013, %v4463, -inf
        %4570 = vmax.xlane.f32.xlu0 %v4569
        %v4571 = vpop.xlane.xlu0 %4570
        %v4572 = vsel %vm1013, %v4468, -inf
        %4573 = vmax.xlane.f32.xlu0 %v4572
        %v4574 = vpop.xlane.xlu0 %4573
        %v4575 = vsel %vm1013, %v4473, -inf
        %4576 = vmax.xlane.f32.xlu0 %v4575
        %v4577 = vpop.xlane.xlu0 %4576
        %v4578 = vsel %vm1013, %v4478, -inf
        %4579 = vmax.xlane.f32.xlu0 %v4578
        %v4580 = vpop.xlane.xlu0 %4579
        %v4581 = vsel %vm1013, %v4483, -inf
        %4582 = vmax.xlane.f32.xlu0 %v4581
        %v4583 = vpop.xlane.xlu0 %4582
        %v4584 = vsel %vm1013, %v4488, -inf
        %4585 = vmax.xlane.f32.xlu0 %v4584
        %v4586 = vpop.xlane.xlu0 %4585
        %v4587 = vsub.f32 %v4333, %v4493
        %v4588 = vsub.f32 %v4338, %v4496
        %v4589 = vsub.f32 %v4343, %v4499
        %v4590 = vsub.f32 %v4348, %v4502
        %v4591 = vsub.f32 %v4353, %v4505
        %v4592 = vsub.f32 %v4358, %v4508
        %v4593 = vsub.f32 %v4363, %v4511
        %v4594 = vsub.f32 %v4368, %v4514
        %v4595 = vsub.f32 %v4373, %v4517
        %v4596 = vsub.f32 %v4378, %v4520
        %v4597 = vsub.f32 %v4383, %v4523
        %v4598 = vsub.f32 %v4388, %v4526
        %v4599 = vsub.f32 %v4393, %v4529
        %v4600 = vsub.f32 %v4398, %v4532
        %v4601 = vsub.f32 %v4403, %v4535
        %v4602 = vsub.f32 %v4408, %v4538
        %v4603 = vsub.f32 %v4413, %v4541
        %v4604 = vsub.f32 %v4418, %v4544
        %v4605 = vsub.f32 %v4423, %v4547
        %v4606 = vsub.f32 %v4428, %v4550
        %v4607 = vsub.f32 %v4433, %v4553
        %v4608 = vsub.f32 %v4438, %v4556
        %v4609 = vsub.f32 %v4443, %v4559
        %v4610 = vsub.f32 %v4448, %v4562
        %v4611 = vsub.f32 %v4453, %v4565
        %v4612 = vsub.f32 %v4458, %v4568
        %v4613 = vsub.f32 %v4463, %v4571
        %v4614 = vsub.f32 %v4468, %v4574
        %v4615 = vsub.f32 %v4473, %v4577
        %v4616 = vsub.f32 %v4478, %v4580
        %v4617 = vsub.f32 %v4483, %v4583
        %v4618 = vsub.f32 %v4488, %v4586
        %v4619 = vmul.f32 %v4587, 1.442695
        %v4620 = vpow.pop %v4619
        %v4621 = vmul.f32 %v4588, 1.442695
        %v4622 = vpow.pop %v4621
        %v4623 = vmul.f32 %v4589, 1.442695
        %v4624 = vpow.pop %v4623
        %v4625 = vmul.f32 %v4590, 1.442695
        %v4626 = vpow.pop %v4625
        %v4627 = vmul.f32 %v4591, 1.442695
        %v4628 = vpow.pop %v4627
        %v4629 = vmul.f32 %v4592, 1.442695
        %v4630 = vpow.pop %v4629
        %v4631 = vmul.f32 %v4593, 1.442695
        %v4632 = vpow.pop %v4631
        %v4633 = vmul.f32 %v4594, 1.442695
        %v4634 = vpow.pop %v4633
        %v4635 = vmul.f32 %v4595, 1.442695
        %v4636 = vpow.pop %v4635
        %v4637 = vmul.f32 %v4596, 1.442695
        %v4638 = vpow.pop %v4637
        %v4639 = vmul.f32 %v4597, 1.442695
        %v4640 = vpow.pop %v4639
        %v4641 = vmul.f32 %v4598, 1.442695
        %v4642 = vpow.pop %v4641
        %v4643 = vmul.f32 %v4599, 1.442695
        %v4644 = vpow.pop %v4643
        %v4645 = vmul.f32 %v4600, 1.442695
        %v4646 = vpow.pop %v4645
        %v4647 = vmul.f32 %v4601, 1.442695
        %v4648 = vpow.pop %v4647
        %v4649 = vmul.f32 %v4602, 1.442695
        %v4650 = vpow.pop %v4649
        %v4651 = vmul.f32 %v4603, 1.442695
        %v4652 = vpow.pop %v4651
        %v4653 = vmul.f32 %v4604, 1.442695
        %v4654 = vpow.pop %v4653
        %v4655 = vmul.f32 %v4605, 1.442695
        %v4656 = vpow.pop %v4655
        %v4657 = vmul.f32 %v4606, 1.442695
        %v4658 = vpow.pop %v4657
        %v4659 = vmul.f32 %v4607, 1.442695
        %v4660 = vpow.pop %v4659
        %v4661 = vmul.f32 %v4608, 1.442695
        %v4662 = vpow.pop %v4661
        %v4663 = vmul.f32 %v4609, 1.442695
        %v4664 = vpow.pop %v4663
        %v4665 = vmul.f32 %v4610, 1.442695
        %v4666 = vpow.pop %v4665
        %v4667 = vmul.f32 %v4611, 1.442695
        %v4668 = vpow.pop %v4667
        %v4669 = vmul.f32 %v4612, 1.442695
        %v4670 = vpow.pop %v4669
        %v4671 = vmul.f32 %v4613, 1.442695
        %v4672 = vpow.pop %v4671
        %v4673 = vmul.f32 %v4614, 1.442695
        %v4674 = vpow.pop %v4673
        %v4675 = vmul.f32 %v4615, 1.442695
        %v4676 = vpow.pop %v4675
        %v4677 = vmul.f32 %v4616, 1.442695
        %v4678 = vpow.pop %v4677
        %v4679 = vmul.f32 %v4617, 1.442695
        %v4680 = vpow.pop %v4679
        %v4681 = vmul.f32 %v4618, 1.442695
        %v4682 = vpow.pop %v4681
        %v4684 = vsel %vm1013, %v4620, 0
        %v4687 = vsel %vm1013, %v4622, 0
        %v4690 = vsel %vm1013, %v4624, 0
        %v4693 = vsel %vm1013, %v4626, 0
        %v4696 = vsel %vm1013, %v4628, 0
        %v4699 = vsel %vm1013, %v4630, 0
        %v4702 = vsel %vm1013, %v4632, 0
        %v4705 = vsel %vm1013, %v4634, 0
        %v4708 = vsel %vm1013, %v4636, 0
        %v4711 = vsel %vm1013, %v4638, 0
        %v4714 = vsel %vm1013, %v4640, 0
        %v4717 = vsel %vm1013, %v4642, 0
        %v4720 = vsel %vm1013, %v4644, 0
        %v4723 = vsel %vm1013, %v4646, 0
        %v4726 = vsel %vm1013, %v4648, 0
        %v4729 = vsel %vm1013, %v4650, 0
        %v4732 = vsel %vm1013, %v4652, 0
        %v4735 = vsel %vm1013, %v4654, 0
        %v4738 = vsel %vm1013, %v4656, 0
        %v4741 = vsel %vm1013, %v4658, 0
        %v4744 = vsel %vm1013, %v4660, 0
        %v4747 = vsel %vm1013, %v4662, 0
        %v4750 = vsel %vm1013, %v4664, 0
        %v4753 = vsel %vm1013, %v4666, 0
        %v4756 = vsel %vm1013, %v4668, 0
        %v4759 = vsel %vm1013, %v4670, 0
        %v4762 = vsel %vm1013, %v4672, 0
        %v4765 = vsel %vm1013, %v4674, 0
        %v4768 = vsel %vm1013, %v4676, 0
        %v4771 = vsel %vm1013, %v4678, 0
        %v4774 = vsel %vm1013, %v4680, 0
        %v4777 = vsel %vm1013, %v4682, 0
        %4779 = vmatprep.subr.mxu0 0.0
        %4780 = vmatpush1.msra.mxu0 0.0
        %4781 = vmatprep.subr.mxu0 0.0
        %4782 = vmatpush1.msra.mxu0 0.0
        %4783 = vmatprep.subr.mxu0 0.0
        %4784 = vmatpush1.msra.mxu0 0.0
        %4785 = vmatprep.subr.mxu0 0.0
        %4786 = vmatpush1.msra.mxu0 0.0
        %4787 = vmatprep.subr.mxu0 0.0
        %4788 = vmatpush1.msra.mxu0 0.0
        %4789 = vmatprep.subr.mxu0 0.0
        %4790 = vmatpush1.msra.mxu0 0.0
        %4791 = vmatprep.subr.mxu0 0.0
        %4792 = vmatpush1.msra.mxu0 0.0
        %4793 = vmatprep.subr.mxu0 0.0
        %4794 = vmatpush1.msra.mxu0 0.0
        %4795 = vmatprep.subr.mxu0 0.0
        %4796 = vmatpush1.msra.mxu0 0.0
        %4797 = vmatprep.subr.mxu0 0.0
        %4798 = vmatpush1.msra.mxu0 0.0
        %4799 = vmatprep.subr.mxu0 0.0
        %4800 = vmatpush1.msra.mxu0 0.0
        %4801 = vmatprep.subr.mxu0 0.0
        %4802 = vmatpush1.msra.mxu0 0.0
        %4803 = vmatprep.subr.mxu0 0.0
        %4804 = vmatpush1.msra.mxu0 %v569
        %4805 = vmatprep.subr.mxu0 0.0
        %4806 = vmatpush1.msra.mxu0 %v568
        %4807 = vmatprep.subr.mxu0 0.0
        %4808 = vmatpush1.msra.mxu0 %v567
        %4809 = vmatprep.subr.mxu0 0.0
        %4810 = vmatpush1.msra.mxu0 %v566
        %4811 = vmatprep.subr.mxu0 0.0
        %4812 = vmatpush2.msra.mxu0 0.0
        %4813 = vmatprep.subr.mxu0 0.0
        %4814 = vmatpush2.msra.mxu0 0.0
        %4815 = vmatprep.subr.mxu0 0.0
        %4816 = vmatpush2.msra.mxu0 0.0
        %4817 = vmatprep.subr.mxu0 0.0
        %4818 = vmatpush2.msra.mxu0 0.0
        %4819 = vmatprep.subr.mxu0 0.0
        %4820 = vmatpush2.msra.mxu0 0.0
        %4821 = vmatprep.subr.mxu0 0.0
        %4822 = vmatpush2.msra.mxu0 0.0
        %4823 = vmatprep.subr.mxu0 0.0
        %4824 = vmatpush2.msra.mxu0 0.0
        %4825 = vmatprep.subr.mxu0 0.0
        %4826 = vmatpush2.msra.mxu0 0.0
        %4827 = vmatprep.subr.mxu0 0.0
        %4828 = vmatpush2.msra.mxu0 0.0
        %4829 = vmatprep.subr.mxu0 0.0
        %4830 = vmatpush2.msra.mxu0 0.0
        %4831 = vmatprep.subr.mxu0 0.0
        %4832 = vmatpush2.msra.mxu0 0.0
        %4833 = vmatprep.subr.mxu0 0.0
        %4834 = vmatpush2.msra.mxu0 0.0
        %4835 = vmatprep.subr.mxu0 0.0
        %4836 = vmatpush2.msra.mxu0 0.0
        %4837 = vmatprep.subr.mxu0 0.0
        %4838 = vmatpush2.msra.mxu0 0.0
        %4839 = vmatprep.subr.mxu0 0.0
        %4840 = vmatpush2.msra.mxu0 0.0
        %4841 = vmatprep.subr.mxu0 0.0
        %4842 = vmatpush2.msra.mxu0 0.0
        %4843 = vmatprep.mubr.f32.mxu0 0.0
        %4844 = vmatmul.mubr.f32.gmra.mxu0 %v4684
        %v4845 = vpop.f32.mrf.mxu0
        %v4846 = vadd.f32 0.0, %v4845
        %v4847 = vpop.f32.mrf.mxu0
        %4848 = vmatprep.mubr.f32.mxu0 0.0
        %4849 = vmatmul.mubr.f32.gmra.mxu0 %v4687
        %v4850 = vpop.f32.mrf.mxu0
        %v4851 = vadd.f32 0.0, %v4850
        %v4852 = vpop.f32.mrf.mxu0
        %4853 = vmatprep.mubr.f32.mxu0 0.0
        %4854 = vmatmul.mubr.f32.gmra.mxu0 %v4690
        %v4855 = vpop.f32.mrf.mxu0
        %v4856 = vadd.f32 0.0, %v4855
        %v4857 = vpop.f32.mrf.mxu0
        %4858 = vmatprep.mubr.f32.mxu0 0.0
        %4859 = vmatmul.mubr.f32.gmra.mxu0 %v4693
        %v4860 = vpop.f32.mrf.mxu0
        %v4861 = vadd.f32 0.0, %v4860
        %v4862 = vpop.f32.mrf.mxu0
        %4863 = vmatprep.mubr.f32.mxu0 0.0
        %4864 = vmatmul.mubr.f32.gmra.mxu0 %v4696
        %v4865 = vpop.f32.mrf.mxu0
        %v4866 = vadd.f32 0.0, %v4865
        %v4867 = vpop.f32.mrf.mxu0
        %4868 = vmatprep.mubr.f32.mxu0 0.0
        %4869 = vmatmul.mubr.f32.gmra.mxu0 %v4699
        %v4870 = vpop.f32.mrf.mxu0
        %v4871 = vadd.f32 0.0, %v4870
        %v4872 = vpop.f32.mrf.mxu0
        %4873 = vmatprep.mubr.f32.mxu0 0.0
        %4874 = vmatmul.mubr.f32.gmra.mxu0 %v4702
        %v4875 = vpop.f32.mrf.mxu0
        %v4876 = vadd.f32 0.0, %v4875
        %v4877 = vpop.f32.mrf.mxu0
        %4878 = vmatprep.mubr.f32.mxu0 0.0
        %4879 = vmatmul.mubr.f32.gmra.mxu0 %v4705
        %v4880 = vpop.f32.mrf.mxu0
        %v4881 = vadd.f32 0.0, %v4880
        %v4882 = vpop.f32.mrf.mxu0
        %4883 = vmatprep.mubr.f32.mxu0 0.0
        %4884 = vmatmul.mubr.f32.gmra.mxu0 %v4708
        %v4885 = vpop.f32.mrf.mxu0
        %v4886 = vadd.f32 0.0, %v4885
        %v4887 = vpop.f32.mrf.mxu0
        %4888 = vmatprep.mubr.f32.mxu0 0.0
        %4889 = vmatmul.mubr.f32.gmra.mxu0 %v4711
        %v4890 = vpop.f32.mrf.mxu0
        %v4891 = vadd.f32 0.0, %v4890
        %v4892 = vpop.f32.mrf.mxu0
        %4893 = vmatprep.mubr.f32.mxu0 0.0
        %4894 = vmatmul.mubr.f32.gmra.mxu0 %v4714
        %v4895 = vpop.f32.mrf.mxu0
        %v4896 = vadd.f32 0.0, %v4895
        %v4897 = vpop.f32.mrf.mxu0
        %4898 = vmatprep.mubr.f32.mxu0 0.0
        %4899 = vmatmul.mubr.f32.gmra.mxu0 %v4717
        %v4900 = vpop.f32.mrf.mxu0
        %v4901 = vadd.f32 0.0, %v4900
        %v4902 = vpop.f32.mrf.mxu0
        %4903 = vmatprep.mubr.f32.mxu0 0.0
        %4904 = vmatmul.mubr.f32.gmra.mxu0 %v4720
        %v4905 = vpop.f32.mrf.mxu0
        %v4906 = vadd.f32 0.0, %v4905
        %v4907 = vpop.f32.mrf.mxu0
        %4908 = vmatprep.mubr.f32.mxu0 0.0
        %4909 = vmatmul.mubr.f32.gmra.mxu0 %v4723
        %v4910 = vpop.f32.mrf.mxu0
        %v4911 = vadd.f32 0.0, %v4910
        %v4912 = vpop.f32.mrf.mxu0
        %4913 = vmatprep.mubr.f32.mxu0 0.0
        %4914 = vmatmul.mubr.f32.gmra.mxu0 %v4726
        %v4915 = vpop.f32.mrf.mxu0
        %v4916 = vadd.f32 0.0, %v4915
        %v4917 = vpop.f32.mrf.mxu0
        %4918 = vmatprep.mubr.f32.mxu0 0.0
        %4919 = vmatmul.mubr.f32.gmra.mxu0 %v4729
        %v4920 = vpop.f32.mrf.mxu0
        %v4921 = vadd.f32 0.0, %v4920
        %v4922 = vpop.f32.mrf.mxu0
        %4923 = vmatprep.mubr.f32.mxu0 0.0
        %4924 = vmatmul.mubr.f32.gmra.mxu0 %v4732
        %v4925 = vpop.f32.mrf.mxu0
        %v4926 = vadd.f32 0.0, %v4925
        %v4927 = vpop.f32.mrf.mxu0
        %4928 = vmatprep.mubr.f32.mxu0 0.0
        %4929 = vmatmul.mubr.f32.gmra.mxu0 %v4735
        %v4930 = vpop.f32.mrf.mxu0
        %v4931 = vadd.f32 0.0, %v4930
        %v4932 = vpop.f32.mrf.mxu0
        %4933 = vmatprep.mubr.f32.mxu0 0.0
        %4934 = vmatmul.mubr.f32.gmra.mxu0 %v4738
        %v4935 = vpop.f32.mrf.mxu0
        %v4936 = vadd.f32 0.0, %v4935
        %v4937 = vpop.f32.mrf.mxu0
        %4938 = vmatprep.mubr.f32.mxu0 0.0
        %4939 = vmatmul.mubr.f32.gmra.mxu0 %v4741
        %v4940 = vpop.f32.mrf.mxu0
        %v4941 = vadd.f32 0.0, %v4940
        %v4942 = vpop.f32.mrf.mxu0
        %4943 = vmatprep.mubr.f32.mxu0 0.0
        %4944 = vmatmul.mubr.f32.gmra.mxu0 %v4744
        %v4945 = vpop.f32.mrf.mxu0
        %v4946 = vadd.f32 0.0, %v4945
        %v4947 = vpop.f32.mrf.mxu0
        %4948 = vmatprep.mubr.f32.mxu0 0.0
        %4949 = vmatmul.mubr.f32.gmra.mxu0 %v4747
        %v4950 = vpop.f32.mrf.mxu0
        %v4951 = vadd.f32 0.0, %v4950
        %v4952 = vpop.f32.mrf.mxu0
        %4953 = vmatprep.mubr.f32.mxu0 0.0
        %4954 = vmatmul.mubr.f32.gmra.mxu0 %v4750
        %v4955 = vpop.f32.mrf.mxu0
        %v4956 = vadd.f32 0.0, %v4955
        %v4957 = vpop.f32.mrf.mxu0
        %4958 = vmatprep.mubr.f32.mxu0 0.0
        %4959 = vmatmul.mubr.f32.gmra.mxu0 %v4753
        %v4960 = vpop.f32.mrf.mxu0
        %v4961 = vadd.f32 0.0, %v4960
        %v4962 = vpop.f32.mrf.mxu0
        %4963 = vmatprep.mubr.f32.mxu0 0.0
        %4964 = vmatmul.mubr.f32.gmra.mxu0 %v4756
        %v4965 = vpop.f32.mrf.mxu0
        %v4966 = vadd.f32 0.0, %v4965
        %v4967 = vpop.f32.mrf.mxu0
        %4968 = vmatprep.mubr.f32.mxu0 0.0
        %4969 = vmatmul.mubr.f32.gmra.mxu0 %v4759
        %v4970 = vpop.f32.mrf.mxu0
        %v4971 = vadd.f32 0.0, %v4970
        %v4972 = vpop.f32.mrf.mxu0
        %4973 = vmatprep.mubr.f32.mxu0 0.0
        %4974 = vmatmul.mubr.f32.gmra.mxu0 %v4762
        %v4975 = vpop.f32.mrf.mxu0
        %v4976 = vadd.f32 0.0, %v4975
        %v4977 = vpop.f32.mrf.mxu0
        %4978 = vmatprep.mubr.f32.mxu0 0.0
        %4979 = vmatmul.mubr.f32.gmra.mxu0 %v4765
        %v4980 = vpop.f32.mrf.mxu0
        %v4981 = vadd.f32 0.0, %v4980
        %v4982 = vpop.f32.mrf.mxu0
        %4983 = vmatprep.mubr.f32.mxu0 0.0
        %4984 = vmatmul.mubr.f32.gmra.mxu0 %v4768
        %v4985 = vpop.f32.mrf.mxu0
        %v4986 = vadd.f32 0.0, %v4985
        %v4987 = vpop.f32.mrf.mxu0
        %4988 = vmatprep.mubr.f32.mxu0 0.0
        %4989 = vmatmul.mubr.f32.gmra.mxu0 %v4771
        %v4990 = vpop.f32.mrf.mxu0
        %v4991 = vadd.f32 0.0, %v4990
        %v4992 = vpop.f32.mrf.mxu0
        %4993 = vmatprep.mubr.f32.mxu0 0.0
        %4994 = vmatmul.mubr.f32.gmra.mxu0 %v4774
        %v4995 = vpop.f32.mrf.mxu0
        %v4996 = vadd.f32 0.0, %v4995
        %v4997 = vpop.f32.mrf.mxu0
        %4998 = vmatprep.mubr.f32.mxu0 0.0
        %4999 = vmatmul.mubr.f32.gmra.mxu0 %v4777
        %v5000 = vpop.f32.mrf.mxu0
        %v5001 = vadd.f32 0.0, %v5000
        %v5002 = vpop.f32.mrf.mxu0
        %5003 = vdwg.mxu0
        %v5004 = vrcp.pop %v4846
        %v5005 = vrcp.pop %v4851
        %v5006 = vrcp.pop %v4856
        %v5007 = vrcp.pop %v4861
        %v5008 = vrcp.pop %v4866
        %v5009 = vrcp.pop %v4871
        %v5010 = vrcp.pop %v4876
        %v5011 = vrcp.pop %v4881
        %v5012 = vrcp.pop %v4886
        %v5013 = vrcp.pop %v4891
        %v5014 = vrcp.pop %v4896
        %v5015 = vrcp.pop %v4901
        %v5016 = vrcp.pop %v4906
        %v5017 = vrcp.pop %v4911
        %v5018 = vrcp.pop %v4916
        %v5019 = vrcp.pop %v4921
        %v5020 = vrcp.pop %v4926
        %v5021 = vrcp.pop %v4931
        %v5022 = vrcp.pop %v4936
        %v5023 = vrcp.pop %v4941
        %v5024 = vrcp.pop %v4946
        %v5025 = vrcp.pop %v4951
        %v5026 = vrcp.pop %v4956
        %v5027 = vrcp.pop %v4961
        %v5028 = vrcp.pop %v4966
        %v5029 = vrcp.pop %v4971
        %v5030 = vrcp.pop %v4976
        %v5031 = vrcp.pop %v4981
        %v5032 = vrcp.pop %v4986
        %v5033 = vrcp.pop %v4991
        %v5034 = vrcp.pop %v4996
        %v5035 = vrcp.pop %v5001
        %v5036 = vmul.f32 %v4846, %v5004
        %v5037 = vmul.f32 %v4851, %v5005
        %v5038 = vmul.f32 %v4856, %v5006
        %v5039 = vmul.f32 %v4861, %v5007
        %v5040 = vmul.f32 %v4866, %v5008
        %v5041 = vmul.f32 %v4871, %v5009
        %v5042 = vmul.f32 %v4876, %v5010
        %v5043 = vmul.f32 %v4881, %v5011
        %v5044 = vmul.f32 %v4886, %v5012
        %v5045 = vmul.f32 %v4891, %v5013
        %v5046 = vmul.f32 %v4896, %v5014
        %v5047 = vmul.f32 %v4901, %v5015
        %v5048 = vmul.f32 %v4906, %v5016
        %v5049 = vmul.f32 %v4911, %v5017
        %v5050 = vmul.f32 %v4916, %v5018
        %v5051 = vmul.f32 %v4921, %v5019
        %v5052 = vmul.f32 %v4926, %v5020
        %v5053 = vmul.f32 %v4931, %v5021
        %v5054 = vmul.f32 %v4936, %v5022
        %v5055 = vmul.f32 %v4941, %v5023
        %v5056 = vmul.f32 %v4946, %v5024
        %v5057 = vmul.f32 %v4951, %v5025
        %v5058 = vmul.f32 %v4956, %v5026
        %v5059 = vmul.f32 %v4961, %v5027
        %v5060 = vmul.f32 %v4966, %v5028
        %v5061 = vmul.f32 %v4971, %v5029
        %v5062 = vmul.f32 %v4976, %v5030
        %v5063 = vmul.f32 %v4981, %v5031
        %v5064 = vmul.f32 %v4986, %v5032
        %v5065 = vmul.f32 %v4991, %v5033
        %v5066 = vmul.f32 %v4996, %v5034
        %v5067 = vmul.f32 %v5001, %v5035
        %v5068 = vsub.f32 2.0, %v5036
        %v5069 = vsub.f32 2.0, %v5037
        %v5070 = vsub.f32 2.0, %v5038
        %v5071 = vsub.f32 2.0, %v5039
        %v5072 = vsub.f32 2.0, %v5040
        %v5073 = vsub.f32 2.0, %v5041
        %v5074 = vsub.f32 2.0, %v5042
        %v5075 = vsub.f32 2.0, %v5043
        %v5076 = vsub.f32 2.0, %v5044
        %v5077 = vsub.f32 2.0, %v5045
        %v5078 = vsub.f32 2.0, %v5046
        %v5079 = vsub.f32 2.0, %v5047
        %v5080 = vsub.f32 2.0, %v5048
        %v5081 = vsub.f32 2.0, %v5049
        %v5082 = vsub.f32 2.0, %v5050
        %v5083 = vsub.f32 2.0, %v5051
        %v5084 = vsub.f32 2.0, %v5052
        %v5085 = vsub.f32 2.0, %v5053
        %v5086 = vsub.f32 2.0, %v5054
        %v5087 = vsub.f32 2.0, %v5055
        %v5088 = vsub.f32 2.0, %v5056
        %v5089 = vsub.f32 2.0, %v5057
        %v5090 = vsub.f32 2.0, %v5058
        %v5091 = vsub.f32 2.0, %v5059
        %v5092 = vsub.f32 2.0, %v5060
        %v5093 = vsub.f32 2.0, %v5061
        %v5094 = vsub.f32 2.0, %v5062
        %v5095 = vsub.f32 2.0, %v5063
        %v5096 = vsub.f32 2.0, %v5064
        %v5097 = vsub.f32 2.0, %v5065
        %v5098 = vsub.f32 2.0, %v5066
        %v5099 = vsub.f32 2.0, %v5067
        %v5100 = vmul.f32 %v5004, %v5068
        %v5101 = vmul.f32 %v5005, %v5069
        %v5102 = vmul.f32 %v5006, %v5070
        %v5103 = vmul.f32 %v5007, %v5071
        %v5104 = vmul.f32 %v5008, %v5072
        %v5105 = vmul.f32 %v5009, %v5073
        %v5106 = vmul.f32 %v5010, %v5074
        %v5107 = vmul.f32 %v5011, %v5075
        %v5108 = vmul.f32 %v5012, %v5076
        %v5109 = vmul.f32 %v5013, %v5077
        %v5110 = vmul.f32 %v5014, %v5078
        %v5111 = vmul.f32 %v5015, %v5079
        %v5112 = vmul.f32 %v5016, %v5080
        %v5113 = vmul.f32 %v5017, %v5081
        %v5114 = vmul.f32 %v5018, %v5082
        %v5115 = vmul.f32 %v5019, %v5083
        %v5116 = vmul.f32 %v5020, %v5084
        %v5117 = vmul.f32 %v5021, %v5085
        %v5118 = vmul.f32 %v5022, %v5086
        %v5119 = vmul.f32 %v5023, %v5087
        %v5120 = vmul.f32 %v5024, %v5088
        %v5121 = vmul.f32 %v5025, %v5089
        %v5122 = vmul.f32 %v5026, %v5090
        %v5123 = vmul.f32 %v5027, %v5091
        %v5124 = vmul.f32 %v5028, %v5092
        %v5125 = vmul.f32 %v5029, %v5093
        %v5126 = vmul.f32 %v5030, %v5094
        %v5127 = vmul.f32 %v5031, %v5095
        %v5128 = vmul.f32 %v5032, %v5096
        %v5129 = vmul.f32 %v5033, %v5097
        %v5130 = vmul.f32 %v5034, %v5098
        %v5131 = vmul.f32 %v5035, %v5099
        %v5132 = vmul.f32 %v4620, %v5100
        %v5133 = vmul.f32 %v4622, %v5101
        %v5134 = vmul.f32 %v4624, %v5102
        %v5135 = vmul.f32 %v4626, %v5103
        %v5136 = vmul.f32 %v4628, %v5104
        %v5137 = vmul.f32 %v4630, %v5105
        %v5138 = vmul.f32 %v4632, %v5106
        %v5139 = vmul.f32 %v4634, %v5107
        %v5140 = vmul.f32 %v4636, %v5108
        %v5141 = vmul.f32 %v4638, %v5109
        %v5142 = vmul.f32 %v4640, %v5110
        %v5143 = vmul.f32 %v4642, %v5111
        %v5144 = vmul.f32 %v4644, %v5112
        %v5145 = vmul.f32 %v4646, %v5113
        %v5146 = vmul.f32 %v4648, %v5114
        %v5147 = vmul.f32 %v4650, %v5115
        %v5148 = vmul.f32 %v4652, %v5116
        %v5149 = vmul.f32 %v4654, %v5117
        %v5150 = vmul.f32 %v4656, %v5118
        %v5151 = vmul.f32 %v4658, %v5119
        %v5152 = vmul.f32 %v4660, %v5120
        %v5153 = vmul.f32 %v4662, %v5121
        %v5154 = vmul.f32 %v4664, %v5122
        %v5155 = vmul.f32 %v4666, %v5123
        %v5156 = vmul.f32 %v4668, %v5124
        %v5157 = vmul.f32 %v4670, %v5125
        %v5158 = vmul.f32 %v4672, %v5126
        %v5159 = vmul.f32 %v4674, %v5127
        %v5160 = vmul.f32 %v4676, %v5128
        %v5161 = vmul.f32 %v4678, %v5129
        %v5162 = vmul.f32 %v4680, %v5130
        %v5163 = vmul.f32 %v4682, %v5131
        %v5165 = vsel %vm1013, %v5132, 0
        %v5168 = vsel %vm1013, %v5133, 0
        %v5171 = vsel %vm1013, %v5134, 0
        %v5174 = vsel %vm1013, %v5135, 0
        %v5177 = vsel %vm1013, %v5136, 0
        %v5180 = vsel %vm1013, %v5137, 0
        %v5183 = vsel %vm1013, %v5138, 0
        %v5186 = vsel %vm1013, %v5139, 0
        %v5189 = vsel %vm1013, %v5140, 0
        %v5192 = vsel %vm1013, %v5141, 0
        %v5195 = vsel %vm1013, %v5142, 0
        %v5198 = vsel %vm1013, %v5143, 0
        %v5201 = vsel %vm1013, %v5144, 0
        %v5204 = vsel %vm1013, %v5145, 0
        %v5207 = vsel %vm1013, %v5146, 0
        %v5210 = vsel %vm1013, %v5147, 0
        %v5213 = vsel %vm1013, %v5148, 0
        %v5216 = vsel %vm1013, %v5149, 0
        %v5219 = vsel %vm1013, %v5150, 0
        %v5222 = vsel %vm1013, %v5151, 0
        %v5225 = vsel %vm1013, %v5152, 0
        %v5228 = vsel %vm1013, %v5153, 0
        %v5231 = vsel %vm1013, %v5154, 0
        %v5234 = vsel %vm1013, %v5155, 0
        %v5237 = vsel %vm1013, %v5156, 0
        %v5240 = vsel %vm1013, %v5157, 0
        %v5243 = vsel %vm1013, %v5158, 0
        %v5246 = vsel %vm1013, %v5159, 0
        %v5249 = vsel %vm1013, %v5160, 0
        %v5252 = vsel %vm1013, %v5161, 0
        %v5255 = vsel %vm1013, %v5162, 0
        %v5258 = vsel %vm1013, %v5163, 0
        %5260 = vmatprep.subr.mxu0 0.0
        %5261 = vmatpush1.msra.mxu0 0.0
        %5262 = vmatprep.subr.mxu0 0.0
        %5263 = vmatpush1.msra.mxu0 0.0
        %5264 = vmatprep.subr.mxu0 0.0
        %5265 = vmatpush1.msra.mxu0 0.0
        %5266 = vmatprep.subr.mxu0 0.0
        %5267 = vmatpush1.msra.mxu0 0.0
        %5268 = vmatprep.subr.mxu0 0.0
        %5269 = vmatpush1.msra.mxu0 0.0
        %5270 = vmatprep.subr.mxu0 0.0
        %5271 = vmatpush1.msra.mxu0 0.0
        %5272 = vmatprep.subr.mxu0 0.0
        %5273 = vmatpush1.msra.mxu0 0.0
        %5274 = vmatprep.subr.mxu0 0.0
        %5275 = vmatpush1.msra.mxu0 0.0
        %5276 = vmatprep.subr.mxu0 0.0
        %5277 = vmatpush1.msra.mxu0 0.0
        %5278 = vmatprep.subr.mxu0 0.0
        %5279 = vmatpush1.msra.mxu0 0.0
        %5280 = vmatprep.subr.mxu0 0.0
        %5281 = vmatpush1.msra.mxu0 0.0
        %5282 = vmatprep.subr.mxu0 0.0
        %5283 = vmatpush1.msra.mxu0 0.0
        %5284 = vmatprep.subr.mxu0 %v611
        %5285 = vmatpush1.msra.mxu0 %v610
        %5286 = vmatprep.subr.mxu0 %v603
        %5287 = vmatpush1.msra.mxu0 %v602
        %5288 = vmatprep.subr.mxu0 %v595
        %5289 = vmatpush1.msra.mxu0 %v594
        %5290 = vmatprep.subr.mxu0 %v587
        %5291 = vmatpush1.msra.mxu0 %v586
        %5292 = vmatprep.subr.mxu0 0.0
        %5293 = vmatpush2.msra.mxu0 0.0
        %5294 = vmatprep.subr.mxu0 0.0
        %5295 = vmatpush2.msra.mxu0 0.0
        %5296 = vmatprep.subr.mxu0 0.0
        %5297 = vmatpush2.msra.mxu0 0.0
        %5298 = vmatprep.subr.mxu0 0.0
        %5299 = vmatpush2.msra.mxu0 0.0
        %5300 = vmatprep.subr.mxu0 0.0
        %5301 = vmatpush2.msra.mxu0 0.0
        %5302 = vmatprep.subr.mxu0 0.0
        %5303 = vmatpush2.msra.mxu0 0.0
        %5304 = vmatprep.subr.mxu0 0.0
        %5305 = vmatpush2.msra.mxu0 0.0
        %5306 = vmatprep.subr.mxu0 0.0
        %5307 = vmatpush2.msra.mxu0 0.0
        %5308 = vmatprep.subr.mxu0 0.0
        %5309 = vmatpush2.msra.mxu0 0.0
        %5310 = vmatprep.subr.mxu0 0.0
        %5311 = vmatpush2.msra.mxu0 0.0
        %5312 = vmatprep.subr.mxu0 0.0
        %5313 = vmatpush2.msra.mxu0 0.0
        %5314 = vmatprep.subr.mxu0 0.0
        %5315 = vmatpush2.msra.mxu0 0.0
        %5316 = vmatprep.subr.mxu0 0.0
        %5317 = vmatpush2.msra.mxu0 0.0
        %5318 = vmatprep.subr.mxu0 0.0
        %5319 = vmatpush2.msra.mxu0 0.0
        %5320 = vmatprep.subr.mxu0 0.0
        %5321 = vmatpush2.msra.mxu0 0.0
        %5322 = vmatprep.subr.mxu0 0.0
        %5323 = vmatpush2.msra.mxu0 0.0
        %5324 = vmatprep.mubr.f32.mxu0 0.0
        %5325 = vmatmul.mubr.f32.gmra.mxu0 %v5165
        %v5326 = vpop.f32.mrf.mxu0
        %v5327 = vadd.f32 0.0, %v5326
        %v5328 = vpop.f32.mrf.mxu0
        %v5329 = vadd.f32 0.0, %v5328
        %5330 = vmatprep.mubr.f32.mxu0 0.0
        %5331 = vmatmul.mubr.f32.gmra.mxu0 %v5168
        %v5332 = vpop.f32.mrf.mxu0
        %v5333 = vadd.f32 0.0, %v5332
        %v5334 = vpop.f32.mrf.mxu0
        %v5335 = vadd.f32 0.0, %v5334
        %5336 = vmatprep.mubr.f32.mxu0 0.0
        %5337 = vmatmul.mubr.f32.gmra.mxu0 %v5171
        %v5338 = vpop.f32.mrf.mxu0
        %v5339 = vadd.f32 0.0, %v5338
        %v5340 = vpop.f32.mrf.mxu0
        %v5341 = vadd.f32 0.0, %v5340
        %5342 = vmatprep.mubr.f32.mxu0 0.0
        %5343 = vmatmul.mubr.f32.gmra.mxu0 %v5174
        %v5344 = vpop.f32.mrf.mxu0
        %v5345 = vadd.f32 0.0, %v5344
        %v5346 = vpop.f32.mrf.mxu0
        %v5347 = vadd.f32 0.0, %v5346
        %5348 = vmatprep.mubr.f32.mxu0 0.0
        %5349 = vmatmul.mubr.f32.gmra.mxu0 %v5177
        %v5350 = vpop.f32.mrf.mxu0
        %v5351 = vadd.f32 0.0, %v5350
        %v5352 = vpop.f32.mrf.mxu0
        %v5353 = vadd.f32 0.0, %v5352
        %5354 = vmatprep.mubr.f32.mxu0 0.0
        %5355 = vmatmul.mubr.f32.gmra.mxu0 %v5180
        %v5356 = vpop.f32.mrf.mxu0
        %v5357 = vadd.f32 0.0, %v5356
        %v5358 = vpop.f32.mrf.mxu0
        %v5359 = vadd.f32 0.0, %v5358
        %5360 = vmatprep.mubr.f32.mxu0 0.0
        %5361 = vmatmul.mubr.f32.gmra.mxu0 %v5183
        %v5362 = vpop.f32.mrf.mxu0
        %v5363 = vadd.f32 0.0, %v5362
        %v5364 = vpop.f32.mrf.mxu0
        %v5365 = vadd.f32 0.0, %v5364
        %5366 = vmatprep.mubr.f32.mxu0 0.0
        %5367 = vmatmul.mubr.f32.gmra.mxu0 %v5186
        %v5368 = vpop.f32.mrf.mxu0
        %v5369 = vadd.f32 0.0, %v5368
        %v5370 = vpop.f32.mrf.mxu0
        %v5371 = vadd.f32 0.0, %v5370
        %5372 = vmatprep.mubr.f32.mxu0 0.0
        %5373 = vmatmul.mubr.f32.gmra.mxu0 %v5189
        %v5374 = vpop.f32.mrf.mxu0
        %v5375 = vadd.f32 0.0, %v5374
        %v5376 = vpop.f32.mrf.mxu0
        %v5377 = vadd.f32 0.0, %v5376
        %5378 = vmatprep.mubr.f32.mxu0 0.0
        %5379 = vmatmul.mubr.f32.gmra.mxu0 %v5192
        %v5380 = vpop.f32.mrf.mxu0
        %v5381 = vadd.f32 0.0, %v5380
        %v5382 = vpop.f32.mrf.mxu0
        %v5383 = vadd.f32 0.0, %v5382
        %5384 = vmatprep.mubr.f32.mxu0 0.0
        %5385 = vmatmul.mubr.f32.gmra.mxu0 %v5195
        %v5386 = vpop.f32.mrf.mxu0
        %v5387 = vadd.f32 0.0, %v5386
        %v5388 = vpop.f32.mrf.mxu0
        %v5389 = vadd.f32 0.0, %v5388
        %5390 = vmatprep.mubr.f32.mxu0 0.0
        %5391 = vmatmul.mubr.f32.gmra.mxu0 %v5198
        %v5392 = vpop.f32.mrf.mxu0
        %v5393 = vadd.f32 0.0, %v5392
        %v5394 = vpop.f32.mrf.mxu0
        %v5395 = vadd.f32 0.0, %v5394
        %5396 = vmatprep.mubr.f32.mxu0 0.0
        %5397 = vmatmul.mubr.f32.gmra.mxu0 %v5201
        %v5398 = vpop.f32.mrf.mxu0
        %v5399 = vadd.f32 0.0, %v5398
        %v5400 = vpop.f32.mrf.mxu0
        %v5401 = vadd.f32 0.0, %v5400
        %5402 = vmatprep.mubr.f32.mxu0 0.0
        %5403 = vmatmul.mubr.f32.gmra.mxu0 %v5204
        %v5404 = vpop.f32.mrf.mxu0
        %v5405 = vadd.f32 0.0, %v5404
        %v5406 = vpop.f32.mrf.mxu0
        %v5407 = vadd.f32 0.0, %v5406
        %5408 = vmatprep.mubr.f32.mxu0 0.0
        %5409 = vmatmul.mubr.f32.gmra.mxu0 %v5207
        %v5410 = vpop.f32.mrf.mxu0
        %v5411 = vadd.f32 0.0, %v5410
        %v5412 = vpop.f32.mrf.mxu0
        %v5413 = vadd.f32 0.0, %v5412
        %5414 = vmatprep.mubr.f32.mxu0 0.0
        %5415 = vmatmul.mubr.f32.gmra.mxu0 %v5210
        %v5416 = vpop.f32.mrf.mxu0
        %v5417 = vadd.f32 0.0, %v5416
        %v5418 = vpop.f32.mrf.mxu0
        %v5419 = vadd.f32 0.0, %v5418
        %5420 = vmatprep.mubr.f32.mxu0 0.0
        %5421 = vmatmul.mubr.f32.gmra.mxu0 %v5213
        %v5422 = vpop.f32.mrf.mxu0
        %v5423 = vadd.f32 0.0, %v5422
        %v5424 = vpop.f32.mrf.mxu0
        %v5425 = vadd.f32 0.0, %v5424
        %5426 = vmatprep.mubr.f32.mxu0 0.0
        %5427 = vmatmul.mubr.f32.gmra.mxu0 %v5216
        %v5428 = vpop.f32.mrf.mxu0
        %v5429 = vadd.f32 0.0, %v5428
        %v5430 = vpop.f32.mrf.mxu0
        %v5431 = vadd.f32 0.0, %v5430
        %5432 = vmatprep.mubr.f32.mxu0 0.0
        %5433 = vmatmul.mubr.f32.gmra.mxu0 %v5219
        %v5434 = vpop.f32.mrf.mxu0
        %v5435 = vadd.f32 0.0, %v5434
        %v5436 = vpop.f32.mrf.mxu0
        %v5437 = vadd.f32 0.0, %v5436
        %5438 = vmatprep.mubr.f32.mxu0 0.0
        %5439 = vmatmul.mubr.f32.gmra.mxu0 %v5222
        %v5440 = vpop.f32.mrf.mxu0
        %v5441 = vadd.f32 0.0, %v5440
        %v5442 = vpop.f32.mrf.mxu0
        %v5443 = vadd.f32 0.0, %v5442
        %5444 = vmatprep.mubr.f32.mxu0 0.0
        %5445 = vmatmul.mubr.f32.gmra.mxu0 %v5225
        %v5446 = vpop.f32.mrf.mxu0
        %v5447 = vadd.f32 0.0, %v5446
        %v5448 = vpop.f32.mrf.mxu0
        %v5449 = vadd.f32 0.0, %v5448
        %5450 = vmatprep.mubr.f32.mxu0 0.0
        %5451 = vmatmul.mubr.f32.gmra.mxu0 %v5228
        %v5452 = vpop.f32.mrf.mxu0
        %v5453 = vadd.f32 0.0, %v5452
        %v5454 = vpop.f32.mrf.mxu0
        %v5455 = vadd.f32 0.0, %v5454
        %5456 = vmatprep.mubr.f32.mxu0 0.0
        %5457 = vmatmul.mubr.f32.gmra.mxu0 %v5231
        %v5458 = vpop.f32.mrf.mxu0
        %v5459 = vadd.f32 0.0, %v5458
        %v5460 = vpop.f32.mrf.mxu0
        %v5461 = vadd.f32 0.0, %v5460
        %5462 = vmatprep.mubr.f32.mxu0 0.0
        %5463 = vmatmul.mubr.f32.gmra.mxu0 %v5234
        %v5464 = vpop.f32.mrf.mxu0
        %v5465 = vadd.f32 0.0, %v5464
        %v5466 = vpop.f32.mrf.mxu0
        %v5467 = vadd.f32 0.0, %v5466
        %5468 = vmatprep.mubr.f32.mxu0 0.0
        %5469 = vmatmul.mubr.f32.gmra.mxu0 %v5237
        %v5470 = vpop.f32.mrf.mxu0
        %v5471 = vadd.f32 0.0, %v5470
        %v5472 = vpop.f32.mrf.mxu0
        %v5473 = vadd.f32 0.0, %v5472
        %5474 = vmatprep.mubr.f32.mxu0 0.0
        %5475 = vmatmul.mubr.f32.gmra.mxu0 %v5240
        %v5476 = vpop.f32.mrf.mxu0
        %v5477 = vadd.f32 0.0, %v5476
        %v5478 = vpop.f32.mrf.mxu0
        %v5479 = vadd.f32 0.0, %v5478
        %5480 = vmatprep.mubr.f32.mxu0 0.0
        %5481 = vmatmul.mubr.f32.gmra.mxu0 %v5243
        %v5482 = vpop.f32.mrf.mxu0
        %v5483 = vadd.f32 0.0, %v5482
        %v5484 = vpop.f32.mrf.mxu0
        %v5485 = vadd.f32 0.0, %v5484
        %5486 = vmatprep.mubr.f32.mxu0 0.0
        %5487 = vmatmul.mubr.f32.gmra.mxu0 %v5246
        %v5488 = vpop.f32.mrf.mxu0
        %v5489 = vadd.f32 0.0, %v5488
        %v5490 = vpop.f32.mrf.mxu0
        %v5491 = vadd.f32 0.0, %v5490
        %5492 = vmatprep.mubr.f32.mxu0 0.0
        %5493 = vmatmul.mubr.f32.gmra.mxu0 %v5249
        %v5494 = vpop.f32.mrf.mxu0
        %v5495 = vadd.f32 0.0, %v5494
        %v5496 = vpop.f32.mrf.mxu0
        %v5497 = vadd.f32 0.0, %v5496
        %5498 = vmatprep.mubr.f32.mxu0 0.0
        %5499 = vmatmul.mubr.f32.gmra.mxu0 %v5252
        %v5500 = vpop.f32.mrf.mxu0
        %v5501 = vadd.f32 0.0, %v5500
        %v5502 = vpop.f32.mrf.mxu0
        %v5503 = vadd.f32 0.0, %v5502
        %5504 = vmatprep.mubr.f32.mxu0 0.0
        %5505 = vmatmul.mubr.f32.gmra.mxu0 %v5255
        %v5506 = vpop.f32.mrf.mxu0
        %v5507 = vadd.f32 0.0, %v5506
        %v5508 = vpop.f32.mrf.mxu0
        %v5509 = vadd.f32 0.0, %v5508
        %5510 = vmatprep.mubr.f32.mxu0 0.0
        %5511 = vmatmul.mubr.f32.gmra.mxu0 %v5258
        %v5512 = vpop.f32.mrf.mxu0
        %v5513 = vadd.f32 0.0, %v5512
        %v5514 = vpop.f32.mrf.mxu0
        %v5515 = vadd.f32 0.0, %v5514
        %5516 = vdwg.mxu0
        %5517 = vmatprep.subr.mxu0 0.0
        %5518 = vmatpush1.msra.mxu0 0.0
        %5519 = vmatprep.subr.mxu0 0.0
        %5520 = vmatpush1.msra.mxu0 0.0
        %5521 = vmatprep.subr.mxu0 0.0
        %5522 = vmatpush1.msra.mxu0 0.0
        %5523 = vmatprep.subr.mxu0 0.0
        %5524 = vmatpush1.msra.mxu0 0.0
        %5525 = vmatprep.subr.mxu0 0.0
        %5526 = vmatpush1.msra.mxu0 0.0
        %5527 = vmatprep.subr.mxu0 0.0
        %5528 = vmatpush1.msra.mxu0 0.0
        %5529 = vmatprep.subr.mxu0 0.0
        %5530 = vmatpush1.msra.mxu0 0.0
        %5531 = vmatprep.subr.mxu0 0.0
        %5532 = vmatpush1.msra.mxu0 0.0
        %5533 = vmatprep.subr.mxu0 0.0
        %5534 = vmatpush1.msra.mxu0 0.0
        %5535 = vmatprep.subr.mxu0 0.0
        %5536 = vmatpush1.msra.mxu0 0.0
        %5537 = vmatprep.subr.mxu0 0.0
        %5538 = vmatpush1.msra.mxu0 0.0
        %5539 = vmatprep.subr.mxu0 0.0
        %5540 = vmatpush1.msra.mxu0 0.0
        %5541 = vmatprep.subr.mxu0 %v613
        %5542 = vmatpush1.msra.mxu0 %v612
        %5543 = vmatprep.subr.mxu0 %v605
        %5544 = vmatpush1.msra.mxu0 %v604
        %5545 = vmatprep.subr.mxu0 %v597
        %5546 = vmatpush1.msra.mxu0 %v596
        %5547 = vmatprep.subr.mxu0 %v589
        %5548 = vmatpush1.msra.mxu0 %v588
        %5549 = vmatprep.subr.mxu0 0.0
        %5550 = vmatpush2.msra.mxu0 0.0
        %5551 = vmatprep.subr.mxu0 0.0
        %5552 = vmatpush2.msra.mxu0 0.0
        %5553 = vmatprep.subr.mxu0 0.0
        %5554 = vmatpush2.msra.mxu0 0.0
        %5555 = vmatprep.subr.mxu0 0.0
        %5556 = vmatpush2.msra.mxu0 0.0
        %5557 = vmatprep.subr.mxu0 0.0
        %5558 = vmatpush2.msra.mxu0 0.0
        %5559 = vmatprep.subr.mxu0 0.0
        %5560 = vmatpush2.msra.mxu0 0.0
        %5561 = vmatprep.subr.mxu0 0.0
        %5562 = vmatpush2.msra.mxu0 0.0
        %5563 = vmatprep.subr.mxu0 0.0
        %5564 = vmatpush2.msra.mxu0 0.0
        %5565 = vmatprep.subr.mxu0 0.0
        %5566 = vmatpush2.msra.mxu0 0.0
        %5567 = vmatprep.subr.mxu0 0.0
        %5568 = vmatpush2.msra.mxu0 0.0
        %5569 = vmatprep.subr.mxu0 0.0
        %5570 = vmatpush2.msra.mxu0 0.0
        %5571 = vmatprep.subr.mxu0 0.0
        %5572 = vmatpush2.msra.mxu0 0.0
        %5573 = vmatprep.subr.mxu0 0.0
        %5574 = vmatpush2.msra.mxu0 0.0
        %5575 = vmatprep.subr.mxu0 0.0
        %5576 = vmatpush2.msra.mxu0 0.0
        %5577 = vmatprep.subr.mxu0 0.0
        %5578 = vmatpush2.msra.mxu0 0.0
        %5579 = vmatprep.subr.mxu0 0.0
        %5580 = vmatpush2.msra.mxu0 0.0
        %5581 = vmatprep.mubr.f32.mxu0 0.0
        %5582 = vmatmul.mubr.f32.gmra.mxu0 %v5165
        %v5583 = vpop.f32.mrf.mxu0
        %v5584 = vadd.f32 0.0, %v5583
        %v5585 = vpop.f32.mrf.mxu0
        %v5586 = vadd.f32 0.0, %v5585
        %5587 = vmatprep.mubr.f32.mxu0 0.0
        %5588 = vmatmul.mubr.f32.gmra.mxu0 %v5168
        %v5589 = vpop.f32.mrf.mxu0
        %v5590 = vadd.f32 0.0, %v5589
        %v5591 = vpop.f32.mrf.mxu0
        %v5592 = vadd.f32 0.0, %v5591
        %5593 = vmatprep.mubr.f32.mxu0 0.0
        %5594 = vmatmul.mubr.f32.gmra.mxu0 %v5171
        %v5595 = vpop.f32.mrf.mxu0
        %v5596 = vadd.f32 0.0, %v5595
        %v5597 = vpop.f32.mrf.mxu0
        %v5598 = vadd.f32 0.0, %v5597
        %5599 = vmatprep.mubr.f32.mxu0 0.0
        %5600 = vmatmul.mubr.f32.gmra.mxu0 %v5174
        %v5601 = vpop.f32.mrf.mxu0
        %v5602 = vadd.f32 0.0, %v5601
        %v5603 = vpop.f32.mrf.mxu0
        %v5604 = vadd.f32 0.0, %v5603
        %5605 = vmatprep.mubr.f32.mxu0 0.0
        %5606 = vmatmul.mubr.f32.gmra.mxu0 %v5177
        %v5607 = vpop.f32.mrf.mxu0
        %v5608 = vadd.f32 0.0, %v5607
        %v5609 = vpop.f32.mrf.mxu0
        %v5610 = vadd.f32 0.0, %v5609
        %5611 = vmatprep.mubr.f32.mxu0 0.0
        %5612 = vmatmul.mubr.f32.gmra.mxu0 %v5180
        %v5613 = vpop.f32.mrf.mxu0
        %v5614 = vadd.f32 0.0, %v5613
        %v5615 = vpop.f32.mrf.mxu0
        %v5616 = vadd.f32 0.0, %v5615
        %5617 = vmatprep.mubr.f32.mxu0 0.0
        %5618 = vmatmul.mubr.f32.gmra.mxu0 %v5183
        %v5619 = vpop.f32.mrf.mxu0
        %v5620 = vadd.f32 0.0, %v5619
        %v5621 = vpop.f32.mrf.mxu0
        %v5622 = vadd.f32 0.0, %v5621
        %5623 = vmatprep.mubr.f32.mxu0 0.0
        %5624 = vmatmul.mubr.f32.gmra.mxu0 %v5186
        %v5625 = vpop.f32.mrf.mxu0
        %v5626 = vadd.f32 0.0, %v5625
        %v5627 = vpop.f32.mrf.mxu0
        %v5628 = vadd.f32 0.0, %v5627
        %5629 = vmatprep.mubr.f32.mxu0 0.0
        %5630 = vmatmul.mubr.f32.gmra.mxu0 %v5189
        %v5631 = vpop.f32.mrf.mxu0
        %v5632 = vadd.f32 0.0, %v5631
        %v5633 = vpop.f32.mrf.mxu0
        %v5634 = vadd.f32 0.0, %v5633
        %5635 = vmatprep.mubr.f32.mxu0 0.0
        %5636 = vmatmul.mubr.f32.gmra.mxu0 %v5192
        %v5637 = vpop.f32.mrf.mxu0
        %v5638 = vadd.f32 0.0, %v5637
        %v5639 = vpop.f32.mrf.mxu0
        %v5640 = vadd.f32 0.0, %v5639
        %5641 = vmatprep.mubr.f32.mxu0 0.0
        %5642 = vmatmul.mubr.f32.gmra.mxu0 %v5195
        %v5643 = vpop.f32.mrf.mxu0
        %v5644 = vadd.f32 0.0, %v5643
        %v5645 = vpop.f32.mrf.mxu0
        %v5646 = vadd.f32 0.0, %v5645
        %5647 = vmatprep.mubr.f32.mxu0 0.0
        %5648 = vmatmul.mubr.f32.gmra.mxu0 %v5198
        %v5649 = vpop.f32.mrf.mxu0
        %v5650 = vadd.f32 0.0, %v5649
        %v5651 = vpop.f32.mrf.mxu0
        %v5652 = vadd.f32 0.0, %v5651
        %5653 = vmatprep.mubr.f32.mxu0 0.0
        %5654 = vmatmul.mubr.f32.gmra.mxu0 %v5201
        %v5655 = vpop.f32.mrf.mxu0
        %v5656 = vadd.f32 0.0, %v5655
        %v5657 = vpop.f32.mrf.mxu0
        %v5658 = vadd.f32 0.0, %v5657
        %5659 = vmatprep.mubr.f32.mxu0 0.0
        %5660 = vmatmul.mubr.f32.gmra.mxu0 %v5204
        %v5661 = vpop.f32.mrf.mxu0
        %v5662 = vadd.f32 0.0, %v5661
        %v5663 = vpop.f32.mrf.mxu0
        %v5664 = vadd.f32 0.0, %v5663
        %5665 = vmatprep.mubr.f32.mxu0 0.0
        %5666 = vmatmul.mubr.f32.gmra.mxu0 %v5207
        %v5667 = vpop.f32.mrf.mxu0
        %v5668 = vadd.f32 0.0, %v5667
        %v5669 = vpop.f32.mrf.mxu0
        %v5670 = vadd.f32 0.0, %v5669
        %5671 = vmatprep.mubr.f32.mxu0 0.0
        %5672 = vmatmul.mubr.f32.gmra.mxu0 %v5210
        %v5673 = vpop.f32.mrf.mxu0
        %v5674 = vadd.f32 0.0, %v5673
        %v5675 = vpop.f32.mrf.mxu0
        %v5676 = vadd.f32 0.0, %v5675
        %5677 = vmatprep.mubr.f32.mxu0 0.0
        %5678 = vmatmul.mubr.f32.gmra.mxu0 %v5213
        %v5679 = vpop.f32.mrf.mxu0
        %v5680 = vadd.f32 0.0, %v5679
        %v5681 = vpop.f32.mrf.mxu0
        %v5682 = vadd.f32 0.0, %v5681
        %5683 = vmatprep.mubr.f32.mxu0 0.0
        %5684 = vmatmul.mubr.f32.gmra.mxu0 %v5216
        %v5685 = vpop.f32.mrf.mxu0
        %v5686 = vadd.f32 0.0, %v5685
        %v5687 = vpop.f32.mrf.mxu0
        %v5688 = vadd.f32 0.0, %v5687
        %5689 = vmatprep.mubr.f32.mxu0 0.0
        %5690 = vmatmul.mubr.f32.gmra.mxu0 %v5219
        %v5691 = vpop.f32.mrf.mxu0
        %v5692 = vadd.f32 0.0, %v5691
        %v5693 = vpop.f32.mrf.mxu0
        %v5694 = vadd.f32 0.0, %v5693
        %5695 = vmatprep.mubr.f32.mxu0 0.0
        %5696 = vmatmul.mubr.f32.gmra.mxu0 %v5222
        %v5697 = vpop.f32.mrf.mxu0
        %v5698 = vadd.f32 0.0, %v5697
        %v5699 = vpop.f32.mrf.mxu0
        %v5700 = vadd.f32 0.0, %v5699
        %5701 = vmatprep.mubr.f32.mxu0 0.0
        %5702 = vmatmul.mubr.f32.gmra.mxu0 %v5225
        %v5703 = vpop.f32.mrf.mxu0
        %v5704 = vadd.f32 0.0, %v5703
        %v5705 = vpop.f32.mrf.mxu0
        %v5706 = vadd.f32 0.0, %v5705
        %5707 = vmatprep.mubr.f32.mxu0 0.0
        %5708 = vmatmul.mubr.f32.gmra.mxu0 %v5228
        %v5709 = vpop.f32.mrf.mxu0
        %v5710 = vadd.f32 0.0, %v5709
        %v5711 = vpop.f32.mrf.mxu0
        %v5712 = vadd.f32 0.0, %v5711
        %5713 = vmatprep.mubr.f32.mxu0 0.0
        %5714 = vmatmul.mubr.f32.gmra.mxu0 %v5231
        %v5715 = vpop.f32.mrf.mxu0
        %v5716 = vadd.f32 0.0, %v5715
        %v5717 = vpop.f32.mrf.mxu0
        %v5718 = vadd.f32 0.0, %v5717
        %5719 = vmatprep.mubr.f32.mxu0 0.0
        %5720 = vmatmul.mubr.f32.gmra.mxu0 %v5234
        %v5721 = vpop.f32.mrf.mxu0
        %v5722 = vadd.f32 0.0, %v5721
        %v5723 = vpop.f32.mrf.mxu0
        %v5724 = vadd.f32 0.0, %v5723
        %5725 = vmatprep.mubr.f32.mxu0 0.0
        %5726 = vmatmul.mubr.f32.gmra.mxu0 %v5237
        %v5727 = vpop.f32.mrf.mxu0
        %v5728 = vadd.f32 0.0, %v5727
        %v5729 = vpop.f32.mrf.mxu0
        %v5730 = vadd.f32 0.0, %v5729
        %5731 = vmatprep.mubr.f32.mxu0 0.0
        %5732 = vmatmul.mubr.f32.gmra.mxu0 %v5240
        %v5733 = vpop.f32.mrf.mxu0
        %v5734 = vadd.f32 0.0, %v5733
        %v5735 = vpop.f32.mrf.mxu0
        %v5736 = vadd.f32 0.0, %v5735
        %5737 = vmatprep.mubr.f32.mxu0 0.0
        %5738 = vmatmul.mubr.f32.gmra.mxu0 %v5243
        %v5739 = vpop.f32.mrf.mxu0
        %v5740 = vadd.f32 0.0, %v5739
        %v5741 = vpop.f32.mrf.mxu0
        %v5742 = vadd.f32 0.0, %v5741
        %5743 = vmatprep.mubr.f32.mxu0 0.0
        %5744 = vmatmul.mubr.f32.gmra.mxu0 %v5246
        %v5745 = vpop.f32.mrf.mxu0
        %v5746 = vadd.f32 0.0, %v5745
        %v5747 = vpop.f32.mrf.mxu0
        %v5748 = vadd.f32 0.0, %v5747
        %5749 = vmatprep.mubr.f32.mxu0 0.0
        %5750 = vmatmul.mubr.f32.gmra.mxu0 %v5249
        %v5751 = vpop.f32.mrf.mxu0
        %v5752 = vadd.f32 0.0, %v5751
        %v5753 = vpop.f32.mrf.mxu0
        %v5754 = vadd.f32 0.0, %v5753
        %5755 = vmatprep.mubr.f32.mxu0 0.0
        %5756 = vmatmul.mubr.f32.gmra.mxu0 %v5252
        %v5757 = vpop.f32.mrf.mxu0
        %v5758 = vadd.f32 0.0, %v5757
        %v5759 = vpop.f32.mrf.mxu0
        %v5760 = vadd.f32 0.0, %v5759
        %5761 = vmatprep.mubr.f32.mxu0 0.0
        %5762 = vmatmul.mubr.f32.gmra.mxu0 %v5255
        %v5763 = vpop.f32.mrf.mxu0
        %v5764 = vadd.f32 0.0, %v5763
        %v5765 = vpop.f32.mrf.mxu0
        %v5766 = vadd.f32 0.0, %v5765
        %5767 = vmatprep.mubr.f32.mxu0 0.0
        %5768 = vmatmul.mubr.f32.gmra.mxu0 %v5258
        %v5769 = vpop.f32.mrf.mxu0
        %v5770 = vadd.f32 0.0, %v5769
        %v5771 = vpop.f32.mrf.mxu0
        %v5772 = vadd.f32 0.0, %v5771
        %5773 = vdwg.mxu0
        %5774 = vmatprep.subr.mxu0 0.0
        %5775 = vmatpush1.msra.mxu0 0.0
        %5776 = vmatprep.subr.mxu0 0.0
        %5777 = vmatpush1.msra.mxu0 0.0
        %5778 = vmatprep.subr.mxu0 0.0
        %5779 = vmatpush1.msra.mxu0 0.0
        %5780 = vmatprep.subr.mxu0 0.0
        %5781 = vmatpush1.msra.mxu0 0.0
        %5782 = vmatprep.subr.mxu0 0.0
        %5783 = vmatpush1.msra.mxu0 0.0
        %5784 = vmatprep.subr.mxu0 0.0
        %5785 = vmatpush1.msra.mxu0 0.0
        %5786 = vmatprep.subr.mxu0 0.0
        %5787 = vmatpush1.msra.mxu0 0.0
        %5788 = vmatprep.subr.mxu0 0.0
        %5789 = vmatpush1.msra.mxu0 0.0
        %5790 = vmatprep.subr.mxu0 0.0
        %5791 = vmatpush1.msra.mxu0 0.0
        %5792 = vmatprep.subr.mxu0 0.0
        %5793 = vmatpush1.msra.mxu0 0.0
        %5794 = vmatprep.subr.mxu0 0.0
        %5795 = vmatpush1.msra.mxu0 0.0
        %5796 = vmatprep.subr.mxu0 0.0
        %5797 = vmatpush1.msra.mxu0 0.0
        %5798 = vmatprep.subr.mxu0 %v615
        %5799 = vmatpush1.msra.mxu0 %v614
        %5800 = vmatprep.subr.mxu0 %v607
        %5801 = vmatpush1.msra.mxu0 %v606
        %5802 = vmatprep.subr.mxu0 %v599
        %5803 = vmatpush1.msra.mxu0 %v598
        %5804 = vmatprep.subr.mxu0 %v591
        %5805 = vmatpush1.msra.mxu0 %v590
        %5806 = vmatprep.subr.mxu0 0.0
        %5807 = vmatpush2.msra.mxu0 0.0
        %5808 = vmatprep.subr.mxu0 0.0
        %5809 = vmatpush2.msra.mxu0 0.0
        %5810 = vmatprep.subr.mxu0 0.0
        %5811 = vmatpush2.msra.mxu0 0.0
        %5812 = vmatprep.subr.mxu0 0.0
        %5813 = vmatpush2.msra.mxu0 0.0
        %5814 = vmatprep.subr.mxu0 0.0
        %5815 = vmatpush2.msra.mxu0 0.0
        %5816 = vmatprep.subr.mxu0 0.0
        %5817 = vmatpush2.msra.mxu0 0.0
        %5818 = vmatprep.subr.mxu0 0.0
        %5819 = vmatpush2.msra.mxu0 0.0
        %5820 = vmatprep.subr.mxu0 0.0
        %5821 = vmatpush2.msra.mxu0 0.0
        %5822 = vmatprep.subr.mxu0 0.0
        %5823 = vmatpush2.msra.mxu0 0.0
        %5824 = vmatprep.subr.mxu0 0.0
        %5825 = vmatpush2.msra.mxu0 0.0
        %5826 = vmatprep.subr.mxu0 0.0
        %5827 = vmatpush2.msra.mxu0 0.0
        %5828 = vmatprep.subr.mxu0 0.0
        %5829 = vmatpush2.msra.mxu0 0.0
        %5830 = vmatprep.subr.mxu0 0.0
        %5831 = vmatpush2.msra.mxu0 0.0
        %5832 = vmatprep.subr.mxu0 0.0
        %5833 = vmatpush2.msra.mxu0 0.0
        %5834 = vmatprep.subr.mxu0 0.0
        %5835 = vmatpush2.msra.mxu0 0.0
        %5836 = vmatprep.subr.mxu0 0.0
        %5837 = vmatpush2.msra.mxu0 0.0
        %5838 = vmatprep.mubr.f32.mxu0 0.0
        %5839 = vmatmul.mubr.f32.gmra.mxu0 %v5165
        %v5840 = vpop.f32.mrf.mxu0
        %v5841 = vadd.f32 0.0, %v5840
        %v5842 = vpop.f32.mrf.mxu0
        %v5843 = vadd.f32 0.0, %v5842
        %5844 = vmatprep.mubr.f32.mxu0 0.0
        %5845 = vmatmul.mubr.f32.gmra.mxu0 %v5168
        %v5846 = vpop.f32.mrf.mxu0
        %v5847 = vadd.f32 0.0, %v5846
        %v5848 = vpop.f32.mrf.mxu0
        %v5849 = vadd.f32 0.0, %v5848
        %5850 = vmatprep.mubr.f32.mxu0 0.0
        %5851 = vmatmul.mubr.f32.gmra.mxu0 %v5171
        %v5852 = vpop.f32.mrf.mxu0
        %v5853 = vadd.f32 0.0, %v5852
        %v5854 = vpop.f32.mrf.mxu0
        %v5855 = vadd.f32 0.0, %v5854
        %5856 = vmatprep.mubr.f32.mxu0 0.0
        %5857 = vmatmul.mubr.f32.gmra.mxu0 %v5174
        %v5858 = vpop.f32.mrf.mxu0
        %v5859 = vadd.f32 0.0, %v5858
        %v5860 = vpop.f32.mrf.mxu0
        %v5861 = vadd.f32 0.0, %v5860
        %5862 = vmatprep.mubr.f32.mxu0 0.0
        %5863 = vmatmul.mubr.f32.gmra.mxu0 %v5177
        %v5864 = vpop.f32.mrf.mxu0
        %v5865 = vadd.f32 0.0, %v5864
        %v5866 = vpop.f32.mrf.mxu0
        %v5867 = vadd.f32 0.0, %v5866
        %5868 = vmatprep.mubr.f32.mxu0 0.0
        %5869 = vmatmul.mubr.f32.gmra.mxu0 %v5180
        %v5870 = vpop.f32.mrf.mxu0
        %v5871 = vadd.f32 0.0, %v5870
        %v5872 = vpop.f32.mrf.mxu0
        %v5873 = vadd.f32 0.0, %v5872
        %5874 = vmatprep.mubr.f32.mxu0 0.0
        %5875 = vmatmul.mubr.f32.gmra.mxu0 %v5183
        %v5876 = vpop.f32.mrf.mxu0
        %v5877 = vadd.f32 0.0, %v5876
        %v5878 = vpop.f32.mrf.mxu0
        %v5879 = vadd.f32 0.0, %v5878
        %5880 = vmatprep.mubr.f32.mxu0 0.0
        %5881 = vmatmul.mubr.f32.gmra.mxu0 %v5186
        %v5882 = vpop.f32.mrf.mxu0
        %v5883 = vadd.f32 0.0, %v5882
        %v5884 = vpop.f32.mrf.mxu0
        %v5885 = vadd.f32 0.0, %v5884
        %5886 = vmatprep.mubr.f32.mxu0 0.0
        %5887 = vmatmul.mubr.f32.gmra.mxu0 %v5189
        %v5888 = vpop.f32.mrf.mxu0
        %v5889 = vadd.f32 0.0, %v5888
        %v5890 = vpop.f32.mrf.mxu0
        %v5891 = vadd.f32 0.0, %v5890
        %5892 = vmatprep.mubr.f32.mxu0 0.0
        %5893 = vmatmul.mubr.f32.gmra.mxu0 %v5192
        %v5894 = vpop.f32.mrf.mxu0
        %v5895 = vadd.f32 0.0, %v5894
        %v5896 = vpop.f32.mrf.mxu0
        %v5897 = vadd.f32 0.0, %v5896
        %5898 = vmatprep.mubr.f32.mxu0 0.0
        %5899 = vmatmul.mubr.f32.gmra.mxu0 %v5195
        %v5900 = vpop.f32.mrf.mxu0
        %v5901 = vadd.f32 0.0, %v5900
        %v5902 = vpop.f32.mrf.mxu0
        %v5903 = vadd.f32 0.0, %v5902
        %5904 = vmatprep.mubr.f32.mxu0 0.0
        %5905 = vmatmul.mubr.f32.gmra.mxu0 %v5198
        %v5906 = vpop.f32.mrf.mxu0
        %v5907 = vadd.f32 0.0, %v5906
        %v5908 = vpop.f32.mrf.mxu0
        %v5909 = vadd.f32 0.0, %v5908
        %5910 = vmatprep.mubr.f32.mxu0 0.0
        %5911 = vmatmul.mubr.f32.gmra.mxu0 %v5201
        %v5912 = vpop.f32.mrf.mxu0
        %v5913 = vadd.f32 0.0, %v5912
        %v5914 = vpop.f32.mrf.mxu0
        %v5915 = vadd.f32 0.0, %v5914
        %5916 = vmatprep.mubr.f32.mxu0 0.0
        %5917 = vmatmul.mubr.f32.gmra.mxu0 %v5204
        %v5918 = vpop.f32.mrf.mxu0
        %v5919 = vadd.f32 0.0, %v5918
        %v5920 = vpop.f32.mrf.mxu0
        %v5921 = vadd.f32 0.0, %v5920
        %5922 = vmatprep.mubr.f32.mxu0 0.0
        %5923 = vmatmul.mubr.f32.gmra.mxu0 %v5207
        %v5924 = vpop.f32.mrf.mxu0
        %v5925 = vadd.f32 0.0, %v5924
        %v5926 = vpop.f32.mrf.mxu0
        %v5927 = vadd.f32 0.0, %v5926
        %5928 = vmatprep.mubr.f32.mxu0 0.0
        %5929 = vmatmul.mubr.f32.gmra.mxu0 %v5210
        %v5930 = vpop.f32.mrf.mxu0
        %v5931 = vadd.f32 0.0, %v5930
        %v5932 = vpop.f32.mrf.mxu0
        %v5933 = vadd.f32 0.0, %v5932
        %5934 = vmatprep.mubr.f32.mxu0 0.0
        %5935 = vmatmul.mubr.f32.gmra.mxu0 %v5213
        %v5936 = vpop.f32.mrf.mxu0
        %v5937 = vadd.f32 0.0, %v5936
        %v5938 = vpop.f32.mrf.mxu0
        %v5939 = vadd.f32 0.0, %v5938
        %5940 = vmatprep.mubr.f32.mxu0 0.0
        %5941 = vmatmul.mubr.f32.gmra.mxu0 %v5216
        %v5942 = vpop.f32.mrf.mxu0
        %v5943 = vadd.f32 0.0, %v5942
        %v5944 = vpop.f32.mrf.mxu0
        %v5945 = vadd.f32 0.0, %v5944
        %5946 = vmatprep.mubr.f32.mxu0 0.0
        %5947 = vmatmul.mubr.f32.gmra.mxu0 %v5219
        %v5948 = vpop.f32.mrf.mxu0
        %v5949 = vadd.f32 0.0, %v5948
        %v5950 = vpop.f32.mrf.mxu0
        %v5951 = vadd.f32 0.0, %v5950
        %5952 = vmatprep.mubr.f32.mxu0 0.0
        %5953 = vmatmul.mubr.f32.gmra.mxu0 %v5222
        %v5954 = vpop.f32.mrf.mxu0
        %v5955 = vadd.f32 0.0, %v5954
        %v5956 = vpop.f32.mrf.mxu0
        %v5957 = vadd.f32 0.0, %v5956
        %5958 = vmatprep.mubr.f32.mxu0 0.0
        %5959 = vmatmul.mubr.f32.gmra.mxu0 %v5225
        %v5960 = vpop.f32.mrf.mxu0
        %v5961 = vadd.f32 0.0, %v5960
        %v5962 = vpop.f32.mrf.mxu0
        %v5963 = vadd.f32 0.0, %v5962
        %5964 = vmatprep.mubr.f32.mxu0 0.0
        %5965 = vmatmul.mubr.f32.gmra.mxu0 %v5228
        %v5966 = vpop.f32.mrf.mxu0
        %v5967 = vadd.f32 0.0, %v5966
        %v5968 = vpop.f32.mrf.mxu0
        %v5969 = vadd.f32 0.0, %v5968
        %5970 = vmatprep.mubr.f32.mxu0 0.0
        %5971 = vmatmul.mubr.f32.gmra.mxu0 %v5231
        %v5972 = vpop.f32.mrf.mxu0
        %v5973 = vadd.f32 0.0, %v5972
        %v5974 = vpop.f32.mrf.mxu0
        %v5975 = vadd.f32 0.0, %v5974
        %5976 = vmatprep.mubr.f32.mxu0 0.0
        %5977 = vmatmul.mubr.f32.gmra.mxu0 %v5234
        %v5978 = vpop.f32.mrf.mxu0
        %v5979 = vadd.f32 0.0, %v5978
        %v5980 = vpop.f32.mrf.mxu0
        %v5981 = vadd.f32 0.0, %v5980
        %5982 = vmatprep.mubr.f32.mxu0 0.0
        %5983 = vmatmul.mubr.f32.gmra.mxu0 %v5237
        %v5984 = vpop.f32.mrf.mxu0
        %v5985 = vadd.f32 0.0, %v5984
        %v5986 = vpop.f32.mrf.mxu0
        %v5987 = vadd.f32 0.0, %v5986
        %5988 = vmatprep.mubr.f32.mxu0 0.0
        %5989 = vmatmul.mubr.f32.gmra.mxu0 %v5240
        %v5990 = vpop.f32.mrf.mxu0
        %v5991 = vadd.f32 0.0, %v5990
        %v5992 = vpop.f32.mrf.mxu0
        %v5993 = vadd.f32 0.0, %v5992
        %5994 = vmatprep.mubr.f32.mxu0 0.0
        %5995 = vmatmul.mubr.f32.gmra.mxu0 %v5243
        %v5996 = vpop.f32.mrf.mxu0
        %v5997 = vadd.f32 0.0, %v5996
        %v5998 = vpop.f32.mrf.mxu0
        %v5999 = vadd.f32 0.0, %v5998
        %6000 = vmatprep.mubr.f32.mxu0 0.0
        %6001 = vmatmul.mubr.f32.gmra.mxu0 %v5246
        %v6002 = vpop.f32.mrf.mxu0
        %v6003 = vadd.f32 0.0, %v6002
        %v6004 = vpop.f32.mrf.mxu0
        %v6005 = vadd.f32 0.0, %v6004
        %6006 = vmatprep.mubr.f32.mxu0 0.0
        %6007 = vmatmul.mubr.f32.gmra.mxu0 %v5249
        %v6008 = vpop.f32.mrf.mxu0
        %v6009 = vadd.f32 0.0, %v6008
        %v6010 = vpop.f32.mrf.mxu0
        %v6011 = vadd.f32 0.0, %v6010
        %6012 = vmatprep.mubr.f32.mxu0 0.0
        %6013 = vmatmul.mubr.f32.gmra.mxu0 %v5252
        %v6014 = vpop.f32.mrf.mxu0
        %v6015 = vadd.f32 0.0, %v6014
        %v6016 = vpop.f32.mrf.mxu0
        %v6017 = vadd.f32 0.0, %v6016
        %6018 = vmatprep.mubr.f32.mxu0 0.0
        %6019 = vmatmul.mubr.f32.gmra.mxu0 %v5255
        %v6020 = vpop.f32.mrf.mxu0
        %v6021 = vadd.f32 0.0, %v6020
        %v6022 = vpop.f32.mrf.mxu0
        %v6023 = vadd.f32 0.0, %v6022
        %6024 = vmatprep.mubr.f32.mxu0 0.0
        %6025 = vmatmul.mubr.f32.gmra.mxu0 %v5258
        %v6026 = vpop.f32.mrf.mxu0
        %v6027 = vadd.f32 0.0, %v6026
        %v6028 = vpop.f32.mrf.mxu0
        %v6029 = vadd.f32 0.0, %v6028
        %6030 = vdwg.mxu0
        %6031 = vmatprep.subr.mxu0 0.0
        %6032 = vmatpush1.msra.mxu0 0.0
        %6033 = vmatprep.subr.mxu0 0.0
        %6034 = vmatpush1.msra.mxu0 0.0
        %6035 = vmatprep.subr.mxu0 0.0
        %6036 = vmatpush1.msra.mxu0 0.0
        %6037 = vmatprep.subr.mxu0 0.0
        %6038 = vmatpush1.msra.mxu0 0.0
        %6039 = vmatprep.subr.mxu0 0.0
        %6040 = vmatpush1.msra.mxu0 0.0
        %6041 = vmatprep.subr.mxu0 0.0
        %6042 = vmatpush1.msra.mxu0 0.0
        %6043 = vmatprep.subr.mxu0 0.0
        %6044 = vmatpush1.msra.mxu0 0.0
        %6045 = vmatprep.subr.mxu0 0.0
        %6046 = vmatpush1.msra.mxu0 0.0
        %6047 = vmatprep.subr.mxu0 0.0
        %6048 = vmatpush1.msra.mxu0 0.0
        %6049 = vmatprep.subr.mxu0 0.0
        %6050 = vmatpush1.msra.mxu0 0.0
        %6051 = vmatprep.subr.mxu0 0.0
        %6052 = vmatpush1.msra.mxu0 0.0
        %6053 = vmatprep.subr.mxu0 0.0
        %6054 = vmatpush1.msra.mxu0 0.0
        %6055 = vmatprep.subr.mxu0 %v617
        %6056 = vmatpush1.msra.mxu0 %v616
        %6057 = vmatprep.subr.mxu0 %v609
        %6058 = vmatpush1.msra.mxu0 %v608
        %6059 = vmatprep.subr.mxu0 %v601
        %6060 = vmatpush1.msra.mxu0 %v600
        %6061 = vmatprep.subr.mxu0 %v593
        %6062 = vmatpush1.msra.mxu0 %v592
        %6063 = vmatprep.subr.mxu0 0.0
        %6064 = vmatpush2.msra.mxu0 0.0
        %6065 = vmatprep.subr.mxu0 0.0
        %6066 = vmatpush2.msra.mxu0 0.0
        %6067 = vmatprep.subr.mxu0 0.0
        %6068 = vmatpush2.msra.mxu0 0.0
        %6069 = vmatprep.subr.mxu0 0.0
        %6070 = vmatpush2.msra.mxu0 0.0
        %6071 = vmatprep.subr.mxu0 0.0
        %6072 = vmatpush2.msra.mxu0 0.0
        %6073 = vmatprep.subr.mxu0 0.0
        %6074 = vmatpush2.msra.mxu0 0.0
        %6075 = vmatprep.subr.mxu0 0.0
        %6076 = vmatpush2.msra.mxu0 0.0
        %6077 = vmatprep.subr.mxu0 0.0
        %6078 = vmatpush2.msra.mxu0 0.0
        %6079 = vmatprep.subr.mxu0 0.0
        %6080 = vmatpush2.msra.mxu0 0.0
        %6081 = vmatprep.subr.mxu0 0.0
        %6082 = vmatpush2.msra.mxu0 0.0
        %6083 = vmatprep.subr.mxu0 0.0
        %6084 = vmatpush2.msra.mxu0 0.0
        %6085 = vmatprep.subr.mxu0 0.0
        %6086 = vmatpush2.msra.mxu0 0.0
        %6087 = vmatprep.subr.mxu0 0.0
        %6088 = vmatpush2.msra.mxu0 0.0
        %6089 = vmatprep.subr.mxu0 0.0
        %6090 = vmatpush2.msra.mxu0 0.0
        %6091 = vmatprep.subr.mxu0 0.0
        %6092 = vmatpush2.msra.mxu0 0.0
        %6093 = vmatprep.subr.mxu0 0.0
        %6094 = vmatpush2.msra.mxu0 0.0
        %6095 = vmatprep.mubr.f32.mxu0 0.0
        %6096 = vmatmul.mubr.f32.gmra.mxu0 %v5165
        %v6097 = vpop.f32.mrf.mxu0
        %v6098 = vadd.f32 0.0, %v6097
        %v6099 = vpop.f32.mrf.mxu0
        %v6100 = vadd.f32 0.0, %v6099
        %6101 = vmatprep.mubr.f32.mxu0 0.0
        %6102 = vmatmul.mubr.f32.gmra.mxu0 %v5168
        %v6103 = vpop.f32.mrf.mxu0
        %v6104 = vadd.f32 0.0, %v6103
        %v6105 = vpop.f32.mrf.mxu0
        %v6106 = vadd.f32 0.0, %v6105
        %6107 = vmatprep.mubr.f32.mxu0 0.0
        %6108 = vmatmul.mubr.f32.gmra.mxu0 %v5171
        %v6109 = vpop.f32.mrf.mxu0
        %v6110 = vadd.f32 0.0, %v6109
        %v6111 = vpop.f32.mrf.mxu0
        %v6112 = vadd.f32 0.0, %v6111
        %6113 = vmatprep.mubr.f32.mxu0 0.0
        %6114 = vmatmul.mubr.f32.gmra.mxu0 %v5174
        %v6115 = vpop.f32.mrf.mxu0
        %v6116 = vadd.f32 0.0, %v6115
        %v6117 = vpop.f32.mrf.mxu0
        %v6118 = vadd.f32 0.0, %v6117
        %6119 = vmatprep.mubr.f32.mxu0 0.0
        %6120 = vmatmul.mubr.f32.gmra.mxu0 %v5177
        %v6121 = vpop.f32.mrf.mxu0
        %v6122 = vadd.f32 0.0, %v6121
        %v6123 = vpop.f32.mrf.mxu0
        %v6124 = vadd.f32 0.0, %v6123
        %6125 = vmatprep.mubr.f32.mxu0 0.0
        %6126 = vmatmul.mubr.f32.gmra.mxu0 %v5180
        %v6127 = vpop.f32.mrf.mxu0
        %v6128 = vadd.f32 0.0, %v6127
        %v6129 = vpop.f32.mrf.mxu0
        %v6130 = vadd.f32 0.0, %v6129
        %6131 = vmatprep.mubr.f32.mxu0 0.0
        %6132 = vmatmul.mubr.f32.gmra.mxu0 %v5183
        %v6133 = vpop.f32.mrf.mxu0
        %v6134 = vadd.f32 0.0, %v6133
        %v6135 = vpop.f32.mrf.mxu0
        %v6136 = vadd.f32 0.0, %v6135
        %6137 = vmatprep.mubr.f32.mxu0 0.0
        %6138 = vmatmul.mubr.f32.gmra.mxu0 %v5186
        %v6139 = vpop.f32.mrf.mxu0
        %v6140 = vadd.f32 0.0, %v6139
        %v6141 = vpop.f32.mrf.mxu0
        %v6142 = vadd.f32 0.0, %v6141
        %6143 = vmatprep.mubr.f32.mxu0 0.0
        %6144 = vmatmul.mubr.f32.gmra.mxu0 %v5189
        %v6145 = vpop.f32.mrf.mxu0
        %v6146 = vadd.f32 0.0, %v6145
        %v6147 = vpop.f32.mrf.mxu0
        %v6148 = vadd.f32 0.0, %v6147
        %6149 = vmatprep.mubr.f32.mxu0 0.0
        %6150 = vmatmul.mubr.f32.gmra.mxu0 %v5192
        %v6151 = vpop.f32.mrf.mxu0
        %v6152 = vadd.f32 0.0, %v6151
        %v6153 = vpop.f32.mrf.mxu0
        %v6154 = vadd.f32 0.0, %v6153
        %6155 = vmatprep.mubr.f32.mxu0 0.0
        %6156 = vmatmul.mubr.f32.gmra.mxu0 %v5195
        %v6157 = vpop.f32.mrf.mxu0
        %v6158 = vadd.f32 0.0, %v6157
        %v6159 = vpop.f32.mrf.mxu0
        %v6160 = vadd.f32 0.0, %v6159
        %6161 = vmatprep.mubr.f32.mxu0 0.0
        %6162 = vmatmul.mubr.f32.gmra.mxu0 %v5198
        %v6163 = vpop.f32.mrf.mxu0
        %v6164 = vadd.f32 0.0, %v6163
        %v6165 = vpop.f32.mrf.mxu0
        %v6166 = vadd.f32 0.0, %v6165
        %6167 = vmatprep.mubr.f32.mxu0 0.0
        %6168 = vmatmul.mubr.f32.gmra.mxu0 %v5201
        %v6169 = vpop.f32.mrf.mxu0
        %v6170 = vadd.f32 0.0, %v6169
        %v6171 = vpop.f32.mrf.mxu0
        %v6172 = vadd.f32 0.0, %v6171
        %6173 = vmatprep.mubr.f32.mxu0 0.0
        %6174 = vmatmul.mubr.f32.gmra.mxu0 %v5204
        %v6175 = vpop.f32.mrf.mxu0
        %v6176 = vadd.f32 0.0, %v6175
        %v6177 = vpop.f32.mrf.mxu0
        %v6178 = vadd.f32 0.0, %v6177
        %6179 = vmatprep.mubr.f32.mxu0 0.0
        %6180 = vmatmul.mubr.f32.gmra.mxu0 %v5207
        %v6181 = vpop.f32.mrf.mxu0
        %v6182 = vadd.f32 0.0, %v6181
        %v6183 = vpop.f32.mrf.mxu0
        %v6184 = vadd.f32 0.0, %v6183
        %6185 = vmatprep.mubr.f32.mxu0 0.0
        %6186 = vmatmul.mubr.f32.gmra.mxu0 %v5210
        %v6187 = vpop.f32.mrf.mxu0
        %v6188 = vadd.f32 0.0, %v6187
        %v6189 = vpop.f32.mrf.mxu0
        %v6190 = vadd.f32 0.0, %v6189
        %6191 = vmatprep.mubr.f32.mxu0 0.0
        %6192 = vmatmul.mubr.f32.gmra.mxu0 %v5213
        %v6193 = vpop.f32.mrf.mxu0
        %v6194 = vadd.f32 0.0, %v6193
        %v6195 = vpop.f32.mrf.mxu0
        %v6196 = vadd.f32 0.0, %v6195
        %6197 = vmatprep.mubr.f32.mxu0 0.0
        %6198 = vmatmul.mubr.f32.gmra.mxu0 %v5216
        %v6199 = vpop.f32.mrf.mxu0
        %v6200 = vadd.f32 0.0, %v6199
        %v6201 = vpop.f32.mrf.mxu0
        %v6202 = vadd.f32 0.0, %v6201
        %6203 = vmatprep.mubr.f32.mxu0 0.0
        %6204 = vmatmul.mubr.f32.gmra.mxu0 %v5219
        %v6205 = vpop.f32.mrf.mxu0
        %v6206 = vadd.f32 0.0, %v6205
        %v6207 = vpop.f32.mrf.mxu0
        %v6208 = vadd.f32 0.0, %v6207
        %6209 = vmatprep.mubr.f32.mxu0 0.0
        %6210 = vmatmul.mubr.f32.gmra.mxu0 %v5222
        %v6211 = vpop.f32.mrf.mxu0
        %v6212 = vadd.f32 0.0, %v6211
        %v6213 = vpop.f32.mrf.mxu0
        %v6214 = vadd.f32 0.0, %v6213
        %6215 = vmatprep.mubr.f32.mxu0 0.0
        %6216 = vmatmul.mubr.f32.gmra.mxu0 %v5225
        %v6217 = vpop.f32.mrf.mxu0
        %v6218 = vadd.f32 0.0, %v6217
        %v6219 = vpop.f32.mrf.mxu0
        %v6220 = vadd.f32 0.0, %v6219
        %6221 = vmatprep.mubr.f32.mxu0 0.0
        %6222 = vmatmul.mubr.f32.gmra.mxu0 %v5228
        %v6223 = vpop.f32.mrf.mxu0
        %v6224 = vadd.f32 0.0, %v6223
        %v6225 = vpop.f32.mrf.mxu0
        %v6226 = vadd.f32 0.0, %v6225
        %6227 = vmatprep.mubr.f32.mxu0 0.0
        %6228 = vmatmul.mubr.f32.gmra.mxu0 %v5231
        %v6229 = vpop.f32.mrf.mxu0
        %v6230 = vadd.f32 0.0, %v6229
        %v6231 = vpop.f32.mrf.mxu0
        %v6232 = vadd.f32 0.0, %v6231
        %6233 = vmatprep.mubr.f32.mxu0 0.0
        %6234 = vmatmul.mubr.f32.gmra.mxu0 %v5234
        %v6235 = vpop.f32.mrf.mxu0
        %v6236 = vadd.f32 0.0, %v6235
        %v6237 = vpop.f32.mrf.mxu0
        %v6238 = vadd.f32 0.0, %v6237
        %6239 = vmatprep.mubr.f32.mxu0 0.0
        %6240 = vmatmul.mubr.f32.gmra.mxu0 %v5237
        %v6241 = vpop.f32.mrf.mxu0
        %v6242 = vadd.f32 0.0, %v6241
        %v6243 = vpop.f32.mrf.mxu0
        %v6244 = vadd.f32 0.0, %v6243
        %6245 = vmatprep.mubr.f32.mxu0 0.0
        %6246 = vmatmul.mubr.f32.gmra.mxu0 %v5240
        %v6247 = vpop.f32.mrf.mxu0
        %v6248 = vadd.f32 0.0, %v6247
        %v6249 = vpop.f32.mrf.mxu0
        %v6250 = vadd.f32 0.0, %v6249
        %6251 = vmatprep.mubr.f32.mxu0 0.0
        %6252 = vmatmul.mubr.f32.gmra.mxu0 %v5243
        %v6253 = vpop.f32.mrf.mxu0
        %v6254 = vadd.f32 0.0, %v6253
        %v6255 = vpop.f32.mrf.mxu0
        %v6256 = vadd.f32 0.0, %v6255
        %6257 = vmatprep.mubr.f32.mxu0 0.0
        %6258 = vmatmul.mubr.f32.gmra.mxu0 %v5246
        %v6259 = vpop.f32.mrf.mxu0
        %v6260 = vadd.f32 0.0, %v6259
        %v6261 = vpop.f32.mrf.mxu0
        %v6262 = vadd.f32 0.0, %v6261
        %6263 = vmatprep.mubr.f32.mxu0 0.0
        %6264 = vmatmul.mubr.f32.gmra.mxu0 %v5249
        %v6265 = vpop.f32.mrf.mxu0
        %v6266 = vadd.f32 0.0, %v6265
        %v6267 = vpop.f32.mrf.mxu0
        %v6268 = vadd.f32 0.0, %v6267
        %6269 = vmatprep.mubr.f32.mxu0 0.0
        %6270 = vmatmul.mubr.f32.gmra.mxu0 %v5252
        %v6271 = vpop.f32.mrf.mxu0
        %v6272 = vadd.f32 0.0, %v6271
        %v6273 = vpop.f32.mrf.mxu0
        %v6274 = vadd.f32 0.0, %v6273
        %6275 = vmatprep.mubr.f32.mxu0 0.0
        %6276 = vmatmul.mubr.f32.gmra.mxu0 %v5255
        %v6277 = vpop.f32.mrf.mxu0
        %v6278 = vadd.f32 0.0, %v6277
        %v6279 = vpop.f32.mrf.mxu0
        %v6280 = vadd.f32 0.0, %v6279
        %6281 = vmatprep.mubr.f32.mxu0 0.0
        %6282 = vmatmul.mubr.f32.gmra.mxu0 %v5258
        %v6283 = vpop.f32.mrf.mxu0
        %v6284 = vadd.f32 0.0, %v6283
        %v6285 = vpop.f32.mrf.mxu0
        %v6286 = vadd.f32 0.0, %v6285
        %6287 = vdwg.mxu0
        %6288 = vmatprep.subr.mxu0 %v867
        %6289 = vmatpush1.msra.mxu0 %v866
        %6290 = vmatprep.subr.mxu0 %v859
        %6291 = vmatpush1.msra.mxu0 %v858
        %6292 = vmatprep.subr.mxu0 %v851
        %6293 = vmatpush1.msra.mxu0 %v850
        %6294 = vmatprep.subr.mxu0 %v843
        %6295 = vmatpush1.msra.mxu0 %v842
        %6296 = vmatprep.subr.mxu0 %v835
        %6297 = vmatpush1.msra.mxu0 %v834
        %6298 = vmatprep.subr.mxu0 %v827
        %6299 = vmatpush1.msra.mxu0 %v826
        %6300 = vmatprep.subr.mxu0 %v819
        %6301 = vmatpush1.msra.mxu0 %v818
        %6302 = vmatprep.subr.mxu0 %v811
        %6303 = vmatpush1.msra.mxu0 %v810
        %6304 = vmatprep.subr.mxu0 %v803
        %6305 = vmatpush1.msra.mxu0 %v802
        %6306 = vmatprep.subr.mxu0 %v795
        %6307 = vmatpush1.msra.mxu0 %v794
        %6308 = vmatprep.subr.mxu0 %v787
        %6309 = vmatpush1.msra.mxu0 %v786
        %6310 = vmatprep.subr.mxu0 %v779
        %6311 = vmatpush1.msra.mxu0 %v778
        %6312 = vmatprep.subr.mxu0 %v771
        %6313 = vmatpush1.msra.mxu0 %v770
        %6314 = vmatprep.subr.mxu0 %v763
        %6315 = vmatpush1.msra.mxu0 %v762
        %6316 = vmatprep.subr.mxu0 %v755
        %6317 = vmatpush1.msra.mxu0 %v754
        %6318 = vmatprep.subr.mxu0 %v747
        %6319 = vmatpush1.msra.mxu0 %v746
        %6320 = vmatprep.subr.mxu0 %v995
        %6321 = vmatpush2.msra.mxu0 %v994
        %6322 = vmatprep.subr.mxu0 %v987
        %6323 = vmatpush2.msra.mxu0 %v986
        %6324 = vmatprep.subr.mxu0 %v979
        %6325 = vmatpush2.msra.mxu0 %v978
        %6326 = vmatprep.subr.mxu0 %v971
        %6327 = vmatpush2.msra.mxu0 %v970
        %6328 = vmatprep.subr.mxu0 %v963
        %6329 = vmatpush2.msra.mxu0 %v962
        %6330 = vmatprep.subr.mxu0 %v955
        %6331 = vmatpush2.msra.mxu0 %v954
        %6332 = vmatprep.subr.mxu0 %v947
        %6333 = vmatpush2.msra.mxu0 %v946
        %6334 = vmatprep.subr.mxu0 %v939
        %6335 = vmatpush2.msra.mxu0 %v938
        %6336 = vmatprep.subr.mxu0 %v931
        %6337 = vmatpush2.msra.mxu0 %v930
        %6338 = vmatprep.subr.mxu0 %v923
        %6339 = vmatpush2.msra.mxu0 %v922
        %6340 = vmatprep.subr.mxu0 %v915
        %6341 = vmatpush2.msra.mxu0 %v914
        %6342 = vmatprep.subr.mxu0 %v907
        %6343 = vmatpush2.msra.mxu0 %v906
        %6344 = vmatprep.subr.mxu0 %v899
        %6345 = vmatpush2.msra.mxu0 %v898
        %6346 = vmatprep.subr.mxu0 %v891
        %6347 = vmatpush2.msra.mxu0 %v890
        %6348 = vmatprep.subr.mxu0 %v883
        %6349 = vmatpush2.msra.mxu0 %v882
        %6350 = vmatprep.subr.mxu0 %v875
        %6351 = vmatpush2.msra.mxu0 %v874
        %6352 = vmatprep.mubr.f32.mxu0 %v3293
        %6353 = vmatmul.mubr.f32.gmra.mxu0 %v3292
        %v6354 = vpop.f32.mrf.mxu0
        %v6355 = vadd.f32 0.0, %v6354
        %v6356 = vpop.f32.mrf.mxu0
        %v6357 = vadd.f32 0.0, %v6356
        %6358 = vmatprep.mubr.f32.mxu0 %v3295
        %6359 = vmatmul.mubr.f32.gmra.mxu0 %v3294
        %v6360 = vpop.f32.mrf.mxu0
        %v6361 = vadd.f32 0.0, %v6360
        %v6362 = vpop.f32.mrf.mxu0
        %v6363 = vadd.f32 0.0, %v6362
        %6364 = vmatprep.mubr.f32.mxu0 %v3297
        %6365 = vmatmul.mubr.f32.gmra.mxu0 %v3296
        %v6366 = vpop.f32.mrf.mxu0
        %v6367 = vadd.f32 0.0, %v6366
        %v6368 = vpop.f32.mrf.mxu0
        %v6369 = vadd.f32 0.0, %v6368
        %6370 = vmatprep.mubr.f32.mxu0 %v3299
        %6371 = vmatmul.mubr.f32.gmra.mxu0 %v3298
        %v6372 = vpop.f32.mrf.mxu0
        %v6373 = vadd.f32 0.0, %v6372
        %v6374 = vpop.f32.mrf.mxu0
        %v6375 = vadd.f32 0.0, %v6374
        %6376 = vmatprep.mubr.f32.mxu0 %v3301
        %6377 = vmatmul.mubr.f32.gmra.mxu0 %v3300
        %v6378 = vpop.f32.mrf.mxu0
        %v6379 = vadd.f32 0.0, %v6378
        %v6380 = vpop.f32.mrf.mxu0
        %v6381 = vadd.f32 0.0, %v6380
        %6382 = vmatprep.mubr.f32.mxu0 %v3303
        %6383 = vmatmul.mubr.f32.gmra.mxu0 %v3302
        %v6384 = vpop.f32.mrf.mxu0
        %v6385 = vadd.f32 0.0, %v6384
        %v6386 = vpop.f32.mrf.mxu0
        %v6387 = vadd.f32 0.0, %v6386
        %6388 = vmatprep.mubr.f32.mxu0 %v3305
        %6389 = vmatmul.mubr.f32.gmra.mxu0 %v3304
        %v6390 = vpop.f32.mrf.mxu0
        %v6391 = vadd.f32 0.0, %v6390
        %v6392 = vpop.f32.mrf.mxu0
        %v6393 = vadd.f32 0.0, %v6392
        %6394 = vmatprep.mubr.f32.mxu0 %v3307
        %6395 = vmatmul.mubr.f32.gmra.mxu0 %v3306
        %v6396 = vpop.f32.mrf.mxu0
        %v6397 = vadd.f32 0.0, %v6396
        %v6398 = vpop.f32.mrf.mxu0
        %v6399 = vadd.f32 0.0, %v6398
        %6400 = vmatprep.mubr.f32.mxu0 %v3309
        %6401 = vmatmul.mubr.f32.gmra.mxu0 %v3308
        %v6402 = vpop.f32.mrf.mxu0
        %v6403 = vadd.f32 0.0, %v6402
        %v6404 = vpop.f32.mrf.mxu0
        %v6405 = vadd.f32 0.0, %v6404
        %6406 = vmatprep.mubr.f32.mxu0 %v3311
        %6407 = vmatmul.mubr.f32.gmra.mxu0 %v3310
        %v6408 = vpop.f32.mrf.mxu0
        %v6409 = vadd.f32 0.0, %v6408
        %v6410 = vpop.f32.mrf.mxu0
        %v6411 = vadd.f32 0.0, %v6410
        %6412 = vmatprep.mubr.f32.mxu0 %v3313
        %6413 = vmatmul.mubr.f32.gmra.mxu0 %v3312
        %v6414 = vpop.f32.mrf.mxu0
        %v6415 = vadd.f32 0.0, %v6414
        %v6416 = vpop.f32.mrf.mxu0
        %v6417 = vadd.f32 0.0, %v6416
        %6418 = vmatprep.mubr.f32.mxu0 %v3315
        %6419 = vmatmul.mubr.f32.gmra.mxu0 %v3314
        %v6420 = vpop.f32.mrf.mxu0
        %v6421 = vadd.f32 0.0, %v6420
        %v6422 = vpop.f32.mrf.mxu0
        %v6423 = vadd.f32 0.0, %v6422
        %6424 = vmatprep.mubr.f32.mxu0 %v3317
        %6425 = vmatmul.mubr.f32.gmra.mxu0 %v3316
        %v6426 = vpop.f32.mrf.mxu0
        %v6427 = vadd.f32 0.0, %v6426
        %v6428 = vpop.f32.mrf.mxu0
        %v6429 = vadd.f32 0.0, %v6428
        %6430 = vmatprep.mubr.f32.mxu0 %v3319
        %6431 = vmatmul.mubr.f32.gmra.mxu0 %v3318
        %v6432 = vpop.f32.mrf.mxu0
        %v6433 = vadd.f32 0.0, %v6432
        %v6434 = vpop.f32.mrf.mxu0
        %v6435 = vadd.f32 0.0, %v6434
        %6436 = vmatprep.mubr.f32.mxu0 %v3321
        %6437 = vmatmul.mubr.f32.gmra.mxu0 %v3320
        %v6438 = vpop.f32.mrf.mxu0
        %v6439 = vadd.f32 0.0, %v6438
        %v6440 = vpop.f32.mrf.mxu0
        %v6441 = vadd.f32 0.0, %v6440
        %6442 = vmatprep.mubr.f32.mxu0 %v3323
        %6443 = vmatmul.mubr.f32.gmra.mxu0 %v3322
        %v6444 = vpop.f32.mrf.mxu0
        %v6445 = vadd.f32 0.0, %v6444
        %v6446 = vpop.f32.mrf.mxu0
        %v6447 = vadd.f32 0.0, %v6446
        %6448 = vmatprep.mubr.f32.mxu0 %v3325
        %6449 = vmatmul.mubr.f32.gmra.mxu0 %v3324
        %v6450 = vpop.f32.mrf.mxu0
        %v6451 = vadd.f32 0.0, %v6450
        %v6452 = vpop.f32.mrf.mxu0
        %v6453 = vadd.f32 0.0, %v6452
        %6454 = vmatprep.mubr.f32.mxu0 %v3327
        %6455 = vmatmul.mubr.f32.gmra.mxu0 %v3326
        %v6456 = vpop.f32.mrf.mxu0
        %v6457 = vadd.f32 0.0, %v6456
        %v6458 = vpop.f32.mrf.mxu0
        %v6459 = vadd.f32 0.0, %v6458
        %6460 = vmatprep.mubr.f32.mxu0 %v3329
        %6461 = vmatmul.mubr.f32.gmra.mxu0 %v3328
        %v6462 = vpop.f32.mrf.mxu0
        %v6463 = vadd.f32 0.0, %v6462
        %v6464 = vpop.f32.mrf.mxu0
        %v6465 = vadd.f32 0.0, %v6464
        %6466 = vmatprep.mubr.f32.mxu0 %v3331
        %6467 = vmatmul.mubr.f32.gmra.mxu0 %v3330
        %v6468 = vpop.f32.mrf.mxu0
        %v6469 = vadd.f32 0.0, %v6468
        %v6470 = vpop.f32.mrf.mxu0
        %v6471 = vadd.f32 0.0, %v6470
        %6472 = vmatprep.mubr.f32.mxu0 %v3333
        %6473 = vmatmul.mubr.f32.gmra.mxu0 %v3332
        %v6474 = vpop.f32.mrf.mxu0
        %v6475 = vadd.f32 0.0, %v6474
        %v6476 = vpop.f32.mrf.mxu0
        %v6477 = vadd.f32 0.0, %v6476
        %6478 = vmatprep.mubr.f32.mxu0 %v3335
        %6479 = vmatmul.mubr.f32.gmra.mxu0 %v3334
        %v6480 = vpop.f32.mrf.mxu0
        %v6481 = vadd.f32 0.0, %v6480
        %v6482 = vpop.f32.mrf.mxu0
        %v6483 = vadd.f32 0.0, %v6482
        %6484 = vmatprep.mubr.f32.mxu0 %v3337
        %6485 = vmatmul.mubr.f32.gmra.mxu0 %v3336
        %v6486 = vpop.f32.mrf.mxu0
        %v6487 = vadd.f32 0.0, %v6486
        %v6488 = vpop.f32.mrf.mxu0
        %v6489 = vadd.f32 0.0, %v6488
        %6490 = vmatprep.mubr.f32.mxu0 %v3339
        %6491 = vmatmul.mubr.f32.gmra.mxu0 %v3338
        %v6492 = vpop.f32.mrf.mxu0
        %v6493 = vadd.f32 0.0, %v6492
        %v6494 = vpop.f32.mrf.mxu0
        %v6495 = vadd.f32 0.0, %v6494
        %6496 = vmatprep.mubr.f32.mxu0 %v3341
        %6497 = vmatmul.mubr.f32.gmra.mxu0 %v3340
        %v6498 = vpop.f32.mrf.mxu0
        %v6499 = vadd.f32 0.0, %v6498
        %v6500 = vpop.f32.mrf.mxu0
        %v6501 = vadd.f32 0.0, %v6500
        %6502 = vmatprep.mubr.f32.mxu0 %v3343
        %6503 = vmatmul.mubr.f32.gmra.mxu0 %v3342
        %v6504 = vpop.f32.mrf.mxu0
        %v6505 = vadd.f32 0.0, %v6504
        %v6506 = vpop.f32.mrf.mxu0
        %v6507 = vadd.f32 0.0, %v6506
        %6508 = vmatprep.mubr.f32.mxu0 %v3345
        %6509 = vmatmul.mubr.f32.gmra.mxu0 %v3344
        %v6510 = vpop.f32.mrf.mxu0
        %v6511 = vadd.f32 0.0, %v6510
        %v6512 = vpop.f32.mrf.mxu0
        %v6513 = vadd.f32 0.0, %v6512
        %6514 = vmatprep.mubr.f32.mxu0 %v3347
        %6515 = vmatmul.mubr.f32.gmra.mxu0 %v3346
        %v6516 = vpop.f32.mrf.mxu0
        %v6517 = vadd.f32 0.0, %v6516
        %v6518 = vpop.f32.mrf.mxu0
        %v6519 = vadd.f32 0.0, %v6518
        %6520 = vmatprep.mubr.f32.mxu0 %v3349
        %6521 = vmatmul.mubr.f32.gmra.mxu0 %v3348
        %v6522 = vpop.f32.mrf.mxu0
        %v6523 = vadd.f32 0.0, %v6522
        %v6524 = vpop.f32.mrf.mxu0
        %v6525 = vadd.f32 0.0, %v6524
        %6526 = vmatprep.mubr.f32.mxu0 %v3351
        %6527 = vmatmul.mubr.f32.gmra.mxu0 %v3350
        %v6528 = vpop.f32.mrf.mxu0
        %v6529 = vadd.f32 0.0, %v6528
        %v6530 = vpop.f32.mrf.mxu0
        %v6531 = vadd.f32 0.0, %v6530
        %6532 = vmatprep.mubr.f32.mxu0 %v3353
        %6533 = vmatmul.mubr.f32.gmra.mxu0 %v3352
        %v6534 = vpop.f32.mrf.mxu0
        %v6535 = vadd.f32 0.0, %v6534
        %v6536 = vpop.f32.mrf.mxu0
        %v6537 = vadd.f32 0.0, %v6536
        %6538 = vmatprep.mubr.f32.mxu0 %v3355
        %6539 = vmatmul.mubr.f32.gmra.mxu0 %v3354
        %v6540 = vpop.f32.mrf.mxu0
        %v6541 = vadd.f32 0.0, %v6540
        %v6542 = vpop.f32.mrf.mxu0
        %v6543 = vadd.f32 0.0, %v6542
        %6544 = vdwg.mxu0
        %6545 = vmatprep.subr.mxu0 %v869
        %6546 = vmatpush1.msra.mxu0 %v868
        %6547 = vmatprep.subr.mxu0 %v861
        %6548 = vmatpush1.msra.mxu0 %v860
        %6549 = vmatprep.subr.mxu0 %v853
        %6550 = vmatpush1.msra.mxu0 %v852
        %6551 = vmatprep.subr.mxu0 %v845
        %6552 = vmatpush1.msra.mxu0 %v844
        %6553 = vmatprep.subr.mxu0 %v837
        %6554 = vmatpush1.msra.mxu0 %v836
        %6555 = vmatprep.subr.mxu0 %v829
        %6556 = vmatpush1.msra.mxu0 %v828
        %6557 = vmatprep.subr.mxu0 %v821
        %6558 = vmatpush1.msra.mxu0 %v820
        %6559 = vmatprep.subr.mxu0 %v813
        %6560 = vmatpush1.msra.mxu0 %v812
        %6561 = vmatprep.subr.mxu0 %v805
        %6562 = vmatpush1.msra.mxu0 %v804
        %6563 = vmatprep.subr.mxu0 %v797
        %6564 = vmatpush1.msra.mxu0 %v796
        %6565 = vmatprep.subr.mxu0 %v789
        %6566 = vmatpush1.msra.mxu0 %v788
        %6567 = vmatprep.subr.mxu0 %v781
        %6568 = vmatpush1.msra.mxu0 %v780
        %6569 = vmatprep.subr.mxu0 %v773
        %6570 = vmatpush1.msra.mxu0 %v772
        %6571 = vmatprep.subr.mxu0 %v765
        %6572 = vmatpush1.msra.mxu0 %v764
        %6573 = vmatprep.subr.mxu0 %v757
        %6574 = vmatpush1.msra.mxu0 %v756
        %6575 = vmatprep.subr.mxu0 %v749
        %6576 = vmatpush1.msra.mxu0 %v748
        %6577 = vmatprep.subr.mxu0 %v997
        %6578 = vmatpush2.msra.mxu0 %v996
        %6579 = vmatprep.subr.mxu0 %v989
        %6580 = vmatpush2.msra.mxu0 %v988
        %6581 = vmatprep.subr.mxu0 %v981
        %6582 = vmatpush2.msra.mxu0 %v980
        %6583 = vmatprep.subr.mxu0 %v973
        %6584 = vmatpush2.msra.mxu0 %v972
        %6585 = vmatprep.subr.mxu0 %v965
        %6586 = vmatpush2.msra.mxu0 %v964
        %6587 = vmatprep.subr.mxu0 %v957
        %6588 = vmatpush2.msra.mxu0 %v956
        %6589 = vmatprep.subr.mxu0 %v949
        %6590 = vmatpush2.msra.mxu0 %v948
        %6591 = vmatprep.subr.mxu0 %v941
        %6592 = vmatpush2.msra.mxu0 %v940
        %6593 = vmatprep.subr.mxu0 %v933
        %6594 = vmatpush2.msra.mxu0 %v932
        %6595 = vmatprep.subr.mxu0 %v925
        %6596 = vmatpush2.msra.mxu0 %v924
        %6597 = vmatprep.subr.mxu0 %v917
        %6598 = vmatpush2.msra.mxu0 %v916
        %6599 = vmatprep.subr.mxu0 %v909
        %6600 = vmatpush2.msra.mxu0 %v908
        %6601 = vmatprep.subr.mxu0 %v901
        %6602 = vmatpush2.msra.mxu0 %v900
        %6603 = vmatprep.subr.mxu0 %v893
        %6604 = vmatpush2.msra.mxu0 %v892
        %6605 = vmatprep.subr.mxu0 %v885
        %6606 = vmatpush2.msra.mxu0 %v884
        %6607 = vmatprep.subr.mxu0 %v877
        %6608 = vmatpush2.msra.mxu0 %v876
        %6609 = vmatprep.mubr.f32.mxu0 %v3293
        %6610 = vmatmul.mubr.f32.gmra.mxu0 %v3292
        %v6611 = vpop.f32.mrf.mxu0
        %v6612 = vadd.f32 0.0, %v6611
        %v6613 = vpop.f32.mrf.mxu0
        %v6614 = vadd.f32 0.0, %v6613
        %6615 = vmatprep.mubr.f32.mxu0 %v3295
        %6616 = vmatmul.mubr.f32.gmra.mxu0 %v3294
        %v6617 = vpop.f32.mrf.mxu0
        %v6618 = vadd.f32 0.0, %v6617
        %v6619 = vpop.f32.mrf.mxu0
        %v6620 = vadd.f32 0.0, %v6619
        %6621 = vmatprep.mubr.f32.mxu0 %v3297
        %6622 = vmatmul.mubr.f32.gmra.mxu0 %v3296
        %v6623 = vpop.f32.mrf.mxu0
        %v6624 = vadd.f32 0.0, %v6623
        %v6625 = vpop.f32.mrf.mxu0
        %v6626 = vadd.f32 0.0, %v6625
        %6627 = vmatprep.mubr.f32.mxu0 %v3299
        %6628 = vmatmul.mubr.f32.gmra.mxu0 %v3298
        %v6629 = vpop.f32.mrf.mxu0
        %v6630 = vadd.f32 0.0, %v6629
        %v6631 = vpop.f32.mrf.mxu0
        %v6632 = vadd.f32 0.0, %v6631
        %6633 = vmatprep.mubr.f32.mxu0 %v3301
        %6634 = vmatmul.mubr.f32.gmra.mxu0 %v3300
        %v6635 = vpop.f32.mrf.mxu0
        %v6636 = vadd.f32 0.0, %v6635
        %v6637 = vpop.f32.mrf.mxu0
        %v6638 = vadd.f32 0.0, %v6637
        %6639 = vmatprep.mubr.f32.mxu0 %v3303
        %6640 = vmatmul.mubr.f32.gmra.mxu0 %v3302
        %v6641 = vpop.f32.mrf.mxu0
        %v6642 = vadd.f32 0.0, %v6641
        %v6643 = vpop.f32.mrf.mxu0
        %v6644 = vadd.f32 0.0, %v6643
        %6645 = vmatprep.mubr.f32.mxu0 %v3305
        %6646 = vmatmul.mubr.f32.gmra.mxu0 %v3304
        %v6647 = vpop.f32.mrf.mxu0
        %v6648 = vadd.f32 0.0, %v6647
        %v6649 = vpop.f32.mrf.mxu0
        %v6650 = vadd.f32 0.0, %v6649
        %6651 = vmatprep.mubr.f32.mxu0 %v3307
        %6652 = vmatmul.mubr.f32.gmra.mxu0 %v3306
        %v6653 = vpop.f32.mrf.mxu0
        %v6654 = vadd.f32 0.0, %v6653
        %v6655 = vpop.f32.mrf.mxu0
        %v6656 = vadd.f32 0.0, %v6655
        %6657 = vmatprep.mubr.f32.mxu0 %v3309
        %6658 = vmatmul.mubr.f32.gmra.mxu0 %v3308
        %v6659 = vpop.f32.mrf.mxu0
        %v6660 = vadd.f32 0.0, %v6659
        %v6661 = vpop.f32.mrf.mxu0
        %v6662 = vadd.f32 0.0, %v6661
        %6663 = vmatprep.mubr.f32.mxu0 %v3311
        %6664 = vmatmul.mubr.f32.gmra.mxu0 %v3310
        %v6665 = vpop.f32.mrf.mxu0
        %v6666 = vadd.f32 0.0, %v6665
        %v6667 = vpop.f32.mrf.mxu0
        %v6668 = vadd.f32 0.0, %v6667
        %6669 = vmatprep.mubr.f32.mxu0 %v3313
        %6670 = vmatmul.mubr.f32.gmra.mxu0 %v3312
        %v6671 = vpop.f32.mrf.mxu0
        %v6672 = vadd.f32 0.0, %v6671
        %v6673 = vpop.f32.mrf.mxu0
        %v6674 = vadd.f32 0.0, %v6673
        %6675 = vmatprep.mubr.f32.mxu0 %v3315
        %6676 = vmatmul.mubr.f32.gmra.mxu0 %v3314
        %v6677 = vpop.f32.mrf.mxu0
        %v6678 = vadd.f32 0.0, %v6677
        %v6679 = vpop.f32.mrf.mxu0
        %v6680 = vadd.f32 0.0, %v6679
        %6681 = vmatprep.mubr.f32.mxu0 %v3317
        %6682 = vmatmul.mubr.f32.gmra.mxu0 %v3316
        %v6683 = vpop.f32.mrf.mxu0
        %v6684 = vadd.f32 0.0, %v6683
        %v6685 = vpop.f32.mrf.mxu0
        %v6686 = vadd.f32 0.0, %v6685
        %6687 = vmatprep.mubr.f32.mxu0 %v3319
        %6688 = vmatmul.mubr.f32.gmra.mxu0 %v3318
        %v6689 = vpop.f32.mrf.mxu0
        %v6690 = vadd.f32 0.0, %v6689
        %v6691 = vpop.f32.mrf.mxu0
        %v6692 = vadd.f32 0.0, %v6691
        %6693 = vmatprep.mubr.f32.mxu0 %v3321
        %6694 = vmatmul.mubr.f32.gmra.mxu0 %v3320
        %v6695 = vpop.f32.mrf.mxu0
        %v6696 = vadd.f32 0.0, %v6695
        %v6697 = vpop.f32.mrf.mxu0
        %v6698 = vadd.f32 0.0, %v6697
        %6699 = vmatprep.mubr.f32.mxu0 %v3323
        %6700 = vmatmul.mubr.f32.gmra.mxu0 %v3322
        %v6701 = vpop.f32.mrf.mxu0
        %v6702 = vadd.f32 0.0, %v6701
        %v6703 = vpop.f32.mrf.mxu0
        %v6704 = vadd.f32 0.0, %v6703
        %6705 = vmatprep.mubr.f32.mxu0 %v3325
        %6706 = vmatmul.mubr.f32.gmra.mxu0 %v3324
        %v6707 = vpop.f32.mrf.mxu0
        %v6708 = vadd.f32 0.0, %v6707
        %v6709 = vpop.f32.mrf.mxu0
        %v6710 = vadd.f32 0.0, %v6709
        %6711 = vmatprep.mubr.f32.mxu0 %v3327
        %6712 = vmatmul.mubr.f32.gmra.mxu0 %v3326
        %v6713 = vpop.f32.mrf.mxu0
        %v6714 = vadd.f32 0.0, %v6713
        %v6715 = vpop.f32.mrf.mxu0
        %v6716 = vadd.f32 0.0, %v6715
        %6717 = vmatprep.mubr.f32.mxu0 %v3329
        %6718 = vmatmul.mubr.f32.gmra.mxu0 %v3328
        %v6719 = vpop.f32.mrf.mxu0
        %v6720 = vadd.f32 0.0, %v6719
        %v6721 = vpop.f32.mrf.mxu0
        %v6722 = vadd.f32 0.0, %v6721
        %6723 = vmatprep.mubr.f32.mxu0 %v3331
        %6724 = vmatmul.mubr.f32.gmra.mxu0 %v3330
        %v6725 = vpop.f32.mrf.mxu0
        %v6726 = vadd.f32 0.0, %v6725
        %v6727 = vpop.f32.mrf.mxu0
        %v6728 = vadd.f32 0.0, %v6727
        %6729 = vmatprep.mubr.f32.mxu0 %v3333
        %6730 = vmatmul.mubr.f32.gmra.mxu0 %v3332
        %v6731 = vpop.f32.mrf.mxu0
        %v6732 = vadd.f32 0.0, %v6731
        %v6733 = vpop.f32.mrf.mxu0
        %v6734 = vadd.f32 0.0, %v6733
        %6735 = vmatprep.mubr.f32.mxu0 %v3335
        %6736 = vmatmul.mubr.f32.gmra.mxu0 %v3334
        %v6737 = vpop.f32.mrf.mxu0
        %v6738 = vadd.f32 0.0, %v6737
        %v6739 = vpop.f32.mrf.mxu0
        %v6740 = vadd.f32 0.0, %v6739
        %6741 = vmatprep.mubr.f32.mxu0 %v3337
        %6742 = vmatmul.mubr.f32.gmra.mxu0 %v3336
        %v6743 = vpop.f32.mrf.mxu0
        %v6744 = vadd.f32 0.0, %v6743
        %v6745 = vpop.f32.mrf.mxu0
        %v6746 = vadd.f32 0.0, %v6745
        %6747 = vmatprep.mubr.f32.mxu0 %v3339
        %6748 = vmatmul.mubr.f32.gmra.mxu0 %v3338
        %v6749 = vpop.f32.mrf.mxu0
        %v6750 = vadd.f32 0.0, %v6749
        %v6751 = vpop.f32.mrf.mxu0
        %v6752 = vadd.f32 0.0, %v6751
        %6753 = vmatprep.mubr.f32.mxu0 %v3341
        %6754 = vmatmul.mubr.f32.gmra.mxu0 %v3340
        %v6755 = vpop.f32.mrf.mxu0
        %v6756 = vadd.f32 0.0, %v6755
        %v6757 = vpop.f32.mrf.mxu0
        %v6758 = vadd.f32 0.0, %v6757
        %6759 = vmatprep.mubr.f32.mxu0 %v3343
        %6760 = vmatmul.mubr.f32.gmra.mxu0 %v3342
        %v6761 = vpop.f32.mrf.mxu0
        %v6762 = vadd.f32 0.0, %v6761
        %v6763 = vpop.f32.mrf.mxu0
        %v6764 = vadd.f32 0.0, %v6763
        %6765 = vmatprep.mubr.f32.mxu0 %v3345
        %6766 = vmatmul.mubr.f32.gmra.mxu0 %v3344
        %v6767 = vpop.f32.mrf.mxu0
        %v6768 = vadd.f32 0.0, %v6767
        %v6769 = vpop.f32.mrf.mxu0
        %v6770 = vadd.f32 0.0, %v6769
        %6771 = vmatprep.mubr.f32.mxu0 %v3347
        %6772 = vmatmul.mubr.f32.gmra.mxu0 %v3346
        %v6773 = vpop.f32.mrf.mxu0
        %v6774 = vadd.f32 0.0, %v6773
        %v6775 = vpop.f32.mrf.mxu0
        %v6776 = vadd.f32 0.0, %v6775
        %6777 = vmatprep.mubr.f32.mxu0 %v3349
        %6778 = vmatmul.mubr.f32.gmra.mxu0 %v3348
        %v6779 = vpop.f32.mrf.mxu0
        %v6780 = vadd.f32 0.0, %v6779
        %v6781 = vpop.f32.mrf.mxu0
        %v6782 = vadd.f32 0.0, %v6781
        %6783 = vmatprep.mubr.f32.mxu0 %v3351
        %6784 = vmatmul.mubr.f32.gmra.mxu0 %v3350
        %v6785 = vpop.f32.mrf.mxu0
        %v6786 = vadd.f32 0.0, %v6785
        %v6787 = vpop.f32.mrf.mxu0
        %v6788 = vadd.f32 0.0, %v6787
        %6789 = vmatprep.mubr.f32.mxu0 %v3353
        %6790 = vmatmul.mubr.f32.gmra.mxu0 %v3352
        %v6791 = vpop.f32.mrf.mxu0
        %v6792 = vadd.f32 0.0, %v6791
        %v6793 = vpop.f32.mrf.mxu0
        %v6794 = vadd.f32 0.0, %v6793
        %6795 = vmatprep.mubr.f32.mxu0 %v3355
        %6796 = vmatmul.mubr.f32.gmra.mxu0 %v3354
        %v6797 = vpop.f32.mrf.mxu0
        %v6798 = vadd.f32 0.0, %v6797
        %v6799 = vpop.f32.mrf.mxu0
        %v6800 = vadd.f32 0.0, %v6799
        %6801 = vdwg.mxu0
        %6802 = vmatprep.subr.mxu0 %v871
        %6803 = vmatpush1.msra.mxu0 %v870
        %6804 = vmatprep.subr.mxu0 %v863
        %6805 = vmatpush1.msra.mxu0 %v862
        %6806 = vmatprep.subr.mxu0 %v855
        %6807 = vmatpush1.msra.mxu0 %v854
        %6808 = vmatprep.subr.mxu0 %v847
        %6809 = vmatpush1.msra.mxu0 %v846
        %6810 = vmatprep.subr.mxu0 %v839
        %6811 = vmatpush1.msra.mxu0 %v838
        %6812 = vmatprep.subr.mxu0 %v831
        %6813 = vmatpush1.msra.mxu0 %v830
        %6814 = vmatprep.subr.mxu0 %v823
        %6815 = vmatpush1.msra.mxu0 %v822
        %6816 = vmatprep.subr.mxu0 %v815
        %6817 = vmatpush1.msra.mxu0 %v814
        %6818 = vmatprep.subr.mxu0 %v807
        %6819 = vmatpush1.msra.mxu0 %v806
        %6820 = vmatprep.subr.mxu0 %v799
        %6821 = vmatpush1.msra.mxu0 %v798
        %6822 = vmatprep.subr.mxu0 %v791
        %6823 = vmatpush1.msra.mxu0 %v790
        %6824 = vmatprep.subr.mxu0 %v783
        %6825 = vmatpush1.msra.mxu0 %v782
        %6826 = vmatprep.subr.mxu0 %v775
        %6827 = vmatpush1.msra.mxu0 %v774
        %6828 = vmatprep.subr.mxu0 %v767
        %6829 = vmatpush1.msra.mxu0 %v766
        %6830 = vmatprep.subr.mxu0 %v759
        %6831 = vmatpush1.msra.mxu0 %v758
        %6832 = vmatprep.subr.mxu0 %v751
        %6833 = vmatpush1.msra.mxu0 %v750
        %6834 = vmatprep.subr.mxu0 %v999
        %6835 = vmatpush2.msra.mxu0 %v998
        %6836 = vmatprep.subr.mxu0 %v991
        %6837 = vmatpush2.msra.mxu0 %v990
        %6838 = vmatprep.subr.mxu0 %v983
        %6839 = vmatpush2.msra.mxu0 %v982
        %6840 = vmatprep.subr.mxu0 %v975
        %6841 = vmatpush2.msra.mxu0 %v974
        %6842 = vmatprep.subr.mxu0 %v967
        %6843 = vmatpush2.msra.mxu0 %v966
        %6844 = vmatprep.subr.mxu0 %v959
        %6845 = vmatpush2.msra.mxu0 %v958
        %6846 = vmatprep.subr.mxu0 %v951
        %6847 = vmatpush2.msra.mxu0 %v950
        %6848 = vmatprep.subr.mxu0 %v943
        %6849 = vmatpush2.msra.mxu0 %v942
        %6850 = vmatprep.subr.mxu0 %v935
        %6851 = vmatpush2.msra.mxu0 %v934
        %6852 = vmatprep.subr.mxu0 %v927
        %6853 = vmatpush2.msra.mxu0 %v926
        %6854 = vmatprep.subr.mxu0 %v919
        %6855 = vmatpush2.msra.mxu0 %v918
        %6856 = vmatprep.subr.mxu0 %v911
        %6857 = vmatpush2.msra.mxu0 %v910
        %6858 = vmatprep.subr.mxu0 %v903
        %6859 = vmatpush2.msra.mxu0 %v902
        %6860 = vmatprep.subr.mxu0 %v895
        %6861 = vmatpush2.msra.mxu0 %v894
        %6862 = vmatprep.subr.mxu0 %v887
        %6863 = vmatpush2.msra.mxu0 %v886
        %6864 = vmatprep.subr.mxu0 %v879
        %6865 = vmatpush2.msra.mxu0 %v878
        %6866 = vmatprep.mubr.f32.mxu0 %v3293
        %6867 = vmatmul.mubr.f32.gmra.mxu0 %v3292
        %v6868 = vpop.f32.mrf.mxu0
        %v6869 = vadd.f32 0.0, %v6868
        %v6870 = vpop.f32.mrf.mxu0
        %v6871 = vadd.f32 0.0, %v6870
        %6872 = vmatprep.mubr.f32.mxu0 %v3295
        %6873 = vmatmul.mubr.f32.gmra.mxu0 %v3294
        %v6874 = vpop.f32.mrf.mxu0
        %v6875 = vadd.f32 0.0, %v6874
        %v6876 = vpop.f32.mrf.mxu0
        %v6877 = vadd.f32 0.0, %v6876
        %6878 = vmatprep.mubr.f32.mxu0 %v3297
        %6879 = vmatmul.mubr.f32.gmra.mxu0 %v3296
        %v6880 = vpop.f32.mrf.mxu0
        %v6881 = vadd.f32 0.0, %v6880
        %v6882 = vpop.f32.mrf.mxu0
        %v6883 = vadd.f32 0.0, %v6882
        %6884 = vmatprep.mubr.f32.mxu0 %v3299
        %6885 = vmatmul.mubr.f32.gmra.mxu0 %v3298
        %v6886 = vpop.f32.mrf.mxu0
        %v6887 = vadd.f32 0.0, %v6886
        %v6888 = vpop.f32.mrf.mxu0
        %v6889 = vadd.f32 0.0, %v6888
        %6890 = vmatprep.mubr.f32.mxu0 %v3301
        %6891 = vmatmul.mubr.f32.gmra.mxu0 %v3300
        %v6892 = vpop.f32.mrf.mxu0
        %v6893 = vadd.f32 0.0, %v6892
        %v6894 = vpop.f32.mrf.mxu0
        %v6895 = vadd.f32 0.0, %v6894
        %6896 = vmatprep.mubr.f32.mxu0 %v3303
        %6897 = vmatmul.mubr.f32.gmra.mxu0 %v3302
        %v6898 = vpop.f32.mrf.mxu0
        %v6899 = vadd.f32 0.0, %v6898
        %v6900 = vpop.f32.mrf.mxu0
        %v6901 = vadd.f32 0.0, %v6900
        %6902 = vmatprep.mubr.f32.mxu0 %v3305
        %6903 = vmatmul.mubr.f32.gmra.mxu0 %v3304
        %v6904 = vpop.f32.mrf.mxu0
        %v6905 = vadd.f32 0.0, %v6904
        %v6906 = vpop.f32.mrf.mxu0
        %v6907 = vadd.f32 0.0, %v6906
        %6908 = vmatprep.mubr.f32.mxu0 %v3307
        %6909 = vmatmul.mubr.f32.gmra.mxu0 %v3306
        %v6910 = vpop.f32.mrf.mxu0
        %v6911 = vadd.f32 0.0, %v6910
        %v6912 = vpop.f32.mrf.mxu0
        %v6913 = vadd.f32 0.0, %v6912
        %6914 = vmatprep.mubr.f32.mxu0 %v3309
        %6915 = vmatmul.mubr.f32.gmra.mxu0 %v3308
        %v6916 = vpop.f32.mrf.mxu0
        %v6917 = vadd.f32 0.0, %v6916
        %v6918 = vpop.f32.mrf.mxu0
        %v6919 = vadd.f32 0.0, %v6918
        %6920 = vmatprep.mubr.f32.mxu0 %v3311
        %6921 = vmatmul.mubr.f32.gmra.mxu0 %v3310
        %v6922 = vpop.f32.mrf.mxu0
        %v6923 = vadd.f32 0.0, %v6922
        %v6924 = vpop.f32.mrf.mxu0
        %v6925 = vadd.f32 0.0, %v6924
        %6926 = vmatprep.mubr.f32.mxu0 %v3313
        %6927 = vmatmul.mubr.f32.gmra.mxu0 %v3312
        %v6928 = vpop.f32.mrf.mxu0
        %v6929 = vadd.f32 0.0, %v6928
        %v6930 = vpop.f32.mrf.mxu0
        %v6931 = vadd.f32 0.0, %v6930
        %6932 = vmatprep.mubr.f32.mxu0 %v3315
        %6933 = vmatmul.mubr.f32.gmra.mxu0 %v3314
        %v6934 = vpop.f32.mrf.mxu0
        %v6935 = vadd.f32 0.0, %v6934
        %v6936 = vpop.f32.mrf.mxu0
        %v6937 = vadd.f32 0.0, %v6936
        %6938 = vmatprep.mubr.f32.mxu0 %v3317
        %6939 = vmatmul.mubr.f32.gmra.mxu0 %v3316
        %v6940 = vpop.f32.mrf.mxu0
        %v6941 = vadd.f32 0.0, %v6940
        %v6942 = vpop.f32.mrf.mxu0
        %v6943 = vadd.f32 0.0, %v6942
        %6944 = vmatprep.mubr.f32.mxu0 %v3319
        %6945 = vmatmul.mubr.f32.gmra.mxu0 %v3318
        %v6946 = vpop.f32.mrf.mxu0
        %v6947 = vadd.f32 0.0, %v6946
        %v6948 = vpop.f32.mrf.mxu0
        %v6949 = vadd.f32 0.0, %v6948
        %6950 = vmatprep.mubr.f32.mxu0 %v3321
        %6951 = vmatmul.mubr.f32.gmra.mxu0 %v3320
        %v6952 = vpop.f32.mrf.mxu0
        %v6953 = vadd.f32 0.0, %v6952
        %v6954 = vpop.f32.mrf.mxu0
        %v6955 = vadd.f32 0.0, %v6954
        %6956 = vmatprep.mubr.f32.mxu0 %v3323
        %6957 = vmatmul.mubr.f32.gmra.mxu0 %v3322
        %v6958 = vpop.f32.mrf.mxu0
        %v6959 = vadd.f32 0.0, %v6958
        %v6960 = vpop.f32.mrf.mxu0
        %v6961 = vadd.f32 0.0, %v6960
        %6962 = vmatprep.mubr.f32.mxu0 %v3325
        %6963 = vmatmul.mubr.f32.gmra.mxu0 %v3324
        %v6964 = vpop.f32.mrf.mxu0
        %v6965 = vadd.f32 0.0, %v6964
        %v6966 = vpop.f32.mrf.mxu0
        %v6967 = vadd.f32 0.0, %v6966
        %6968 = vmatprep.mubr.f32.mxu0 %v3327
        %6969 = vmatmul.mubr.f32.gmra.mxu0 %v3326
        %v6970 = vpop.f32.mrf.mxu0
        %v6971 = vadd.f32 0.0, %v6970
        %v6972 = vpop.f32.mrf.mxu0
        %v6973 = vadd.f32 0.0, %v6972
        %6974 = vmatprep.mubr.f32.mxu0 %v3329
        %6975 = vmatmul.mubr.f32.gmra.mxu0 %v3328
        %v6976 = vpop.f32.mrf.mxu0
        %v6977 = vadd.f32 0.0, %v6976
        %v6978 = vpop.f32.mrf.mxu0
        %v6979 = vadd.f32 0.0, %v6978
        %6980 = vmatprep.mubr.f32.mxu0 %v3331
        %6981 = vmatmul.mubr.f32.gmra.mxu0 %v3330
        %v6982 = vpop.f32.mrf.mxu0
        %v6983 = vadd.f32 0.0, %v6982
        %v6984 = vpop.f32.mrf.mxu0
        %v6985 = vadd.f32 0.0, %v6984
        %6986 = vmatprep.mubr.f32.mxu0 %v3333
        %6987 = vmatmul.mubr.f32.gmra.mxu0 %v3332
        %v6988 = vpop.f32.mrf.mxu0
        %v6989 = vadd.f32 0.0, %v6988
        %v6990 = vpop.f32.mrf.mxu0
        %v6991 = vadd.f32 0.0, %v6990
        %6992 = vmatprep.mubr.f32.mxu0 %v3335
        %6993 = vmatmul.mubr.f32.gmra.mxu0 %v3334
        %v6994 = vpop.f32.mrf.mxu0
        %v6995 = vadd.f32 0.0, %v6994
        %v6996 = vpop.f32.mrf.mxu0
        %v6997 = vadd.f32 0.0, %v6996
        %6998 = vmatprep.mubr.f32.mxu0 %v3337
        %6999 = vmatmul.mubr.f32.gmra.mxu0 %v3336
        %v7000 = vpop.f32.mrf.mxu0
        %v7001 = vadd.f32 0.0, %v7000
        %v7002 = vpop.f32.mrf.mxu0
        %v7003 = vadd.f32 0.0, %v7002
        %7004 = vmatprep.mubr.f32.mxu0 %v3339
        %7005 = vmatmul.mubr.f32.gmra.mxu0 %v3338
        %v7006 = vpop.f32.mrf.mxu0
        %v7007 = vadd.f32 0.0, %v7006
        %v7008 = vpop.f32.mrf.mxu0
        %v7009 = vadd.f32 0.0, %v7008
        %7010 = vmatprep.mubr.f32.mxu0 %v3341
        %7011 = vmatmul.mubr.f32.gmra.mxu0 %v3340
        %v7012 = vpop.f32.mrf.mxu0
        %v7013 = vadd.f32 0.0, %v7012
        %v7014 = vpop.f32.mrf.mxu0
        %v7015 = vadd.f32 0.0, %v7014
        %7016 = vmatprep.mubr.f32.mxu0 %v3343
        %7017 = vmatmul.mubr.f32.gmra.mxu0 %v3342
        %v7018 = vpop.f32.mrf.mxu0
        %v7019 = vadd.f32 0.0, %v7018
        %v7020 = vpop.f32.mrf.mxu0
        %v7021 = vadd.f32 0.0, %v7020
        %7022 = vmatprep.mubr.f32.mxu0 %v3345
        %7023 = vmatmul.mubr.f32.gmra.mxu0 %v3344
        %v7024 = vpop.f32.mrf.mxu0
        %v7025 = vadd.f32 0.0, %v7024
        %v7026 = vpop.f32.mrf.mxu0
        %v7027 = vadd.f32 0.0, %v7026
        %7028 = vmatprep.mubr.f32.mxu0 %v3347
        %7029 = vmatmul.mubr.f32.gmra.mxu0 %v3346
        %v7030 = vpop.f32.mrf.mxu0
        %v7031 = vadd.f32 0.0, %v7030
        %v7032 = vpop.f32.mrf.mxu0
        %v7033 = vadd.f32 0.0, %v7032
        %7034 = vmatprep.mubr.f32.mxu0 %v3349
        %7035 = vmatmul.mubr.f32.gmra.mxu0 %v3348
        %v7036 = vpop.f32.mrf.mxu0
        %v7037 = vadd.f32 0.0, %v7036
        %v7038 = vpop.f32.mrf.mxu0
        %v7039 = vadd.f32 0.0, %v7038
        %7040 = vmatprep.mubr.f32.mxu0 %v3351
        %7041 = vmatmul.mubr.f32.gmra.mxu0 %v3350
        %v7042 = vpop.f32.mrf.mxu0
        %v7043 = vadd.f32 0.0, %v7042
        %v7044 = vpop.f32.mrf.mxu0
        %v7045 = vadd.f32 0.0, %v7044
        %7046 = vmatprep.mubr.f32.mxu0 %v3353
        %7047 = vmatmul.mubr.f32.gmra.mxu0 %v3352
        %v7048 = vpop.f32.mrf.mxu0
        %v7049 = vadd.f32 0.0, %v7048
        %v7050 = vpop.f32.mrf.mxu0
        %v7051 = vadd.f32 0.0, %v7050
        %7052 = vmatprep.mubr.f32.mxu0 %v3355
        %7053 = vmatmul.mubr.f32.gmra.mxu0 %v3354
        %v7054 = vpop.f32.mrf.mxu0
        %v7055 = vadd.f32 0.0, %v7054
        %v7056 = vpop.f32.mrf.mxu0
        %v7057 = vadd.f32 0.0, %v7056
        %7058 = vdwg.mxu0
        %7059 = vmatprep.subr.mxu0 %v873
        %7060 = vmatpush1.msra.mxu0 %v872
        %7061 = vmatprep.subr.mxu0 %v865
        %7062 = vmatpush1.msra.mxu0 %v864
        %7063 = vmatprep.subr.mxu0 %v857
        %7064 = vmatpush1.msra.mxu0 %v856
        %7065 = vmatprep.subr.mxu0 %v849
        %7066 = vmatpush1.msra.mxu0 %v848
        %7067 = vmatprep.subr.mxu0 %v841
        %7068 = vmatpush1.msra.mxu0 %v840
        %7069 = vmatprep.subr.mxu0 %v833
        %7070 = vmatpush1.msra.mxu0 %v832
        %7071 = vmatprep.subr.mxu0 %v825
        %7072 = vmatpush1.msra.mxu0 %v824
        %7073 = vmatprep.subr.mxu0 %v817
        %7074 = vmatpush1.msra.mxu0 %v816
        %7075 = vmatprep.subr.mxu0 %v809
        %7076 = vmatpush1.msra.mxu0 %v808
        %7077 = vmatprep.subr.mxu0 %v801
        %7078 = vmatpush1.msra.mxu0 %v800
        %7079 = vmatprep.subr.mxu0 %v793
        %7080 = vmatpush1.msra.mxu0 %v792
        %7081 = vmatprep.subr.mxu0 %v785
        %7082 = vmatpush1.msra.mxu0 %v784
        %7083 = vmatprep.subr.mxu0 %v777
        %7084 = vmatpush1.msra.mxu0 %v776
        %7085 = vmatprep.subr.mxu0 %v769
        %7086 = vmatpush1.msra.mxu0 %v768
        %7087 = vmatprep.subr.mxu0 %v761
        %7088 = vmatpush1.msra.mxu0 %v760
        %7089 = vmatprep.subr.mxu0 %v753
        %7090 = vmatpush1.msra.mxu0 %v752
        %7091 = vmatprep.subr.mxu0 %v1001
        %7092 = vmatpush2.msra.mxu0 %v1000
        %7093 = vmatprep.subr.mxu0 %v993
        %7094 = vmatpush2.msra.mxu0 %v992
        %7095 = vmatprep.subr.mxu0 %v985
        %7096 = vmatpush2.msra.mxu0 %v984
        %7097 = vmatprep.subr.mxu0 %v977
        %7098 = vmatpush2.msra.mxu0 %v976
        %7099 = vmatprep.subr.mxu0 %v969
        %7100 = vmatpush2.msra.mxu0 %v968
        %7101 = vmatprep.subr.mxu0 %v961
        %7102 = vmatpush2.msra.mxu0 %v960
        %7103 = vmatprep.subr.mxu0 %v953
        %7104 = vmatpush2.msra.mxu0 %v952
        %7105 = vmatprep.subr.mxu0 %v945
        %7106 = vmatpush2.msra.mxu0 %v944
        %7107 = vmatprep.subr.mxu0 %v937
        %7108 = vmatpush2.msra.mxu0 %v936
        %7109 = vmatprep.subr.mxu0 %v929
        %7110 = vmatpush2.msra.mxu0 %v928
        %7111 = vmatprep.subr.mxu0 %v921
        %7112 = vmatpush2.msra.mxu0 %v920
        %7113 = vmatprep.subr.mxu0 %v913
        %7114 = vmatpush2.msra.mxu0 %v912
        %7115 = vmatprep.subr.mxu0 %v905
        %7116 = vmatpush2.msra.mxu0 %v904
        %7117 = vmatprep.subr.mxu0 %v897
        %7118 = vmatpush2.msra.mxu0 %v896
        %7119 = vmatprep.subr.mxu0 %v889
        %7120 = vmatpush2.msra.mxu0 %v888
        %7121 = vmatprep.subr.mxu0 %v881
        %7122 = vmatpush2.msra.mxu0 %v880
        %7123 = vmatprep.mubr.f32.mxu0 %v3293
        %7124 = vmatmul.mubr.f32.gmra.mxu0 %v3292
        %v7125 = vpop.f32.mrf.mxu0
        %v7126 = vadd.f32 0.0, %v7125
        %v7127 = vpop.f32.mrf.mxu0
        %v7128 = vadd.f32 0.0, %v7127
        %7129 = vmatprep.mubr.f32.mxu0 %v3295
        %7130 = vmatmul.mubr.f32.gmra.mxu0 %v3294
        %v7131 = vpop.f32.mrf.mxu0
        %v7132 = vadd.f32 0.0, %v7131
        %v7133 = vpop.f32.mrf.mxu0
        %v7134 = vadd.f32 0.0, %v7133
        %7135 = vmatprep.mubr.f32.mxu0 %v3297
        %7136 = vmatmul.mubr.f32.gmra.mxu0 %v3296
        %v7137 = vpop.f32.mrf.mxu0
        %v7138 = vadd.f32 0.0, %v7137
        %v7139 = vpop.f32.mrf.mxu0
        %v7140 = vadd.f32 0.0, %v7139
        %7141 = vmatprep.mubr.f32.mxu0 %v3299
        %7142 = vmatmul.mubr.f32.gmra.mxu0 %v3298
        %v7143 = vpop.f32.mrf.mxu0
        %v7144 = vadd.f32 0.0, %v7143
        %v7145 = vpop.f32.mrf.mxu0
        %v7146 = vadd.f32 0.0, %v7145
        %7147 = vmatprep.mubr.f32.mxu0 %v3301
        %7148 = vmatmul.mubr.f32.gmra.mxu0 %v3300
        %v7149 = vpop.f32.mrf.mxu0
        %v7150 = vadd.f32 0.0, %v7149
        %v7151 = vpop.f32.mrf.mxu0
        %v7152 = vadd.f32 0.0, %v7151
        %7153 = vmatprep.mubr.f32.mxu0 %v3303
        %7154 = vmatmul.mubr.f32.gmra.mxu0 %v3302
        %v7155 = vpop.f32.mrf.mxu0
        %v7156 = vadd.f32 0.0, %v7155
        %v7157 = vpop.f32.mrf.mxu0
        %v7158 = vadd.f32 0.0, %v7157
        %7159 = vmatprep.mubr.f32.mxu0 %v3305
        %7160 = vmatmul.mubr.f32.gmra.mxu0 %v3304
        %v7161 = vpop.f32.mrf.mxu0
        %v7162 = vadd.f32 0.0, %v7161
        %v7163 = vpop.f32.mrf.mxu0
        %v7164 = vadd.f32 0.0, %v7163
        %7165 = vmatprep.mubr.f32.mxu0 %v3307
        %7166 = vmatmul.mubr.f32.gmra.mxu0 %v3306
        %v7167 = vpop.f32.mrf.mxu0
        %v7168 = vadd.f32 0.0, %v7167
        %v7169 = vpop.f32.mrf.mxu0
        %v7170 = vadd.f32 0.0, %v7169
        %7171 = vmatprep.mubr.f32.mxu0 %v3309
        %7172 = vmatmul.mubr.f32.gmra.mxu0 %v3308
        %v7173 = vpop.f32.mrf.mxu0
        %v7174 = vadd.f32 0.0, %v7173
        %v7175 = vpop.f32.mrf.mxu0
        %v7176 = vadd.f32 0.0, %v7175
        %7177 = vmatprep.mubr.f32.mxu0 %v3311
        %7178 = vmatmul.mubr.f32.gmra.mxu0 %v3310
        %v7179 = vpop.f32.mrf.mxu0
        %v7180 = vadd.f32 0.0, %v7179
        %v7181 = vpop.f32.mrf.mxu0
        %v7182 = vadd.f32 0.0, %v7181
        %7183 = vmatprep.mubr.f32.mxu0 %v3313
        %7184 = vmatmul.mubr.f32.gmra.mxu0 %v3312
        %v7185 = vpop.f32.mrf.mxu0
        %v7186 = vadd.f32 0.0, %v7185
        %v7187 = vpop.f32.mrf.mxu0
        %v7188 = vadd.f32 0.0, %v7187
        %7189 = vmatprep.mubr.f32.mxu0 %v3315
        %7190 = vmatmul.mubr.f32.gmra.mxu0 %v3314
        %v7191 = vpop.f32.mrf.mxu0
        %v7192 = vadd.f32 0.0, %v7191
        %v7193 = vpop.f32.mrf.mxu0
        %v7194 = vadd.f32 0.0, %v7193
        %7195 = vmatprep.mubr.f32.mxu0 %v3317
        %7196 = vmatmul.mubr.f32.gmra.mxu0 %v3316
        %v7197 = vpop.f32.mrf.mxu0
        %v7198 = vadd.f32 0.0, %v7197
        %v7199 = vpop.f32.mrf.mxu0
        %v7200 = vadd.f32 0.0, %v7199
        %7201 = vmatprep.mubr.f32.mxu0 %v3319
        %7202 = vmatmul.mubr.f32.gmra.mxu0 %v3318
        %v7203 = vpop.f32.mrf.mxu0
        %v7204 = vadd.f32 0.0, %v7203
        %v7205 = vpop.f32.mrf.mxu0
        %v7206 = vadd.f32 0.0, %v7205
        %7207 = vmatprep.mubr.f32.mxu0 %v3321
        %7208 = vmatmul.mubr.f32.gmra.mxu0 %v3320
        %v7209 = vpop.f32.mrf.mxu0
        %v7210 = vadd.f32 0.0, %v7209
        %v7211 = vpop.f32.mrf.mxu0
        %v7212 = vadd.f32 0.0, %v7211
        %7213 = vmatprep.mubr.f32.mxu0 %v3323
        %7214 = vmatmul.mubr.f32.gmra.mxu0 %v3322
        %v7215 = vpop.f32.mrf.mxu0
        %v7216 = vadd.f32 0.0, %v7215
        %v7217 = vpop.f32.mrf.mxu0
        %v7218 = vadd.f32 0.0, %v7217
        %7219 = vmatprep.mubr.f32.mxu0 %v3325
        %7220 = vmatmul.mubr.f32.gmra.mxu0 %v3324
        %v7221 = vpop.f32.mrf.mxu0
        %v7222 = vadd.f32 0.0, %v7221
        %v7223 = vpop.f32.mrf.mxu0
        %v7224 = vadd.f32 0.0, %v7223
        %7225 = vmatprep.mubr.f32.mxu0 %v3327
        %7226 = vmatmul.mubr.f32.gmra.mxu0 %v3326
        %v7227 = vpop.f32.mrf.mxu0
        %v7228 = vadd.f32 0.0, %v7227
        %v7229 = vpop.f32.mrf.mxu0
        %v7230 = vadd.f32 0.0, %v7229
        %7231 = vmatprep.mubr.f32.mxu0 %v3329
        %7232 = vmatmul.mubr.f32.gmra.mxu0 %v3328
        %v7233 = vpop.f32.mrf.mxu0
        %v7234 = vadd.f32 0.0, %v7233
        %v7235 = vpop.f32.mrf.mxu0
        %v7236 = vadd.f32 0.0, %v7235
        %7237 = vmatprep.mubr.f32.mxu0 %v3331
        %7238 = vmatmul.mubr.f32.gmra.mxu0 %v3330
        %v7239 = vpop.f32.mrf.mxu0
        %v7240 = vadd.f32 0.0, %v7239
        %v7241 = vpop.f32.mrf.mxu0
        %v7242 = vadd.f32 0.0, %v7241
        %7243 = vmatprep.mubr.f32.mxu0 %v3333
        %7244 = vmatmul.mubr.f32.gmra.mxu0 %v3332
        %v7245 = vpop.f32.mrf.mxu0
        %v7246 = vadd.f32 0.0, %v7245
        %v7247 = vpop.f32.mrf.mxu0
        %v7248 = vadd.f32 0.0, %v7247
        %7249 = vmatprep.mubr.f32.mxu0 %v3335
        %7250 = vmatmul.mubr.f32.gmra.mxu0 %v3334
        %v7251 = vpop.f32.mrf.mxu0
        %v7252 = vadd.f32 0.0, %v7251
        %v7253 = vpop.f32.mrf.mxu0
        %v7254 = vadd.f32 0.0, %v7253
        %7255 = vmatprep.mubr.f32.mxu0 %v3337
        %7256 = vmatmul.mubr.f32.gmra.mxu0 %v3336
        %v7257 = vpop.f32.mrf.mxu0
        %v7258 = vadd.f32 0.0, %v7257
        %v7259 = vpop.f32.mrf.mxu0
        %v7260 = vadd.f32 0.0, %v7259
        %7261 = vmatprep.mubr.f32.mxu0 %v3339
        %7262 = vmatmul.mubr.f32.gmra.mxu0 %v3338
        %v7263 = vpop.f32.mrf.mxu0
        %v7264 = vadd.f32 0.0, %v7263
        %v7265 = vpop.f32.mrf.mxu0
        %v7266 = vadd.f32 0.0, %v7265
        %7267 = vmatprep.mubr.f32.mxu0 %v3341
        %7268 = vmatmul.mubr.f32.gmra.mxu0 %v3340
        %v7269 = vpop.f32.mrf.mxu0
        %v7270 = vadd.f32 0.0, %v7269
        %v7271 = vpop.f32.mrf.mxu0
        %v7272 = vadd.f32 0.0, %v7271
        %7273 = vmatprep.mubr.f32.mxu0 %v3343
        %7274 = vmatmul.mubr.f32.gmra.mxu0 %v3342
        %v7275 = vpop.f32.mrf.mxu0
        %v7276 = vadd.f32 0.0, %v7275
        %v7277 = vpop.f32.mrf.mxu0
        %v7278 = vadd.f32 0.0, %v7277
        %7279 = vmatprep.mubr.f32.mxu0 %v3345
        %7280 = vmatmul.mubr.f32.gmra.mxu0 %v3344
        %v7281 = vpop.f32.mrf.mxu0
        %v7282 = vadd.f32 0.0, %v7281
        %v7283 = vpop.f32.mrf.mxu0
        %v7284 = vadd.f32 0.0, %v7283
        %7285 = vmatprep.mubr.f32.mxu0 %v3347
        %7286 = vmatmul.mubr.f32.gmra.mxu0 %v3346
        %v7287 = vpop.f32.mrf.mxu0
        %v7288 = vadd.f32 0.0, %v7287
        %v7289 = vpop.f32.mrf.mxu0
        %v7290 = vadd.f32 0.0, %v7289
        %7291 = vmatprep.mubr.f32.mxu0 %v3349
        %7292 = vmatmul.mubr.f32.gmra.mxu0 %v3348
        %v7293 = vpop.f32.mrf.mxu0
        %v7294 = vadd.f32 0.0, %v7293
        %v7295 = vpop.f32.mrf.mxu0
        %v7296 = vadd.f32 0.0, %v7295
        %7297 = vmatprep.mubr.f32.mxu0 %v3351
        %7298 = vmatmul.mubr.f32.gmra.mxu0 %v3350
        %v7299 = vpop.f32.mrf.mxu0
        %v7300 = vadd.f32 0.0, %v7299
        %v7301 = vpop.f32.mrf.mxu0
        %v7302 = vadd.f32 0.0, %v7301
        %7303 = vmatprep.mubr.f32.mxu0 %v3353
        %7304 = vmatmul.mubr.f32.gmra.mxu0 %v3352
        %v7305 = vpop.f32.mrf.mxu0
        %v7306 = vadd.f32 0.0, %v7305
        %v7307 = vpop.f32.mrf.mxu0
        %v7308 = vadd.f32 0.0, %v7307
        %7309 = vmatprep.mubr.f32.mxu0 %v3355
        %7310 = vmatmul.mubr.f32.gmra.mxu0 %v3354
        %v7311 = vpop.f32.mrf.mxu0
        %v7312 = vadd.f32 0.0, %v7311
        %v7313 = vpop.f32.mrf.mxu0
        %v7314 = vadd.f32 0.0, %v7313
        %7315 = vdwg.mxu0
        %v7316 = vmul.f32 %v5327, %v6355
        %v7317 = vmul.f32 %v5329, %v6357
        %v7318 = vmul.f32 %v5584, %v6612
        %v7319 = vmul.f32 %v5586, %v6614
        %v7320 = vmul.f32 %v5841, %v6869
        %v7321 = vmul.f32 %v5843, %v6871
        %v7322 = vmul.f32 %v6098, %v7126
        %v7323 = vmul.f32 %v6100, %v7128
        %v7324 = vmul.f32 %v5333, %v6361
        %v7325 = vmul.f32 %v5335, %v6363
        %v7326 = vmul.f32 %v5590, %v6618
        %v7327 = vmul.f32 %v5592, %v6620
        %v7328 = vmul.f32 %v5847, %v6875
        %v7329 = vmul.f32 %v5849, %v6877
        %v7330 = vmul.f32 %v6104, %v7132
        %v7331 = vmul.f32 %v6106, %v7134
        %v7332 = vmul.f32 %v5339, %v6367
        %v7333 = vmul.f32 %v5341, %v6369
        %v7334 = vmul.f32 %v5596, %v6624
        %v7335 = vmul.f32 %v5598, %v6626
        %v7336 = vmul.f32 %v5853, %v6881
        %v7337 = vmul.f32 %v5855, %v6883
        %v7338 = vmul.f32 %v6110, %v7138
        %v7339 = vmul.f32 %v6112, %v7140
        %v7340 = vmul.f32 %v5345, %v6373
        %v7341 = vmul.f32 %v5347, %v6375
        %v7342 = vmul.f32 %v5602, %v6630
        %v7343 = vmul.f32 %v5604, %v6632
        %v7344 = vmul.f32 %v5859, %v6887
        %v7345 = vmul.f32 %v5861, %v6889
        %v7346 = vmul.f32 %v6116, %v7144
        %v7347 = vmul.f32 %v6118, %v7146
        %v7348 = vmul.f32 %v5351, %v6379
        %v7349 = vmul.f32 %v5353, %v6381
        %v7350 = vmul.f32 %v5608, %v6636
        %v7351 = vmul.f32 %v5610, %v6638
        %v7352 = vmul.f32 %v5865, %v6893
        %v7353 = vmul.f32 %v5867, %v6895
        %v7354 = vmul.f32 %v6122, %v7150
        %v7355 = vmul.f32 %v6124, %v7152
        %v7356 = vmul.f32 %v5357, %v6385
        %v7357 = vmul.f32 %v5359, %v6387
        %v7358 = vmul.f32 %v5614, %v6642
        %v7359 = vmul.f32 %v5616, %v6644
        %v7360 = vmul.f32 %v5871, %v6899
        %v7361 = vmul.f32 %v5873, %v6901
        %v7362 = vmul.f32 %v6128, %v7156
        %v7363 = vmul.f32 %v6130, %v7158
        %v7364 = vmul.f32 %v5363, %v6391
        %v7365 = vmul.f32 %v5365, %v6393
        %v7366 = vmul.f32 %v5620, %v6648
        %v7367 = vmul.f32 %v5622, %v6650
        %v7368 = vmul.f32 %v5877, %v6905
        %v7369 = vmul.f32 %v5879, %v6907
        %v7370 = vmul.f32 %v6134, %v7162
        %v7371 = vmul.f32 %v6136, %v7164
        %v7372 = vmul.f32 %v5369, %v6397
        %v7373 = vmul.f32 %v5371, %v6399
        %v7374 = vmul.f32 %v5626, %v6654
        %v7375 = vmul.f32 %v5628, %v6656
        %v7376 = vmul.f32 %v5883, %v6911
        %v7377 = vmul.f32 %v5885, %v6913
        %v7378 = vmul.f32 %v6140, %v7168
        %v7379 = vmul.f32 %v6142, %v7170
        %v7380 = vmul.f32 %v5375, %v6403
        %v7381 = vmul.f32 %v5377, %v6405
        %v7382 = vmul.f32 %v5632, %v6660
        %v7383 = vmul.f32 %v5634, %v6662
        %v7384 = vmul.f32 %v5889, %v6917
        %v7385 = vmul.f32 %v5891, %v6919
        %v7386 = vmul.f32 %v6146, %v7174
        %v7387 = vmul.f32 %v6148, %v7176
        %v7388 = vmul.f32 %v5381, %v6409
        %v7389 = vmul.f32 %v5383, %v6411
        %v7390 = vmul.f32 %v5638, %v6666
        %v7391 = vmul.f32 %v5640, %v6668
        %v7392 = vmul.f32 %v5895, %v6923
        %v7393 = vmul.f32 %v5897, %v6925
        %v7394 = vmul.f32 %v6152, %v7180
        %v7395 = vmul.f32 %v6154, %v7182
        %v7396 = vmul.f32 %v5387, %v6415
        %v7397 = vmul.f32 %v5389, %v6417
        %v7398 = vmul.f32 %v5644, %v6672
        %v7399 = vmul.f32 %v5646, %v6674
        %v7400 = vmul.f32 %v5901, %v6929
        %v7401 = vmul.f32 %v5903, %v6931
        %v7402 = vmul.f32 %v6158, %v7186
        %v7403 = vmul.f32 %v6160, %v7188
        %v7404 = vmul.f32 %v5393, %v6421
        %v7405 = vmul.f32 %v5395, %v6423
        %v7406 = vmul.f32 %v5650, %v6678
        %v7407 = vmul.f32 %v5652, %v6680
        %v7408 = vmul.f32 %v5907, %v6935
        %v7409 = vmul.f32 %v5909, %v6937
        %v7410 = vmul.f32 %v6164, %v7192
        %v7411 = vmul.f32 %v6166, %v7194
        %v7412 = vmul.f32 %v5399, %v6427
        %v7413 = vmul.f32 %v5401, %v6429
        %v7414 = vmul.f32 %v5656, %v6684
        %v7415 = vmul.f32 %v5658, %v6686
        %v7416 = vmul.f32 %v5913, %v6941
        %v7417 = vmul.f32 %v5915, %v6943
        %v7418 = vmul.f32 %v6170, %v7198
        %v7419 = vmul.f32 %v6172, %v7200
        %v7420 = vmul.f32 %v5405, %v6433
        %v7421 = vmul.f32 %v5407, %v6435
        %v7422 = vmul.f32 %v5662, %v6690
        %v7423 = vmul.f32 %v5664, %v6692
        %v7424 = vmul.f32 %v5919, %v6947
        %v7425 = vmul.f32 %v5921, %v6949
        %v7426 = vmul.f32 %v6176, %v7204
        %v7427 = vmul.f32 %v6178, %v7206
        %v7428 = vmul.f32 %v5411, %v6439
        %v7429 = vmul.f32 %v5413, %v6441
        %v7430 = vmul.f32 %v5668, %v6696
        %v7431 = vmul.f32 %v5670, %v6698
        %v7432 = vmul.f32 %v5925, %v6953
        %v7433 = vmul.f32 %v5927, %v6955
        %v7434 = vmul.f32 %v6182, %v7210
        %v7435 = vmul.f32 %v6184, %v7212
        %v7436 = vmul.f32 %v5417, %v6445
        %v7437 = vmul.f32 %v5419, %v6447
        %v7438 = vmul.f32 %v5674, %v6702
        %v7439 = vmul.f32 %v5676, %v6704
        %v7440 = vmul.f32 %v5931, %v6959
        %v7441 = vmul.f32 %v5933, %v6961
        %v7442 = vmul.f32 %v6188, %v7216
        %v7443 = vmul.f32 %v6190, %v7218
        %v7444 = vmul.f32 %v5423, %v6451
        %v7445 = vmul.f32 %v5425, %v6453
        %v7446 = vmul.f32 %v5680, %v6708
        %v7447 = vmul.f32 %v5682, %v6710
        %v7448 = vmul.f32 %v5937, %v6965
        %v7449 = vmul.f32 %v5939, %v6967
        %v7450 = vmul.f32 %v6194, %v7222
        %v7451 = vmul.f32 %v6196, %v7224
        %v7452 = vmul.f32 %v5429, %v6457
        %v7453 = vmul.f32 %v5431, %v6459
        %v7454 = vmul.f32 %v5686, %v6714
        %v7455 = vmul.f32 %v5688, %v6716
        %v7456 = vmul.f32 %v5943, %v6971
        %v7457 = vmul.f32 %v5945, %v6973
        %v7458 = vmul.f32 %v6200, %v7228
        %v7459 = vmul.f32 %v6202, %v7230
        %v7460 = vmul.f32 %v5435, %v6463
        %v7461 = vmul.f32 %v5437, %v6465
        %v7462 = vmul.f32 %v5692, %v6720
        %v7463 = vmul.f32 %v5694, %v6722
        %v7464 = vmul.f32 %v5949, %v6977
        %v7465 = vmul.f32 %v5951, %v6979
        %v7466 = vmul.f32 %v6206, %v7234
        %v7467 = vmul.f32 %v6208, %v7236
        %v7468 = vmul.f32 %v5441, %v6469
        %v7469 = vmul.f32 %v5443, %v6471
        %v7470 = vmul.f32 %v5698, %v6726
        %v7471 = vmul.f32 %v5700, %v6728
        %v7472 = vmul.f32 %v5955, %v6983
        %v7473 = vmul.f32 %v5957, %v6985
        %v7474 = vmul.f32 %v6212, %v7240
        %v7475 = vmul.f32 %v6214, %v7242
        %v7476 = vmul.f32 %v5447, %v6475
        %v7477 = vmul.f32 %v5449, %v6477
        %v7478 = vmul.f32 %v5704, %v6732
        %v7479 = vmul.f32 %v5706, %v6734
        %v7480 = vmul.f32 %v5961, %v6989
        %v7481 = vmul.f32 %v5963, %v6991
        %v7482 = vmul.f32 %v6218, %v7246
        %v7483 = vmul.f32 %v6220, %v7248
        %v7484 = vmul.f32 %v5453, %v6481
        %v7485 = vmul.f32 %v5455, %v6483
        %v7486 = vmul.f32 %v5710, %v6738
        %v7487 = vmul.f32 %v5712, %v6740
        %v7488 = vmul.f32 %v5967, %v6995
        %v7489 = vmul.f32 %v5969, %v6997
        %v7490 = vmul.f32 %v6224, %v7252
        %v7491 = vmul.f32 %v6226, %v7254
        %v7492 = vmul.f32 %v5459, %v6487
        %v7493 = vmul.f32 %v5461, %v6489
        %v7494 = vmul.f32 %v5716, %v6744
        %v7495 = vmul.f32 %v5718, %v6746
        %v7496 = vmul.f32 %v5973, %v7001
        %v7497 = vmul.f32 %v5975, %v7003
        %v7498 = vmul.f32 %v6230, %v7258
        %v7499 = vmul.f32 %v6232, %v7260
        %v7500 = vmul.f32 %v5465, %v6493
        %v7501 = vmul.f32 %v5467, %v6495
        %v7502 = vmul.f32 %v5722, %v6750
        %v7503 = vmul.f32 %v5724, %v6752
        %v7504 = vmul.f32 %v5979, %v7007
        %v7505 = vmul.f32 %v5981, %v7009
        %v7506 = vmul.f32 %v6236, %v7264
        %v7507 = vmul.f32 %v6238, %v7266
        %v7508 = vmul.f32 %v5471, %v6499
        %v7509 = vmul.f32 %v5473, %v6501
        %v7510 = vmul.f32 %v5728, %v6756
        %v7511 = vmul.f32 %v5730, %v6758
        %v7512 = vmul.f32 %v5985, %v7013
        %v7513 = vmul.f32 %v5987, %v7015
        %v7514 = vmul.f32 %v6242, %v7270
        %v7515 = vmul.f32 %v6244, %v7272
        %v7516 = vmul.f32 %v5477, %v6505
        %v7517 = vmul.f32 %v5479, %v6507
        %v7518 = vmul.f32 %v5734, %v6762
        %v7519 = vmul.f32 %v5736, %v6764
        %v7520 = vmul.f32 %v5991, %v7019
        %v7521 = vmul.f32 %v5993, %v7021
        %v7522 = vmul.f32 %v6248, %v7276
        %v7523 = vmul.f32 %v6250, %v7278
        %v7524 = vmul.f32 %v5483, %v6511
        %v7525 = vmul.f32 %v5485, %v6513
        %v7526 = vmul.f32 %v5740, %v6768
        %v7527 = vmul.f32 %v5742, %v6770
        %v7528 = vmul.f32 %v5997, %v7025
        %v7529 = vmul.f32 %v5999, %v7027
        %v7530 = vmul.f32 %v6254, %v7282
        %v7531 = vmul.f32 %v6256, %v7284
        %v7532 = vmul.f32 %v5489, %v6517
        %v7533 = vmul.f32 %v5491, %v6519
        %v7534 = vmul.f32 %v5746, %v6774
        %v7535 = vmul.f32 %v5748, %v6776
        %v7536 = vmul.f32 %v6003, %v7031
        %v7537 = vmul.f32 %v6005, %v7033
        %v7538 = vmul.f32 %v6260, %v7288
        %v7539 = vmul.f32 %v6262, %v7290
        %v7540 = vmul.f32 %v5495, %v6523
        %v7541 = vmul.f32 %v5497, %v6525
        %v7542 = vmul.f32 %v5752, %v6780
        %v7543 = vmul.f32 %v5754, %v6782
        %v7544 = vmul.f32 %v6009, %v7037
        %v7545 = vmul.f32 %v6011, %v7039
        %v7546 = vmul.f32 %v6266, %v7294
        %v7547 = vmul.f32 %v6268, %v7296
        %v7548 = vmul.f32 %v5501, %v6529
        %v7549 = vmul.f32 %v5503, %v6531
        %v7550 = vmul.f32 %v5758, %v6786
        %v7551 = vmul.f32 %v5760, %v6788
        %v7552 = vmul.f32 %v6015, %v7043
        %v7553 = vmul.f32 %v6017, %v7045
        %v7554 = vmul.f32 %v6272, %v7300
        %v7555 = vmul.f32 %v6274, %v7302
        %v7556 = vmul.f32 %v5507, %v6535
        %v7557 = vmul.f32 %v5509, %v6537
        %v7558 = vmul.f32 %v5764, %v6792
        %v7559 = vmul.f32 %v5766, %v6794
        %v7560 = vmul.f32 %v6021, %v7049
        %v7561 = vmul.f32 %v6023, %v7051
        %v7562 = vmul.f32 %v6278, %v7306
        %v7563 = vmul.f32 %v6280, %v7308
        %v7564 = vmul.f32 %v5513, %v6541
        %v7565 = vmul.f32 %v5515, %v6543
        %v7566 = vmul.f32 %v5770, %v6798
        %v7567 = vmul.f32 %v5772, %v6800
        %v7568 = vmul.f32 %v6027, %v7055
        %v7569 = vmul.f32 %v6029, %v7057
        %v7570 = vmul.f32 %v6284, %v7312
        %v7571 = vmul.f32 %v6286, %v7314
        %v7572 = vadd.f32 %v7316, %v7317
        %v7573 = vadd.f32 %v7324, %v7325
        %v7574 = vadd.f32 %v7332, %v7333
        %v7575 = vadd.f32 %v7340, %v7341
        %v7576 = vadd.f32 %v7348, %v7349
        %v7577 = vadd.f32 %v7356, %v7357
        %v7578 = vadd.f32 %v7364, %v7365
        %v7579 = vadd.f32 %v7372, %v7373
        %v7580 = vadd.f32 %v7380, %v7381
        %v7581 = vadd.f32 %v7388, %v7389
        %v7582 = vadd.f32 %v7396, %v7397
        %v7583 = vadd.f32 %v7404, %v7405
        %v7584 = vadd.f32 %v7412, %v7413
        %v7585 = vadd.f32 %v7420, %v7421
        %v7586 = vadd.f32 %v7428, %v7429
        %v7587 = vadd.f32 %v7436, %v7437
        %v7588 = vadd.f32 %v7444, %v7445
        %v7589 = vadd.f32 %v7452, %v7453
        %v7590 = vadd.f32 %v7460, %v7461
        %v7591 = vadd.f32 %v7468, %v7469
        %v7592 = vadd.f32 %v7476, %v7477
        %v7593 = vadd.f32 %v7484, %v7485
        %v7594 = vadd.f32 %v7492, %v7493
        %v7595 = vadd.f32 %v7500, %v7501
        %v7596 = vadd.f32 %v7508, %v7509
        %v7597 = vadd.f32 %v7516, %v7517
        %v7598 = vadd.f32 %v7524, %v7525
        %v7599 = vadd.f32 %v7532, %v7533
        %v7600 = vadd.f32 %v7540, %v7541
        %v7601 = vadd.f32 %v7548, %v7549
        %v7602 = vadd.f32 %v7556, %v7557
        %v7603 = vadd.f32 %v7564, %v7565
        %v7604 = vadd.f32 %v7318, %v7319
        %v7605 = vadd.f32 %v7326, %v7327
        %v7606 = vadd.f32 %v7334, %v7335
        %v7607 = vadd.f32 %v7342, %v7343
        %v7608 = vadd.f32 %v7350, %v7351
        %v7609 = vadd.f32 %v7358, %v7359
        %v7610 = vadd.f32 %v7366, %v7367
        %v7611 = vadd.f32 %v7374, %v7375
        %v7612 = vadd.f32 %v7382, %v7383
        %v7613 = vadd.f32 %v7390, %v7391
        %v7614 = vadd.f32 %v7398, %v7399
        %v7615 = vadd.f32 %v7406, %v7407
        %v7616 = vadd.f32 %v7414, %v7415
        %v7617 = vadd.f32 %v7422, %v7423
        %v7618 = vadd.f32 %v7430, %v7431
        %v7619 = vadd.f32 %v7438, %v7439
        %v7620 = vadd.f32 %v7446, %v7447
        %v7621 = vadd.f32 %v7454, %v7455
        %v7622 = vadd.f32 %v7462, %v7463
        %v7623 = vadd.f32 %v7470, %v7471
        %v7624 = vadd.f32 %v7478, %v7479
        %v7625 = vadd.f32 %v7486, %v7487
        %v7626 = vadd.f32 %v7494, %v7495
        %v7627 = vadd.f32 %v7502, %v7503
        %v7628 = vadd.f32 %v7510, %v7511
        %v7629 = vadd.f32 %v7518, %v7519
        %v7630 = vadd.f32 %v7526, %v7527
        %v7631 = vadd.f32 %v7534, %v7535
        %v7632 = vadd.f32 %v7542, %v7543
        %v7633 = vadd.f32 %v7550, %v7551
        %v7634 = vadd.f32 %v7558, %v7559
        %v7635 = vadd.f32 %v7566, %v7567
        %v7636 = vadd.f32 %v7320, %v7321
        %v7637 = vadd.f32 %v7328, %v7329
        %v7638 = vadd.f32 %v7336, %v7337
        %v7639 = vadd.f32 %v7344, %v7345
        %v7640 = vadd.f32 %v7352, %v7353
        %v7641 = vadd.f32 %v7360, %v7361
        %v7642 = vadd.f32 %v7368, %v7369
        %v7643 = vadd.f32 %v7376, %v7377
        %v7644 = vadd.f32 %v7384, %v7385
        %v7645 = vadd.f32 %v7392, %v7393
        %v7646 = vadd.f32 %v7400, %v7401
        %v7647 = vadd.f32 %v7408, %v7409
        %v7648 = vadd.f32 %v7416, %v7417
        %v7649 = vadd.f32 %v7424, %v7425
        %v7650 = vadd.f32 %v7432, %v7433
        %v7651 = vadd.f32 %v7440, %v7441
        %v7652 = vadd.f32 %v7448, %v7449
        %v7653 = vadd.f32 %v7456, %v7457
        %v7654 = vadd.f32 %v7464, %v7465
        %v7655 = vadd.f32 %v7472, %v7473
        %v7656 = vadd.f32 %v7480, %v7481
        %v7657 = vadd.f32 %v7488, %v7489
        %v7658 = vadd.f32 %v7496, %v7497
        %v7659 = vadd.f32 %v7504, %v7505
        %v7660 = vadd.f32 %v7512, %v7513
        %v7661 = vadd.f32 %v7520, %v7521
        %v7662 = vadd.f32 %v7528, %v7529
        %v7663 = vadd.f32 %v7536, %v7537
        %v7664 = vadd.f32 %v7544, %v7545
        %v7665 = vadd.f32 %v7552, %v7553
        %v7666 = vadd.f32 %v7560, %v7561
        %v7667 = vadd.f32 %v7568, %v7569
        %v7668 = vadd.f32 %v7322, %v7323
        %v7669 = vadd.f32 %v7330, %v7331
        %v7670 = vadd.f32 %v7338, %v7339
        %v7671 = vadd.f32 %v7346, %v7347
        %v7672 = vadd.f32 %v7354, %v7355
        %v7673 = vadd.f32 %v7362, %v7363
        %v7674 = vadd.f32 %v7370, %v7371
        %v7675 = vadd.f32 %v7378, %v7379
        %v7676 = vadd.f32 %v7386, %v7387
        %v7677 = vadd.f32 %v7394, %v7395
        %v7678 = vadd.f32 %v7402, %v7403
        %v7679 = vadd.f32 %v7410, %v7411
        %v7680 = vadd.f32 %v7418, %v7419
        %v7681 = vadd.f32 %v7426, %v7427
        %v7682 = vadd.f32 %v7434, %v7435
        %v7683 = vadd.f32 %v7442, %v7443
        %v7684 = vadd.f32 %v7450, %v7451
        %v7685 = vadd.f32 %v7458, %v7459
        %v7686 = vadd.f32 %v7466, %v7467
        %v7687 = vadd.f32 %v7474, %v7475
        %v7688 = vadd.f32 %v7482, %v7483
        %v7689 = vadd.f32 %v7490, %v7491
        %v7690 = vadd.f32 %v7498, %v7499
        %v7691 = vadd.f32 %v7506, %v7507
        %v7692 = vadd.f32 %v7514, %v7515
        %v7693 = vadd.f32 %v7522, %v7523
        %v7694 = vadd.f32 %v7530, %v7531
        %v7695 = vadd.f32 %v7538, %v7539
        %v7696 = vadd.f32 %v7546, %v7547
        %v7697 = vadd.f32 %v7554, %v7555
        %v7698 = vadd.f32 %v7562, %v7563
        %v7699 = vadd.f32 %v7570, %v7571
        %v7700 = vadd.f32 %v7572, %v7604
        %v7701 = vadd.f32 %v7573, %v7605
        %v7702 = vadd.f32 %v7574, %v7606
        %v7703 = vadd.f32 %v7575, %v7607
        %v7704 = vadd.f32 %v7576, %v7608
        %v7705 = vadd.f32 %v7577, %v7609
        %v7706 = vadd.f32 %v7578, %v7610
        %v7707 = vadd.f32 %v7579, %v7611
        %v7708 = vadd.f32 %v7580, %v7612
        %v7709 = vadd.f32 %v7581, %v7613
        %v7710 = vadd.f32 %v7582, %v7614
        %v7711 = vadd.f32 %v7583, %v7615
        %v7712 = vadd.f32 %v7584, %v7616
        %v7713 = vadd.f32 %v7585, %v7617
        %v7714 = vadd.f32 %v7586, %v7618
        %v7715 = vadd.f32 %v7587, %v7619
        %v7716 = vadd.f32 %v7588, %v7620
        %v7717 = vadd.f32 %v7589, %v7621
        %v7718 = vadd.f32 %v7590, %v7622
        %v7719 = vadd.f32 %v7591, %v7623
        %v7720 = vadd.f32 %v7592, %v7624
        %v7721 = vadd.f32 %v7593, %v7625
        %v7722 = vadd.f32 %v7594, %v7626
        %v7723 = vadd.f32 %v7595, %v7627
        %v7724 = vadd.f32 %v7596, %v7628
        %v7725 = vadd.f32 %v7597, %v7629
        %v7726 = vadd.f32 %v7598, %v7630
        %v7727 = vadd.f32 %v7599, %v7631
        %v7728 = vadd.f32 %v7600, %v7632
        %v7729 = vadd.f32 %v7601, %v7633
        %v7730 = vadd.f32 %v7602, %v7634
        %v7731 = vadd.f32 %v7603, %v7635
        %v7732 = vadd.f32 %v7636, %v7668
        %v7733 = vadd.f32 %v7637, %v7669
        %v7734 = vadd.f32 %v7638, %v7670
        %v7735 = vadd.f32 %v7639, %v7671
        %v7736 = vadd.f32 %v7640, %v7672
        %v7737 = vadd.f32 %v7641, %v7673
        %v7738 = vadd.f32 %v7642, %v7674
        %v7739 = vadd.f32 %v7643, %v7675
        %v7740 = vadd.f32 %v7644, %v7676
        %v7741 = vadd.f32 %v7645, %v7677
        %v7742 = vadd.f32 %v7646, %v7678
        %v7743 = vadd.f32 %v7647, %v7679
        %v7744 = vadd.f32 %v7648, %v7680
        %v7745 = vadd.f32 %v7649, %v7681
        %v7746 = vadd.f32 %v7650, %v7682
        %v7747 = vadd.f32 %v7651, %v7683
        %v7748 = vadd.f32 %v7652, %v7684
        %v7749 = vadd.f32 %v7653, %v7685
        %v7750 = vadd.f32 %v7654, %v7686
        %v7751 = vadd.f32 %v7655, %v7687
        %v7752 = vadd.f32 %v7656, %v7688
        %v7753 = vadd.f32 %v7657, %v7689
        %v7754 = vadd.f32 %v7658, %v7690
        %v7755 = vadd.f32 %v7659, %v7691
        %v7756 = vadd.f32 %v7660, %v7692
        %v7757 = vadd.f32 %v7661, %v7693
        %v7758 = vadd.f32 %v7662, %v7694
        %v7759 = vadd.f32 %v7663, %v7695
        %v7760 = vadd.f32 %v7664, %v7696
        %v7761 = vadd.f32 %v7665, %v7697
        %v7762 = vadd.f32 %v7666, %v7698
        %v7763 = vadd.f32 %v7667, %v7699
        %v7764 = vadd.f32 %v7700, %v7732
        %v7765 = vadd.f32 %v7701, %v7733
        %v7766 = vadd.f32 %v7702, %v7734
        %v7767 = vadd.f32 %v7703, %v7735
        %v7768 = vadd.f32 %v7704, %v7736
        %v7769 = vadd.f32 %v7705, %v7737
        %v7770 = vadd.f32 %v7706, %v7738
        %v7771 = vadd.f32 %v7707, %v7739
        %v7772 = vadd.f32 %v7708, %v7740
        %v7773 = vadd.f32 %v7709, %v7741
        %v7774 = vadd.f32 %v7710, %v7742
        %v7775 = vadd.f32 %v7711, %v7743
        %v7776 = vadd.f32 %v7712, %v7744
        %v7777 = vadd.f32 %v7713, %v7745
        %v7778 = vadd.f32 %v7714, %v7746
        %v7779 = vadd.f32 %v7715, %v7747
        %v7780 = vadd.f32 %v7716, %v7748
        %v7781 = vadd.f32 %v7717, %v7749
        %v7782 = vadd.f32 %v7718, %v7750
        %v7783 = vadd.f32 %v7719, %v7751
        %v7784 = vadd.f32 %v7720, %v7752
        %v7785 = vadd.f32 %v7721, %v7753
        %v7786 = vadd.f32 %v7722, %v7754
        %v7787 = vadd.f32 %v7723, %v7755
        %v7788 = vadd.f32 %v7724, %v7756
        %v7789 = vadd.f32 %v7725, %v7757
        %v7790 = vadd.f32 %v7726, %v7758
        %v7791 = vadd.f32 %v7727, %v7759
        %v7792 = vadd.f32 %v7728, %v7760
        %v7793 = vadd.f32 %v7729, %v7761
        %v7794 = vadd.f32 %v7730, %v7762
        %v7795 = vadd.f32 %v7731, %v7763
        %7796 = vmatprep.subr.mxu0 0.0
        %7797 = vmatpush1.msra.mxu0 %v529
        %7798 = vmatprep.subr.mxu0 0.0
        %7799 = vmatpush1.msra.mxu0 %v528
        %7800 = vmatprep.subr.mxu0 0.0
        %7801 = vmatpush1.msra.mxu0 %v527
        %7802 = vmatprep.subr.mxu0 0.0
        %7803 = vmatpush1.msra.mxu0 %v526
        %7804 = vmatprep.subr.mxu0 0.0
        %7805 = vmatpush1.msra.mxu0 %v525
        %7806 = vmatprep.subr.mxu0 0.0
        %7807 = vmatpush1.msra.mxu0 %v524
        %7808 = vmatprep.subr.mxu0 0.0
        %7809 = vmatpush1.msra.mxu0 %v523
        %7810 = vmatprep.subr.mxu0 0.0
        %7811 = vmatpush1.msra.mxu0 %v522
        %7812 = vmatprep.subr.mxu0 0.0
        %7813 = vmatpush1.msra.mxu0 %v521
        %7814 = vmatprep.subr.mxu0 0.0
        %7815 = vmatpush1.msra.mxu0 %v520
        %7816 = vmatprep.subr.mxu0 0.0
        %7817 = vmatpush1.msra.mxu0 %v519
        %7818 = vmatprep.subr.mxu0 0.0
        %7819 = vmatpush1.msra.mxu0 %v518
        %7820 = vmatprep.subr.mxu0 0.0
        %7821 = vmatpush1.msra.mxu0 %v517
        %7822 = vmatprep.subr.mxu0 0.0
        %7823 = vmatpush1.msra.mxu0 %v516
        %7824 = vmatprep.subr.mxu0 0.0
        %7825 = vmatpush1.msra.mxu0 %v515
        %7826 = vmatprep.subr.mxu0 0.0
        %7827 = vmatpush1.msra.mxu0 %v514
        %7828 = vmatprep.subr.mxu0 0.0
        %7829 = vmatpush2.msra.mxu0 0.0
        %7830 = vmatprep.subr.mxu0 0.0
        %7831 = vmatpush2.msra.mxu0 0.0
        %7832 = vmatprep.subr.mxu0 0.0
        %7833 = vmatpush2.msra.mxu0 0.0
        %7834 = vmatprep.subr.mxu0 0.0
        %7835 = vmatpush2.msra.mxu0 0.0
        %7836 = vmatprep.subr.mxu0 0.0
        %7837 = vmatpush2.msra.mxu0 0.0
        %7838 = vmatprep.subr.mxu0 0.0
        %7839 = vmatpush2.msra.mxu0 0.0
        %7840 = vmatprep.subr.mxu0 0.0
        %7841 = vmatpush2.msra.mxu0 0.0
        %7842 = vmatprep.subr.mxu0 0.0
        %7843 = vmatpush2.msra.mxu0 0.0
        %7844 = vmatprep.subr.mxu0 0.0
        %7845 = vmatpush2.msra.mxu0 0.0
        %7846 = vmatprep.subr.mxu0 0.0
        %7847 = vmatpush2.msra.mxu0 0.0
        %7848 = vmatprep.subr.mxu0 0.0
        %7849 = vmatpush2.msra.mxu0 0.0
        %7850 = vmatprep.subr.mxu0 0.0
        %7851 = vmatpush2.msra.mxu0 0.0
        %7852 = vmatprep.subr.mxu0 0.0
        %7853 = vmatpush2.msra.mxu0 0.0
        %7854 = vmatprep.subr.mxu0 0.0
        %7855 = vmatpush2.msra.mxu0 0.0
        %7856 = vmatprep.subr.mxu0 0.0
        %7857 = vmatpush2.msra.mxu0 0.0
        %7858 = vmatprep.subr.mxu0 0.0
        %7859 = vmatpush2.msra.mxu0 0.0
        %7860 = vmatprep.mubr.f32.mxu0 0.0
        %7861 = vmatmul.mubr.f32.gmra.mxu0 %v7764
        %v7862 = vpop.f32.mrf.mxu0
        %v7863 = vadd.f32 %v1010, %v7862
        %v7864 = vpop.f32.mrf.mxu0
        %7865 = vmatprep.mubr.f32.mxu0 0.0
        %7866 = vmatmul.mubr.f32.gmra.mxu0 %v7765
        %v7867 = vpop.f32.mrf.mxu0
        %v7868 = vadd.f32 %v1010, %v7867
        %v7869 = vpop.f32.mrf.mxu0
        %7870 = vmatprep.mubr.f32.mxu0 0.0
        %7871 = vmatmul.mubr.f32.gmra.mxu0 %v7766
        %v7872 = vpop.f32.mrf.mxu0
        %v7873 = vadd.f32 %v1010, %v7872
        %v7874 = vpop.f32.mrf.mxu0
        %7875 = vmatprep.mubr.f32.mxu0 0.0
        %7876 = vmatmul.mubr.f32.gmra.mxu0 %v7767
        %v7877 = vpop.f32.mrf.mxu0
        %v7878 = vadd.f32 %v1010, %v7877
        %v7879 = vpop.f32.mrf.mxu0
        %7880 = vmatprep.mubr.f32.mxu0 0.0
        %7881 = vmatmul.mubr.f32.gmra.mxu0 %v7768
        %v7882 = vpop.f32.mrf.mxu0
        %v7883 = vadd.f32 %v1010, %v7882
        %v7884 = vpop.f32.mrf.mxu0
        %7885 = vmatprep.mubr.f32.mxu0 0.0
        %7886 = vmatmul.mubr.f32.gmra.mxu0 %v7769
        %v7887 = vpop.f32.mrf.mxu0
        %v7888 = vadd.f32 %v1010, %v7887
        %v7889 = vpop.f32.mrf.mxu0
        %7890 = vmatprep.mubr.f32.mxu0 0.0
        %7891 = vmatmul.mubr.f32.gmra.mxu0 %v7770
        %v7892 = vpop.f32.mrf.mxu0
        %v7893 = vadd.f32 %v1010, %v7892
        %v7894 = vpop.f32.mrf.mxu0
        %7895 = vmatprep.mubr.f32.mxu0 0.0
        %7896 = vmatmul.mubr.f32.gmra.mxu0 %v7771
        %v7897 = vpop.f32.mrf.mxu0
        %v7898 = vadd.f32 %v1010, %v7897
        %v7899 = vpop.f32.mrf.mxu0
        %7900 = vmatprep.mubr.f32.mxu0 0.0
        %7901 = vmatmul.mubr.f32.gmra.mxu0 %v7772
        %v7902 = vpop.f32.mrf.mxu0
        %v7903 = vadd.f32 %v1010, %v7902
        %v7904 = vpop.f32.mrf.mxu0
        %7905 = vmatprep.mubr.f32.mxu0 0.0
        %7906 = vmatmul.mubr.f32.gmra.mxu0 %v7773
        %v7907 = vpop.f32.mrf.mxu0
        %v7908 = vadd.f32 %v1010, %v7907
        %v7909 = vpop.f32.mrf.mxu0
        %7910 = vmatprep.mubr.f32.mxu0 0.0
        %7911 = vmatmul.mubr.f32.gmra.mxu0 %v7774
        %v7912 = vpop.f32.mrf.mxu0
        %v7913 = vadd.f32 %v1010, %v7912
        %v7914 = vpop.f32.mrf.mxu0
        %7915 = vmatprep.mubr.f32.mxu0 0.0
        %7916 = vmatmul.mubr.f32.gmra.mxu0 %v7775
        %v7917 = vpop.f32.mrf.mxu0
        %v7918 = vadd.f32 %v1010, %v7917
        %v7919 = vpop.f32.mrf.mxu0
        %7920 = vmatprep.mubr.f32.mxu0 0.0
        %7921 = vmatmul.mubr.f32.gmra.mxu0 %v7776
        %v7922 = vpop.f32.mrf.mxu0
        %v7923 = vadd.f32 %v1010, %v7922
        %v7924 = vpop.f32.mrf.mxu0
        %7925 = vmatprep.mubr.f32.mxu0 0.0
        %7926 = vmatmul.mubr.f32.gmra.mxu0 %v7777
        %v7927 = vpop.f32.mrf.mxu0
        %v7928 = vadd.f32 %v1010, %v7927
        %v7929 = vpop.f32.mrf.mxu0
        %7930 = vmatprep.mubr.f32.mxu0 0.0
        %7931 = vmatmul.mubr.f32.gmra.mxu0 %v7778
        %v7932 = vpop.f32.mrf.mxu0
        %v7933 = vadd.f32 %v1010, %v7932
        %v7934 = vpop.f32.mrf.mxu0
        %7935 = vmatprep.mubr.f32.mxu0 0.0
        %7936 = vmatmul.mubr.f32.gmra.mxu0 %v7779
        %v7937 = vpop.f32.mrf.mxu0
        %v7938 = vadd.f32 %v1010, %v7937
        %v7939 = vpop.f32.mrf.mxu0
        %7940 = vmatprep.mubr.f32.mxu0 0.0
        %7941 = vmatmul.mubr.f32.gmra.mxu0 %v7780
        %v7942 = vpop.f32.mrf.mxu0
        %v7943 = vadd.f32 %v1010, %v7942
        %v7944 = vpop.f32.mrf.mxu0
        %7945 = vmatprep.mubr.f32.mxu0 0.0
        %7946 = vmatmul.mubr.f32.gmra.mxu0 %v7781
        %v7947 = vpop.f32.mrf.mxu0
        %v7948 = vadd.f32 %v1010, %v7947
        %v7949 = vpop.f32.mrf.mxu0
        %7950 = vmatprep.mubr.f32.mxu0 0.0
        %7951 = vmatmul.mubr.f32.gmra.mxu0 %v7782
        %v7952 = vpop.f32.mrf.mxu0
        %v7953 = vadd.f32 %v1010, %v7952
        %v7954 = vpop.f32.mrf.mxu0
        %7955 = vmatprep.mubr.f32.mxu0 0.0
        %7956 = vmatmul.mubr.f32.gmra.mxu0 %v7783
        %v7957 = vpop.f32.mrf.mxu0
        %v7958 = vadd.f32 %v1010, %v7957
        %v7959 = vpop.f32.mrf.mxu0
        %7960 = vmatprep.mubr.f32.mxu0 0.0
        %7961 = vmatmul.mubr.f32.gmra.mxu0 %v7784
        %v7962 = vpop.f32.mrf.mxu0
        %v7963 = vadd.f32 %v1010, %v7962
        %v7964 = vpop.f32.mrf.mxu0
        %7965 = vmatprep.mubr.f32.mxu0 0.0
        %7966 = vmatmul.mubr.f32.gmra.mxu0 %v7785
        %v7967 = vpop.f32.mrf.mxu0
        %v7968 = vadd.f32 %v1010, %v7967
        %v7969 = vpop.f32.mrf.mxu0
        %7970 = vmatprep.mubr.f32.mxu0 0.0
        %7971 = vmatmul.mubr.f32.gmra.mxu0 %v7786
        %v7972 = vpop.f32.mrf.mxu0
        %v7973 = vadd.f32 %v1010, %v7972
        %v7974 = vpop.f32.mrf.mxu0
        %7975 = vmatprep.mubr.f32.mxu0 0.0
        %7976 = vmatmul.mubr.f32.gmra.mxu0 %v7787
        %v7977 = vpop.f32.mrf.mxu0
        %v7978 = vadd.f32 %v1010, %v7977
        %v7979 = vpop.f32.mrf.mxu0
        %7980 = vmatprep.mubr.f32.mxu0 0.0
        %7981 = vmatmul.mubr.f32.gmra.mxu0 %v7788
        %v7982 = vpop.f32.mrf.mxu0
        %v7983 = vadd.f32 %v1010, %v7982
        %v7984 = vpop.f32.mrf.mxu0
        %7985 = vmatprep.mubr.f32.mxu0 0.0
        %7986 = vmatmul.mubr.f32.gmra.mxu0 %v7789
        %v7987 = vpop.f32.mrf.mxu0
        %v7988 = vadd.f32 %v1010, %v7987
        %v7989 = vpop.f32.mrf.mxu0
        %7990 = vmatprep.mubr.f32.mxu0 0.0
        %7991 = vmatmul.mubr.f32.gmra.mxu0 %v7790
        %v7992 = vpop.f32.mrf.mxu0
        %v7993 = vadd.f32 %v1010, %v7992
        %v7994 = vpop.f32.mrf.mxu0
        %7995 = vmatprep.mubr.f32.mxu0 0.0
        %7996 = vmatmul.mubr.f32.gmra.mxu0 %v7791
        %v7997 = vpop.f32.mrf.mxu0
        %v7998 = vadd.f32 %v1010, %v7997
        %v7999 = vpop.f32.mrf.mxu0
        %8000 = vmatprep.mubr.f32.mxu0 0.0
        %8001 = vmatmul.mubr.f32.gmra.mxu0 %v7792
        %v8002 = vpop.f32.mrf.mxu0
        %v8003 = vadd.f32 %v1010, %v8002
        %v8004 = vpop.f32.mrf.mxu0
        %8005 = vmatprep.mubr.f32.mxu0 0.0
        %8006 = vmatmul.mubr.f32.gmra.mxu0 %v7793
        %v8007 = vpop.f32.mrf.mxu0
        %v8008 = vadd.f32 %v1010, %v8007
        %v8009 = vpop.f32.mrf.mxu0
        %8010 = vmatprep.mubr.f32.mxu0 0.0
        %8011 = vmatmul.mubr.f32.gmra.mxu0 %v7794
        %v8012 = vpop.f32.mrf.mxu0
        %v8013 = vadd.f32 %v1010, %v8012
        %v8014 = vpop.f32.mrf.mxu0
        %8015 = vmatprep.mubr.f32.mxu0 0.0
        %8016 = vmatmul.mubr.f32.gmra.mxu0 %v7795
        %v8017 = vpop.f32.mrf.mxu0
        %v8018 = vadd.f32 %v1010, %v8017
        %v8019 = vpop.f32.mrf.mxu0
        %8020 = vdwg.mxu0
        %v8021 = vmax.f32 %v7863, 0.0
        %v8022 = vmax.f32 %v7868, 0.0
        %v8023 = vmax.f32 %v7873, 0.0
        %v8024 = vmax.f32 %v7878, 0.0
        %v8025 = vmax.f32 %v7883, 0.0
        %v8026 = vmax.f32 %v7888, 0.0
        %v8027 = vmax.f32 %v7893, 0.0
        %v8028 = vmax.f32 %v7898, 0.0
        %v8029 = vmax.f32 %v7903, 0.0
        %v8030 = vmax.f32 %v7908, 0.0
        %v8031 = vmax.f32 %v7913, 0.0
        %v8032 = vmax.f32 %v7918, 0.0
        %v8033 = vmax.f32 %v7923, 0.0
        %v8034 = vmax.f32 %v7928, 0.0
        %v8035 = vmax.f32 %v7933, 0.0
        %v8036 = vmax.f32 %v7938, 0.0
        %v8037 = vmax.f32 %v7943, 0.0
        %v8038 = vmax.f32 %v7948, 0.0
        %v8039 = vmax.f32 %v7953, 0.0
        %v8040 = vmax.f32 %v7958, 0.0
        %v8041 = vmax.f32 %v7963, 0.0
        %v8042 = vmax.f32 %v7968, 0.0
        %v8043 = vmax.f32 %v7973, 0.0
        %v8044 = vmax.f32 %v7978, 0.0
        %v8045 = vmax.f32 %v7983, 0.0
        %v8046 = vmax.f32 %v7988, 0.0
        %v8047 = vmax.f32 %v7993, 0.0
        %v8048 = vmax.f32 %v7998, 0.0
        %v8049 = vmax.f32 %v8003, 0.0
        %v8050 = vmax.f32 %v8008, 0.0
        %v8051 = vmax.f32 %v8013, 0.0
        %v8052 = vmax.f32 %v8018, 0.0
        %v8053 = vsel %vm1013, %v8021, 0.0
        %8054 = vadd.xlane.f32.xlu0 %v8053
        %v8055 = vpop.xlane.xlu0 %8054
        %v8056 = vsel %vm1013, %v8022, 0.0
        %8057 = vadd.xlane.f32.xlu0 %v8056
        %v8058 = vpop.xlane.xlu0 %8057
        %v8059 = vsel %vm1013, %v8023, 0.0
        %8060 = vadd.xlane.f32.xlu0 %v8059
        %v8061 = vpop.xlane.xlu0 %8060
        %v8062 = vsel %vm1013, %v8024, 0.0
        %8063 = vadd.xlane.f32.xlu0 %v8062
        %v8064 = vpop.xlane.xlu0 %8063
        %v8065 = vsel %vm1013, %v8025, 0.0
        %8066 = vadd.xlane.f32.xlu0 %v8065
        %v8067 = vpop.xlane.xlu0 %8066
        %v8068 = vsel %vm1013, %v8026, 0.0
        %8069 = vadd.xlane.f32.xlu0 %v8068
        %v8070 = vpop.xlane.xlu0 %8069
        %v8071 = vsel %vm1013, %v8027, 0.0
        %8072 = vadd.xlane.f32.xlu0 %v8071
        %v8073 = vpop.xlane.xlu0 %8072
        %v8074 = vsel %vm1013, %v8028, 0.0
        %8075 = vadd.xlane.f32.xlu0 %v8074
        %v8076 = vpop.xlane.xlu0 %8075
        %v8077 = vsel %vm1013, %v8029, 0.0
        %8078 = vadd.xlane.f32.xlu0 %v8077
        %v8079 = vpop.xlane.xlu0 %8078
        %v8080 = vsel %vm1013, %v8030, 0.0
        %8081 = vadd.xlane.f32.xlu0 %v8080
        %v8082 = vpop.xlane.xlu0 %8081
        %v8083 = vsel %vm1013, %v8031, 0.0
        %8084 = vadd.xlane.f32.xlu0 %v8083
        %v8085 = vpop.xlane.xlu0 %8084
        %v8086 = vsel %vm1013, %v8032, 0.0
        %8087 = vadd.xlane.f32.xlu0 %v8086
        %v8088 = vpop.xlane.xlu0 %8087
        %v8089 = vsel %vm1013, %v8033, 0.0
        %8090 = vadd.xlane.f32.xlu0 %v8089
        %v8091 = vpop.xlane.xlu0 %8090
        %v8092 = vsel %vm1013, %v8034, 0.0
        %8093 = vadd.xlane.f32.xlu0 %v8092
        %v8094 = vpop.xlane.xlu0 %8093
        %v8095 = vsel %vm1013, %v8035, 0.0
        %8096 = vadd.xlane.f32.xlu0 %v8095
        %v8097 = vpop.xlane.xlu0 %8096
        %v8098 = vsel %vm1013, %v8036, 0.0
        %8099 = vadd.xlane.f32.xlu0 %v8098
        %v8100 = vpop.xlane.xlu0 %8099
        %v8101 = vsel %vm1013, %v8037, 0.0
        %8102 = vadd.xlane.f32.xlu0 %v8101
        %v8103 = vpop.xlane.xlu0 %8102
        %v8104 = vsel %vm1013, %v8038, 0.0
        %8105 = vadd.xlane.f32.xlu0 %v8104
        %v8106 = vpop.xlane.xlu0 %8105
        %v8107 = vsel %vm1013, %v8039, 0.0
        %8108 = vadd.xlane.f32.xlu0 %v8107
        %v8109 = vpop.xlane.xlu0 %8108
        %v8110 = vsel %vm1013, %v8040, 0.0
        %8111 = vadd.xlane.f32.xlu0 %v8110
        %v8112 = vpop.xlane.xlu0 %8111
        %v8113 = vsel %vm1013, %v8041, 0.0
        %8114 = vadd.xlane.f32.xlu0 %v8113
        %v8115 = vpop.xlane.xlu0 %8114
        %v8116 = vsel %vm1013, %v8042, 0.0
        %8117 = vadd.xlane.f32.xlu0 %v8116
        %v8118 = vpop.xlane.xlu0 %8117
        %v8119 = vsel %vm1013, %v8043, 0.0
        %8120 = vadd.xlane.f32.xlu0 %v8119
        %v8121 = vpop.xlane.xlu0 %8120
        %v8122 = vsel %vm1013, %v8044, 0.0
        %8123 = vadd.xlane.f32.xlu0 %v8122
        %v8124 = vpop.xlane.xlu0 %8123
        %v8125 = vsel %vm1013, %v8045, 0.0
        %8126 = vadd.xlane.f32.xlu0 %v8125
        %v8127 = vpop.xlane.xlu0 %8126
        %v8128 = vsel %vm1013, %v8046, 0.0
        %8129 = vadd.xlane.f32.xlu0 %v8128
        %v8130 = vpop.xlane.xlu0 %8129
        %v8131 = vsel %vm1013, %v8047, 0.0
        %8132 = vadd.xlane.f32.xlu0 %v8131
        %v8133 = vpop.xlane.xlu0 %8132
        %v8134 = vsel %vm1013, %v8048, 0.0
        %8135 = vadd.xlane.f32.xlu0 %v8134
        %v8136 = vpop.xlane.xlu0 %8135
        %v8137 = vsel %vm1013, %v8049, 0.0
        %8138 = vadd.xlane.f32.xlu0 %v8137
        %v8139 = vpop.xlane.xlu0 %8138
        %v8140 = vsel %vm1013, %v8050, 0.0
        %8141 = vadd.xlane.f32.xlu0 %v8140
        %v8142 = vpop.xlane.xlu0 %8141
        %v8143 = vsel %vm1013, %v8051, 0.0
        %8144 = vadd.xlane.f32.xlu0 %v8143
        %v8145 = vpop.xlane.xlu0 %8144
        %v8146 = vsel %vm1013, %v8052, 0.0
        %8147 = vadd.xlane.f32.xlu0 %v8146
        %v8148 = vpop.xlane.xlu0 %8147
        %v8149 = vrcp.pop 32.0
        %v8150 = vmul.f32 %v8055, %v8149
        %v8151 = vmul.f32 %v8058, %v8149
        %v8152 = vmul.f32 %v8061, %v8149
        %v8153 = vmul.f32 %v8064, %v8149
        %v8154 = vmul.f32 %v8067, %v8149
        %v8155 = vmul.f32 %v8070, %v8149
        %v8156 = vmul.f32 %v8073, %v8149
        %v8157 = vmul.f32 %v8076, %v8149
        %v8158 = vmul.f32 %v8079, %v8149
        %v8159 = vmul.f32 %v8082, %v8149
        %v8160 = vmul.f32 %v8085, %v8149
        %v8161 = vmul.f32 %v8088, %v8149
        %v8162 = vmul.f32 %v8091, %v8149
        %v8163 = vmul.f32 %v8094, %v8149
        %v8164 = vmul.f32 %v8097, %v8149
        %v8165 = vmul.f32 %v8100, %v8149
        %v8166 = vmul.f32 %v8103, %v8149
        %v8167 = vmul.f32 %v8106, %v8149
        %v8168 = vmul.f32 %v8109, %v8149
        %v8169 = vmul.f32 %v8112, %v8149
        %v8170 = vmul.f32 %v8115, %v8149
        %v8171 = vmul.f32 %v8118, %v8149
        %v8172 = vmul.f32 %v8121, %v8149
        %v8173 = vmul.f32 %v8124, %v8149
        %v8174 = vmul.f32 %v8127, %v8149
        %v8175 = vmul.f32 %v8130, %v8149
        %v8176 = vmul.f32 %v8133, %v8149
        %v8177 = vmul.f32 %v8136, %v8149
        %v8178 = vmul.f32 %v8139, %v8149
        %v8179 = vmul.f32 %v8142, %v8149
        %v8180 = vmul.f32 %v8145, %v8149
        %v8181 = vmul.f32 %v8148, %v8149
        %v8182 = vsub.f32 %v8021, %v8150
        %v8183 = vsub.f32 %v8022, %v8151
        %v8184 = vsub.f32 %v8023, %v8152
        %v8185 = vsub.f32 %v8024, %v8153
        %v8186 = vsub.f32 %v8025, %v8154
        %v8187 = vsub.f32 %v8026, %v8155
        %v8188 = vsub.f32 %v8027, %v8156
        %v8189 = vsub.f32 %v8028, %v8157
        %v8190 = vsub.f32 %v8029, %v8158
        %v8191 = vsub.f32 %v8030, %v8159
        %v8192 = vsub.f32 %v8031, %v8160
        %v8193 = vsub.f32 %v8032, %v8161
        %v8194 = vsub.f32 %v8033, %v8162
        %v8195 = vsub.f32 %v8034, %v8163
        %v8196 = vsub.f32 %v8035, %v8164
        %v8197 = vsub.f32 %v8036, %v8165
        %v8198 = vsub.f32 %v8037, %v8166
        %v8199 = vsub.f32 %v8038, %v8167
        %v8200 = vsub.f32 %v8039, %v8168
        %v8201 = vsub.f32 %v8040, %v8169
        %v8202 = vsub.f32 %v8041, %v8170
        %v8203 = vsub.f32 %v8042, %v8171
        %v8204 = vsub.f32 %v8043, %v8172
        %v8205 = vsub.f32 %v8044, %v8173
        %v8206 = vsub.f32 %v8045, %v8174
        %v8207 = vsub.f32 %v8046, %v8175
        %v8208 = vsub.f32 %v8047, %v8176
        %v8209 = vsub.f32 %v8048, %v8177
        %v8210 = vsub.f32 %v8049, %v8178
        %v8211 = vsub.f32 %v8050, %v8179
        %v8212 = vsub.f32 %v8051, %v8180
        %v8213 = vsub.f32 %v8052, %v8181
        %v8214 = vmul.f32 %v8182, %v8182
        %v8215 = vmul.f32 %v8183, %v8183
        %v8216 = vmul.f32 %v8184, %v8184
        %v8217 = vmul.f32 %v8185, %v8185
        %v8218 = vmul.f32 %v8186, %v8186
        %v8219 = vmul.f32 %v8187, %v8187
        %v8220 = vmul.f32 %v8188, %v8188
        %v8221 = vmul.f32 %v8189, %v8189
        %v8222 = vmul.f32 %v8190, %v8190
        %v8223 = vmul.f32 %v8191, %v8191
        %v8224 = vmul.f32 %v8192, %v8192
        %v8225 = vmul.f32 %v8193, %v8193
        %v8226 = vmul.f32 %v8194, %v8194
        %v8227 = vmul.f32 %v8195, %v8195
        %v8228 = vmul.f32 %v8196, %v8196
        %v8229 = vmul.f32 %v8197, %v8197
        %v8230 = vmul.f32 %v8198, %v8198
        %v8231 = vmul.f32 %v8199, %v8199
        %v8232 = vmul.f32 %v8200, %v8200
        %v8233 = vmul.f32 %v8201, %v8201
        %v8234 = vmul.f32 %v8202, %v8202
        %v8235 = vmul.f32 %v8203, %v8203
        %v8236 = vmul.f32 %v8204, %v8204
        %v8237 = vmul.f32 %v8205, %v8205
        %v8238 = vmul.f32 %v8206, %v8206
        %v8239 = vmul.f32 %v8207, %v8207
        %v8240 = vmul.f32 %v8208, %v8208
        %v8241 = vmul.f32 %v8209, %v8209
        %v8242 = vmul.f32 %v8210, %v8210
        %v8243 = vmul.f32 %v8211, %v8211
        %v8244 = vmul.f32 %v8212, %v8212
        %v8245 = vmul.f32 %v8213, %v8213
        %v8246 = vsel %vm1013, %v8214, 0.0
        %8247 = vadd.xlane.f32.xlu0 %v8246
        %v8248 = vpop.xlane.xlu0 %8247
        %v8249 = vsel %vm1013, %v8215, 0.0
        %8250 = vadd.xlane.f32.xlu0 %v8249
        %v8251 = vpop.xlane.xlu0 %8250
        %v8252 = vsel %vm1013, %v8216, 0.0
        %8253 = vadd.xlane.f32.xlu0 %v8252
        %v8254 = vpop.xlane.xlu0 %8253
        %v8255 = vsel %vm1013, %v8217, 0.0
        %8256 = vadd.xlane.f32.xlu0 %v8255
        %v8257 = vpop.xlane.xlu0 %8256
        %v8258 = vsel %vm1013, %v8218, 0.0
        %8259 = vadd.xlane.f32.xlu0 %v8258
        %v8260 = vpop.xlane.xlu0 %8259
        %v8261 = vsel %vm1013, %v8219, 0.0
        %8262 = vadd.xlane.f32.xlu0 %v8261
        %v8263 = vpop.xlane.xlu0 %8262
        %v8264 = vsel %vm1013, %v8220, 0.0
        %8265 = vadd.xlane.f32.xlu0 %v8264
        %v8266 = vpop.xlane.xlu0 %8265
        %v8267 = vsel %vm1013, %v8221, 0.0
        %8268 = vadd.xlane.f32.xlu0 %v8267
        %v8269 = vpop.xlane.xlu0 %8268
        %v8270 = vsel %vm1013, %v8222, 0.0
        %8271 = vadd.xlane.f32.xlu0 %v8270
        %v8272 = vpop.xlane.xlu0 %8271
        %v8273 = vsel %vm1013, %v8223, 0.0
        %8274 = vadd.xlane.f32.xlu0 %v8273
        %v8275 = vpop.xlane.xlu0 %8274
        %v8276 = vsel %vm1013, %v8224, 0.0
        %8277 = vadd.xlane.f32.xlu0 %v8276
        %v8278 = vpop.xlane.xlu0 %8277
        %v8279 = vsel %vm1013, %v8225, 0.0
        %8280 = vadd.xlane.f32.xlu0 %v8279
        %v8281 = vpop.xlane.xlu0 %8280
        %v8282 = vsel %vm1013, %v8226, 0.0
        %8283 = vadd.xlane.f32.xlu0 %v8282
        %v8284 = vpop.xlane.xlu0 %8283
        %v8285 = vsel %vm1013, %v8227, 0.0
        %8286 = vadd.xlane.f32.xlu0 %v8285
        %v8287 = vpop.xlane.xlu0 %8286
        %v8288 = vsel %vm1013, %v8228, 0.0
        %8289 = vadd.xlane.f32.xlu0 %v8288
        %v8290 = vpop.xlane.xlu0 %8289
        %v8291 = vsel %vm1013, %v8229, 0.0
        %8292 = vadd.xlane.f32.xlu0 %v8291
        %v8293 = vpop.xlane.xlu0 %8292
        %v8294 = vsel %vm1013, %v8230, 0.0
        %8295 = vadd.xlane.f32.xlu0 %v8294
        %v8296 = vpop.xlane.xlu0 %8295
        %v8297 = vsel %vm1013, %v8231, 0.0
        %8298 = vadd.xlane.f32.xlu0 %v8297
        %v8299 = vpop.xlane.xlu0 %8298
        %v8300 = vsel %vm1013, %v8232, 0.0
        %8301 = vadd.xlane.f32.xlu0 %v8300
        %v8302 = vpop.xlane.xlu0 %8301
        %v8303 = vsel %vm1013, %v8233, 0.0
        %8304 = vadd.xlane.f32.xlu0 %v8303
        %v8305 = vpop.xlane.xlu0 %8304
        %v8306 = vsel %vm1013, %v8234, 0.0
        %8307 = vadd.xlane.f32.xlu0 %v8306
        %v8308 = vpop.xlane.xlu0 %8307
        %v8309 = vsel %vm1013, %v8235, 0.0
        %8310 = vadd.xlane.f32.xlu0 %v8309
        %v8311 = vpop.xlane.xlu0 %8310
        %v8312 = vsel %vm1013, %v8236, 0.0
        %8313 = vadd.xlane.f32.xlu0 %v8312
        %v8314 = vpop.xlane.xlu0 %8313
        %v8315 = vsel %vm1013, %v8237, 0.0
        %8316 = vadd.xlane.f32.xlu0 %v8315
        %v8317 = vpop.xlane.xlu0 %8316
        %v8318 = vsel %vm1013, %v8238, 0.0
        %8319 = vadd.xlane.f32.xlu0 %v8318
        %v8320 = vpop.xlane.xlu0 %8319
        %v8321 = vsel %vm1013, %v8239, 0.0
        %8322 = vadd.xlane.f32.xlu0 %v8321
        %v8323 = vpop.xlane.xlu0 %8322
        %v8324 = vsel %vm1013, %v8240, 0.0
        %8325 = vadd.xlane.f32.xlu0 %v8324
        %v8326 = vpop.xlane.xlu0 %8325
        %v8327 = vsel %vm1013, %v8241, 0.0
        %8328 = vadd.xlane.f32.xlu0 %v8327
        %v8329 = vpop.xlane.xlu0 %8328
        %v8330 = vsel %vm1013, %v8242, 0.0
        %8331 = vadd.xlane.f32.xlu0 %v8330
        %v8332 = vpop.xlane.xlu0 %8331
        %v8333 = vsel %vm1013, %v8243, 0.0
        %8334 = vadd.xlane.f32.xlu0 %v8333
        %v8335 = vpop.xlane.xlu0 %8334
        %v8336 = vsel %vm1013, %v8244, 0.0
        %8337 = vadd.xlane.f32.xlu0 %v8336
        %v8338 = vpop.xlane.xlu0 %8337
        %v8339 = vsel %vm1013, %v8245, 0.0
        %8340 = vadd.xlane.f32.xlu0 %v8339
        %v8341 = vpop.xlane.xlu0 %8340
        %v8342 = vmul.f32 %v8248, %v8149
        %v8343 = vmul.f32 %v8251, %v8149
        %v8344 = vmul.f32 %v8254, %v8149
        %v8345 = vmul.f32 %v8257, %v8149
        %v8346 = vmul.f32 %v8260, %v8149
        %v8347 = vmul.f32 %v8263, %v8149
        %v8348 = vmul.f32 %v8266, %v8149
        %v8349 = vmul.f32 %v8269, %v8149
        %v8350 = vmul.f32 %v8272, %v8149
        %v8351 = vmul.f32 %v8275, %v8149
        %v8352 = vmul.f32 %v8278, %v8149
        %v8353 = vmul.f32 %v8281, %v8149
        %v8354 = vmul.f32 %v8284, %v8149
        %v8355 = vmul.f32 %v8287, %v8149
        %v8356 = vmul.f32 %v8290, %v8149
        %v8357 = vmul.f32 %v8293, %v8149
        %v8358 = vmul.f32 %v8296, %v8149
        %v8359 = vmul.f32 %v8299, %v8149
        %v8360 = vmul.f32 %v8302, %v8149
        %v8361 = vmul.f32 %v8305, %v8149
        %v8362 = vmul.f32 %v8308, %v8149
        %v8363 = vmul.f32 %v8311, %v8149
        %v8364 = vmul.f32 %v8314, %v8149
        %v8365 = vmul.f32 %v8317, %v8149
        %v8366 = vmul.f32 %v8320, %v8149
        %v8367 = vmul.f32 %v8323, %v8149
        %v8368 = vmul.f32 %v8326, %v8149
        %v8369 = vmul.f32 %v8329, %v8149
        %v8370 = vmul.f32 %v8332, %v8149
        %v8371 = vmul.f32 %v8335, %v8149
        %v8372 = vmul.f32 %v8338, %v8149
        %v8373 = vmul.f32 %v8341, %v8149
        %v8374 = vadd.f32 %v8342, 1e-05
        %v8375 = vadd.f32 %v8343, 1e-05
        %v8376 = vadd.f32 %v8344, 1e-05
        %v8377 = vadd.f32 %v8345, 1e-05
        %v8378 = vadd.f32 %v8346, 1e-05
        %v8379 = vadd.f32 %v8347, 1e-05
        %v8380 = vadd.f32 %v8348, 1e-05
        %v8381 = vadd.f32 %v8349, 1e-05
        %v8382 = vadd.f32 %v8350, 1e-05
        %v8383 = vadd.f32 %v8351, 1e-05
        %v8384 = vadd.f32 %v8352, 1e-05
        %v8385 = vadd.f32 %v8353, 1e-05
        %v8386 = vadd.f32 %v8354, 1e-05
        %v8387 = vadd.f32 %v8355, 1e-05
        %v8388 = vadd.f32 %v8356, 1e-05
        %v8389 = vadd.f32 %v8357, 1e-05
        %v8390 = vadd.f32 %v8358, 1e-05
        %v8391 = vadd.f32 %v8359, 1e-05
        %v8392 = vadd.f32 %v8360, 1e-05
        %v8393 = vadd.f32 %v8361, 1e-05
        %v8394 = vadd.f32 %v8362, 1e-05
        %v8395 = vadd.f32 %v8363, 1e-05
        %v8396 = vadd.f32 %v8364, 1e-05
        %v8397 = vadd.f32 %v8365, 1e-05
        %v8398 = vadd.f32 %v8366, 1e-05
        %v8399 = vadd.f32 %v8367, 1e-05
        %v8400 = vadd.f32 %v8368, 1e-05
        %v8401 = vadd.f32 %v8369, 1e-05
        %v8402 = vadd.f32 %v8370, 1e-05
        %v8403 = vadd.f32 %v8371, 1e-05
        %v8404 = vadd.f32 %v8372, 1e-05
        %v8405 = vadd.f32 %v8373, 1e-05
        %v8406 = vrsqrt.pop %v8374
        %v8407 = vrsqrt.pop %v8375
        %v8408 = vrsqrt.pop %v8376
        %v8409 = vrsqrt.pop %v8377
        %v8410 = vrsqrt.pop %v8378
        %v8411 = vrsqrt.pop %v8379
        %v8412 = vrsqrt.pop %v8380
        %v8413 = vrsqrt.pop %v8381
        %v8414 = vrsqrt.pop %v8382
        %v8415 = vrsqrt.pop %v8383
        %v8416 = vrsqrt.pop %v8384
        %v8417 = vrsqrt.pop %v8385
        %v8418 = vrsqrt.pop %v8386
        %v8419 = vrsqrt.pop %v8387
        %v8420 = vrsqrt.pop %v8388
        %v8421 = vrsqrt.pop %v8389
        %v8422 = vrsqrt.pop %v8390
        %v8423 = vrsqrt.pop %v8391
        %v8424 = vrsqrt.pop %v8392
        %v8425 = vrsqrt.pop %v8393
        %v8426 = vrsqrt.pop %v8394
        %v8427 = vrsqrt.pop %v8395
        %v8428 = vrsqrt.pop %v8396
        %v8429 = vrsqrt.pop %v8397
        %v8430 = vrsqrt.pop %v8398
        %v8431 = vrsqrt.pop %v8399
        %v8432 = vrsqrt.pop %v8400
        %v8433 = vrsqrt.pop %v8401
        %v8434 = vrsqrt.pop %v8402
        %v8435 = vrsqrt.pop %v8403
        %v8436 = vrsqrt.pop %v8404
        %v8437 = vrsqrt.pop %v8405
        %v8438 = vmul.f32 %v8182, %v8406
        %v8439 = vmul.f32 %v8183, %v8407
        %v8440 = vmul.f32 %v8184, %v8408
        %v8441 = vmul.f32 %v8185, %v8409
        %v8442 = vmul.f32 %v8186, %v8410
        %v8443 = vmul.f32 %v8187, %v8411
        %v8444 = vmul.f32 %v8188, %v8412
        %v8445 = vmul.f32 %v8189, %v8413
        %v8446 = vmul.f32 %v8190, %v8414
        %v8447 = vmul.f32 %v8191, %v8415
        %v8448 = vmul.f32 %v8192, %v8416
        %v8449 = vmul.f32 %v8193, %v8417
        %v8450 = vmul.f32 %v8194, %v8418
        %v8451 = vmul.f32 %v8195, %v8419
        %v8452 = vmul.f32 %v8196, %v8420
        %v8453 = vmul.f32 %v8197, %v8421
        %v8454 = vmul.f32 %v8198, %v8422
        %v8455 = vmul.f32 %v8199, %v8423
        %v8456 = vmul.f32 %v8200, %v8424
        %v8457 = vmul.f32 %v8201, %v8425
        %v8458 = vmul.f32 %v8202, %v8426
        %v8459 = vmul.f32 %v8203, %v8427
        %v8460 = vmul.f32 %v8204, %v8428
        %v8461 = vmul.f32 %v8205, %v8429
        %v8462 = vmul.f32 %v8206, %v8430
        %v8463 = vmul.f32 %v8207, %v8431
        %v8464 = vmul.f32 %v8208, %v8432
        %v8465 = vmul.f32 %v8209, %v8433
        %v8466 = vmul.f32 %v8210, %v8434
        %v8467 = vmul.f32 %v8211, %v8435
        %v8468 = vmul.f32 %v8212, %v8436
        %v8469 = vmul.f32 %v8213, %v8437
        %v8470 = vmul.f32 %v8438, %v1011
        %v8471 = vmul.f32 %v8439, %v1011
        %v8472 = vmul.f32 %v8440, %v1011
        %v8473 = vmul.f32 %v8441, %v1011
        %v8474 = vmul.f32 %v8442, %v1011
        %v8475 = vmul.f32 %v8443, %v1011
        %v8476 = vmul.f32 %v8444, %v1011
        %v8477 = vmul.f32 %v8445, %v1011
        %v8478 = vmul.f32 %v8446, %v1011
        %v8479 = vmul.f32 %v8447, %v1011
        %v8480 = vmul.f32 %v8448, %v1011
        %v8481 = vmul.f32 %v8449, %v1011
        %v8482 = vmul.f32 %v8450, %v1011
        %v8483 = vmul.f32 %v8451, %v1011
        %v8484 = vmul.f32 %v8452, %v1011
        %v8485 = vmul.f32 %v8453, %v1011
        %v8486 = vmul.f32 %v8454, %v1011
        %v8487 = vmul.f32 %v8455, %v1011
        %v8488 = vmul.f32 %v8456, %v1011
        %v8489 = vmul.f32 %v8457, %v1011
        %v8490 = vmul.f32 %v8458, %v1011
        %v8491 = vmul.f32 %v8459, %v1011
        %v8492 = vmul.f32 %v8460, %v1011
        %v8493 = vmul.f32 %v8461, %v1011
        %v8494 = vmul.f32 %v8462, %v1011
        %v8495 = vmul.f32 %v8463, %v1011
        %v8496 = vmul.f32 %v8464, %v1011
        %v8497 = vmul.f32 %v8465, %v1011
        %v8498 = vmul.f32 %v8466, %v1011
        %v8499 = vmul.f32 %v8467, %v1011
        %v8500 = vmul.f32 %v8468, %v1011
        %v8501 = vmul.f32 %v8469, %v1011
        %v8502 = vadd.f32 %v8470, %v1012
        %v8503 = vadd.f32 %v8471, %v1012
        %v8504 = vadd.f32 %v8472, %v1012
        %v8505 = vadd.f32 %v8473, %v1012
        %v8506 = vadd.f32 %v8474, %v1012
        %v8507 = vadd.f32 %v8475, %v1012
        %v8508 = vadd.f32 %v8476, %v1012
        %v8509 = vadd.f32 %v8477, %v1012
        %v8510 = vadd.f32 %v8478, %v1012
        %v8511 = vadd.f32 %v8479, %v1012
        %v8512 = vadd.f32 %v8480, %v1012
        %v8513 = vadd.f32 %v8481, %v1012
        %v8514 = vadd.f32 %v8482, %v1012
        %v8515 = vadd.f32 %v8483, %v1012
        %v8516 = vadd.f32 %v8484, %v1012
        %v8517 = vadd.f32 %v8485, %v1012
        %v8518 = vadd.f32 %v8486, %v1012
        %v8519 = vadd.f32 %v8487, %v1012
        %v8520 = vadd.f32 %v8488, %v1012
        %v8521 = vadd.f32 %v8489, %v1012
        %v8522 = vadd.f32 %v8490, %v1012
        %v8523 = vadd.f32 %v8491, %v1012
        %v8524 = vadd.f32 %v8492, %v1012
        %v8525 = vadd.f32 %v8493, %v1012
        %v8526 = vadd.f32 %v8494, %v1012
        %v8527 = vadd.f32 %v8495, %v1012
        %v8528 = vadd.f32 %v8496, %v1012
        %v8529 = vadd.f32 %v8497, %v1012
        %v8530 = vadd.f32 %v8498, %v1012
        %v8531 = vadd.f32 %v8499, %v1012
        %v8532 = vadd.f32 %v8500, %v1012
        %v8533 = vadd.f32 %v8501, %v1012
        %8534 = vst.msk [vmem:[%s268] sm:$0xff] %vm1013, %v8502
        %8535 = vst.msk [vmem:[%s268 + $0x8] sm:$0xff] %vm1013, %v8503
        %8536 = vst.msk [vmem:[%s268 + $0x10] sm:$0xff] %vm1013, %v8504
        %8537 = vst.msk [vmem:[%s268 + $0x18] sm:$0xff] %vm1013, %v8505
        %8538 = vst.msk [vmem:[%s268 + $0x20] sm:$0xff] %vm1013, %v8506
        %8539 = vst.msk [vmem:[%s268 + $0x28] sm:$0xff] %vm1013, %v8507
        %8540 = vst.msk [vmem:[%s268 + $0x30] sm:$0xff] %vm1013, %v8508
        %8541 = vst.msk [vmem:[%s268 + $0x38] sm:$0xff] %vm1013, %v8509
        %8542 = vst.msk [vmem:[%s268 + $0x40] sm:$0xff] %vm1013, %v8510
        %8543 = vst.msk [vmem:[%s268 + $0x48] sm:$0xff] %vm1013, %v8511
        %8544 = vst.msk [vmem:[%s268 + $0x50] sm:$0xff] %vm1013, %v8512
        %8545 = vst.msk [vmem:[%s268 + $0x58] sm:$0xff] %vm1013, %v8513
        %8546 = vst.msk [vmem:[%s268 + $0x60] sm:$0xff] %vm1013, %v8514
        %8547 = vst.msk [vmem:[%s268 + $0x68] sm:$0xff] %vm1013, %v8515
        %8548 = vst.msk [vmem:[%s268 + $0x70] sm:$0xff] %vm1013, %v8516
        %8549 = vst.msk [vmem:[%s268 + $0x78] sm:$0xff] %vm1013, %v8517
        %8550 = vst.msk [vmem:[%s268 + $0x80] sm:$0xff] %vm1013, %v8518
        %8551 = vst.msk [vmem:[%s268 + $0x88] sm:$0xff] %vm1013, %v8519
        %8552 = vst.msk [vmem:[%s268 + $0x90] sm:$0xff] %vm1013, %v8520
        %8553 = vst.msk [vmem:[%s268 + $0x98] sm:$0xff] %vm1013, %v8521
        %8554 = vst.msk [vmem:[%s268 + $0xa0] sm:$0xff] %vm1013, %v8522
        %8555 = vst.msk [vmem:[%s268 + $0xa8] sm:$0xff] %vm1013, %v8523
        %8556 = vst.msk [vmem:[%s268 + $0xb0] sm:$0xff] %vm1013, %v8524
        %8557 = vst.msk [vmem:[%s268 + $0xb8] sm:$0xff] %vm1013, %v8525
        %8558 = vst.msk [vmem:[%s268 + $0xc0] sm:$0xff] %vm1013, %v8526
        %8559 = vst.msk [vmem:[%s268 + $0xc8] sm:$0xff] %vm1013, %v8527
        %8560 = vst.msk [vmem:[%s268 + $0xd0] sm:$0xff] %vm1013, %v8528
        %8561 = vst.msk [vmem:[%s268 + $0xd8] sm:$0xff] %vm1013, %v8529
        %8562 = vst.msk [vmem:[%s268 + $0xe0] sm:$0xff] %vm1013, %v8530
        %8563 = vst.msk [vmem:[%s268 + $0xe8] sm:$0xff] %vm1013, %v8531
        %8564 = vst.msk [vmem:[%s268 + $0xf0] sm:$0xff] %vm1013, %v8532
        %8565 = vst.msk [vmem:[%s268 + $0xf8] sm:$0xff] %vm1013, %v8533
        %s8566 = smul.u32 32, %s18
        %p8567 = scmp.lt.s32.totalorder %s8566, 63
        %s8568 = scalar_select %p8567, %s8566, 63
        %s8569 = smul.addr %s8568, 8
        %s8570 = scalar_lea.vmem %s6, %s8569
        // Predicated region
        $region49: #{tpu_custom_call.1} parent=43 // pred_check
          %p8571 = pneg %p167
        $region50: #{tpu_custom_call.1} parent=43 // pred_check_branch
          %8573 = sbr.rel (%p8571) target = $region52
        $region51: #{tpu_custom_call.1} parent=43 // pred_region
          %s8574 = smul.u32 32, %s18
        $region52: #{tpu_custom_call.1} parent=43 // pred_fallthru
          _
      $region44: #{tpu_custom_call.1} parent=5 // pred_fallthru
        _
      %p8575 = scmp.le.s32.totalorder 2, %s13
      // Predicated region
      $region53: #{tpu_custom_call.1} parent=5 // pred_check
        %p8576 = pneg %p8575
      $region54: #{tpu_custom_call.1} parent=5 // pred_check_branch
        %8578 = sbr.rel (%p8576) target = $region56
      $region55: #{tpu_custom_call.1} parent=5 // pred_region
        %s8579 = ssub.s32 %s13, 2
        // Predicated region
        $region57: #{tpu_custom_call.1} parent=55 // pred_check
          %p8580 = pneg %p173
        $region58: #{tpu_custom_call.1} parent=55 // pred_check_branch
          %8582 = sbr.rel (%p8580) target = $region60
        $region59: #{tpu_custom_call.1} parent=55 // pred_region
          %s8583 = smul.u32 32, %s19
          %p8584 = scmp.lt.s32.totalorder %s8583, 63
          %s8585 = scalar_select %p8584, %s8583, 63
          %s8586 = smul.addr %s8585, 8
          %s8587 = scalar_lea.vmem %s6, %s8586
        $region60: #{tpu_custom_call.1} parent=55 // pred_fallthru
          _
      $region56: #{tpu_custom_call.1} parent=5 // pred_fallthru
        _
    $region6: #{tpu_custom_call.1} parent=1 // loop_footer
      %s17 = sadd.s32 1, %s13
    $region7: #{tpu_custom_call.1} parent=1 // loop_footer_branch
      %12 = sbr.rel target = $region3
    $region8: #{tpu_custom_call.1} parent=1 // loop_exit
      _
    %8588 = vsyncpa [#allocation3], 1
    %s8589 = scalar_lea.sflag [#allocation3], 1
    %8590 = vsyncpa %s8589, 1

</llo_original>
